<compile_context>
chip_gen: v6e
topology: v6e:2x2x1
jax: 0.10.0
libtpu: 0.0.40
codegen_flags: <defaults>
</compile_context>

<pallas_src>
import jax
import jax.numpy as jnp
from jax import lax
from jax.experimental import pallas as pl
from jax.experimental.pallas import tpu as pltpu


_SQRT_2_OVER_PI = 0.7978845608028654


def _gelu_tanh(x):
    # TODO(synk): PyTorch nn.GELU() defaults to the exact erf form; the tanh
    # approximation is used here (and in the in-script reference) for robust
    # EUP-friendly lowering inside the kernel.
    return 0.5 * x * (1.0 + jnp.tanh(_SQRT_2_OVER_PI * (x + 0.044715 * x * x * x)))


# ----------------------------------------------------------------------------------
# Pallas kernel
# ----------------------------------------------------------------------------------
def _spatial_embedding_kernel(x_ref, w1_ref, b1_ref, sel1_ref,
                              w2_ref, b2_ref, sel2_ref,
                              wfc1_ref, bfc1_ref, wfc2_ref, bfc2_ref,
                              out_ref):
    f32 = jnp.float32
    tb = x_ref.shape[0]
    h, w = x_ref.shape[1] - 2, x_ref.shape[2] - 2          # un-padded spatial dims
    cin = x_ref.shape[3]
    c1 = w1_ref.shape[2]
    c2 = w2_ref.shape[2]
    h1, w1 = h // 2, w // 2                                 # after pool 1
    h2 = h // 4                                             # after pool 2
    wpad1 = sel1_ref.shape[1] // (tb * (h1 + 2))            # padded width fed to conv2

    x = x_ref[...]                                          # (tb, h+2, w+2, cin)

    # ---- conv1 (3x3, SAME) with folded BN1: 9 accumulated tap matmuls -------------
    a1 = jnp.zeros((tb * h * w, c1), f32)
    for k in range(9):
        di, dj = divmod(k, 3)
        patch = x[:, di:di + h, dj:dj + w, :].reshape(tb * h * w, cin)
        a1 = a1 + jnp.dot(patch, w1_ref[k], preferred_element_type=f32)
    g1 = _gelu_tanh(a1 + b1_ref[...])                       # (tb*h*w, c1)

    # ---- maxpool 3x3 / stride 2 / pad 1 --------------------------------------------
    # H direction: out_i = max(row 2i-1, 2i, 2i+1) via even/odd split (leading dims).
    g1 = g1.reshape(tb, h1, 2, w, c1)
    ev, od = g1[:, :, 0], g1[:, :, 1]
    od_up = jnp.concatenate(
        [jnp.full((tb, 1, w, c1), -jnp.inf, f32), od[:, :h1 - 1]], axis=1)
    hp1 = jnp.maximum(jnp.maximum(ev, od), od_up)           # (tb, h1, w, c1)
    hp1 = hp1.reshape(tb * h1 * w, c1)

    # W direction (+ zero padding for conv2) as max over three 0/1 selection matmuls.
    p1 = jnp.dot(sel1_ref[0], hp1, preferred_element_type=f32)
    p1 = jnp.maximum(p1, jnp.dot(sel1_ref[1], hp1, preferred_element_type=f32))
    p1 = jnp.maximum(p1, jnp.dot(sel1_ref[2], hp1, preferred_element_type=f32))
    p1 = p1.reshape(tb, h1 + 2, wpad1, c1)                  # zero-padded pooled act.

    # ---- conv2 (3x3, SAME) with folded BN2 ------------------------------------------
    a2 = jnp.zeros((tb * h1 * w1, c2), f32)
    for k in range(9):
        di, dj = divmod(k, 3)
        patch = p1[:, di:di + h1, dj:dj + w1, :].reshape(tb * h1 * w1, c1)
        a2 = a2 + jnp.dot(patch, w2_ref[k], preferred_element_type=f32)
    g2 = _gelu_tanh(a2 + b2_ref[...])                       # (tb*h1*w1, c2)

    # ---- maxpool 2 -------------------------------------------------------------------
    g2 = g2.reshape(tb, h2, 2, w1, c2)
    ev2, od2 = g2[:, :, 0], g2[:, :, 1]
    od2_up = jnp.concatenate(
        [jnp.full((tb, 1, w1, c2), -jnp.inf, f32), od2[:, :h2 - 1]], axis=1)
    hp2 = jnp.maximum(jnp.maximum(ev2, od2), od2_up)        # (tb, h2, w1, c2)
    hp2 = hp2.reshape(tb * h2 * w1, c2)

    q = jnp.dot(sel2_ref[0], hp2, preferred_element_type=f32)
    q = jnp.maximum(q, jnp.dot(sel2_ref[1], hp2, preferred_element_type=f32))
    q = jnp.maximum(q, jnp.dot(sel2_ref[2], hp2, preferred_element_type=f32))
    # q: (n_pos * tb, c2), rows ordered (spatial position p, batch b)

    # ---- Flatten (HWC order) + Linear + GELU ----------------------------------------
    n_pos = wfc1_ref.shape[0]
    dfc = wfc1_ref.shape[2]
    a3 = jnp.zeros((tb, dfc), f32)
    for p in range(n_pos):
        a3 = a3 + jnp.dot(q[p * tb:(p + 1) * tb, :], wfc1_ref[p],
                          preferred_element_type=f32)
    hfc = _gelu_tanh(a3 + bfc1_ref[...])                    # (tb, 2*hidden)

    # ---- final Linear -> (tb, hidden) -------------------------------------------------
    out_ref[...] = (jnp.dot(hfc, wfc2_ref[...], preferred_element_type=f32)
                    + bfc2_ref[...])


# ----------------------------------------------------------------------------------
# Constant 0/1 selection matrices (wrapper-side parameter prep, not data compute)
# ----------------------------------------------------------------------------------
def _sel_pool_pad(tb, hh, win, wout, hpad, wpad):
    """Three matrices (dj=-1,0,+1): W-direction 3-window/stride-2 max-pool plus the
    zero 'SAME' padding of the following conv.
    rows: (b, ii, jj) over the (hpad, wpad) zero-padded pooled grid
    cols: (b, i, s)   over the H-pooled, pre-W-pool grid (hh, win)."""
    b = jnp.arange(tb)[:, None, None]
    ii = jnp.arange(hpad)[None, :, None]
    jj = jnp.arange(wpad)[None, None, :]
    valid = (ii >= 1) & (ii <= hh) & (jj >= 1) & (jj <= wout)
    i_src = jnp.clip(ii - 1, 0, hh - 1)
    n_in = tb * hh * win
    mats = []
    for dj in (-1, 0, 1):
        s = jnp.clip(2 * (jj - 1) + dj, 0, win - 1)   # clamp == -inf pad for the max
        r_in = (b * hh + i_src) * win + s
        m = jax.nn.one_hot(r_in, n_in, dtype=jnp.float32)
        m = m * valid.astype(jnp.float32)[..., None]
        mats.append(m.reshape(tb * hpad * wpad, n_in))
    return jnp.stack(mats)


def _sel_pool_pb(tb, hh, win, wout):
    """Three matrices (dj=-1,0,+1): W-direction max-pool of the second pooling stage,
    emitting rows ordered (spatial position p = i*wout + j, batch b)."""
    p = jnp.arange(hh * wout)[:, None]
    b = jnp.arange(tb)[None, :]
    i = p // wout
    j = p % wout
    n_in = tb * hh * win
    mats = []
    for dj in (-1, 0, 1):
        s = jnp.clip(2 * j + dj, 0, win - 1)
        r_in = (b * hh + i) * win + s
        m = jax.nn.one_hot(r_in, n_in, dtype=jnp.float32)
        mats.append(m.reshape(hh * wout * tb, n_in))
    return jnp.stack(mats)


# ----------------------------------------------------------------------------------
# Wrapper
# ----------------------------------------------------------------------------------
def spatial_embedding_forward(x, params, *, batch_tile=None, eps=1e-5):
    B, H, W, C_in = x.shape
    hidden = params["fc2_w"].shape[1]
    tb = B if batch_tile is None else batch_tile
    assert B % tb == 0 and (tb == B or tb % 8 == 0)
    assert H % 4 == 0 and W % 16 == 0, "kernel supports H % 4 == 0 and W % 16 == 0"

    # Fold eval-mode BatchNorm into the conv weights / biases.
    def fold(w9, b, gamma, beta, mean, var):
        scale = gamma / jnp.sqrt(var + eps)
        return w9 * scale[None, None, :], ((b - mean) * scale + beta)[None, :]

    w1f, b1f = fold(params["conv1_w"], params["conv1_b"],
                    params["bn1_gamma"], params["bn1_beta"],
                    params["bn1_mean"], params["bn1_var"])
    w2f, b2f = fold(params["conv2_w"], params["conv2_b"],
                    params["bn2_gamma"], params["bn2_beta"],
                    params["bn2_mean"], params["bn2_var"])
    bfc1 = params["fc1_b"].reshape(1, -1)
    bfc2 = params["fc2_b"].reshape(1, -1)

    # Zero 'SAME' padding of the raw input is pure layout prep -> done in the wrapper.
    xpad = jnp.pad(x, ((0, 0), (1, 1), (1, 1), (0, 0)))

    h1, w1 = H // 2, W // 2
    h2, w2 = H // 4, W // 4
    wpad1 = ((w1 + 2 + 7) // 8) * 8            # padded width, rounded up for layout
    sel1 = _sel_pool_pad(tb, h1, W, w1, h1 + 2, wpad1)   # (3, tb*(h1+2)*wpad1, tb*h1*W)
    sel2 = _sel_pool_pb(tb, h2, w1, w2)                  # (3, h2*w2*tb, tb*h2*w1)

    def full_spec(arr):
        zeros = (0,) * arr.ndim
        return pl.BlockSpec(arr.shape, lambda i, zeros=zeros: zeros)

    out = pl.pallas_call(
        _spatial_embedding_kernel,
        out_shape=jax.ShapeDtypeStruct((B, hidden), jnp.float32),
        grid_spec=pltpu.PrefetchScalarGridSpec(
            num_scalar_prefetch=0,
            grid=(B // tb,),
            in_specs=[
                pl.BlockSpec((tb, H + 2, W + 2, C_in), lambda i: (i, 0, 0, 0)),
                full_spec(w1f), full_spec(b1f), full_spec(sel1),
                full_spec(w2f), full_spec(b2f), full_spec(sel2),
                full_spec(params["fc1_w"]), full_spec(bfc1),
                full_spec(params["fc2_w"]), full_spec(bfc2),
            ],
            out_specs=pl.BlockSpec((tb, hidden), lambda i: (i, 0)),
        ),
        compiler_params=pltpu.CompilerParams(
            dimension_semantics=("parallel",)),
    )(xpad, w1f, b1f, sel1, w2f, b2f, sel2,
      params["fc1_w"], bfc1, params["fc2_w"], bfc2)
    return out


# ----------------------------------------------------------------------------------
# Deterministic synthetic parameters (PyTorch-style U(-1/sqrt(fan_in), ...) init)
# ----------------------------------------------------------------------------------
def make_params(key, space_dim, h, w, hidden):
    c1, c2 = hidden // 2, hidden
    n_pos = (h // 4) * (w // 4)
    fan_fc1 = c2 * n_pos
    ks = jax.random.split(key, 16)

    def uinit(k, shape, fan_in):
        bound = 1.0 / jnp.sqrt(jnp.float32(fan_in))
        return jax.random.uniform(k, shape, jnp.float32, -bound, bound)

    return dict(
        conv1_w=uinit(ks[0], (9, space_dim, c1), 9 * space_dim),
        conv1_b=uinit(ks[1], (c1,), 9 * space_dim),
        bn1_gamma=jax.random.uniform(ks[2], (c1,), jnp.float32, 0.8, 1.2),
        bn1_beta=0.1 * jax.random.normal(ks[3], (c1,), jnp.float32),
        bn1_mean=0.1 * jax.random.normal(ks[4], (c1,), jnp.float32),
        bn1_var=jax.random.uniform(ks[5], (c1,), jnp.float32, 0.5, 1.5),
        conv2_w=uinit(ks[6], (9, c1, c2), 9 * c1),
        conv2_b=uinit(ks[7], (c2,), 9 * c1),
        bn2_gamma=jax.random.uniform(ks[8], (c2,), jnp.float32, 0.8, 1.2),
        bn2_beta=0.1 * jax.random.normal(ks[9], (c2,), jnp.float32),
        bn2_mean=0.1 * jax.random.normal(ks[10], (c2,), jnp.float32),
        bn2_var=jax.random.uniform(ks[11], (c2,), jnp.float32, 0.5, 1.5),
        fc1_w=uinit(ks[12], (n_pos, c2, 2 * hidden), fan_fc1),
        fc1_b=uinit(ks[13], (2 * hidden,), fan_fc1),
        fc2_w=uinit(ks[14], (2 * hidden, hidden), 2 * hidden),
        fc2_b=uinit(ks[15], (hidden,), 2 * hidden),
    )


# ----------------------------------------------------------------------------------
# Pure-JAX reference (un-folded BN, lax.conv / lax.reduce_window) for verification
# ----------------------------------------------------------------------------------
def _reference_forward(x, params, eps=1e-5):
    B = x.shape[0]

    def conv(y, w9, b):
        w = w9.reshape(3, 3, w9.shape[1], w9.shape[2])
        return lax.conv_general_dilated(
            y, w, window_strides=(1, 1), padding="SAME",
            dimension_numbers=("NHWC", "HWIO", "NHWC"),
            precision=lax.Precision.HIGHEST) + b

    def bn(y, g, b, m, v):
        return (y - m) / jnp.sqrt(v + eps) * g + b

    def pool(y):
        return lax.reduce_window(y, -jnp.inf, lax.max,
                                 (1, 3, 3, 1), (1, 2, 2, 1),
                                 ((0, 0), (1, 1), (1, 1), (0, 0)))

    y = conv(x, params["conv1_w"], params["conv1_b"])
    y = pool(_gelu_tanh(bn(y, params["bn1_gamma"], params["bn1_beta"],
                           params["bn1_mean"], params["bn1_var"])))
    y = conv(y, params["conv2_w"], params["conv2_b"])
    y = pool(_gelu_tanh(bn(y, params["bn2_gamma"], params["bn2_beta"],
                           params["bn2_mean"], params["bn2_var"])))
    feat = y.reshape(B, -1)                                  # HWC flatten order
    w_fc1 = params["fc1_w"].reshape(-1, params["fc1_w"].shape[2])
    h = _gelu_tanh(jnp.matmul(feat, w_fc1, precision=lax.Precision.HIGHEST)
                   + params["fc1_b"])
    return jnp.matmul(h, params["fc2_w"], precision=lax.Precision.HIGHEST) \
        + params["fc2_b"]


if __name__ == "__main__":
    B, SPACE_DIM, H, W, HIDDEN = 2, 4, 16, 16, 32

    key = jax.random.PRNGKey(0)
    kx, kp = jax.random.split(key)
    x = jax.random.normal(kx, (B, H, W, SPACE_DIM), jnp.float32)
    params = make_params(kp, SPACE_DIM, H, W, HIDDEN)

    y = spatial_embedding_forward(x, params)
    y = jax.block_until_ready(y)

    y_ref = _reference_forward(x, params)
    assert y.shape == (B, HIDDEN)
    assert jnp.allclose(y, y_ref, atol=2e-3, rtol=2e-3), \
        float(jnp.max(jnp.abs(y - y_ref)))

    print("KERNEL_OK")
</pallas_src>

<mosaic_0001>
module attributes {stable_mosaic.version = 11 : i64} {
  func.func @_spatial_embedding_kernel(%arg0: i32, %arg1: memref<2x18x18x4xf32, #tpu.memory_space<vmem>>, %arg2: memref<9x4x16xf32, #tpu.memory_space<vmem>>, %arg3: memref<1x16xf32, #tpu.memory_space<vmem>>, %arg4: memref<3x320x256xf32, #tpu.memory_space<vmem>>, %arg5: memref<9x16x32xf32, #tpu.memory_space<vmem>>, %arg6: memref<1x32xf32, #tpu.memory_space<vmem>>, %arg7: memref<3x32x64xf32, #tpu.memory_space<vmem>>, %arg8: memref<16x32x64xf32, #tpu.memory_space<vmem>>, %arg9: memref<1x64xf32, #tpu.memory_space<vmem>>, %arg10: memref<64x32xf32, #tpu.memory_space<vmem>>, %arg11: memref<1x32xf32, #tpu.memory_space<vmem>>, %arg12: memref<2x32xf32, #tpu.memory_space<vmem>>) attributes {dimension_semantics = [#tpu.dimension_semantics<parallel>], iteration_bounds = array<i64: 1>, scalar_prefetch = 0 : i64, scratch_operands = 0 : i64, tpu.core_type = #tpu.core_type<tc>, window_params = [{transform_indices = @transform_0, window_bounds = array<i64: 2, 18, 18, 4>}, {pipeline_mode = #tpu.pipeline_mode<synchronous>, transform_indices = @transform_1, window_bounds = array<i64: 9, 4, 16>}, {pipeline_mode = #tpu.pipeline_mode<synchronous>, transform_indices = @transform_2, window_bounds = array<i64: 1, 16>}, {pipeline_mode = #tpu.pipeline_mode<synchronous>, transform_indices = @transform_3, window_bounds = array<i64: 3, 320, 256>}, {pipeline_mode = #tpu.pipeline_mode<synchronous>, transform_indices = @transform_4, window_bounds = array<i64: 9, 16, 32>}, {pipeline_mode = #tpu.pipeline_mode<synchronous>, transform_indices = @transform_5, window_bounds = array<i64: 1, 32>}, {pipeline_mode = #tpu.pipeline_mode<synchronous>, transform_indices = @transform_6, window_bounds = array<i64: 3, 32, 64>}, {pipeline_mode = #tpu.pipeline_mode<synchronous>, transform_indices = @transform_7, window_bounds = array<i64: 16, 32, 64>}, {pipeline_mode = #tpu.pipeline_mode<synchronous>, transform_indices = @transform_8, window_bounds = array<i64: 1, 64>}, {pipeline_mode = #tpu.pipeline_mode<synchronous>, transform_indices = @transform_9, window_bounds = array<i64: 64, 32>}, {pipeline_mode = #tpu.pipeline_mode<synchronous>, transform_indices = @transform_10, window_bounds = array<i64: 1, 32>}, {transform_indices = @transform_11, window_bounds = array<i64: 2, 32>}]} {
    %c0 = arith.constant 0 : index
    %c0_0 = arith.constant 0 : index
    %c0_1 = arith.constant 0 : index
    %c0_2 = arith.constant 0 : index
    %0 = vector.load %arg1[%c0, %c0_0, %c0_1, %c0_2] : memref<2x18x18x4xf32, #tpu.memory_space<vmem>>, vector<2x18x18x4xf32>
    %cst = arith.constant 0.000000e+00 : f32
    %1 = vector.broadcast %cst : f32 to vector<512x16xf32>
    %2 = vector.extract_strided_slice %0 {offsets = [0, 0, 0, 0], sizes = [2, 16, 16, 4], strides = [1, 1, 1, 1]} : vector<2x18x18x4xf32> to vector<2x16x16x4xf32>
    %3 = vector.shape_cast %2 : vector<2x16x16x4xf32> to vector<512x4xf32>
    %c0_3 = arith.constant 0 : index
    %c0_4 = arith.constant 0 : index
    %c0_5 = arith.constant 0 : index
    %4 = vector.load %arg2[%c0_3, %c0_4, %c0_5] : memref<9x4x16xf32, #tpu.memory_space<vmem>>, vector<1x4x16xf32>
    %5 = vector.shape_cast %4 : vector<1x4x16xf32> to vector<4x16xf32>
    %cst_6 = arith.constant dense<0.000000e+00> : vector<512x16xf32>
    %6 = tpu.matmul %3, %5, %cst_6 {dimension_numbers = #tpu.dot_dimension_numbers<[1], [0], [0], [1], [0, 0, 1, 1], [], []>} : vector<512x4xf32>, vector<4x16xf32>, vector<512x16xf32> -> vector<512x16xf32>
    %7 = arith.addf %1, %6 : vector<512x16xf32>
    %8 = vector.extract_strided_slice %0 {offsets = [0, 0, 1, 0], sizes = [2, 16, 16, 4], strides = [1, 1, 1, 1]} : vector<2x18x18x4xf32> to vector<2x16x16x4xf32>
    %9 = vector.shape_cast %8 : vector<2x16x16x4xf32> to vector<512x4xf32>
    %c1 = arith.constant 1 : index
    %c0_7 = arith.constant 0 : index
    %c0_8 = arith.constant 0 : index
    %10 = vector.load %arg2[%c1, %c0_7, %c0_8] : memref<9x4x16xf32, #tpu.memory_space<vmem>>, vector<1x4x16xf32>
    %11 = vector.shape_cast %10 : vector<1x4x16xf32> to vector<4x16xf32>
    %cst_9 = arith.constant dense<0.000000e+00> : vector<512x16xf32>
    %12 = tpu.matmul %9, %11, %cst_9 {dimension_numbers = #tpu.dot_dimension_numbers<[1], [0], [0], [1], [0, 0, 1, 1], [], []>} : vector<512x4xf32>, vector<4x16xf32>, vector<512x16xf32> -> vector<512x16xf32>
    %13 = arith.addf %7, %12 : vector<512x16xf32>
    %14 = vector.extract_strided_slice %0 {offsets = [0, 0, 2, 0], sizes = [2, 16, 16, 4], strides = [1, 1, 1, 1]} : vector<2x18x18x4xf32> to vector<2x16x16x4xf32>
    %15 = vector.shape_cast %14 : vector<2x16x16x4xf32> to vector<512x4xf32>
    %c2 = arith.constant 2 : index
    %c0_10 = arith.constant 0 : index
    %c0_11 = arith.constant 0 : index
    %16 = vector.load %arg2[%c2, %c0_10, %c0_11] : memref<9x4x16xf32, #tpu.memory_space<vmem>>, vector<1x4x16xf32>
    %17 = vector.shape_cast %16 : vector<1x4x16xf32> to vector<4x16xf32>
    %cst_12 = arith.constant dense<0.000000e+00> : vector<512x16xf32>
    %18 = tpu.matmul %15, %17, %cst_12 {dimension_numbers = #tpu.dot_dimension_numbers<[1], [0], [0], [1], [0, 0, 1, 1], [], []>} : vector<512x4xf32>, vector<4x16xf32>, vector<512x16xf32> -> vector<512x16xf32>
    %19 = arith.addf %13, %18 : vector<512x16xf32>
    %20 = vector.extract_strided_slice %0 {offsets = [0, 1, 0, 0], sizes = [2, 16, 16, 4], strides = [1, 1, 1, 1]} : vector<2x18x18x4xf32> to vector<2x16x16x4xf32>
    %21 = vector.shape_cast %20 : vector<2x16x16x4xf32> to vector<512x4xf32>
    %c3 = arith.constant 3 : index
    %c0_13 = arith.constant 0 : index
    %c0_14 = arith.constant 0 : index
    %22 = vector.load %arg2[%c3, %c0_13, %c0_14] : memref<9x4x16xf32, #tpu.memory_space<vmem>>, vector<1x4x16xf32>
    %23 = vector.shape_cast %22 : vector<1x4x16xf32> to vector<4x16xf32>
    %cst_15 = arith.constant dense<0.000000e+00> : vector<512x16xf32>
    %24 = tpu.matmul %21, %23, %cst_15 {dimension_numbers = #tpu.dot_dimension_numbers<[1], [0], [0], [1], [0, 0, 1, 1], [], []>} : vector<512x4xf32>, vector<4x16xf32>, vector<512x16xf32> -> vector<512x16xf32>
    %25 = arith.addf %19, %24 : vector<512x16xf32>
    %26 = vector.extract_strided_slice %0 {offsets = [0, 1, 1, 0], sizes = [2, 16, 16, 4], strides = [1, 1, 1, 1]} : vector<2x18x18x4xf32> to vector<2x16x16x4xf32>
    %27 = vector.shape_cast %26 : vector<2x16x16x4xf32> to vector<512x4xf32>
    %c4 = arith.constant 4 : index
    %c0_16 = arith.constant 0 : index
    %c0_17 = arith.constant 0 : index
    %28 = vector.load %arg2[%c4, %c0_16, %c0_17] : memref<9x4x16xf32, #tpu.memory_space<vmem>>, vector<1x4x16xf32>
    %29 = vector.shape_cast %28 : vector<1x4x16xf32> to vector<4x16xf32>
    %cst_18 = arith.constant dense<0.000000e+00> : vector<512x16xf32>
    %30 = tpu.matmul %27, %29, %cst_18 {dimension_numbers = #tpu.dot_dimension_numbers<[1], [0], [0], [1], [0, 0, 1, 1], [], []>} : vector<512x4xf32>, vector<4x16xf32>, vector<512x16xf32> -> vector<512x16xf32>
    %31 = arith.addf %25, %30 : vector<512x16xf32>
    %32 = vector.extract_strided_slice %0 {offsets = [0, 1, 2, 0], sizes = [2, 16, 16, 4], strides = [1, 1, 1, 1]} : vector<2x18x18x4xf32> to vector<2x16x16x4xf32>
    %33 = vector.shape_cast %32 : vector<2x16x16x4xf32> to vector<512x4xf32>
    %c5 = arith.constant 5 : index
    %c0_19 = arith.constant 0 : index
    %c0_20 = arith.constant 0 : index
    %34 = vector.load %arg2[%c5, %c0_19, %c0_20] : memref<9x4x16xf32, #tpu.memory_space<vmem>>, vector<1x4x16xf32>
    %35 = vector.shape_cast %34 : vector<1x4x16xf32> to vector<4x16xf32>
    %cst_21 = arith.constant dense<0.000000e+00> : vector<512x16xf32>
    %36 = tpu.matmul %33, %35, %cst_21 {dimension_numbers = #tpu.dot_dimension_numbers<[1], [0], [0], [1], [0, 0, 1, 1], [], []>} : vector<512x4xf32>, vector<4x16xf32>, vector<512x16xf32> -> vector<512x16xf32>
    %37 = arith.addf %31, %36 : vector<512x16xf32>
    %38 = vector.extract_strided_slice %0 {offsets = [0, 2, 0, 0], sizes = [2, 16, 16, 4], strides = [1, 1, 1, 1]} : vector<2x18x18x4xf32> to vector<2x16x16x4xf32>
    %39 = vector.shape_cast %38 : vector<2x16x16x4xf32> to vector<512x4xf32>
    %c6 = arith.constant 6 : index
    %c0_22 = arith.constant 0 : index
    %c0_23 = arith.constant 0 : index
    %40 = vector.load %arg2[%c6, %c0_22, %c0_23] : memref<9x4x16xf32, #tpu.memory_space<vmem>>, vector<1x4x16xf32>
    %41 = vector.shape_cast %40 : vector<1x4x16xf32> to vector<4x16xf32>
    %cst_24 = arith.constant dense<0.000000e+00> : vector<512x16xf32>
    %42 = tpu.matmul %39, %41, %cst_24 {dimension_numbers = #tpu.dot_dimension_numbers<[1], [0], [0], [1], [0, 0, 1, 1], [], []>} : vector<512x4xf32>, vector<4x16xf32>, vector<512x16xf32> -> vector<512x16xf32>
    %43 = arith.addf %37, %42 : vector<512x16xf32>
    %44 = vector.extract_strided_slice %0 {offsets = [0, 2, 1, 0], sizes = [2, 16, 16, 4], strides = [1, 1, 1, 1]} : vector<2x18x18x4xf32> to vector<2x16x16x4xf32>
    %45 = vector.shape_cast %44 : vector<2x16x16x4xf32> to vector<512x4xf32>
    %c7 = arith.constant 7 : index
    %c0_25 = arith.constant 0 : index
    %c0_26 = arith.constant 0 : index
    %46 = vector.load %arg2[%c7, %c0_25, %c0_26] : memref<9x4x16xf32, #tpu.memory_space<vmem>>, vector<1x4x16xf32>
    %47 = vector.shape_cast %46 : vector<1x4x16xf32> to vector<4x16xf32>
    %cst_27 = arith.constant dense<0.000000e+00> : vector<512x16xf32>
    %48 = tpu.matmul %45, %47, %cst_27 {dimension_numbers = #tpu.dot_dimension_numbers<[1], [0], [0], [1], [0, 0, 1, 1], [], []>} : vector<512x4xf32>, vector<4x16xf32>, vector<512x16xf32> -> vector<512x16xf32>
    %49 = arith.addf %43, %48 : vector<512x16xf32>
    %50 = vector.extract_strided_slice %0 {offsets = [0, 2, 2, 0], sizes = [2, 16, 16, 4], strides = [1, 1, 1, 1]} : vector<2x18x18x4xf32> to vector<2x16x16x4xf32>
    %51 = vector.shape_cast %50 : vector<2x16x16x4xf32> to vector<512x4xf32>
    %c8 = arith.constant 8 : index
    %c0_28 = arith.constant 0 : index
    %c0_29 = arith.constant 0 : index
    %52 = vector.load %arg2[%c8, %c0_28, %c0_29] : memref<9x4x16xf32, #tpu.memory_space<vmem>>, vector<1x4x16xf32>
    %53 = vector.shape_cast %52 : vector<1x4x16xf32> to vector<4x16xf32>
    %cst_30 = arith.constant dense<0.000000e+00> : vector<512x16xf32>
    %54 = tpu.matmul %51, %53, %cst_30 {dimension_numbers = #tpu.dot_dimension_numbers<[1], [0], [0], [1], [0, 0, 1, 1], [], []>} : vector<512x4xf32>, vector<4x16xf32>, vector<512x16xf32> -> vector<512x16xf32>
    %55 = arith.addf %49, %54 : vector<512x16xf32>
    %c0_31 = arith.constant 0 : index
    %c0_32 = arith.constant 0 : index
    %56 = vector.load %arg3[%c0_31, %c0_32] : memref<1x16xf32, #tpu.memory_space<vmem>>, vector<1x16xf32>
    %57 = vector.broadcast %56 : vector<1x16xf32> to vector<512x16xf32>
    %58 = arith.addf %55, %57 : vector<512x16xf32>
    %cst_33 = arith.constant 5.000000e-01 : f32
    %59 = vector.broadcast %cst_33 : f32 to vector<512x16xf32>
    %60 = arith.mulf %59, %58 : vector<512x16xf32>
    %cst_34 = arith.constant 4.471500e-02 : f32
    %61 = vector.broadcast %cst_34 : f32 to vector<512x16xf32>
    %62 = arith.mulf %61, %58 : vector<512x16xf32>
    %63 = arith.mulf %62, %58 : vector<512x16xf32>
    %64 = arith.mulf %63, %58 : vector<512x16xf32>
    %65 = arith.addf %58, %64 : vector<512x16xf32>
    %cst_35 = arith.constant 0.797884583 : f32
    %66 = vector.broadcast %cst_35 : f32 to vector<512x16xf32>
    %67 = arith.mulf %66, %65 : vector<512x16xf32>
    %68 = math.tanh %67 : vector<512x16xf32>
    %cst_36 = arith.constant 1.000000e+00 : f32
    %69 = vector.broadcast %cst_36 : f32 to vector<512x16xf32>
    %70 = arith.addf %69, %68 : vector<512x16xf32>
    %71 = arith.mulf %60, %70 : vector<512x16xf32>
    %72 = vector.shape_cast %71 : vector<512x16xf32> to vector<2x8x2x16x16xf32>
    %73 = vector.extract_strided_slice %72 {offsets = [0, 0, 0, 0, 0], sizes = [2, 8, 1, 16, 16], strides = [1, 1, 1, 1, 1]} : vector<2x8x2x16x16xf32> to vector<2x8x1x16x16xf32>
    %74 = vector.shape_cast %73 : vector<2x8x1x16x16xf32> to vector<2x8x16x16xf32>
    %75 = vector.extract_strided_slice %72 {offsets = [0, 0, 1, 0, 0], sizes = [2, 8, 1, 16, 16], strides = [1, 1, 1, 1, 1]} : vector<2x8x2x16x16xf32> to vector<2x8x1x16x16xf32>
    %76 = vector.shape_cast %75 : vector<2x8x1x16x16xf32> to vector<2x8x16x16xf32>
    %cst_37 = arith.constant 0xFF800000 : f32
    %77 = vector.broadcast %cst_37 : f32 to vector<2x1x16x16xf32>
    %78 = vector.extract_strided_slice %76 {offsets = [0, 0, 0, 0], sizes = [2, 7, 16, 16], strides = [1, 1, 1, 1]} : vector<2x8x16x16xf32> to vector<2x7x16x16xf32>
    %79 = tpu.concatenate %77, %78 in 1 : vector<2x1x16x16xf32>, vector<2x7x16x16xf32> -> vector<2x8x16x16xf32>
    %80 = arith.maximumf %74, %76 : vector<2x8x16x16xf32>
    %81 = arith.maximumf %80, %79 : vector<2x8x16x16xf32>
    %82 = vector.shape_cast %81 : vector<2x8x16x16xf32> to vector<256x16xf32>
    %c0_38 = arith.constant 0 : index
    %c0_39 = arith.constant 0 : index
    %c0_40 = arith.constant 0 : index
    %83 = vector.load %arg4[%c0_38, %c0_39, %c0_40] : memref<3x320x256xf32, #tpu.memory_space<vmem>>, vector<1x320x256xf32>
    %84 = vector.shape_cast %83 : vector<1x320x256xf32> to vector<320x256xf32>
    %cst_41 = arith.constant dense<0.000000e+00> : vector<320x16xf32>
    %85 = tpu.matmul %84, %82, %cst_41 {dimension_numbers = #tpu.dot_dimension_numbers<[1], [0], [0], [1], [0, 0, 1, 1], [], []>} : vector<320x256xf32>, vector<256x16xf32>, vector<320x16xf32> -> vector<320x16xf32>
    %c1_42 = arith.constant 1 : index
    %c0_43 = arith.constant 0 : index
    %c0_44 = arith.constant 0 : index
    %86 = vector.load %arg4[%c1_42, %c0_43, %c0_44] : memref<3x320x256xf32, #tpu.memory_space<vmem>>, vector<1x320x256xf32>
    %87 = vector.shape_cast %86 : vector<1x320x256xf32> to vector<320x256xf32>
    %cst_45 = arith.constant dense<0.000000e+00> : vector<320x16xf32>
    %88 = tpu.matmul %87, %82, %cst_45 {dimension_numbers = #tpu.dot_dimension_numbers<[1], [0], [0], [1], [0, 0, 1, 1], [], []>} : vector<320x256xf32>, vector<256x16xf32>, vector<320x16xf32> -> vector<320x16xf32>
    %89 = arith.maximumf %85, %88 : vector<320x16xf32>
    %c2_46 = arith.constant 2 : index
    %c0_47 = arith.constant 0 : index
    %c0_48 = arith.constant 0 : index
    %90 = vector.load %arg4[%c2_46, %c0_47, %c0_48] : memref<3x320x256xf32, #tpu.memory_space<vmem>>, vector<1x320x256xf32>
    %91 = vector.shape_cast %90 : vector<1x320x256xf32> to vector<320x256xf32>
    %cst_49 = arith.constant dense<0.000000e+00> : vector<320x16xf32>
    %92 = tpu.matmul %91, %82, %cst_49 {dimension_numbers = #tpu.dot_dimension_numbers<[1], [0], [0], [1], [0, 0, 1, 1], [], []>} : vector<320x256xf32>, vector<256x16xf32>, vector<320x16xf32> -> vector<320x16xf32>
    %93 = arith.maximumf %89, %92 : vector<320x16xf32>
    %94 = vector.shape_cast %93 : vector<320x16xf32> to vector<2x10x16x16xf32>
    %cst_50 = arith.constant 0.000000e+00 : f32
    %95 = vector.broadcast %cst_50 : f32 to vector<128x32xf32>
    %96 = vector.extract_strided_slice %94 {offsets = [0, 0, 0, 0], sizes = [2, 8, 8, 16], strides = [1, 1, 1, 1]} : vector<2x10x16x16xf32> to vector<2x8x8x16xf32>
    %97 = vector.shape_cast %96 : vector<2x8x8x16xf32> to vector<128x16xf32>
    %c0_51 = arith.constant 0 : index
    %c0_52 = arith.constant 0 : index
    %c0_53 = arith.constant 0 : index
    %98 = vector.load %arg5[%c0_51, %c0_52, %c0_53] : memref<9x16x32xf32, #tpu.memory_space<vmem>>, vector<1x16x32xf32>
    %99 = vector.shape_cast %98 : vector<1x16x32xf32> to vector<16x32xf32>
    %cst_54 = arith.constant dense<0.000000e+00> : vector<128x32xf32>
    %100 = tpu.matmul %97, %99, %cst_54 {dimension_numbers = #tpu.dot_dimension_numbers<[1], [0], [0], [1], [0, 0, 1, 1], [], []>} : vector<128x16xf32>, vector<16x32xf32>, vector<128x32xf32> -> vector<128x32xf32>
    %101 = arith.addf %95, %100 : vector<128x32xf32>
    %102 = vector.extract_strided_slice %94 {offsets = [0, 0, 1, 0], sizes = [2, 8, 8, 16], strides = [1, 1, 1, 1]} : vector<2x10x16x16xf32> to vector<2x8x8x16xf32>
    %103 = vector.shape_cast %102 : vector<2x8x8x16xf32> to vector<128x16xf32>
    %c1_55 = arith.constant 1 : index
    %c0_56 = arith.constant 0 : index
    %c0_57 = arith.constant 0 : index
    %104 = vector.load %arg5[%c1_55, %c0_56, %c0_57] : memref<9x16x32xf32, #tpu.memory_space<vmem>>, vector<1x16x32xf32>
    %105 = vector.shape_cast %104 : vector<1x16x32xf32> to vector<16x32xf32>
    %cst_58 = arith.constant dense<0.000000e+00> : vector<128x32xf32>
    %106 = tpu.matmul %103, %105, %cst_58 {dimension_numbers = #tpu.dot_dimension_numbers<[1], [0], [0], [1], [0, 0, 1, 1], [], []>} : vector<128x16xf32>, vector<16x32xf32>, vector<128x32xf32> -> vector<128x32xf32>
    %107 = arith.addf %101, %106 : vector<128x32xf32>
    %108 = vector.extract_strided_slice %94 {offsets = [0, 0, 2, 0], sizes = [2, 8, 8, 16], strides = [1, 1, 1, 1]} : vector<2x10x16x16xf32> to vector<2x8x8x16xf32>
    %109 = vector.shape_cast %108 : vector<2x8x8x16xf32> to vector<128x16xf32>
    %c2_59 = arith.constant 2 : index
    %c0_60 = arith.constant 0 : index
    %c0_61 = arith.constant 0 : index
    %110 = vector.load %arg5[%c2_59, %c0_60, %c0_61] : memref<9x16x32xf32, #tpu.memory_space<vmem>>, vector<1x16x32xf32>
    %111 = vector.shape_cast %110 : vector<1x16x32xf32> to vector<16x32xf32>
    %cst_62 = arith.constant dense<0.000000e+00> : vector<128x32xf32>
    %112 = tpu.matmul %109, %111, %cst_62 {dimension_numbers = #tpu.dot_dimension_numbers<[1], [0], [0], [1], [0, 0, 1, 1], [], []>} : vector<128x16xf32>, vector<16x32xf32>, vector<128x32xf32> -> vector<128x32xf32>
    %113 = arith.addf %107, %112 : vector<128x32xf32>
    %114 = vector.extract_strided_slice %94 {offsets = [0, 1, 0, 0], sizes = [2, 8, 8, 16], strides = [1, 1, 1, 1]} : vector<2x10x16x16xf32> to vector<2x8x8x16xf32>
    %115 = vector.shape_cast %114 : vector<2x8x8x16xf32> to vector<128x16xf32>
    %c3_63 = arith.constant 3 : index
    %c0_64 = arith.constant 0 : index
    %c0_65 = arith.constant 0 : index
    %116 = vector.load %arg5[%c3_63, %c0_64, %c0_65] : memref<9x16x32xf32, #tpu.memory_space<vmem>>, vector<1x16x32xf32>
    %117 = vector.shape_cast %116 : vector<1x16x32xf32> to vector<16x32xf32>
    %cst_66 = arith.constant dense<0.000000e+00> : vector<128x32xf32>
    %118 = tpu.matmul %115, %117, %cst_66 {dimension_numbers = #tpu.dot_dimension_numbers<[1], [0], [0], [1], [0, 0, 1, 1], [], []>} : vector<128x16xf32>, vector<16x32xf32>, vector<128x32xf32> -> vector<128x32xf32>
    %119 = arith.addf %113, %118 : vector<128x32xf32>
    %120 = vector.extract_strided_slice %94 {offsets = [0, 1, 1, 0], sizes = [2, 8, 8, 16], strides = [1, 1, 1, 1]} : vector<2x10x16x16xf32> to vector<2x8x8x16xf32>
    %121 = vector.shape_cast %120 : vector<2x8x8x16xf32> to vector<128x16xf32>
    %c4_67 = arith.constant 4 : index
    %c0_68 = arith.constant 0 : index
    %c0_69 = arith.constant 0 : index
    %122 = vector.load %arg5[%c4_67, %c0_68, %c0_69] : memref<9x16x32xf32, #tpu.memory_space<vmem>>, vector<1x16x32xf32>
    %123 = vector.shape_cast %122 : vector<1x16x32xf32> to vector<16x32xf32>
    %cst_70 = arith.constant dense<0.000000e+00> : vector<128x32xf32>
    %124 = tpu.matmul %121, %123, %cst_70 {dimension_numbers = #tpu.dot_dimension_numbers<[1], [0], [0], [1], [0, 0, 1, 1], [], []>} : vector<128x16xf32>, vector<16x32xf32>, vector<128x32xf32> -> vector<128x32xf32>
    %125 = arith.addf %119, %124 : vector<128x32xf32>
    %126 = vector.extract_strided_slice %94 {offsets = [0, 1, 2, 0], sizes = [2, 8, 8, 16], strides = [1, 1, 1, 1]} : vector<2x10x16x16xf32> to vector<2x8x8x16xf32>
    %127 = vector.shape_cast %126 : vector<2x8x8x16xf32> to vector<128x16xf32>
    %c5_71 = arith.constant 5 : index
    %c0_72 = arith.constant 0 : index
    %c0_73 = arith.constant 0 : index
    %128 = vector.load %arg5[%c5_71, %c0_72, %c0_73] : memref<9x16x32xf32, #tpu.memory_space<vmem>>, vector<1x16x32xf32>
    %129 = vector.shape_cast %128 : vector<1x16x32xf32> to vector<16x32xf32>
    %cst_74 = arith.constant dense<0.000000e+00> : vector<128x32xf32>
    %130 = tpu.matmul %127, %129, %cst_74 {dimension_numbers = #tpu.dot_dimension_numbers<[1], [0], [0], [1], [0, 0, 1, 1], [], []>} : vector<128x16xf32>, vector<16x32xf32>, vector<128x32xf32> -> vector<128x32xf32>
    %131 = arith.addf %125, %130 : vector<128x32xf32>
    %132 = vector.extract_strided_slice %94 {offsets = [0, 2, 0, 0], sizes = [2, 8, 8, 16], strides = [1, 1, 1, 1]} : vector<2x10x16x16xf32> to vector<2x8x8x16xf32>
    %133 = vector.shape_cast %132 : vector<2x8x8x16xf32> to vector<128x16xf32>
    %c6_75 = arith.constant 6 : index
    %c0_76 = arith.constant 0 : index
    %c0_77 = arith.constant 0 : index
    %134 = vector.load %arg5[%c6_75, %c0_76, %c0_77] : memref<9x16x32xf32, #tpu.memory_space<vmem>>, vector<1x16x32xf32>
    %135 = vector.shape_cast %134 : vector<1x16x32xf32> to vector<16x32xf32>
    %cst_78 = arith.constant dense<0.000000e+00> : vector<128x32xf32>
    %136 = tpu.matmul %133, %135, %cst_78 {dimension_numbers = #tpu.dot_dimension_numbers<[1], [0], [0], [1], [0, 0, 1, 1], [], []>} : vector<128x16xf32>, vector<16x32xf32>, vector<128x32xf32> -> vector<128x32xf32>
    %137 = arith.addf %131, %136 : vector<128x32xf32>
    %138 = vector.extract_strided_slice %94 {offsets = [0, 2, 1, 0], sizes = [2, 8, 8, 16], strides = [1, 1, 1, 1]} : vector<2x10x16x16xf32> to vector<2x8x8x16xf32>
    %139 = vector.shape_cast %138 : vector<2x8x8x16xf32> to vector<128x16xf32>
    %c7_79 = arith.constant 7 : index
    %c0_80 = arith.constant 0 : index
    %c0_81 = arith.constant 0 : index
    %140 = vector.load %arg5[%c7_79, %c0_80, %c0_81] : memref<9x16x32xf32, #tpu.memory_space<vmem>>, vector<1x16x32xf32>
    %141 = vector.shape_cast %140 : vector<1x16x32xf32> to vector<16x32xf32>
    %cst_82 = arith.constant dense<0.000000e+00> : vector<128x32xf32>
    %142 = tpu.matmul %139, %141, %cst_82 {dimension_numbers = #tpu.dot_dimension_numbers<[1], [0], [0], [1], [0, 0, 1, 1], [], []>} : vector<128x16xf32>, vector<16x32xf32>, vector<128x32xf32> -> vector<128x32xf32>
    %143 = arith.addf %137, %142 : vector<128x32xf32>
    %144 = vector.extract_strided_slice %94 {offsets = [0, 2, 2, 0], sizes = [2, 8, 8, 16], strides = [1, 1, 1, 1]} : vector<2x10x16x16xf32> to vector<2x8x8x16xf32>
    %145 = vector.shape_cast %144 : vector<2x8x8x16xf32> to vector<128x16xf32>
    %c8_83 = arith.constant 8 : index
    %c0_84 = arith.constant 0 : index
    %c0_85 = arith.constant 0 : index
    %146 = vector.load %arg5[%c8_83, %c0_84, %c0_85] : memref<9x16x32xf32, #tpu.memory_space<vmem>>, vector<1x16x32xf32>
    %147 = vector.shape_cast %146 : vector<1x16x32xf32> to vector<16x32xf32>
    %cst_86 = arith.constant dense<0.000000e+00> : vector<128x32xf32>
    %148 = tpu.matmul %145, %147, %cst_86 {dimension_numbers = #tpu.dot_dimension_numbers<[1], [0], [0], [1], [0, 0, 1, 1], [], []>} : vector<128x16xf32>, vector<16x32xf32>, vector<128x32xf32> -> vector<128x32xf32>
    %149 = arith.addf %143, %148 : vector<128x32xf32>
    %c0_87 = arith.constant 0 : index
    %c0_88 = arith.constant 0 : index
    %150 = vector.load %arg6[%c0_87, %c0_88] : memref<1x32xf32, #tpu.memory_space<vmem>>, vector<1x32xf32>
    %151 = vector.broadcast %150 : vector<1x32xf32> to vector<128x32xf32>
    %152 = arith.addf %149, %151 : vector<128x32xf32>
    %cst_89 = arith.constant 5.000000e-01 : f32
    %153 = vector.broadcast %cst_89 : f32 to vector<128x32xf32>
    %154 = arith.mulf %153, %152 : vector<128x32xf32>
    %cst_90 = arith.constant 4.471500e-02 : f32
    %155 = vector.broadcast %cst_90 : f32 to vector<128x32xf32>
    %156 = arith.mulf %155, %152 : vector<128x32xf32>
    %157 = arith.mulf %156, %152 : vector<128x32xf32>
    %158 = arith.mulf %157, %152 : vector<128x32xf32>
    %159 = arith.addf %152, %158 : vector<128x32xf32>
    %cst_91 = arith.constant 0.797884583 : f32
    %160 = vector.broadcast %cst_91 : f32 to vector<128x32xf32>
    %161 = arith.mulf %160, %159 : vector<128x32xf32>
    %162 = math.tanh %161 : vector<128x32xf32>
    %cst_92 = arith.constant 1.000000e+00 : f32
    %163 = vector.broadcast %cst_92 : f32 to vector<128x32xf32>
    %164 = arith.addf %163, %162 : vector<128x32xf32>
    %165 = arith.mulf %154, %164 : vector<128x32xf32>
    %166 = vector.shape_cast %165 : vector<128x32xf32> to vector<2x4x2x8x32xf32>
    %167 = vector.extract_strided_slice %166 {offsets = [0, 0, 0, 0, 0], sizes = [2, 4, 1, 8, 32], strides = [1, 1, 1, 1, 1]} : vector<2x4x2x8x32xf32> to vector<2x4x1x8x32xf32>
    %168 = vector.shape_cast %167 : vector<2x4x1x8x32xf32> to vector<2x4x8x32xf32>
    %169 = vector.extract_strided_slice %166 {offsets = [0, 0, 1, 0, 0], sizes = [2, 4, 1, 8, 32], strides = [1, 1, 1, 1, 1]} : vector<2x4x2x8x32xf32> to vector<2x4x1x8x32xf32>
    %170 = vector.shape_cast %169 : vector<2x4x1x8x32xf32> to vector<2x4x8x32xf32>
    %cst_93 = arith.constant 0xFF800000 : f32
    %171 = vector.broadcast %cst_93 : f32 to vector<2x1x8x32xf32>
    %172 = vector.extract_strided_slice %170 {offsets = [0, 0, 0, 0], sizes = [2, 3, 8, 32], strides = [1, 1, 1, 1]} : vector<2x4x8x32xf32> to vector<2x3x8x32xf32>
    %173 = tpu.concatenate %171, %172 in 1 : vector<2x1x8x32xf32>, vector<2x3x8x32xf32> -> vector<2x4x8x32xf32>
    %174 = arith.maximumf %168, %170 : vector<2x4x8x32xf32>
    %175 = arith.maximumf %174, %173 : vector<2x4x8x32xf32>
    %176 = vector.shape_cast %175 : vector<2x4x8x32xf32> to vector<64x32xf32>
    %c0_94 = arith.constant 0 : index
    %c0_95 = arith.constant 0 : index
    %c0_96 = arith.constant 0 : index
    %177 = vector.load %arg7[%c0_94, %c0_95, %c0_96] : memref<3x32x64xf32, #tpu.memory_space<vmem>>, vector<1x32x64xf32>
    %178 = vector.shape_cast %177 : vector<1x32x64xf32> to vector<32x64xf32>
    %cst_97 = arith.constant dense<0.000000e+00> : vector<32x32xf32>
    %179 = tpu.matmul %178, %176, %cst_97 {dimension_numbers = #tpu.dot_dimension_numbers<[1], [0], [0], [1], [0, 0, 1, 1], [], []>} : vector<32x64xf32>, vector<64x32xf32>, vector<32x32xf32> -> vector<32x32xf32>
    %c1_98 = arith.constant 1 : index
    %c0_99 = arith.constant 0 : index
    %c0_100 = arith.constant 0 : index
    %180 = vector.load %arg7[%c1_98, %c0_99, %c0_100] : memref<3x32x64xf32, #tpu.memory_space<vmem>>, vector<1x32x64xf32>
    %181 = vector.shape_cast %180 : vector<1x32x64xf32> to vector<32x64xf32>
    %cst_101 = arith.constant dense<0.000000e+00> : vector<32x32xf32>
    %182 = tpu.matmul %181, %176, %cst_101 {dimension_numbers = #tpu.dot_dimension_numbers<[1], [0], [0], [1], [0, 0, 1, 1], [], []>} : vector<32x64xf32>, vector<64x32xf32>, vector<32x32xf32> -> vector<32x32xf32>
    %183 = arith.maximumf %179, %182 : vector<32x32xf32>
    %c2_102 = arith.constant 2 : index
    %c0_103 = arith.constant 0 : index
    %c0_104 = arith.constant 0 : index
    %184 = vector.load %arg7[%c2_102, %c0_103, %c0_104] : memref<3x32x64xf32, #tpu.memory_space<vmem>>, vector<1x32x64xf32>
    %185 = vector.shape_cast %184 : vector<1x32x64xf32> to vector<32x64xf32>
    %cst_105 = arith.constant dense<0.000000e+00> : vector<32x32xf32>
    %186 = tpu.matmul %185, %176, %cst_105 {dimension_numbers = #tpu.dot_dimension_numbers<[1], [0], [0], [1], [0, 0, 1, 1], [], []>} : vector<32x64xf32>, vector<64x32xf32>, vector<32x32xf32> -> vector<32x32xf32>
    %187 = arith.maximumf %183, %186 : vector<32x32xf32>
    %cst_106 = arith.constant 0.000000e+00 : f32
    %188 = vector.broadcast %cst_106 : f32 to vector<2x64xf32>
    %189 = vector.extract_strided_slice %187 {offsets = [0, 0], sizes = [2, 32], strides = [1, 1]} : vector<32x32xf32> to vector<2x32xf32>
    %c0_107 = arith.constant 0 : index
    %c0_108 = arith.constant 0 : index
    %c0_109 = arith.constant 0 : index
    %190 = vector.load %arg8[%c0_107, %c0_108, %c0_109] : memref<16x32x64xf32, #tpu.memory_space<vmem>>, vector<1x32x64xf32>
    %191 = vector.shape_cast %190 : vector<1x32x64xf32> to vector<32x64xf32>
    %cst_110 = arith.constant dense<0.000000e+00> : vector<2x64xf32>
    %192 = tpu.matmul %189, %191, %cst_110 {dimension_numbers = #tpu.dot_dimension_numbers<[1], [0], [0], [1], [0, 0, 1, 1], [], []>} : vector<2x32xf32>, vector<32x64xf32>, vector<2x64xf32> -> vector<2x64xf32>
    %193 = arith.addf %188, %192 : vector<2x64xf32>
    %194 = vector.extract_strided_slice %187 {offsets = [2, 0], sizes = [2, 32], strides = [1, 1]} : vector<32x32xf32> to vector<2x32xf32>
    %c1_111 = arith.constant 1 : index
    %c0_112 = arith.constant 0 : index
    %c0_113 = arith.constant 0 : index
    %195 = vector.load %arg8[%c1_111, %c0_112, %c0_113] : memref<16x32x64xf32, #tpu.memory_space<vmem>>, vector<1x32x64xf32>
    %196 = vector.shape_cast %195 : vector<1x32x64xf32> to vector<32x64xf32>
    %cst_114 = arith.constant dense<0.000000e+00> : vector<2x64xf32>
    %197 = tpu.matmul %194, %196, %cst_114 {dimension_numbers = #tpu.dot_dimension_numbers<[1], [0], [0], [1], [0, 0, 1, 1], [], []>} : vector<2x32xf32>, vector<32x64xf32>, vector<2x64xf32> -> vector<2x64xf32>
    %198 = arith.addf %193, %197 : vector<2x64xf32>
    %199 = vector.extract_strided_slice %187 {offsets = [4, 0], sizes = [2, 32], strides = [1, 1]} : vector<32x32xf32> to vector<2x32xf32>
    %c2_115 = arith.constant 2 : index
    %c0_116 = arith.constant 0 : index
    %c0_117 = arith.constant 0 : index
    %200 = vector.load %arg8[%c2_115, %c0_116, %c0_117] : memref<16x32x64xf32, #tpu.memory_space<vmem>>, vector<1x32x64xf32>
    %201 = vector.shape_cast %200 : vector<1x32x64xf32> to vector<32x64xf32>
    %cst_118 = arith.constant dense<0.000000e+00> : vector<2x64xf32>
    %202 = tpu.matmul %199, %201, %cst_118 {dimension_numbers = #tpu.dot_dimension_numbers<[1], [0], [0], [1], [0, 0, 1, 1], [], []>} : vector<2x32xf32>, vector<32x64xf32>, vector<2x64xf32> -> vector<2x64xf32>
    %203 = arith.addf %198, %202 : vector<2x64xf32>
    %204 = vector.extract_strided_slice %187 {offsets = [6, 0], sizes = [2, 32], strides = [1, 1]} : vector<32x32xf32> to vector<2x32xf32>
    %c3_119 = arith.constant 3 : index
    %c0_120 = arith.constant 0 : index
    %c0_121 = arith.constant 0 : index
    %205 = vector.load %arg8[%c3_119, %c0_120, %c0_121] : memref<16x32x64xf32, #tpu.memory_space<vmem>>, vector<1x32x64xf32>
    %206 = vector.shape_cast %205 : vector<1x32x64xf32> to vector<32x64xf32>
    %cst_122 = arith.constant dense<0.000000e+00> : vector<2x64xf32>
    %207 = tpu.matmul %204, %206, %cst_122 {dimension_numbers = #tpu.dot_dimension_numbers<[1], [0], [0], [1], [0, 0, 1, 1], [], []>} : vector<2x32xf32>, vector<32x64xf32>, vector<2x64xf32> -> vector<2x64xf32>
    %208 = arith.addf %203, %207 : vector<2x64xf32>
    %209 = vector.extract_strided_slice %187 {offsets = [8, 0], sizes = [2, 32], strides = [1, 1]} : vector<32x32xf32> to vector<2x32xf32>
    %c4_123 = arith.constant 4 : index
    %c0_124 = arith.constant 0 : index
    %c0_125 = arith.constant 0 : index
    %210 = vector.load %arg8[%c4_123, %c0_124, %c0_125] : memref<16x32x64xf32, #tpu.memory_space<vmem>>, vector<1x32x64xf32>
    %211 = vector.shape_cast %210 : vector<1x32x64xf32> to vector<32x64xf32>
    %cst_126 = arith.constant dense<0.000000e+00> : vector<2x64xf32>
    %212 = tpu.matmul %209, %211, %cst_126 {dimension_numbers = #tpu.dot_dimension_numbers<[1], [0], [0], [1], [0, 0, 1, 1], [], []>} : vector<2x32xf32>, vector<32x64xf32>, vector<2x64xf32> -> vector<2x64xf32>
    %213 = arith.addf %208, %212 : vector<2x64xf32>
    %214 = vector.extract_strided_slice %187 {offsets = [10, 0], sizes = [2, 32], strides = [1, 1]} : vector<32x32xf32> to vector<2x32xf32>
    %c5_127 = arith.constant 5 : index
    %c0_128 = arith.constant 0 : index
    %c0_129 = arith.constant 0 : index
    %215 = vector.load %arg8[%c5_127, %c0_128, %c0_129] : memref<16x32x64xf32, #tpu.memory_space<vmem>>, vector<1x32x64xf32>
    %216 = vector.shape_cast %215 : vector<1x32x64xf32> to vector<32x64xf32>
    %cst_130 = arith.constant dense<0.000000e+00> : vector<2x64xf32>
    %217 = tpu.matmul %214, %216, %cst_130 {dimension_numbers = #tpu.dot_dimension_numbers<[1], [0], [0], [1], [0, 0, 1, 1], [], []>} : vector<2x32xf32>, vector<32x64xf32>, vector<2x64xf32> -> vector<2x64xf32>
    %218 = arith.addf %213, %217 : vector<2x64xf32>
    %219 = vector.extract_strided_slice %187 {offsets = [12, 0], sizes = [2, 32], strides = [1, 1]} : vector<32x32xf32> to vector<2x32xf32>
    %c6_131 = arith.constant 6 : index
    %c0_132 = arith.constant 0 : index
    %c0_133 = arith.constant 0 : index
    %220 = vector.load %arg8[%c6_131, %c0_132, %c0_133] : memref<16x32x64xf32, #tpu.memory_space<vmem>>, vector<1x32x64xf32>
    %221 = vector.shape_cast %220 : vector<1x32x64xf32> to vector<32x64xf32>
    %cst_134 = arith.constant dense<0.000000e+00> : vector<2x64xf32>
    %222 = tpu.matmul %219, %221, %cst_134 {dimension_numbers = #tpu.dot_dimension_numbers<[1], [0], [0], [1], [0, 0, 1, 1], [], []>} : vector<2x32xf32>, vector<32x64xf32>, vector<2x64xf32> -> vector<2x64xf32>
    %223 = arith.addf %218, %222 : vector<2x64xf32>
    %224 = vector.extract_strided_slice %187 {offsets = [14, 0], sizes = [2, 32], strides = [1, 1]} : vector<32x32xf32> to vector<2x32xf32>
    %c7_135 = arith.constant 7 : index
    %c0_136 = arith.constant 0 : index
    %c0_137 = arith.constant 0 : index
    %225 = vector.load %arg8[%c7_135, %c0_136, %c0_137] : memref<16x32x64xf32, #tpu.memory_space<vmem>>, vector<1x32x64xf32>
    %226 = vector.shape_cast %225 : vector<1x32x64xf32> to vector<32x64xf32>
    %cst_138 = arith.constant dense<0.000000e+00> : vector<2x64xf32>
    %227 = tpu.matmul %224, %226, %cst_138 {dimension_numbers = #tpu.dot_dimension_numbers<[1], [0], [0], [1], [0, 0, 1, 1], [], []>} : vector<2x32xf32>, vector<32x64xf32>, vector<2x64xf32> -> vector<2x64xf32>
    %228 = arith.addf %223, %227 : vector<2x64xf32>
    %229 = vector.extract_strided_slice %187 {offsets = [16, 0], sizes = [2, 32], strides = [1, 1]} : vector<32x32xf32> to vector<2x32xf32>
    %c8_139 = arith.constant 8 : index
    %c0_140 = arith.constant 0 : index
    %c0_141 = arith.constant 0 : index
    %230 = vector.load %arg8[%c8_139, %c0_140, %c0_141] : memref<16x32x64xf32, #tpu.memory_space<vmem>>, vector<1x32x64xf32>
    %231 = vector.shape_cast %230 : vector<1x32x64xf32> to vector<32x64xf32>
    %cst_142 = arith.constant dense<0.000000e+00> : vector<2x64xf32>
    %232 = tpu.matmul %229, %231, %cst_142 {dimension_numbers = #tpu.dot_dimension_numbers<[1], [0], [0], [1], [0, 0, 1, 1], [], []>} : vector<2x32xf32>, vector<32x64xf32>, vector<2x64xf32> -> vector<2x64xf32>
    %233 = arith.addf %228, %232 : vector<2x64xf32>
    %234 = vector.extract_strided_slice %187 {offsets = [18, 0], sizes = [2, 32], strides = [1, 1]} : vector<32x32xf32> to vector<2x32xf32>
    %c9 = arith.constant 9 : index
    %c0_143 = arith.constant 0 : index
    %c0_144 = arith.constant 0 : index
    %235 = vector.load %arg8[%c9, %c0_143, %c0_144] : memref<16x32x64xf32, #tpu.memory_space<vmem>>, vector<1x32x64xf32>
    %236 = vector.shape_cast %235 : vector<1x32x64xf32> to vector<32x64xf32>
    %cst_145 = arith.constant dense<0.000000e+00> : vector<2x64xf32>
    %237 = tpu.matmul %234, %236, %cst_145 {dimension_numbers = #tpu.dot_dimension_numbers<[1], [0], [0], [1], [0, 0, 1, 1], [], []>} : vector<2x32xf32>, vector<32x64xf32>, vector<2x64xf32> -> vector<2x64xf32>
    %238 = arith.addf %233, %237 : vector<2x64xf32>
    %239 = vector.extract_strided_slice %187 {offsets = [20, 0], sizes = [2, 32], strides = [1, 1]} : vector<32x32xf32> to vector<2x32xf32>
    %c10 = arith.constant 10 : index
    %c0_146 = arith.constant 0 : index
    %c0_147 = arith.constant 0 : index
    %240 = vector.load %arg8[%c10, %c0_146, %c0_147] : memref<16x32x64xf32, #tpu.memory_space<vmem>>, vector<1x32x64xf32>
    %241 = vector.shape_cast %240 : vector<1x32x64xf32> to vector<32x64xf32>
    %cst_148 = arith.constant dense<0.000000e+00> : vector<2x64xf32>
    %242 = tpu.matmul %239, %241, %cst_148 {dimension_numbers = #tpu.dot_dimension_numbers<[1], [0], [0], [1], [0, 0, 1, 1], [], []>} : vector<2x32xf32>, vector<32x64xf32>, vector<2x64xf32> -> vector<2x64xf32>
    %243 = arith.addf %238, %242 : vector<2x64xf32>
    %244 = vector.extract_strided_slice %187 {offsets = [22, 0], sizes = [2, 32], strides = [1, 1]} : vector<32x32xf32> to vector<2x32xf32>
    %c11 = arith.constant 11 : index
    %c0_149 = arith.constant 0 : index
    %c0_150 = arith.constant 0 : index
    %245 = vector.load %arg8[%c11, %c0_149, %c0_150] : memref<16x32x64xf32, #tpu.memory_space<vmem>>, vector<1x32x64xf32>
    %246 = vector.shape_cast %245 : vector<1x32x64xf32> to vector<32x64xf32>
    %cst_151 = arith.constant dense<0.000000e+00> : vector<2x64xf32>
    %247 = tpu.matmul %244, %246, %cst_151 {dimension_numbers = #tpu.dot_dimension_numbers<[1], [0], [0], [1], [0, 0, 1, 1], [], []>} : vector<2x32xf32>, vector<32x64xf32>, vector<2x64xf32> -> vector<2x64xf32>
    %248 = arith.addf %243, %247 : vector<2x64xf32>
    %249 = vector.extract_strided_slice %187 {offsets = [24, 0], sizes = [2, 32], strides = [1, 1]} : vector<32x32xf32> to vector<2x32xf32>
    %c12 = arith.constant 12 : index
    %c0_152 = arith.constant 0 : index
    %c0_153 = arith.constant 0 : index
    %250 = vector.load %arg8[%c12, %c0_152, %c0_153] : memref<16x32x64xf32, #tpu.memory_space<vmem>>, vector<1x32x64xf32>
    %251 = vector.shape_cast %250 : vector<1x32x64xf32> to vector<32x64xf32>
    %cst_154 = arith.constant dense<0.000000e+00> : vector<2x64xf32>
    %252 = tpu.matmul %249, %251, %cst_154 {dimension_numbers = #tpu.dot_dimension_numbers<[1], [0], [0], [1], [0, 0, 1, 1], [], []>} : vector<2x32xf32>, vector<32x64xf32>, vector<2x64xf32> -> vector<2x64xf32>
    %253 = arith.addf %248, %252 : vector<2x64xf32>
    %254 = vector.extract_strided_slice %187 {offsets = [26, 0], sizes = [2, 32], strides = [1, 1]} : vector<32x32xf32> to vector<2x32xf32>
    %c13 = arith.constant 13 : index
    %c0_155 = arith.constant 0 : index
    %c0_156 = arith.constant 0 : index
    %255 = vector.load %arg8[%c13, %c0_155, %c0_156] : memref<16x32x64xf32, #tpu.memory_space<vmem>>, vector<1x32x64xf32>
    %256 = vector.shape_cast %255 : vector<1x32x64xf32> to vector<32x64xf32>
    %cst_157 = arith.constant dense<0.000000e+00> : vector<2x64xf32>
    %257 = tpu.matmul %254, %256, %cst_157 {dimension_numbers = #tpu.dot_dimension_numbers<[1], [0], [0], [1], [0, 0, 1, 1], [], []>} : vector<2x32xf32>, vector<32x64xf32>, vector<2x64xf32> -> vector<2x64xf32>
    %258 = arith.addf %253, %257 : vector<2x64xf32>
    %259 = vector.extract_strided_slice %187 {offsets = [28, 0], sizes = [2, 32], strides = [1, 1]} : vector<32x32xf32> to vector<2x32xf32>
    %c14 = arith.constant 14 : index
    %c0_158 = arith.constant 0 : index
    %c0_159 = arith.constant 0 : index
    %260 = vector.load %arg8[%c14, %c0_158, %c0_159] : memref<16x32x64xf32, #tpu.memory_space<vmem>>, vector<1x32x64xf32>
    %261 = vector.shape_cast %260 : vector<1x32x64xf32> to vector<32x64xf32>
    %cst_160 = arith.constant dense<0.000000e+00> : vector<2x64xf32>
    %262 = tpu.matmul %259, %261, %cst_160 {dimension_numbers = #tpu.dot_dimension_numbers<[1], [0], [0], [1], [0, 0, 1, 1], [], []>} : vector<2x32xf32>, vector<32x64xf32>, vector<2x64xf32> -> vector<2x64xf32>
    %263 = arith.addf %258, %262 : vector<2x64xf32>
    %264 = vector.extract_strided_slice %187 {offsets = [30, 0], sizes = [2, 32], strides = [1, 1]} : vector<32x32xf32> to vector<2x32xf32>
    %c15 = arith.constant 15 : index
    %c0_161 = arith.constant 0 : index
    %c0_162 = arith.constant 0 : index
    %265 = vector.load %arg8[%c15, %c0_161, %c0_162] : memref<16x32x64xf32, #tpu.memory_space<vmem>>, vector<1x32x64xf32>
    %266 = vector.shape_cast %265 : vector<1x32x64xf32> to vector<32x64xf32>
    %cst_163 = arith.constant dense<0.000000e+00> : vector<2x64xf32>
    %267 = tpu.matmul %264, %266, %cst_163 {dimension_numbers = #tpu.dot_dimension_numbers<[1], [0], [0], [1], [0, 0, 1, 1], [], []>} : vector<2x32xf32>, vector<32x64xf32>, vector<2x64xf32> -> vector<2x64xf32>
    %268 = arith.addf %263, %267 : vector<2x64xf32>
    %c0_164 = arith.constant 0 : index
    %c0_165 = arith.constant 0 : index
    %269 = vector.load %arg9[%c0_164, %c0_165] : memref<1x64xf32, #tpu.memory_space<vmem>>, vector<1x64xf32>
    %270 = vector.broadcast %269 : vector<1x64xf32> to vector<2x64xf32>
    %271 = arith.addf %268, %270 : vector<2x64xf32>
    %cst_166 = arith.constant 5.000000e-01 : f32
    %272 = vector.broadcast %cst_166 : f32 to vector<2x64xf32>
    %273 = arith.mulf %272, %271 : vector<2x64xf32>
    %cst_167 = arith.constant 4.471500e-02 : f32
    %274 = vector.broadcast %cst_167 : f32 to vector<2x64xf32>
    %275 = arith.mulf %274, %271 : vector<2x64xf32>
    %276 = arith.mulf %275, %271 : vector<2x64xf32>
    %277 = arith.mulf %276, %271 : vector<2x64xf32>
    %278 = arith.addf %271, %277 : vector<2x64xf32>
    %cst_168 = arith.constant 0.797884583 : f32
    %279 = vector.broadcast %cst_168 : f32 to vector<2x64xf32>
    %280 = arith.mulf %279, %278 : vector<2x64xf32>
    %281 = math.tanh %280 : vector<2x64xf32>
    %cst_169 = arith.constant 1.000000e+00 : f32
    %282 = vector.broadcast %cst_169 : f32 to vector<2x64xf32>
    %283 = arith.addf %282, %281 : vector<2x64xf32>
    %284 = arith.mulf %273, %283 : vector<2x64xf32>
    %c0_170 = arith.constant 0 : index
    %c0_171 = arith.constant 0 : index
    %285 = vector.load %arg10[%c0_170, %c0_171] : memref<64x32xf32, #tpu.memory_space<vmem>>, vector<64x32xf32>
    %cst_172 = arith.constant dense<0.000000e+00> : vector<2x32xf32>
    %286 = tpu.matmul %284, %285, %cst_172 {dimension_numbers = #tpu.dot_dimension_numbers<[1], [0], [0], [1], [0, 0, 1, 1], [], []>} : vector<2x64xf32>, vector<64x32xf32>, vector<2x32xf32> -> vector<2x32xf32>
    %c0_173 = arith.constant 0 : index
    %c0_174 = arith.constant 0 : index
    %287 = vector.load %arg11[%c0_173, %c0_174] : memref<1x32xf32, #tpu.memory_space<vmem>>, vector<1x32xf32>
    %288 = vector.broadcast %287 : vector<1x32xf32> to vector<2x32xf32>
    %289 = arith.addf %286, %288 : vector<2x32xf32>
    %c0_175 = arith.constant 0 : index
    %c0_176 = arith.constant 0 : index
    %290 = vector.load %arg12[%c0_175, %c0_176] : memref<2x32xf32, #tpu.memory_space<vmem>>, vector<2x32xf32>
    tpu.vector_store %arg12[%c0_175, %c0_176], %289 {strides = array<i32>} : memref<2x32xf32, #tpu.memory_space<vmem>>, vector<2x32xf32>,
    return
  }
  func.func @transform_0(%arg0: i32) -> (i32, i32, i32, i32) {
    %c0_i32 = arith.constant 0 : i32
    %c0_i32_0 = arith.constant 0 : i32
    %c0_i32_1 = arith.constant 0 : i32
    %c0_i32_2 = arith.constant 0 : i32
    return %arg0, %c0_i32, %c0_i32_0, %c0_i32_1 : i32, i32, i32, i32
  }
  func.func @transform_1(%arg0: i32) -> (i32, i32, i32) {
    %c0_i32 = arith.constant 0 : i32
    %c0_i32_0 = arith.constant 0 : i32
    %c0_i32_1 = arith.constant 0 : i32
    %c0_i32_2 = arith.constant 0 : i32
    return %c0_i32, %c0_i32_0, %c0_i32_1 : i32, i32, i32
  }
  func.func @transform_2(%arg0: i32) -> (i32, i32) {
    %c0_i32 = arith.constant 0 : i32
    %c0_i32_0 = arith.constant 0 : i32
    %c0_i32_1 = arith.constant 0 : i32
    return %c0_i32, %c0_i32_0 : i32, i32
  }
  func.func @transform_3(%arg0: i32) -> (i32, i32, i32) {
    %c0_i32 = arith.constant 0 : i32
    %c0_i32_0 = arith.constant 0 : i32
    %c0_i32_1 = arith.constant 0 : i32
    %c0_i32_2 = arith.constant 0 : i32
    return %c0_i32, %c0_i32_0, %c0_i32_1 : i32, i32, i32
  }
  func.func @transform_4(%arg0: i32) -> (i32, i32, i32) {
    %c0_i32 = arith.constant 0 : i32
    %c0_i32_0 = arith.constant 0 : i32
    %c0_i32_1 = arith.constant 0 : i32
    %c0_i32_2 = arith.constant 0 : i32
    return %c0_i32, %c0_i32_0, %c0_i32_1 : i32, i32, i32
  }
  func.func @transform_5(%arg0: i32) -> (i32, i32) {
    %c0_i32 = arith.constant 0 : i32
    %c0_i32_0 = arith.constant 0 : i32
    %c0_i32_1 = arith.constant 0 : i32
    return %c0_i32, %c0_i32_0 : i32, i32
  }
  func.func @transform_6(%arg0: i32) -> (i32, i32, i32) {
    %c0_i32 = arith.constant 0 : i32
    %c0_i32_0 = arith.constant 0 : i32
    %c0_i32_1 = arith.constant 0 : i32
    %c0_i32_2 = arith.constant 0 : i32
    return %c0_i32, %c0_i32_0, %c0_i32_1 : i32, i32, i32
  }
  func.func @transform_7(%arg0: i32) -> (i32, i32, i32) {
    %c0_i32 = arith.constant 0 : i32
    %c0_i32_0 = arith.constant 0 : i32
    %c0_i32_1 = arith.constant 0 : i32
    %c0_i32_2 = arith.constant 0 : i32
    return %c0_i32, %c0_i32_0, %c0_i32_1 : i32, i32, i32
  }
  func.func @transform_8(%arg0: i32) -> (i32, i32) {
    %c0_i32 = arith.constant 0 : i32
    %c0_i32_0 = arith.constant 0 : i32
    %c0_i32_1 = arith.constant 0 : i32
    return %c0_i32, %c0_i32_0 : i32, i32
  }
  func.func @transform_9(%arg0: i32) -> (i32, i32) {
    %c0_i32 = arith.constant 0 : i32
    %c0_i32_0 = arith.constant 0 : i32
    %c0_i32_1 = arith.constant 0 : i32
    return %c0_i32, %c0_i32_0 : i32, i32
  }
  func.func @transform_10(%arg0: i32) -> (i32, i32) {
    %c0_i32 = arith.constant 0 : i32
    %c0_i32_0 = arith.constant 0 : i32
    %c0_i32_1 = arith.constant 0 : i32
    return %c0_i32, %c0_i32_0 : i32, i32
  }
  func.func @transform_11(%arg0: i32) -> (i32, i32) {
    %c0_i32 = arith.constant 0 : i32
    %c0_i32_0 = arith.constant 0 : i32
    return %arg0, %c0_i32 : i32, i32
  }
}

</mosaic_0001>

<llo_original>
// kernel: tpu_custom_call.1
$region0: #{tpu_custom_call.1}
  #allocation0 [shape = 'u32[]', space=smem, size = 0x4, offset = 0x4, fixed_abs, tag = 'smem constant byte address 0x4 - core index']
  #allocation1 [shape = 'u32[144,128]{1,0:T(1,128)}', space=vmem, size = 0x12000, scoped, tag = 'internal scratch']
  %s0 = inlined_call_operand.vmem [shape: f32[2,18,18,4], index: 0, kind: input, shape index: {}]
  %s1 = inlined_call_operand.vmem [shape: f32[9,4,16], index: 1, kind: input, shape index: {}]
  %s2 = inlined_call_operand.vmem [shape: f32[1,16], index: 2, kind: input, shape index: {}]
  %s3 = inlined_call_operand.hbm [shape: f32[3,320,256], index: 3, kind: input, shape index: {}]
  %s4 = inlined_call_operand.vmem [shape: f32[9,16,32], index: 4, kind: input, shape index: {}]
  %s5 = inlined_call_operand.vmem [shape: f32[1,32], index: 5, kind: input, shape index: {}]
  %s6 = inlined_call_operand.vmem [shape: f32[3,32,64], index: 6, kind: input, shape index: {}]
  %s7 = inlined_call_operand.vmem [shape: f32[16,32,64], index: 7, kind: input, shape index: {}]
  %s8 = inlined_call_operand.vmem [shape: f32[1,64], index: 8, kind: input, shape index: {}]
  %s9 = inlined_call_operand.vmem [shape: f32[64,32], index: 9, kind: input, shape index: {}]
  %s10 = inlined_call_operand.vmem [shape: f32[1,32], index: 10, kind: input, shape index: {}]
  %s11 = inlined_call_operand.hbm [shape: f32[2,32], index: 11, kind: output, shape index: {}]
  %s12 = sld [smem:[#allocation0]]
  $region58: #{tpu_custom_call.1} parent=0
    _
  %s14 = ssub.s32 1, %s12
  %s15 = scalar_select 0, %s14, %s12
  $region1: #{tpu_custom_call.1} parent=0
    #allocation2 [shape = 'u8[983040]{0}', space=vmem, size = 0xf0000, scoped, tag = 'input window, operand 3, single buffered']
    #allocation3 [shape = 's32[1]{0}', space=sflag, size = 0x4, scoped, tag = 'scoped memory for tpu_custom_call.1']
    #allocation4 [shape = 's32[1]{0}', space=sflag, size = 0x4, scoped, tag = 'scoped memory for tpu_custom_call.1']
    #allocation5 [shape = 'u8[1024]{0}', space=vmem, size = 0x400, scoped, tag = 'output window, operand 0, single buffered']
    %16 = vsyncpa [#allocation3], 0
    %17 = vsyncpa [#allocation4], 0
    // Predicated region
    $region2: #{tpu_custom_call.1} parent=1 // pred_check
      _
    $region3: #{tpu_custom_call.1} parent=1 // pred_check_branch
      %19 = sbr.rel (0) target = $region5
    $region4: #{tpu_custom_call.1} parent=1 // pred_region
      _
    $region5: #{tpu_custom_call.1} parent=1 // pred_fallthru
      _
    // Predicated region
    $region6: #{tpu_custom_call.1} parent=1 // pred_check
      _
    $region7: #{tpu_custom_call.1} parent=1 // pred_check_branch
      %21 = sbr.rel (0) target = $region9
    $region8: #{tpu_custom_call.1} parent=1 // pred_region
      _
    $region9: #{tpu_custom_call.1} parent=1 // pred_fallthru
      _
    // Predicated region
    $region10: #{tpu_custom_call.1} parent=1 // pred_check
      _
    $region11: #{tpu_custom_call.1} parent=1 // pred_check_branch
      %23 = sbr.rel (0) target = $region13
    $region12: #{tpu_custom_call.1} parent=1 // pred_region
      _
    $region13: #{tpu_custom_call.1} parent=1 // pred_fallthru
      _
    // Predicated region
    $region14: #{tpu_custom_call.1} parent=1 // pred_check
      _
    $region15: #{tpu_custom_call.1} parent=1 // pred_check_branch
      %25 = sbr.rel (0) target = $region17
    $region16: #{tpu_custom_call.1} parent=1 // pred_region
      %s27 = ssub.s32 30720, 30720
      %28 = vsyncadd [#allocation3], %s27
      %s29 = sshll.u32 [#allocation2], 4
      %s30 = int_to_ptr.vmem [resolvable:$true] %s29
      %35 = dma.hbm_to_vmem [thread:$0]  %s3, 30720, %s30, [#allocation3], 256, 256, 16
    $region17: #{tpu_custom_call.1} parent=1 // pred_fallthru
      _
    // Predicated region
    $region18: #{tpu_custom_call.1} parent=1 // pred_check
      _
    $region19: #{tpu_custom_call.1} parent=1 // pred_check_branch
      %37 = sbr.rel (0) target = $region21
    $region20: #{tpu_custom_call.1} parent=1 // pred_region
      _
    $region21: #{tpu_custom_call.1} parent=1 // pred_fallthru
      _
    // Predicated region
    $region22: #{tpu_custom_call.1} parent=1 // pred_check
      _
    $region23: #{tpu_custom_call.1} parent=1 // pred_check_branch
      %39 = sbr.rel (0) target = $region25
    $region24: #{tpu_custom_call.1} parent=1 // pred_region
      _
    $region25: #{tpu_custom_call.1} parent=1 // pred_fallthru
      _
    // Predicated region
    $region26: #{tpu_custom_call.1} parent=1 // pred_check
      _
    $region27: #{tpu_custom_call.1} parent=1 // pred_check_branch
      %41 = sbr.rel (0) target = $region29
    $region28: #{tpu_custom_call.1} parent=1 // pred_region
      _
    $region29: #{tpu_custom_call.1} parent=1 // pred_fallthru
      _
    // Predicated region
    $region30: #{tpu_custom_call.1} parent=1 // pred_check
      _
    $region31: #{tpu_custom_call.1} parent=1 // pred_check_branch
      %43 = sbr.rel (0) target = $region33
    $region32: #{tpu_custom_call.1} parent=1 // pred_region
      _
    $region33: #{tpu_custom_call.1} parent=1 // pred_fallthru
      _
    // Predicated region
    $region34: #{tpu_custom_call.1} parent=1 // pred_check
      _
    $region35: #{tpu_custom_call.1} parent=1 // pred_check_branch
      %45 = sbr.rel (0) target = $region37
    $region36: #{tpu_custom_call.1} parent=1 // pred_region
      _
    $region37: #{tpu_custom_call.1} parent=1 // pred_fallthru
      _
    // Predicated region
    $region38: #{tpu_custom_call.1} parent=1 // pred_check
      _
    $region39: #{tpu_custom_call.1} parent=1 // pred_check_branch
      %47 = sbr.rel (0) target = $region41
    $region40: #{tpu_custom_call.1} parent=1 // pred_region
      _
    $region41: #{tpu_custom_call.1} parent=1 // pred_fallthru
      _
    // Predicated region
    $region42: #{tpu_custom_call.1} parent=1 // pred_check
      _
    $region43: #{tpu_custom_call.1} parent=1 // pred_check_branch
      %49 = sbr.rel (0) target = $region45
    $region44: #{tpu_custom_call.1} parent=1 // pred_region
      _
    $region45: #{tpu_custom_call.1} parent=1 // pred_fallthru
      _
    // Predicated region
    $region46: #{tpu_custom_call.1} parent=1 // pred_check
      _
    $region47: #{tpu_custom_call.1} parent=1 // pred_check_branch
      %51 = sbr.rel (0) target = $region49
    $region48: #{tpu_custom_call.1} parent=1 // pred_region
      %52 = dma.done [#allocation3], 30720
    $region49: #{tpu_custom_call.1} parent=1 // pred_fallthru
      _
    %v53 = vld [vmem:[%s0] sm:$0xff]
    %v54 = vld [vmem:[%s0 + $0x8] sm:$0xff]
    %v55 = vld [vmem:[%s0 + $0x10] sm:$0x3]
    %v56 = vld [vmem:[%s0 + $0x18] sm:$0xff]
    %v57 = vld [vmem:[%s0 + $0x20] sm:$0xff]
    %v58 = vld [vmem:[%s0 + $0x28] sm:$0x3]
    %v59 = vld [vmem:[%s0 + $0x30] sm:$0xff]
    %v60 = vld [vmem:[%s0 + $0x38] sm:$0xff]
    %v61 = vld [vmem:[%s0 + $0x40] sm:$0x3]
    %v62 = vld [vmem:[%s0 + $0x48] sm:$0xff]
    %v63 = vld [vmem:[%s0 + $0x50] sm:$0xff]
    %v64 = vld [vmem:[%s0 + $0x58] sm:$0x3]
    %v65 = vld [vmem:[%s0 + $0x60] sm:$0xff]
    %v66 = vld [vmem:[%s0 + $0x68] sm:$0xff]
    %v67 = vld [vmem:[%s0 + $0x70] sm:$0x3]
    %v68 = vld [vmem:[%s0 + $0x78] sm:$0xff]
    %v69 = vld [vmem:[%s0 + $0x80] sm:$0xff]
    %v70 = vld [vmem:[%s0 + $0x88] sm:$0x3]
    %v71 = vld [vmem:[%s0 + $0x90] sm:$0xff]
    %v72 = vld [vmem:[%s0 + $0x98] sm:$0xff]
    %v73 = vld [vmem:[%s0 + $0xa0] sm:$0x3]
    %v74 = vld [vmem:[%s0 + $0xa8] sm:$0xff]
    %v75 = vld [vmem:[%s0 + $0xb0] sm:$0xff]
    %v76 = vld [vmem:[%s0 + $0xb8] sm:$0x3]
    %v77 = vld [vmem:[%s0 + $0xc0] sm:$0xff]
    %v78 = vld [vmem:[%s0 + $0xc8] sm:$0xff]
    %v79 = vld [vmem:[%s0 + $0xd0] sm:$0x3]
    %v80 = vld [vmem:[%s0 + $0xd8] sm:$0xff]
    %v81 = vld [vmem:[%s0 + $0xe0] sm:$0xff]
    %v82 = vld [vmem:[%s0 + $0xe8] sm:$0x3]
    %v83 = vld [vmem:[%s0 + $0xf0] sm:$0xff]
    %v84 = vld [vmem:[%s0 + $0xf8] sm:$0xff]
    %v85 = vld [vmem:[%s0 + $0x100] sm:$0x3]
    %v86 = vld [vmem:[%s0 + $0x108] sm:$0xff]
    %v87 = vld [vmem:[%s0 + $0x110] sm:$0xff]
    %v88 = vld [vmem:[%s0 + $0x118] sm:$0x3]
    %v89 = vld [vmem:[%s0 + $0x120] sm:$0xff]
    %v90 = vld [vmem:[%s0 + $0x128] sm:$0xff]
    %v91 = vld [vmem:[%s0 + $0x130] sm:$0x3]
    %v92 = vld [vmem:[%s0 + $0x138] sm:$0xff]
    %v93 = vld [vmem:[%s0 + $0x140] sm:$0xff]
    %v94 = vld [vmem:[%s0 + $0x148] sm:$0x3]
    %v95 = vld [vmem:[%s0 + $0x150] sm:$0xff]
    %v96 = vld [vmem:[%s0 + $0x158] sm:$0xff]
    %v97 = vld [vmem:[%s0 + $0x160] sm:$0x3]
    %v98 = vld [vmem:[%s0 + $0x168] sm:$0xff]
    %v99 = vld [vmem:[%s0 + $0x170] sm:$0xff]
    %v100 = vld [vmem:[%s0 + $0x178] sm:$0x3]
    %v101 = vld [vmem:[%s0 + $0x180] sm:$0xff]
    %v102 = vld [vmem:[%s0 + $0x188] sm:$0xff]
    %v103 = vld [vmem:[%s0 + $0x190] sm:$0x3]
    %v104 = vld [vmem:[%s0 + $0x198] sm:$0xff]
    %v105 = vld [vmem:[%s0 + $0x1a0] sm:$0xff]
    %v106 = vld [vmem:[%s0 + $0x1a8] sm:$0x3]
    %v107 = vld [vmem:[%s0 + $0x1b0] sm:$0xff]
    %v108 = vld [vmem:[%s0 + $0x1b8] sm:$0xff]
    %v109 = vld [vmem:[%s0 + $0x1c0] sm:$0x3]
    %v110 = vld [vmem:[%s0 + $0x1c8] sm:$0xff]
    %v111 = vld [vmem:[%s0 + $0x1d0] sm:$0xff]
    %v112 = vld [vmem:[%s0 + $0x1d8] sm:$0x3]
    %v113 = vld [vmem:[%s0 + $0x1e0] sm:$0xff]
    %v114 = vld [vmem:[%s0 + $0x1e8] sm:$0xff]
    %v115 = vld [vmem:[%s0 + $0x1f0] sm:$0x3]
    %v116 = vld [vmem:[%s0 + $0x1f8] sm:$0xff]
    %v117 = vld [vmem:[%s0 + $0x200] sm:$0xff]
    %v118 = vld [vmem:[%s0 + $0x208] sm:$0x3]
    %v119 = vld [vmem:[%s0 + $0x210] sm:$0xff]
    %v120 = vld [vmem:[%s0 + $0x218] sm:$0xff]
    %v121 = vld [vmem:[%s0 + $0x220] sm:$0x3]
    %v122 = vld [vmem:[%s0 + $0x228] sm:$0xff]
    %v123 = vld [vmem:[%s0 + $0x230] sm:$0xff]
    %v124 = vld [vmem:[%s0 + $0x238] sm:$0x3]
    %v125 = vld [vmem:[%s0 + $0x240] sm:$0xff]
    %v126 = vld [vmem:[%s0 + $0x248] sm:$0xff]
    %v127 = vld [vmem:[%s0 + $0x250] sm:$0x3]
    %v128 = vld [vmem:[%s0 + $0x258] sm:$0xff]
    %v129 = vld [vmem:[%s0 + $0x260] sm:$0xff]
    %v130 = vld [vmem:[%s0 + $0x268] sm:$0x3]
    %v131 = vld [vmem:[%s0 + $0x270] sm:$0xff]
    %v132 = vld [vmem:[%s0 + $0x278] sm:$0xff]
    %v133 = vld [vmem:[%s0 + $0x280] sm:$0x3]
    %v134 = vld [vmem:[%s0 + $0x288] sm:$0xff]
    %v135 = vld [vmem:[%s0 + $0x290] sm:$0xff]
    %v136 = vld [vmem:[%s0 + $0x298] sm:$0x3]
    %v137 = vld [vmem:[%s0 + $0x2a0] sm:$0xff]
    %v138 = vld [vmem:[%s0 + $0x2a8] sm:$0xff]
    %v139 = vld [vmem:[%s0 + $0x2b0] sm:$0x3]
    %v140 = vld [vmem:[%s0 + $0x2b8] sm:$0xff]
    %v141 = vld [vmem:[%s0 + $0x2c0] sm:$0xff]
    %v142 = vld [vmem:[%s0 + $0x2c8] sm:$0x3]
    %v143 = vld [vmem:[%s0 + $0x2d0] sm:$0xff]
    %v144 = vld [vmem:[%s0 + $0x2d8] sm:$0xff]
    %v145 = vld [vmem:[%s0 + $0x2e0] sm:$0x3]
    %v146 = vld [vmem:[%s0 + $0x2e8] sm:$0xff]
    %v147 = vld [vmem:[%s0 + $0x2f0] sm:$0xff]
    %v148 = vld [vmem:[%s0 + $0x2f8] sm:$0x3]
    %v149 = vld [vmem:[%s0 + $0x300] sm:$0xff]
    %v150 = vld [vmem:[%s0 + $0x308] sm:$0xff]
    %v151 = vld [vmem:[%s0 + $0x310] sm:$0x3]
    %v152 = vld [vmem:[%s0 + $0x318] sm:$0xff]
    %v153 = vld [vmem:[%s0 + $0x320] sm:$0xff]
    %v154 = vld [vmem:[%s0 + $0x328] sm:$0x3]
    %v155 = vld [vmem:[%s0 + $0x330] sm:$0xff]
    %v156 = vld [vmem:[%s0 + $0x338] sm:$0xff]
    %v157 = vld [vmem:[%s0 + $0x340] sm:$0x3]
    %v158 = vld [vmem:[%s0 + $0x348] sm:$0xff]
    %v159 = vld [vmem:[%s0 + $0x350] sm:$0xff]
    %v160 = vld [vmem:[%s0 + $0x358] sm:$0x3]
    %v161 = vld [vmem:[%s1] sm:$0xf]
    %vm258 = vcmask 1046528
    %v259 = vrot.slane %v53, 1
    %v260 = vrot.slane %v54, 1
    %v261 = vsel %vm258, %v259, %v260
    %v262 = vrot.slane %v55, 1
    %v263 = vsel %vm258, %v260, %v262
    %v264 = vrot.slane %v56, 1
    %v265 = vrot.slane %v57, 1
    %v266 = vsel %vm258, %v264, %v265
    %v267 = vrot.slane %v58, 1
    %v268 = vsel %vm258, %v265, %v267
    %v269 = vrot.slane %v59, 1
    %v270 = vrot.slane %v60, 1
    %v271 = vsel %vm258, %v269, %v270
    %v272 = vrot.slane %v61, 1
    %v273 = vsel %vm258, %v270, %v272
    %v274 = vrot.slane %v62, 1
    %v275 = vrot.slane %v63, 1
    %v276 = vsel %vm258, %v274, %v275
    %v277 = vrot.slane %v64, 1
    %v278 = vsel %vm258, %v275, %v277
    %v279 = vrot.slane %v65, 1
    %v280 = vrot.slane %v66, 1
    %v281 = vsel %vm258, %v279, %v280
    %v282 = vrot.slane %v67, 1
    %v283 = vsel %vm258, %v280, %v282
    %v284 = vrot.slane %v68, 1
    %v285 = vrot.slane %v69, 1
    %v286 = vsel %vm258, %v284, %v285
    %v287 = vrot.slane %v70, 1
    %v288 = vsel %vm258, %v285, %v287
    %v289 = vrot.slane %v71, 1
    %v290 = vrot.slane %v72, 1
    %v291 = vsel %vm258, %v289, %v290
    %v292 = vrot.slane %v73, 1
    %v293 = vsel %vm258, %v290, %v292
    %v294 = vrot.slane %v74, 1
    %v295 = vrot.slane %v75, 1
    %v296 = vsel %vm258, %v294, %v295
    %v297 = vrot.slane %v76, 1
    %v298 = vsel %vm258, %v295, %v297
    %v299 = vrot.slane %v77, 1
    %v300 = vrot.slane %v78, 1
    %v301 = vsel %vm258, %v299, %v300
    %v302 = vrot.slane %v79, 1
    %v303 = vsel %vm258, %v300, %v302
    %v304 = vrot.slane %v80, 1
    %v305 = vrot.slane %v81, 1
    %v306 = vsel %vm258, %v304, %v305
    %v307 = vrot.slane %v82, 1
    %v308 = vsel %vm258, %v305, %v307
    %v309 = vrot.slane %v83, 1
    %v310 = vrot.slane %v84, 1
    %v311 = vsel %vm258, %v309, %v310
    %v312 = vrot.slane %v85, 1
    %v313 = vsel %vm258, %v310, %v312
    %v314 = vrot.slane %v86, 1
    %v315 = vrot.slane %v87, 1
    %v316 = vsel %vm258, %v314, %v315
    %v317 = vrot.slane %v88, 1
    %v318 = vsel %vm258, %v315, %v317
    %v319 = vrot.slane %v89, 1
    %v320 = vrot.slane %v90, 1
    %v321 = vsel %vm258, %v319, %v320
    %v322 = vrot.slane %v91, 1
    %v323 = vsel %vm258, %v320, %v322
    %v324 = vrot.slane %v92, 1
    %v325 = vrot.slane %v93, 1
    %v326 = vsel %vm258, %v324, %v325
    %v327 = vrot.slane %v94, 1
    %v328 = vsel %vm258, %v325, %v327
    %v329 = vrot.slane %v95, 1
    %v330 = vrot.slane %v96, 1
    %v331 = vsel %vm258, %v329, %v330
    %v332 = vrot.slane %v97, 1
    %v333 = vsel %vm258, %v330, %v332
    %v334 = vrot.slane %v98, 1
    %v335 = vrot.slane %v99, 1
    %v336 = vsel %vm258, %v334, %v335
    %v337 = vrot.slane %v100, 1
    %v338 = vsel %vm258, %v335, %v337
    %v339 = vrot.slane %v107, 1
    %v340 = vrot.slane %v108, 1
    %v341 = vsel %vm258, %v339, %v340
    %v342 = vrot.slane %v109, 1
    %v343 = vsel %vm258, %v340, %v342
    %v344 = vrot.slane %v110, 1
    %v345 = vrot.slane %v111, 1
    %v346 = vsel %vm258, %v344, %v345
    %v347 = vrot.slane %v112, 1
    %v348 = vsel %vm258, %v345, %v347
    %v349 = vrot.slane %v113, 1
    %v350 = vrot.slane %v114, 1
    %v351 = vsel %vm258, %v349, %v350
    %v352 = vrot.slane %v115, 1
    %v353 = vsel %vm258, %v350, %v352
    %v354 = vrot.slane %v116, 1
    %v355 = vrot.slane %v117, 1
    %v356 = vsel %vm258, %v354, %v355
    %v357 = vrot.slane %v118, 1
    %v358 = vsel %vm258, %v355, %v357
    %v359 = vrot.slane %v119, 1
    %v360 = vrot.slane %v120, 1
    %v361 = vsel %vm258, %v359, %v360
    %v362 = vrot.slane %v121, 1
    %v363 = vsel %vm258, %v360, %v362
    %v364 = vrot.slane %v122, 1
    %v365 = vrot.slane %v123, 1
    %v366 = vsel %vm258, %v364, %v365
    %v367 = vrot.slane %v124, 1
    %v368 = vsel %vm258, %v365, %v367
    %v369 = vrot.slane %v125, 1
    %v370 = vrot.slane %v126, 1
    %v371 = vsel %vm258, %v369, %v370
    %v372 = vrot.slane %v127, 1
    %v373 = vsel %vm258, %v370, %v372
    %v374 = vrot.slane %v128, 1
    %v375 = vrot.slane %v129, 1
    %v376 = vsel %vm258, %v374, %v375
    %v377 = vrot.slane %v130, 1
    %v378 = vsel %vm258, %v375, %v377
    %v379 = vrot.slane %v131, 1
    %v380 = vrot.slane %v132, 1
    %v381 = vsel %vm258, %v379, %v380
    %v382 = vrot.slane %v133, 1
    %v383 = vsel %vm258, %v380, %v382
    %v384 = vrot.slane %v134, 1
    %v385 = vrot.slane %v135, 1
    %v386 = vsel %vm258, %v384, %v385
    %v387 = vrot.slane %v136, 1
    %v388 = vsel %vm258, %v385, %v387
    %v389 = vrot.slane %v137, 1
    %v390 = vrot.slane %v138, 1
    %v391 = vsel %vm258, %v389, %v390
    %v392 = vrot.slane %v139, 1
    %v393 = vsel %vm258, %v390, %v392
    %v394 = vrot.slane %v140, 1
    %v395 = vrot.slane %v141, 1
    %v396 = vsel %vm258, %v394, %v395
    %v397 = vrot.slane %v142, 1
    %v398 = vsel %vm258, %v395, %v397
    %v399 = vrot.slane %v143, 1
    %v400 = vrot.slane %v144, 1
    %v401 = vsel %vm258, %v399, %v400
    %v402 = vrot.slane %v145, 1
    %v403 = vsel %vm258, %v400, %v402
    %v404 = vrot.slane %v146, 1
    %v405 = vrot.slane %v147, 1
    %v406 = vsel %vm258, %v404, %v405
    %v407 = vrot.slane %v148, 1
    %v408 = vsel %vm258, %v405, %v407
    %v409 = vrot.slane %v149, 1
    %v410 = vrot.slane %v150, 1
    %v411 = vsel %vm258, %v409, %v410
    %v412 = vrot.slane %v151, 1
    %v413 = vsel %vm258, %v410, %v412
    %v414 = vrot.slane %v152, 1
    %v415 = vrot.slane %v153, 1
    %v416 = vsel %vm258, %v414, %v415
    %v417 = vrot.slane %v154, 1
    %v418 = vsel %vm258, %v415, %v417
    %s419 = scalar_lea.vmem %s1, 4
    %v420 = vld [vmem:[%s419] sm:$0xf]
    %vm421 = vcmask 31744
    %v422 = vsel %vm421, %v261, 0
    %v424 = vsel %vm421, %v263, 0
    %v426 = vsel %vm421, %v266, 0
    %v428 = vsel %vm421, %v268, 0
    %v430 = vsel %vm421, %v271, 0
    %v432 = vsel %vm421, %v273, 0
    %v434 = vsel %vm421, %v276, 0
    %v436 = vsel %vm421, %v278, 0
    %v438 = vsel %vm421, %v281, 0
    %v440 = vsel %vm421, %v283, 0
    %v442 = vsel %vm421, %v286, 0
    %v444 = vsel %vm421, %v288, 0
    %v446 = vsel %vm421, %v291, 0
    %v448 = vsel %vm421, %v293, 0
    %v450 = vsel %vm421, %v296, 0
    %v452 = vsel %vm421, %v298, 0
    %v454 = vsel %vm421, %v301, 0
    %v456 = vsel %vm421, %v303, 0
    %v458 = vsel %vm421, %v306, 0
    %v460 = vsel %vm421, %v308, 0
    %v462 = vsel %vm421, %v311, 0
    %v464 = vsel %vm421, %v313, 0
    %v466 = vsel %vm421, %v316, 0
    %v468 = vsel %vm421, %v318, 0
    %v470 = vsel %vm421, %v321, 0
    %v472 = vsel %vm421, %v323, 0
    %v474 = vsel %vm421, %v326, 0
    %v476 = vsel %vm421, %v328, 0
    %v478 = vsel %vm421, %v331, 0
    %v480 = vsel %vm421, %v333, 0
    %v482 = vsel %vm421, %v336, 0
    %v484 = vsel %vm421, %v338, 0
    %v486 = vsel %vm421, %v341, 0
    %v488 = vsel %vm421, %v343, 0
    %v490 = vsel %vm421, %v346, 0
    %v492 = vsel %vm421, %v348, 0
    %v494 = vsel %vm421, %v351, 0
    %v496 = vsel %vm421, %v353, 0
    %v498 = vsel %vm421, %v356, 0
    %v500 = vsel %vm421, %v358, 0
    %v502 = vsel %vm421, %v361, 0
    %v504 = vsel %vm421, %v363, 0
    %v506 = vsel %vm421, %v366, 0
    %v508 = vsel %vm421, %v368, 0
    %v510 = vsel %vm421, %v371, 0
    %v512 = vsel %vm421, %v373, 0
    %v514 = vsel %vm421, %v376, 0
    %v516 = vsel %vm421, %v378, 0
    %v518 = vsel %vm421, %v381, 0
    %v520 = vsel %vm421, %v383, 0
    %v522 = vsel %vm421, %v386, 0
    %v524 = vsel %vm421, %v388, 0
    %v526 = vsel %vm421, %v391, 0
    %v528 = vsel %vm421, %v393, 0
    %v530 = vsel %vm421, %v396, 0
    %v532 = vsel %vm421, %v398, 0
    %v534 = vsel %vm421, %v401, 0
    %v536 = vsel %vm421, %v403, 0
    %v538 = vsel %vm421, %v406, 0
    %v540 = vsel %vm421, %v408, 0
    %v542 = vsel %vm421, %v411, 0
    %v544 = vsel %vm421, %v413, 0
    %v546 = vsel %vm421, %v416, 0
    %v548 = vsel %vm421, %v418, 0
    %vm550 = vcmask 1043456
    %v552 = vsel %vm550, %v420, 0
    %554 = vmatprep.subr.mxu0 0.0
    %555 = vmatpush1.msra.mxu0 0.0
    %556 = vmatprep.subr.mxu0 0.0
    %557 = vmatpush1.msra.mxu0 0.0
    %558 = vmatprep.subr.mxu0 0.0
    %559 = vmatpush1.msra.mxu0 0.0
    %560 = vmatprep.subr.mxu0 0.0
    %561 = vmatpush1.msra.mxu0 0.0
    %562 = vmatprep.subr.mxu0 0.0
    %563 = vmatpush1.msra.mxu0 0.0
    %564 = vmatprep.subr.mxu0 0.0
    %565 = vmatpush1.msra.mxu0 0.0
    %566 = vmatprep.subr.mxu0 0.0
    %567 = vmatpush1.msra.mxu0 0.0
    %568 = vmatprep.subr.mxu0 0.0
    %569 = vmatpush1.msra.mxu0 0.0
    %570 = vmatprep.subr.mxu0 0.0
    %571 = vmatpush1.msra.mxu0 0.0
    %572 = vmatprep.subr.mxu0 0.0
    %573 = vmatpush1.msra.mxu0 0.0
    %574 = vmatprep.subr.mxu0 0.0
    %575 = vmatpush1.msra.mxu0 0.0
    %576 = vmatprep.subr.mxu0 0.0
    %577 = vmatpush1.msra.mxu0 0.0
    %578 = vmatprep.subr.mxu0 0.0
    %579 = vmatpush1.msra.mxu0 0.0
    %580 = vmatprep.subr.mxu0 0.0
    %581 = vmatpush1.msra.mxu0 0.0
    %582 = vmatprep.subr.mxu0 0.0
    %583 = vmatpush1.msra.mxu0 0.0
    %584 = vmatprep.subr.mxu0 0.0
    %585 = vmatpush1.msra.mxu0 %v552
    %586 = vmatprep.subr.mxu0 0.0
    %587 = vmatpush2.msra.mxu0 0.0
    %588 = vmatprep.subr.mxu0 0.0
    %589 = vmatpush2.msra.mxu0 0.0
    %590 = vmatprep.subr.mxu0 0.0
    %591 = vmatpush2.msra.mxu0 0.0
    %592 = vmatprep.subr.mxu0 0.0
    %593 = vmatpush2.msra.mxu0 0.0
    %594 = vmatprep.subr.mxu0 0.0
    %595 = vmatpush2.msra.mxu0 0.0
    %596 = vmatprep.subr.mxu0 0.0
    %597 = vmatpush2.msra.mxu0 0.0
    %598 = vmatprep.subr.mxu0 0.0
    %599 = vmatpush2.msra.mxu0 0.0
    %600 = vmatprep.subr.mxu0 0.0
    %601 = vmatpush2.msra.mxu0 0.0
    %602 = vmatprep.subr.mxu0 0.0
    %603 = vmatpush2.msra.mxu0 0.0
    %604 = vmatprep.subr.mxu0 0.0
    %605 = vmatpush2.msra.mxu0 0.0
    %606 = vmatprep.subr.mxu0 0.0
    %607 = vmatpush2.msra.mxu0 0.0
    %608 = vmatprep.subr.mxu0 0.0
    %609 = vmatpush2.msra.mxu0 0.0
    %610 = vmatprep.subr.mxu0 0.0
    %611 = vmatpush2.msra.mxu0 0.0
    %612 = vmatprep.subr.mxu0 0.0
    %613 = vmatpush2.msra.mxu0 0.0
    %614 = vmatprep.subr.mxu0 0.0
    %615 = vmatpush2.msra.mxu0 0.0
    %616 = vmatprep.subr.mxu0 0.0
    %617 = vmatpush2.msra.mxu0 0.0
    %618 = vmatprep.mubr.f32.mxu0 0.0
    %619 = vmatmul.mubr.f32.gmra.mxu0 %v422
    %v620 = vpop.f32.mrf.mxu0
    %v621 = vadd.f32 0.0, %v620
    %v622 = vpop.f32.mrf.mxu0
    %623 = vmatprep.mubr.f32.mxu0 0.0
    %624 = vmatmul.mubr.f32.gmra.mxu0 %v424
    %v625 = vpop.f32.mrf.mxu0
    %v626 = vadd.f32 0.0, %v625
    %v627 = vpop.f32.mrf.mxu0
    %628 = vmatprep.mubr.f32.mxu0 0.0
    %629 = vmatmul.mubr.f32.gmra.mxu0 %v426
    %v630 = vpop.f32.mrf.mxu0
    %v631 = vadd.f32 0.0, %v630
    %v632 = vpop.f32.mrf.mxu0
    %633 = vmatprep.mubr.f32.mxu0 0.0
    %634 = vmatmul.mubr.f32.gmra.mxu0 %v428
    %v635 = vpop.f32.mrf.mxu0
    %v636 = vadd.f32 0.0, %v635
    %v637 = vpop.f32.mrf.mxu0
    %638 = vmatprep.mubr.f32.mxu0 0.0
    %639 = vmatmul.mubr.f32.gmra.mxu0 %v430
    %v640 = vpop.f32.mrf.mxu0
    %v641 = vadd.f32 0.0, %v640
    %v642 = vpop.f32.mrf.mxu0
    %643 = vmatprep.mubr.f32.mxu0 0.0
    %644 = vmatmul.mubr.f32.gmra.mxu0 %v432
    %v645 = vpop.f32.mrf.mxu0
    %v646 = vadd.f32 0.0, %v645
    %v647 = vpop.f32.mrf.mxu0
    %648 = vmatprep.mubr.f32.mxu0 0.0
    %649 = vmatmul.mubr.f32.gmra.mxu0 %v434
    %v650 = vpop.f32.mrf.mxu0
    %v651 = vadd.f32 0.0, %v650
    %v652 = vpop.f32.mrf.mxu0
    %653 = vmatprep.mubr.f32.mxu0 0.0
    %654 = vmatmul.mubr.f32.gmra.mxu0 %v436
    %v655 = vpop.f32.mrf.mxu0
    %v656 = vadd.f32 0.0, %v655
    %v657 = vpop.f32.mrf.mxu0
    %658 = vmatprep.mubr.f32.mxu0 0.0
    %659 = vmatmul.mubr.f32.gmra.mxu0 %v438
    %v660 = vpop.f32.mrf.mxu0
    %v661 = vadd.f32 0.0, %v660
    %v662 = vpop.f32.mrf.mxu0
    %663 = vmatprep.mubr.f32.mxu0 0.0
    %664 = vmatmul.mubr.f32.gmra.mxu0 %v440
    %v665 = vpop.f32.mrf.mxu0
    %v666 = vadd.f32 0.0, %v665
    %v667 = vpop.f32.mrf.mxu0
    %668 = vmatprep.mubr.f32.mxu0 0.0
    %669 = vmatmul.mubr.f32.gmra.mxu0 %v442
    %v670 = vpop.f32.mrf.mxu0
    %v671 = vadd.f32 0.0, %v670
    %v672 = vpop.f32.mrf.mxu0
    %673 = vmatprep.mubr.f32.mxu0 0.0
    %674 = vmatmul.mubr.f32.gmra.mxu0 %v444
    %v675 = vpop.f32.mrf.mxu0
    %v676 = vadd.f32 0.0, %v675
    %v677 = vpop.f32.mrf.mxu0
    %678 = vmatprep.mubr.f32.mxu0 0.0
    %679 = vmatmul.mubr.f32.gmra.mxu0 %v446
    %v680 = vpop.f32.mrf.mxu0
    %v681 = vadd.f32 0.0, %v680
    %v682 = vpop.f32.mrf.mxu0
    %683 = vmatprep.mubr.f32.mxu0 0.0
    %684 = vmatmul.mubr.f32.gmra.mxu0 %v448
    %v685 = vpop.f32.mrf.mxu0
    %v686 = vadd.f32 0.0, %v685
    %v687 = vpop.f32.mrf.mxu0
    %688 = vmatprep.mubr.f32.mxu0 0.0
    %689 = vmatmul.mubr.f32.gmra.mxu0 %v450
    %v690 = vpop.f32.mrf.mxu0
    %v691 = vadd.f32 0.0, %v690
    %v692 = vpop.f32.mrf.mxu0
    %693 = vmatprep.mubr.f32.mxu0 0.0
    %694 = vmatmul.mubr.f32.gmra.mxu0 %v452
    %v695 = vpop.f32.mrf.mxu0
    %v696 = vadd.f32 0.0, %v695
    %v697 = vpop.f32.mrf.mxu0
    %698 = vmatprep.mubr.f32.mxu0 0.0
    %699 = vmatmul.mubr.f32.gmra.mxu0 %v454
    %v700 = vpop.f32.mrf.mxu0
    %v701 = vadd.f32 0.0, %v700
    %v702 = vpop.f32.mrf.mxu0
    %703 = vmatprep.mubr.f32.mxu0 0.0
    %704 = vmatmul.mubr.f32.gmra.mxu0 %v456
    %v705 = vpop.f32.mrf.mxu0
    %v706 = vadd.f32 0.0, %v705
    %v707 = vpop.f32.mrf.mxu0
    %708 = vmatprep.mubr.f32.mxu0 0.0
    %709 = vmatmul.mubr.f32.gmra.mxu0 %v458
    %v710 = vpop.f32.mrf.mxu0
    %v711 = vadd.f32 0.0, %v710
    %v712 = vpop.f32.mrf.mxu0
    %713 = vmatprep.mubr.f32.mxu0 0.0
    %714 = vmatmul.mubr.f32.gmra.mxu0 %v460
    %v715 = vpop.f32.mrf.mxu0
    %v716 = vadd.f32 0.0, %v715
    %v717 = vpop.f32.mrf.mxu0
    %718 = vmatprep.mubr.f32.mxu0 0.0
    %719 = vmatmul.mubr.f32.gmra.mxu0 %v462
    %v720 = vpop.f32.mrf.mxu0
    %v721 = vadd.f32 0.0, %v720
    %v722 = vpop.f32.mrf.mxu0
    %723 = vmatprep.mubr.f32.mxu0 0.0
    %724 = vmatmul.mubr.f32.gmra.mxu0 %v464
    %v725 = vpop.f32.mrf.mxu0
    %v726 = vadd.f32 0.0, %v725
    %v727 = vpop.f32.mrf.mxu0
    %728 = vmatprep.mubr.f32.mxu0 0.0
    %729 = vmatmul.mubr.f32.gmra.mxu0 %v466
    %v730 = vpop.f32.mrf.mxu0
    %v731 = vadd.f32 0.0, %v730
    %v732 = vpop.f32.mrf.mxu0
    %733 = vmatprep.mubr.f32.mxu0 0.0
    %734 = vmatmul.mubr.f32.gmra.mxu0 %v468
    %v735 = vpop.f32.mrf.mxu0
    %v736 = vadd.f32 0.0, %v735
    %v737 = vpop.f32.mrf.mxu0
    %738 = vmatprep.mubr.f32.mxu0 0.0
    %739 = vmatmul.mubr.f32.gmra.mxu0 %v470
    %v740 = vpop.f32.mrf.mxu0
    %v741 = vadd.f32 0.0, %v740
    %v742 = vpop.f32.mrf.mxu0
    %743 = vmatprep.mubr.f32.mxu0 0.0
    %744 = vmatmul.mubr.f32.gmra.mxu0 %v472
    %v745 = vpop.f32.mrf.mxu0
    %v746 = vadd.f32 0.0, %v745
    %v747 = vpop.f32.mrf.mxu0
    %748 = vmatprep.mubr.f32.mxu0 0.0
    %749 = vmatmul.mubr.f32.gmra.mxu0 %v474
    %v750 = vpop.f32.mrf.mxu0
    %v751 = vadd.f32 0.0, %v750
    %v752 = vpop.f32.mrf.mxu0
    %753 = vmatprep.mubr.f32.mxu0 0.0
    %754 = vmatmul.mubr.f32.gmra.mxu0 %v476
    %v755 = vpop.f32.mrf.mxu0
    %v756 = vadd.f32 0.0, %v755
    %v757 = vpop.f32.mrf.mxu0
    %758 = vmatprep.mubr.f32.mxu0 0.0
    %759 = vmatmul.mubr.f32.gmra.mxu0 %v478
    %v760 = vpop.f32.mrf.mxu0
    %v761 = vadd.f32 0.0, %v760
    %v762 = vpop.f32.mrf.mxu0
    %763 = vmatprep.mubr.f32.mxu0 0.0
    %764 = vmatmul.mubr.f32.gmra.mxu0 %v480
    %v765 = vpop.f32.mrf.mxu0
    %v766 = vadd.f32 0.0, %v765
    %v767 = vpop.f32.mrf.mxu0
    %768 = vmatprep.mubr.f32.mxu0 0.0
    %769 = vmatmul.mubr.f32.gmra.mxu0 %v482
    %v770 = vpop.f32.mrf.mxu0
    %v771 = vadd.f32 0.0, %v770
    %v772 = vpop.f32.mrf.mxu0
    %773 = vmatprep.mubr.f32.mxu0 0.0
    %774 = vmatmul.mubr.f32.gmra.mxu0 %v484
    %v775 = vpop.f32.mrf.mxu0
    %v776 = vadd.f32 0.0, %v775
    %v777 = vpop.f32.mrf.mxu0
    %778 = vmatprep.mubr.f32.mxu0 0.0
    %779 = vmatmul.mubr.f32.gmra.mxu0 %v486
    %v780 = vpop.f32.mrf.mxu0
    %v781 = vadd.f32 0.0, %v780
    %v782 = vpop.f32.mrf.mxu0
    %783 = vmatprep.mubr.f32.mxu0 0.0
    %784 = vmatmul.mubr.f32.gmra.mxu0 %v488
    %v785 = vpop.f32.mrf.mxu0
    %v786 = vadd.f32 0.0, %v785
    %v787 = vpop.f32.mrf.mxu0
    %788 = vmatprep.mubr.f32.mxu0 0.0
    %789 = vmatmul.mubr.f32.gmra.mxu0 %v490
    %v790 = vpop.f32.mrf.mxu0
    %v791 = vadd.f32 0.0, %v790
    %v792 = vpop.f32.mrf.mxu0
    %793 = vmatprep.mubr.f32.mxu0 0.0
    %794 = vmatmul.mubr.f32.gmra.mxu0 %v492
    %v795 = vpop.f32.mrf.mxu0
    %v796 = vadd.f32 0.0, %v795
    %v797 = vpop.f32.mrf.mxu0
    %798 = vmatprep.mubr.f32.mxu0 0.0
    %799 = vmatmul.mubr.f32.gmra.mxu0 %v494
    %v800 = vpop.f32.mrf.mxu0
    %v801 = vadd.f32 0.0, %v800
    %v802 = vpop.f32.mrf.mxu0
    %803 = vmatprep.mubr.f32.mxu0 0.0
    %804 = vmatmul.mubr.f32.gmra.mxu0 %v496
    %v805 = vpop.f32.mrf.mxu0
    %v806 = vadd.f32 0.0, %v805
    %v807 = vpop.f32.mrf.mxu0
    %808 = vmatprep.mubr.f32.mxu0 0.0
    %809 = vmatmul.mubr.f32.gmra.mxu0 %v498
    %v810 = vpop.f32.mrf.mxu0
    %v811 = vadd.f32 0.0, %v810
    %v812 = vpop.f32.mrf.mxu0
    %813 = vmatprep.mubr.f32.mxu0 0.0
    %814 = vmatmul.mubr.f32.gmra.mxu0 %v500
    %v815 = vpop.f32.mrf.mxu0
    %v816 = vadd.f32 0.0, %v815
    %v817 = vpop.f32.mrf.mxu0
    %818 = vmatprep.mubr.f32.mxu0 0.0
    %819 = vmatmul.mubr.f32.gmra.mxu0 %v502
    %v820 = vpop.f32.mrf.mxu0
    %v821 = vadd.f32 0.0, %v820
    %v822 = vpop.f32.mrf.mxu0
    %823 = vmatprep.mubr.f32.mxu0 0.0
    %824 = vmatmul.mubr.f32.gmra.mxu0 %v504
    %v825 = vpop.f32.mrf.mxu0
    %v826 = vadd.f32 0.0, %v825
    %v827 = vpop.f32.mrf.mxu0
    %828 = vmatprep.mubr.f32.mxu0 0.0
    %829 = vmatmul.mubr.f32.gmra.mxu0 %v506
    %v830 = vpop.f32.mrf.mxu0
    %v831 = vadd.f32 0.0, %v830
    %v832 = vpop.f32.mrf.mxu0
    %833 = vmatprep.mubr.f32.mxu0 0.0
    %834 = vmatmul.mubr.f32.gmra.mxu0 %v508
    %v835 = vpop.f32.mrf.mxu0
    %v836 = vadd.f32 0.0, %v835
    %v837 = vpop.f32.mrf.mxu0
    %838 = vmatprep.mubr.f32.mxu0 0.0
    %839 = vmatmul.mubr.f32.gmra.mxu0 %v510
    %v840 = vpop.f32.mrf.mxu0
    %v841 = vadd.f32 0.0, %v840
    %v842 = vpop.f32.mrf.mxu0
    %843 = vmatprep.mubr.f32.mxu0 0.0
    %844 = vmatmul.mubr.f32.gmra.mxu0 %v512
    %v845 = vpop.f32.mrf.mxu0
    %v846 = vadd.f32 0.0, %v845
    %v847 = vpop.f32.mrf.mxu0
    %848 = vmatprep.mubr.f32.mxu0 0.0
    %849 = vmatmul.mubr.f32.gmra.mxu0 %v514
    %v850 = vpop.f32.mrf.mxu0
    %v851 = vadd.f32 0.0, %v850
    %v852 = vpop.f32.mrf.mxu0
    %853 = vmatprep.mubr.f32.mxu0 0.0
    %854 = vmatmul.mubr.f32.gmra.mxu0 %v516
    %v855 = vpop.f32.mrf.mxu0
    %v856 = vadd.f32 0.0, %v855
    %v857 = vpop.f32.mrf.mxu0
    %858 = vmatprep.mubr.f32.mxu0 0.0
    %859 = vmatmul.mubr.f32.gmra.mxu0 %v518
    %v860 = vpop.f32.mrf.mxu0
    %v861 = vadd.f32 0.0, %v860
    %v862 = vpop.f32.mrf.mxu0
    %863 = vmatprep.mubr.f32.mxu0 0.0
    %864 = vmatmul.mubr.f32.gmra.mxu0 %v520
    %v865 = vpop.f32.mrf.mxu0
    %v866 = vadd.f32 0.0, %v865
    %v867 = vpop.f32.mrf.mxu0
    %868 = vmatprep.mubr.f32.mxu0 0.0
    %869 = vmatmul.mubr.f32.gmra.mxu0 %v522
    %v870 = vpop.f32.mrf.mxu0
    %v871 = vadd.f32 0.0, %v870
    %v872 = vpop.f32.mrf.mxu0
    %873 = vmatprep.mubr.f32.mxu0 0.0
    %874 = vmatmul.mubr.f32.gmra.mxu0 %v524
    %v875 = vpop.f32.mrf.mxu0
    %v876 = vadd.f32 0.0, %v875
    %v877 = vpop.f32.mrf.mxu0
    %878 = vmatprep.mubr.f32.mxu0 0.0
    %879 = vmatmul.mubr.f32.gmra.mxu0 %v526
    %v880 = vpop.f32.mrf.mxu0
    %v881 = vadd.f32 0.0, %v880
    %v882 = vpop.f32.mrf.mxu0
    %883 = vmatprep.mubr.f32.mxu0 0.0
    %884 = vmatmul.mubr.f32.gmra.mxu0 %v528
    %v885 = vpop.f32.mrf.mxu0
    %v886 = vadd.f32 0.0, %v885
    %v887 = vpop.f32.mrf.mxu0
    %888 = vmatprep.mubr.f32.mxu0 0.0
    %889 = vmatmul.mubr.f32.gmra.mxu0 %v530
    %v890 = vpop.f32.mrf.mxu0
    %v891 = vadd.f32 0.0, %v890
    %v892 = vpop.f32.mrf.mxu0
    %893 = vmatprep.mubr.f32.mxu0 0.0
    %894 = vmatmul.mubr.f32.gmra.mxu0 %v532
    %v895 = vpop.f32.mrf.mxu0
    %v896 = vadd.f32 0.0, %v895
    %v897 = vpop.f32.mrf.mxu0
    %898 = vmatprep.mubr.f32.mxu0 0.0
    %899 = vmatmul.mubr.f32.gmra.mxu0 %v534
    %v900 = vpop.f32.mrf.mxu0
    %v901 = vadd.f32 0.0, %v900
    %v902 = vpop.f32.mrf.mxu0
    %903 = vmatprep.mubr.f32.mxu0 0.0
    %904 = vmatmul.mubr.f32.gmra.mxu0 %v536
    %v905 = vpop.f32.mrf.mxu0
    %v906 = vadd.f32 0.0, %v905
    %v907 = vpop.f32.mrf.mxu0
    %908 = vmatprep.mubr.f32.mxu0 0.0
    %909 = vmatmul.mubr.f32.gmra.mxu0 %v538
    %v910 = vpop.f32.mrf.mxu0
    %v911 = vadd.f32 0.0, %v910
    %v912 = vpop.f32.mrf.mxu0
    %913 = vmatprep.mubr.f32.mxu0 0.0
    %914 = vmatmul.mubr.f32.gmra.mxu0 %v540
    %v915 = vpop.f32.mrf.mxu0
    %v916 = vadd.f32 0.0, %v915
    %v917 = vpop.f32.mrf.mxu0
    %918 = vmatprep.mubr.f32.mxu0 0.0
    %919 = vmatmul.mubr.f32.gmra.mxu0 %v542
    %v920 = vpop.f32.mrf.mxu0
    %v921 = vadd.f32 0.0, %v920
    %v922 = vpop.f32.mrf.mxu0
    %923 = vmatprep.mubr.f32.mxu0 0.0
    %924 = vmatmul.mubr.f32.gmra.mxu0 %v544
    %v925 = vpop.f32.mrf.mxu0
    %v926 = vadd.f32 0.0, %v925
    %v927 = vpop.f32.mrf.mxu0
    %928 = vmatprep.mubr.f32.mxu0 0.0
    %929 = vmatmul.mubr.f32.gmra.mxu0 %v546
    %v930 = vpop.f32.mrf.mxu0
    %v931 = vadd.f32 0.0, %v930
    %v932 = vpop.f32.mrf.mxu0
    %933 = vmatprep.mubr.f32.mxu0 0.0
    %934 = vmatmul.mubr.f32.gmra.mxu0 %v548
    %v935 = vpop.f32.mrf.mxu0
    %v936 = vadd.f32 0.0, %v935
    %v937 = vpop.f32.mrf.mxu0
    %938 = vdwg.mxu0
    %v939 = vsel %vm421, %v53, 0
    %v941 = vsel %vm421, %v54, 0
    %v943 = vsel %vm421, %v56, 0
    %v945 = vsel %vm421, %v57, 0
    %v947 = vsel %vm421, %v59, 0
    %v949 = vsel %vm421, %v60, 0
    %v951 = vsel %vm421, %v62, 0
    %v953 = vsel %vm421, %v63, 0
    %v955 = vsel %vm421, %v65, 0
    %v957 = vsel %vm421, %v66, 0
    %v959 = vsel %vm421, %v68, 0
    %v961 = vsel %vm421, %v69, 0
    %v963 = vsel %vm421, %v71, 0
    %v965 = vsel %vm421, %v72, 0
    %v967 = vsel %vm421, %v74, 0
    %v969 = vsel %vm421, %v75, 0
    %v971 = vsel %vm421, %v77, 0
    %v973 = vsel %vm421, %v78, 0
    %v975 = vsel %vm421, %v80, 0
    %v977 = vsel %vm421, %v81, 0
    %v979 = vsel %vm421, %v83, 0
    %v981 = vsel %vm421, %v84, 0
    %v983 = vsel %vm421, %v86, 0
    %v985 = vsel %vm421, %v87, 0
    %v987 = vsel %vm421, %v89, 0
    %v989 = vsel %vm421, %v90, 0
    %v991 = vsel %vm421, %v92, 0
    %v993 = vsel %vm421, %v93, 0
    %v995 = vsel %vm421, %v95, 0
    %v997 = vsel %vm421, %v96, 0
    %v999 = vsel %vm421, %v98, 0
    %v1001 = vsel %vm421, %v99, 0
    %v1003 = vsel %vm421, %v107, 0
    %v1005 = vsel %vm421, %v108, 0
    %v1007 = vsel %vm421, %v110, 0
    %v1009 = vsel %vm421, %v111, 0
    %v1011 = vsel %vm421, %v113, 0
    %v1013 = vsel %vm421, %v114, 0
    %v1015 = vsel %vm421, %v116, 0
    %v1017 = vsel %vm421, %v117, 0
    %v1019 = vsel %vm421, %v119, 0
    %v1021 = vsel %vm421, %v120, 0
    %v1023 = vsel %vm421, %v122, 0
    %v1025 = vsel %vm421, %v123, 0
    %v1027 = vsel %vm421, %v125, 0
    %v1029 = vsel %vm421, %v126, 0
    %v1031 = vsel %vm421, %v128, 0
    %v1033 = vsel %vm421, %v129, 0
    %v1035 = vsel %vm421, %v131, 0
    %v1037 = vsel %vm421, %v132, 0
    %v1039 = vsel %vm421, %v134, 0
    %v1041 = vsel %vm421, %v135, 0
    %v1043 = vsel %vm421, %v137, 0
    %v1045 = vsel %vm421, %v138, 0
    %v1047 = vsel %vm421, %v140, 0
    %v1049 = vsel %vm421, %v141, 0
    %v1051 = vsel %vm421, %v143, 0
    %v1053 = vsel %vm421, %v144, 0
    %v1055 = vsel %vm421, %v146, 0
    %v1057 = vsel %vm421, %v147, 0
    %v1059 = vsel %vm421, %v149, 0
    %v1061 = vsel %vm421, %v150, 0
    %v1063 = vsel %vm421, %v152, 0
    %v1065 = vsel %vm421, %v153, 0
    %v1068 = vsel %vm550, %v161, 0
    %1070 = vmatprep.subr.mxu0 0.0
    %1071 = vmatpush1.msra.mxu0 0.0
    %1072 = vmatprep.subr.mxu0 0.0
    %1073 = vmatpush1.msra.mxu0 0.0
    %1074 = vmatprep.subr.mxu0 0.0
    %1075 = vmatpush1.msra.mxu0 0.0
    %1076 = vmatprep.subr.mxu0 0.0
    %1077 = vmatpush1.msra.mxu0 0.0
    %1078 = vmatprep.subr.mxu0 0.0
    %1079 = vmatpush1.msra.mxu0 0.0
    %1080 = vmatprep.subr.mxu0 0.0
    %1081 = vmatpush1.msra.mxu0 0.0
    %1082 = vmatprep.subr.mxu0 0.0
    %1083 = vmatpush1.msra.mxu0 0.0
    %1084 = vmatprep.subr.mxu0 0.0
    %1085 = vmatpush1.msra.mxu0 0.0
    %1086 = vmatprep.subr.mxu0 0.0
    %1087 = vmatpush1.msra.mxu0 0.0
    %1088 = vmatprep.subr.mxu0 0.0
    %1089 = vmatpush1.msra.mxu0 0.0
    %1090 = vmatprep.subr.mxu0 0.0
    %1091 = vmatpush1.msra.mxu0 0.0
    %1092 = vmatprep.subr.mxu0 0.0
    %1093 = vmatpush1.msra.mxu0 0.0
    %1094 = vmatprep.subr.mxu0 0.0
    %1095 = vmatpush1.msra.mxu0 0.0
    %1096 = vmatprep.subr.mxu0 0.0
    %1097 = vmatpush1.msra.mxu0 0.0
    %1098 = vmatprep.subr.mxu0 0.0
    %1099 = vmatpush1.msra.mxu0 0.0
    %1100 = vmatprep.subr.mxu0 0.0
    %1101 = vmatpush1.msra.mxu0 %v1068
    %1102 = vmatprep.subr.mxu0 0.0
    %1103 = vmatpush2.msra.mxu0 0.0
    %1104 = vmatprep.subr.mxu0 0.0
    %1105 = vmatpush2.msra.mxu0 0.0
    %1106 = vmatprep.subr.mxu0 0.0
    %1107 = vmatpush2.msra.mxu0 0.0
    %1108 = vmatprep.subr.mxu0 0.0
    %1109 = vmatpush2.msra.mxu0 0.0
    %1110 = vmatprep.subr.mxu0 0.0
    %1111 = vmatpush2.msra.mxu0 0.0
    %1112 = vmatprep.subr.mxu0 0.0
    %1113 = vmatpush2.msra.mxu0 0.0
    %1114 = vmatprep.subr.mxu0 0.0
    %1115 = vmatpush2.msra.mxu0 0.0
    %1116 = vmatprep.subr.mxu0 0.0
    %1117 = vmatpush2.msra.mxu0 0.0
    %1118 = vmatprep.subr.mxu0 0.0
    %1119 = vmatpush2.msra.mxu0 0.0
    %1120 = vmatprep.subr.mxu0 0.0
    %1121 = vmatpush2.msra.mxu0 0.0
    %1122 = vmatprep.subr.mxu0 0.0
    %1123 = vmatpush2.msra.mxu0 0.0
    %1124 = vmatprep.subr.mxu0 0.0
    %1125 = vmatpush2.msra.mxu0 0.0
    %1126 = vmatprep.subr.mxu0 0.0
    %1127 = vmatpush2.msra.mxu0 0.0
    %1128 = vmatprep.subr.mxu0 0.0
    %1129 = vmatpush2.msra.mxu0 0.0
    %1130 = vmatprep.subr.mxu0 0.0
    %1131 = vmatpush2.msra.mxu0 0.0
    %1132 = vmatprep.subr.mxu0 0.0
    %1133 = vmatpush2.msra.mxu0 0.0
    %1134 = vmatprep.mubr.f32.mxu0 0.0
    %1135 = vmatmul.mubr.f32.gmra.mxu0 %v939
    %v1136 = vpop.f32.mrf.mxu0
    %v1137 = vadd.f32 %v621, %v1136
    %v1138 = vpop.f32.mrf.mxu0
    %1139 = vmatprep.mubr.f32.mxu0 0.0
    %1140 = vmatmul.mubr.f32.gmra.mxu0 %v941
    %v1141 = vpop.f32.mrf.mxu0
    %v1142 = vadd.f32 %v626, %v1141
    %v1143 = vpop.f32.mrf.mxu0
    %1144 = vmatprep.mubr.f32.mxu0 0.0
    %1145 = vmatmul.mubr.f32.gmra.mxu0 %v943
    %v1146 = vpop.f32.mrf.mxu0
    %v1147 = vadd.f32 %v631, %v1146
    %v1148 = vpop.f32.mrf.mxu0
    %1149 = vmatprep.mubr.f32.mxu0 0.0
    %1150 = vmatmul.mubr.f32.gmra.mxu0 %v945
    %v1151 = vpop.f32.mrf.mxu0
    %v1152 = vadd.f32 %v636, %v1151
    %v1153 = vpop.f32.mrf.mxu0
    %1154 = vmatprep.mubr.f32.mxu0 0.0
    %1155 = vmatmul.mubr.f32.gmra.mxu0 %v947
    %v1156 = vpop.f32.mrf.mxu0
    %v1157 = vadd.f32 %v641, %v1156
    %v1158 = vpop.f32.mrf.mxu0
    %1159 = vmatprep.mubr.f32.mxu0 0.0
    %1160 = vmatmul.mubr.f32.gmra.mxu0 %v949
    %v1161 = vpop.f32.mrf.mxu0
    %v1162 = vadd.f32 %v646, %v1161
    %v1163 = vpop.f32.mrf.mxu0
    %1164 = vmatprep.mubr.f32.mxu0 0.0
    %1165 = vmatmul.mubr.f32.gmra.mxu0 %v951
    %v1166 = vpop.f32.mrf.mxu0
    %v1167 = vadd.f32 %v651, %v1166
    %v1168 = vpop.f32.mrf.mxu0
    %1169 = vmatprep.mubr.f32.mxu0 0.0
    %1170 = vmatmul.mubr.f32.gmra.mxu0 %v953
    %v1171 = vpop.f32.mrf.mxu0
    %v1172 = vadd.f32 %v656, %v1171
    %v1173 = vpop.f32.mrf.mxu0
    %1174 = vmatprep.mubr.f32.mxu0 0.0
    %1175 = vmatmul.mubr.f32.gmra.mxu0 %v955
    %v1176 = vpop.f32.mrf.mxu0
    %v1177 = vadd.f32 %v661, %v1176
    %v1178 = vpop.f32.mrf.mxu0
    %1179 = vmatprep.mubr.f32.mxu0 0.0
    %1180 = vmatmul.mubr.f32.gmra.mxu0 %v957
    %v1181 = vpop.f32.mrf.mxu0
    %v1182 = vadd.f32 %v666, %v1181
    %v1183 = vpop.f32.mrf.mxu0
    %1184 = vmatprep.mubr.f32.mxu0 0.0
    %1185 = vmatmul.mubr.f32.gmra.mxu0 %v959
    %v1186 = vpop.f32.mrf.mxu0
    %v1187 = vadd.f32 %v671, %v1186
    %v1188 = vpop.f32.mrf.mxu0
    %1189 = vmatprep.mubr.f32.mxu0 0.0
    %1190 = vmatmul.mubr.f32.gmra.mxu0 %v961
    %v1191 = vpop.f32.mrf.mxu0
    %v1192 = vadd.f32 %v676, %v1191
    %v1193 = vpop.f32.mrf.mxu0
    %1194 = vmatprep.mubr.f32.mxu0 0.0
    %1195 = vmatmul.mubr.f32.gmra.mxu0 %v963
    %v1196 = vpop.f32.mrf.mxu0
    %v1197 = vadd.f32 %v681, %v1196
    %v1198 = vpop.f32.mrf.mxu0
    %1199 = vmatprep.mubr.f32.mxu0 0.0
    %1200 = vmatmul.mubr.f32.gmra.mxu0 %v965
    %v1201 = vpop.f32.mrf.mxu0
    %v1202 = vadd.f32 %v686, %v1201
    %v1203 = vpop.f32.mrf.mxu0
    %1204 = vmatprep.mubr.f32.mxu0 0.0
    %1205 = vmatmul.mubr.f32.gmra.mxu0 %v967
    %v1206 = vpop.f32.mrf.mxu0
    %v1207 = vadd.f32 %v691, %v1206
    %v1208 = vpop.f32.mrf.mxu0
    %1209 = vmatprep.mubr.f32.mxu0 0.0
    %1210 = vmatmul.mubr.f32.gmra.mxu0 %v969
    %v1211 = vpop.f32.mrf.mxu0
    %v1212 = vadd.f32 %v696, %v1211
    %v1213 = vpop.f32.mrf.mxu0
    %1214 = vmatprep.mubr.f32.mxu0 0.0
    %1215 = vmatmul.mubr.f32.gmra.mxu0 %v971
    %v1216 = vpop.f32.mrf.mxu0
    %v1217 = vadd.f32 %v701, %v1216
    %v1218 = vpop.f32.mrf.mxu0
    %1219 = vmatprep.mubr.f32.mxu0 0.0
    %1220 = vmatmul.mubr.f32.gmra.mxu0 %v973
    %v1221 = vpop.f32.mrf.mxu0
    %v1222 = vadd.f32 %v706, %v1221
    %v1223 = vpop.f32.mrf.mxu0
    %1224 = vmatprep.mubr.f32.mxu0 0.0
    %1225 = vmatmul.mubr.f32.gmra.mxu0 %v975
    %v1226 = vpop.f32.mrf.mxu0
    %v1227 = vadd.f32 %v711, %v1226
    %v1228 = vpop.f32.mrf.mxu0
    %1229 = vmatprep.mubr.f32.mxu0 0.0
    %1230 = vmatmul.mubr.f32.gmra.mxu0 %v977
    %v1231 = vpop.f32.mrf.mxu0
    %v1232 = vadd.f32 %v716, %v1231
    %v1233 = vpop.f32.mrf.mxu0
    %1234 = vmatprep.mubr.f32.mxu0 0.0
    %1235 = vmatmul.mubr.f32.gmra.mxu0 %v979
    %v1236 = vpop.f32.mrf.mxu0
    %v1237 = vadd.f32 %v721, %v1236
    %v1238 = vpop.f32.mrf.mxu0
    %1239 = vmatprep.mubr.f32.mxu0 0.0
    %1240 = vmatmul.mubr.f32.gmra.mxu0 %v981
    %v1241 = vpop.f32.mrf.mxu0
    %v1242 = vadd.f32 %v726, %v1241
    %v1243 = vpop.f32.mrf.mxu0
    %1244 = vmatprep.mubr.f32.mxu0 0.0
    %1245 = vmatmul.mubr.f32.gmra.mxu0 %v983
    %v1246 = vpop.f32.mrf.mxu0
    %v1247 = vadd.f32 %v731, %v1246
    %v1248 = vpop.f32.mrf.mxu0
    %1249 = vmatprep.mubr.f32.mxu0 0.0
    %1250 = vmatmul.mubr.f32.gmra.mxu0 %v985
    %v1251 = vpop.f32.mrf.mxu0
    %v1252 = vadd.f32 %v736, %v1251
    %v1253 = vpop.f32.mrf.mxu0
    %1254 = vmatprep.mubr.f32.mxu0 0.0
    %1255 = vmatmul.mubr.f32.gmra.mxu0 %v987
    %v1256 = vpop.f32.mrf.mxu0
    %v1257 = vadd.f32 %v741, %v1256
    %v1258 = vpop.f32.mrf.mxu0
    %1259 = vmatprep.mubr.f32.mxu0 0.0
    %1260 = vmatmul.mubr.f32.gmra.mxu0 %v989
    %v1261 = vpop.f32.mrf.mxu0
    %v1262 = vadd.f32 %v746, %v1261
    %v1263 = vpop.f32.mrf.mxu0
    %1264 = vmatprep.mubr.f32.mxu0 0.0
    %1265 = vmatmul.mubr.f32.gmra.mxu0 %v991
    %v1266 = vpop.f32.mrf.mxu0
    %v1267 = vadd.f32 %v751, %v1266
    %v1268 = vpop.f32.mrf.mxu0
    %1269 = vmatprep.mubr.f32.mxu0 0.0
    %1270 = vmatmul.mubr.f32.gmra.mxu0 %v993
    %v1271 = vpop.f32.mrf.mxu0
    %v1272 = vadd.f32 %v756, %v1271
    %v1273 = vpop.f32.mrf.mxu0
    %1274 = vmatprep.mubr.f32.mxu0 0.0
    %1275 = vmatmul.mubr.f32.gmra.mxu0 %v995
    %v1276 = vpop.f32.mrf.mxu0
    %v1277 = vadd.f32 %v761, %v1276
    %v1278 = vpop.f32.mrf.mxu0
    %1279 = vmatprep.mubr.f32.mxu0 0.0
    %1280 = vmatmul.mubr.f32.gmra.mxu0 %v997
    %v1281 = vpop.f32.mrf.mxu0
    %v1282 = vadd.f32 %v766, %v1281
    %v1283 = vpop.f32.mrf.mxu0
    %1284 = vmatprep.mubr.f32.mxu0 0.0
    %1285 = vmatmul.mubr.f32.gmra.mxu0 %v999
    %v1286 = vpop.f32.mrf.mxu0
    %v1287 = vadd.f32 %v771, %v1286
    %v1288 = vpop.f32.mrf.mxu0
    %1289 = vmatprep.mubr.f32.mxu0 0.0
    %1290 = vmatmul.mubr.f32.gmra.mxu0 %v1001
    %v1291 = vpop.f32.mrf.mxu0
    %v1292 = vadd.f32 %v776, %v1291
    %v1293 = vpop.f32.mrf.mxu0
    %1294 = vmatprep.mubr.f32.mxu0 0.0
    %1295 = vmatmul.mubr.f32.gmra.mxu0 %v1003
    %v1296 = vpop.f32.mrf.mxu0
    %v1297 = vadd.f32 %v781, %v1296
    %v1298 = vpop.f32.mrf.mxu0
    %1299 = vmatprep.mubr.f32.mxu0 0.0
    %1300 = vmatmul.mubr.f32.gmra.mxu0 %v1005
    %v1301 = vpop.f32.mrf.mxu0
    %v1302 = vadd.f32 %v786, %v1301
    %v1303 = vpop.f32.mrf.mxu0
    %1304 = vmatprep.mubr.f32.mxu0 0.0
    %1305 = vmatmul.mubr.f32.gmra.mxu0 %v1007
    %v1306 = vpop.f32.mrf.mxu0
    %v1307 = vadd.f32 %v791, %v1306
    %v1308 = vpop.f32.mrf.mxu0
    %1309 = vmatprep.mubr.f32.mxu0 0.0
    %1310 = vmatmul.mubr.f32.gmra.mxu0 %v1009
    %v1311 = vpop.f32.mrf.mxu0
    %v1312 = vadd.f32 %v796, %v1311
    %v1313 = vpop.f32.mrf.mxu0
    %1314 = vmatprep.mubr.f32.mxu0 0.0
    %1315 = vmatmul.mubr.f32.gmra.mxu0 %v1011
    %v1316 = vpop.f32.mrf.mxu0
    %v1317 = vadd.f32 %v801, %v1316
    %v1318 = vpop.f32.mrf.mxu0
    %1319 = vmatprep.mubr.f32.mxu0 0.0
    %1320 = vmatmul.mubr.f32.gmra.mxu0 %v1013
    %v1321 = vpop.f32.mrf.mxu0
    %v1322 = vadd.f32 %v806, %v1321
    %v1323 = vpop.f32.mrf.mxu0
    %1324 = vmatprep.mubr.f32.mxu0 0.0
    %1325 = vmatmul.mubr.f32.gmra.mxu0 %v1015
    %v1326 = vpop.f32.mrf.mxu0
    %v1327 = vadd.f32 %v811, %v1326
    %v1328 = vpop.f32.mrf.mxu0
    %1329 = vmatprep.mubr.f32.mxu0 0.0
    %1330 = vmatmul.mubr.f32.gmra.mxu0 %v1017
    %v1331 = vpop.f32.mrf.mxu0
    %v1332 = vadd.f32 %v816, %v1331
    %v1333 = vpop.f32.mrf.mxu0
    %1334 = vmatprep.mubr.f32.mxu0 0.0
    %1335 = vmatmul.mubr.f32.gmra.mxu0 %v1019
    %v1336 = vpop.f32.mrf.mxu0
    %v1337 = vadd.f32 %v821, %v1336
    %v1338 = vpop.f32.mrf.mxu0
    %1339 = vmatprep.mubr.f32.mxu0 0.0
    %1340 = vmatmul.mubr.f32.gmra.mxu0 %v1021
    %v1341 = vpop.f32.mrf.mxu0
    %v1342 = vadd.f32 %v826, %v1341
    %v1343 = vpop.f32.mrf.mxu0
    %1344 = vmatprep.mubr.f32.mxu0 0.0
    %1345 = vmatmul.mubr.f32.gmra.mxu0 %v1023
    %v1346 = vpop.f32.mrf.mxu0
    %v1347 = vadd.f32 %v831, %v1346
    %v1348 = vpop.f32.mrf.mxu0
    %1349 = vmatprep.mubr.f32.mxu0 0.0
    %1350 = vmatmul.mubr.f32.gmra.mxu0 %v1025
    %v1351 = vpop.f32.mrf.mxu0
    %v1352 = vadd.f32 %v836, %v1351
    %v1353 = vpop.f32.mrf.mxu0
    %1354 = vmatprep.mubr.f32.mxu0 0.0
    %1355 = vmatmul.mubr.f32.gmra.mxu0 %v1027
    %v1356 = vpop.f32.mrf.mxu0
    %v1357 = vadd.f32 %v841, %v1356
    %v1358 = vpop.f32.mrf.mxu0
    %1359 = vmatprep.mubr.f32.mxu0 0.0
    %1360 = vmatmul.mubr.f32.gmra.mxu0 %v1029
    %v1361 = vpop.f32.mrf.mxu0
    %v1362 = vadd.f32 %v846, %v1361
    %v1363 = vpop.f32.mrf.mxu0
    %1364 = vmatprep.mubr.f32.mxu0 0.0
    %1365 = vmatmul.mubr.f32.gmra.mxu0 %v1031
    %v1366 = vpop.f32.mrf.mxu0
    %v1367 = vadd.f32 %v851, %v1366
    %v1368 = vpop.f32.mrf.mxu0
    %1369 = vmatprep.mubr.f32.mxu0 0.0
    %1370 = vmatmul.mubr.f32.gmra.mxu0 %v1033
    %v1371 = vpop.f32.mrf.mxu0
    %v1372 = vadd.f32 %v856, %v1371
    %v1373 = vpop.f32.mrf.mxu0
    %1374 = vmatprep.mubr.f32.mxu0 0.0
    %1375 = vmatmul.mubr.f32.gmra.mxu0 %v1035
    %v1376 = vpop.f32.mrf.mxu0
    %v1377 = vadd.f32 %v861, %v1376
    %v1378 = vpop.f32.mrf.mxu0
    %1379 = vmatprep.mubr.f32.mxu0 0.0
    %1380 = vmatmul.mubr.f32.gmra.mxu0 %v1037
    %v1381 = vpop.f32.mrf.mxu0
    %v1382 = vadd.f32 %v866, %v1381
    %v1383 = vpop.f32.mrf.mxu0
    %1384 = vmatprep.mubr.f32.mxu0 0.0
    %1385 = vmatmul.mubr.f32.gmra.mxu0 %v1039
    %v1386 = vpop.f32.mrf.mxu0
    %v1387 = vadd.f32 %v871, %v1386
    %v1388 = vpop.f32.mrf.mxu0
    %1389 = vmatprep.mubr.f32.mxu0 0.0
    %1390 = vmatmul.mubr.f32.gmra.mxu0 %v1041
    %v1391 = vpop.f32.mrf.mxu0
    %v1392 = vadd.f32 %v876, %v1391
    %v1393 = vpop.f32.mrf.mxu0
    %1394 = vmatprep.mubr.f32.mxu0 0.0
    %1395 = vmatmul.mubr.f32.gmra.mxu0 %v1043
    %v1396 = vpop.f32.mrf.mxu0
    %v1397 = vadd.f32 %v881, %v1396
    %v1398 = vpop.f32.mrf.mxu0
    %1399 = vmatprep.mubr.f32.mxu0 0.0
    %1400 = vmatmul.mubr.f32.gmra.mxu0 %v1045
    %v1401 = vpop.f32.mrf.mxu0
    %v1402 = vadd.f32 %v886, %v1401
    %v1403 = vpop.f32.mrf.mxu0
    %1404 = vmatprep.mubr.f32.mxu0 0.0
    %1405 = vmatmul.mubr.f32.gmra.mxu0 %v1047
    %v1406 = vpop.f32.mrf.mxu0
    %v1407 = vadd.f32 %v891, %v1406
    %v1408 = vpop.f32.mrf.mxu0
    %1409 = vmatprep.mubr.f32.mxu0 0.0
    %1410 = vmatmul.mubr.f32.gmra.mxu0 %v1049
    %v1411 = vpop.f32.mrf.mxu0
    %v1412 = vadd.f32 %v896, %v1411
    %v1413 = vpop.f32.mrf.mxu0
    %1414 = vmatprep.mubr.f32.mxu0 0.0
    %1415 = vmatmul.mubr.f32.gmra.mxu0 %v1051
    %v1416 = vpop.f32.mrf.mxu0
    %v1417 = vadd.f32 %v901, %v1416
    %v1418 = vpop.f32.mrf.mxu0
    %1419 = vmatprep.mubr.f32.mxu0 0.0
    %1420 = vmatmul.mubr.f32.gmra.mxu0 %v1053
    %v1421 = vpop.f32.mrf.mxu0
    %v1422 = vadd.f32 %v906, %v1421
    %v1423 = vpop.f32.mrf.mxu0
    %1424 = vmatprep.mubr.f32.mxu0 0.0
    %1425 = vmatmul.mubr.f32.gmra.mxu0 %v1055
    %v1426 = vpop.f32.mrf.mxu0
    %v1427 = vadd.f32 %v911, %v1426
    %v1428 = vpop.f32.mrf.mxu0
    %1429 = vmatprep.mubr.f32.mxu0 0.0
    %1430 = vmatmul.mubr.f32.gmra.mxu0 %v1057
    %v1431 = vpop.f32.mrf.mxu0
    %v1432 = vadd.f32 %v916, %v1431
    %v1433 = vpop.f32.mrf.mxu0
    %1434 = vmatprep.mubr.f32.mxu0 0.0
    %1435 = vmatmul.mubr.f32.gmra.mxu0 %v1059
    %v1436 = vpop.f32.mrf.mxu0
    %v1437 = vadd.f32 %v921, %v1436
    %v1438 = vpop.f32.mrf.mxu0
    %1439 = vmatprep.mubr.f32.mxu0 0.0
    %1440 = vmatmul.mubr.f32.gmra.mxu0 %v1061
    %v1441 = vpop.f32.mrf.mxu0
    %v1442 = vadd.f32 %v926, %v1441
    %v1443 = vpop.f32.mrf.mxu0
    %1444 = vmatprep.mubr.f32.mxu0 0.0
    %1445 = vmatmul.mubr.f32.gmra.mxu0 %v1063
    %v1446 = vpop.f32.mrf.mxu0
    %v1447 = vadd.f32 %v931, %v1446
    %v1448 = vpop.f32.mrf.mxu0
    %1449 = vmatprep.mubr.f32.mxu0 0.0
    %1450 = vmatmul.mubr.f32.gmra.mxu0 %v1065
    %v1451 = vpop.f32.mrf.mxu0
    %v1452 = vadd.f32 %v936, %v1451
    %v1453 = vpop.f32.mrf.mxu0
    %1454 = vdwg.mxu0
    %vm1455 = vcmask 1045504
    %v1456 = vrot.slane %v53, 2
    %v1457 = vrot.slane %v54, 2
    %v1458 = vsel %vm1455, %v1456, %v1457
    %v1459 = vrot.slane %v55, 2
    %v1460 = vsel %vm1455, %v1457, %v1459
    %v1461 = vrot.slane %v56, 2
    %v1462 = vrot.slane %v57, 2
    %v1463 = vsel %vm1455, %v1461, %v1462
    %v1464 = vrot.slane %v58, 2
    %v1465 = vsel %vm1455, %v1462, %v1464
    %v1466 = vrot.slane %v59, 2
    %v1467 = vrot.slane %v60, 2
    %v1468 = vsel %vm1455, %v1466, %v1467
    %v1469 = vrot.slane %v61, 2
    %v1470 = vsel %vm1455, %v1467, %v1469
    %v1471 = vrot.slane %v62, 2
    %v1472 = vrot.slane %v63, 2
    %v1473 = vsel %vm1455, %v1471, %v1472
    %v1474 = vrot.slane %v64, 2
    %v1475 = vsel %vm1455, %v1472, %v1474
    %v1476 = vrot.slane %v65, 2
    %v1477 = vrot.slane %v66, 2
    %v1478 = vsel %vm1455, %v1476, %v1477
    %v1479 = vrot.slane %v67, 2
    %v1480 = vsel %vm1455, %v1477, %v1479
    %v1481 = vrot.slane %v68, 2
    %v1482 = vrot.slane %v69, 2
    %v1483 = vsel %vm1455, %v1481, %v1482
    %v1484 = vrot.slane %v70, 2
    %v1485 = vsel %vm1455, %v1482, %v1484
    %v1486 = vrot.slane %v71, 2
    %v1487 = vrot.slane %v72, 2
    %v1488 = vsel %vm1455, %v1486, %v1487
    %v1489 = vrot.slane %v73, 2
    %v1490 = vsel %vm1455, %v1487, %v1489
    %v1491 = vrot.slane %v74, 2
    %v1492 = vrot.slane %v75, 2
    %v1493 = vsel %vm1455, %v1491, %v1492
    %v1494 = vrot.slane %v76, 2
    %v1495 = vsel %vm1455, %v1492, %v1494
    %v1496 = vrot.slane %v77, 2
    %v1497 = vrot.slane %v78, 2
    %v1498 = vsel %vm1455, %v1496, %v1497
    %v1499 = vrot.slane %v79, 2
    %v1500 = vsel %vm1455, %v1497, %v1499
    %v1501 = vrot.slane %v80, 2
    %v1502 = vrot.slane %v81, 2
    %v1503 = vsel %vm1455, %v1501, %v1502
    %v1504 = vrot.slane %v82, 2
    %v1505 = vsel %vm1455, %v1502, %v1504
    %v1506 = vrot.slane %v83, 2
    %v1507 = vrot.slane %v84, 2
    %v1508 = vsel %vm1455, %v1506, %v1507
    %v1509 = vrot.slane %v85, 2
    %v1510 = vsel %vm1455, %v1507, %v1509
    %v1511 = vrot.slane %v86, 2
    %v1512 = vrot.slane %v87, 2
    %v1513 = vsel %vm1455, %v1511, %v1512
    %v1514 = vrot.slane %v88, 2
    %v1515 = vsel %vm1455, %v1512, %v1514
    %v1516 = vrot.slane %v89, 2
    %v1517 = vrot.slane %v90, 2
    %v1518 = vsel %vm1455, %v1516, %v1517
    %v1519 = vrot.slane %v91, 2
    %v1520 = vsel %vm1455, %v1517, %v1519
    %v1521 = vrot.slane %v92, 2
    %v1522 = vrot.slane %v93, 2
    %v1523 = vsel %vm1455, %v1521, %v1522
    %v1524 = vrot.slane %v94, 2
    %v1525 = vsel %vm1455, %v1522, %v1524
    %v1526 = vrot.slane %v95, 2
    %v1527 = vrot.slane %v96, 2
    %v1528 = vsel %vm1455, %v1526, %v1527
    %v1529 = vrot.slane %v97, 2
    %v1530 = vsel %vm1455, %v1527, %v1529
    %v1531 = vrot.slane %v98, 2
    %v1532 = vrot.slane %v99, 2
    %v1533 = vsel %vm1455, %v1531, %v1532
    %v1534 = vrot.slane %v100, 2
    %v1535 = vsel %vm1455, %v1532, %v1534
    %v1536 = vrot.slane %v107, 2
    %v1537 = vrot.slane %v108, 2
    %v1538 = vsel %vm1455, %v1536, %v1537
    %v1539 = vrot.slane %v109, 2
    %v1540 = vsel %vm1455, %v1537, %v1539
    %v1541 = vrot.slane %v110, 2
    %v1542 = vrot.slane %v111, 2
    %v1543 = vsel %vm1455, %v1541, %v1542
    %v1544 = vrot.slane %v112, 2
    %v1545 = vsel %vm1455, %v1542, %v1544
    %v1546 = vrot.slane %v113, 2
    %v1547 = vrot.slane %v114, 2
    %v1548 = vsel %vm1455, %v1546, %v1547
    %v1549 = vrot.slane %v115, 2
    %v1550 = vsel %vm1455, %v1547, %v1549
    %v1551 = vrot.slane %v116, 2
    %v1552 = vrot.slane %v117, 2
    %v1553 = vsel %vm1455, %v1551, %v1552
    %v1554 = vrot.slane %v118, 2
    %v1555 = vsel %vm1455, %v1552, %v1554
    %v1556 = vrot.slane %v119, 2
    %v1557 = vrot.slane %v120, 2
    %v1558 = vsel %vm1455, %v1556, %v1557
    %v1559 = vrot.slane %v121, 2
    %v1560 = vsel %vm1455, %v1557, %v1559
    %v1561 = vrot.slane %v122, 2
    %v1562 = vrot.slane %v123, 2
    %v1563 = vsel %vm1455, %v1561, %v1562
    %v1564 = vrot.slane %v124, 2
    %v1565 = vsel %vm1455, %v1562, %v1564
    %v1566 = vrot.slane %v125, 2
    %v1567 = vrot.slane %v126, 2
    %v1568 = vsel %vm1455, %v1566, %v1567
    %v1569 = vrot.slane %v127, 2
    %v1570 = vsel %vm1455, %v1567, %v1569
    %v1571 = vrot.slane %v128, 2
    %v1572 = vrot.slane %v129, 2
    %v1573 = vsel %vm1455, %v1571, %v1572
    %v1574 = vrot.slane %v130, 2
    %v1575 = vsel %vm1455, %v1572, %v1574
    %v1576 = vrot.slane %v131, 2
    %v1577 = vrot.slane %v132, 2
    %v1578 = vsel %vm1455, %v1576, %v1577
    %v1579 = vrot.slane %v133, 2
    %v1580 = vsel %vm1455, %v1577, %v1579
    %v1581 = vrot.slane %v134, 2
    %v1582 = vrot.slane %v135, 2
    %v1583 = vsel %vm1455, %v1581, %v1582
    %v1584 = vrot.slane %v136, 2
    %v1585 = vsel %vm1455, %v1582, %v1584
    %v1586 = vrot.slane %v137, 2
    %v1587 = vrot.slane %v138, 2
    %v1588 = vsel %vm1455, %v1586, %v1587
    %v1589 = vrot.slane %v139, 2
    %v1590 = vsel %vm1455, %v1587, %v1589
    %v1591 = vrot.slane %v140, 2
    %v1592 = vrot.slane %v141, 2
    %v1593 = vsel %vm1455, %v1591, %v1592
    %v1594 = vrot.slane %v142, 2
    %v1595 = vsel %vm1455, %v1592, %v1594
    %v1596 = vrot.slane %v143, 2
    %v1597 = vrot.slane %v144, 2
    %v1598 = vsel %vm1455, %v1596, %v1597
    %v1599 = vrot.slane %v145, 2
    %v1600 = vsel %vm1455, %v1597, %v1599
    %v1601 = vrot.slane %v146, 2
    %v1602 = vrot.slane %v147, 2
    %v1603 = vsel %vm1455, %v1601, %v1602
    %v1604 = vrot.slane %v148, 2
    %v1605 = vsel %vm1455, %v1602, %v1604
    %v1606 = vrot.slane %v149, 2
    %v1607 = vrot.slane %v150, 2
    %v1608 = vsel %vm1455, %v1606, %v1607
    %v1609 = vrot.slane %v151, 2
    %v1610 = vsel %vm1455, %v1607, %v1609
    %v1611 = vrot.slane %v152, 2
    %v1612 = vrot.slane %v153, 2
    %v1613 = vsel %vm1455, %v1611, %v1612
    %v1614 = vrot.slane %v154, 2
    %v1615 = vsel %vm1455, %v1612, %v1614
    %s1616 = scalar_lea.vmem %s1, 8
    %v1617 = vld [vmem:[%s1616] sm:$0xf]
    %v1618 = vsel %vm421, %v1458, 0
    %v1620 = vsel %vm421, %v1460, 0
    %v1622 = vsel %vm421, %v1463, 0
    %v1624 = vsel %vm421, %v1465, 0
    %v1626 = vsel %vm421, %v1468, 0
    %v1628 = vsel %vm421, %v1470, 0
    %v1630 = vsel %vm421, %v1473, 0
    %v1632 = vsel %vm421, %v1475, 0
    %v1634 = vsel %vm421, %v1478, 0
    %v1636 = vsel %vm421, %v1480, 0
    %v1638 = vsel %vm421, %v1483, 0
    %v1640 = vsel %vm421, %v1485, 0
    %v1642 = vsel %vm421, %v1488, 0
    %v1644 = vsel %vm421, %v1490, 0
    %v1646 = vsel %vm421, %v1493, 0
    %v1648 = vsel %vm421, %v1495, 0
    %v1650 = vsel %vm421, %v1498, 0
    %v1652 = vsel %vm421, %v1500, 0
    %v1654 = vsel %vm421, %v1503, 0
    %v1656 = vsel %vm421, %v1505, 0
    %v1658 = vsel %vm421, %v1508, 0
    %v1660 = vsel %vm421, %v1510, 0
    %v1662 = vsel %vm421, %v1513, 0
    %v1664 = vsel %vm421, %v1515, 0
    %v1666 = vsel %vm421, %v1518, 0
    %v1668 = vsel %vm421, %v1520, 0
    %v1670 = vsel %vm421, %v1523, 0
    %v1672 = vsel %vm421, %v1525, 0
    %v1674 = vsel %vm421, %v1528, 0
    %v1676 = vsel %vm421, %v1530, 0
    %v1678 = vsel %vm421, %v1533, 0
    %v1680 = vsel %vm421, %v1535, 0
    %v1682 = vsel %vm421, %v1538, 0
    %v1684 = vsel %vm421, %v1540, 0
    %v1686 = vsel %vm421, %v1543, 0
    %v1688 = vsel %vm421, %v1545, 0
    %v1690 = vsel %vm421, %v1548, 0
    %v1692 = vsel %vm421, %v1550, 0
    %v1694 = vsel %vm421, %v1553, 0
    %v1696 = vsel %vm421, %v1555, 0
    %v1698 = vsel %vm421, %v1558, 0
    %v1700 = vsel %vm421, %v1560, 0
    %v1702 = vsel %vm421, %v1563, 0
    %v1704 = vsel %vm421, %v1565, 0
    %v1706 = vsel %vm421, %v1568, 0
    %v1708 = vsel %vm421, %v1570, 0
    %v1710 = vsel %vm421, %v1573, 0
    %v1712 = vsel %vm421, %v1575, 0
    %v1714 = vsel %vm421, %v1578, 0
    %v1716 = vsel %vm421, %v1580, 0
    %v1718 = vsel %vm421, %v1583, 0
    %v1720 = vsel %vm421, %v1585, 0
    %v1722 = vsel %vm421, %v1588, 0
    %v1724 = vsel %vm421, %v1590, 0
    %v1726 = vsel %vm421, %v1593, 0
    %v1728 = vsel %vm421, %v1595, 0
    %v1730 = vsel %vm421, %v1598, 0
    %v1732 = vsel %vm421, %v1600, 0
    %v1734 = vsel %vm421, %v1603, 0
    %v1736 = vsel %vm421, %v1605, 0
    %v1738 = vsel %vm421, %v1608, 0
    %v1740 = vsel %vm421, %v1610, 0
    %v1742 = vsel %vm421, %v1613, 0
    %v1744 = vsel %vm421, %v1615, 0
    %v1747 = vsel %vm550, %v1617, 0
    %1749 = vmatprep.subr.mxu0 0.0
    %1750 = vmatpush1.msra.mxu0 0.0
    %1751 = vmatprep.subr.mxu0 0.0
    %1752 = vmatpush1.msra.mxu0 0.0
    %1753 = vmatprep.subr.mxu0 0.0
    %1754 = vmatpush1.msra.mxu0 0.0
    %1755 = vmatprep.subr.mxu0 0.0
    %1756 = vmatpush1.msra.mxu0 0.0
    %1757 = vmatprep.subr.mxu0 0.0
    %1758 = vmatpush1.msra.mxu0 0.0
    %1759 = vmatprep.subr.mxu0 0.0
    %1760 = vmatpush1.msra.mxu0 0.0
    %1761 = vmatprep.subr.mxu0 0.0
    %1762 = vmatpush1.msra.mxu0 0.0
    %1763 = vmatprep.subr.mxu0 0.0
    %1764 = vmatpush1.msra.mxu0 0.0
    %1765 = vmatprep.subr.mxu0 0.0
    %1766 = vmatpush1.msra.mxu0 0.0
    %1767 = vmatprep.subr.mxu0 0.0
    %1768 = vmatpush1.msra.mxu0 0.0
    %1769 = vmatprep.subr.mxu0 0.0
    %1770 = vmatpush1.msra.mxu0 0.0
    %1771 = vmatprep.subr.mxu0 0.0
    %1772 = vmatpush1.msra.mxu0 0.0
    %1773 = vmatprep.subr.mxu0 0.0
    %1774 = vmatpush1.msra.mxu0 0.0
    %1775 = vmatprep.subr.mxu0 0.0
    %1776 = vmatpush1.msra.mxu0 0.0
    %1777 = vmatprep.subr.mxu0 0.0
    %1778 = vmatpush1.msra.mxu0 0.0
    %1779 = vmatprep.subr.mxu0 0.0
    %1780 = vmatpush1.msra.mxu0 %v1747
    %1781 = vmatprep.subr.mxu0 0.0
    %1782 = vmatpush2.msra.mxu0 0.0
    %1783 = vmatprep.subr.mxu0 0.0
    %1784 = vmatpush2.msra.mxu0 0.0
    %1785 = vmatprep.subr.mxu0 0.0
    %1786 = vmatpush2.msra.mxu0 0.0
    %1787 = vmatprep.subr.mxu0 0.0
    %1788 = vmatpush2.msra.mxu0 0.0
    %1789 = vmatprep.subr.mxu0 0.0
    %1790 = vmatpush2.msra.mxu0 0.0
    %1791 = vmatprep.subr.mxu0 0.0
    %1792 = vmatpush2.msra.mxu0 0.0
    %1793 = vmatprep.subr.mxu0 0.0
    %1794 = vmatpush2.msra.mxu0 0.0
    %1795 = vmatprep.subr.mxu0 0.0
    %1796 = vmatpush2.msra.mxu0 0.0
    %1797 = vmatprep.subr.mxu0 0.0
    %1798 = vmatpush2.msra.mxu0 0.0
    %1799 = vmatprep.subr.mxu0 0.0
    %1800 = vmatpush2.msra.mxu0 0.0
    %1801 = vmatprep.subr.mxu0 0.0
    %1802 = vmatpush2.msra.mxu0 0.0
    %1803 = vmatprep.subr.mxu0 0.0
    %1804 = vmatpush2.msra.mxu0 0.0
    %1805 = vmatprep.subr.mxu0 0.0
    %1806 = vmatpush2.msra.mxu0 0.0
    %1807 = vmatprep.subr.mxu0 0.0
    %1808 = vmatpush2.msra.mxu0 0.0
    %1809 = vmatprep.subr.mxu0 0.0
    %1810 = vmatpush2.msra.mxu0 0.0
    %1811 = vmatprep.subr.mxu0 0.0
    %1812 = vmatpush2.msra.mxu0 0.0
    %1813 = vmatprep.mubr.f32.mxu0 0.0
    %1814 = vmatmul.mubr.f32.gmra.mxu0 %v1618
    %v1815 = vpop.f32.mrf.mxu0
    %v1816 = vadd.f32 0.0, %v1815
    %v1817 = vpop.f32.mrf.mxu0
    %1818 = vmatprep.mubr.f32.mxu0 0.0
    %1819 = vmatmul.mubr.f32.gmra.mxu0 %v1620
    %v1820 = vpop.f32.mrf.mxu0
    %v1821 = vadd.f32 0.0, %v1820
    %v1822 = vpop.f32.mrf.mxu0
    %1823 = vmatprep.mubr.f32.mxu0 0.0
    %1824 = vmatmul.mubr.f32.gmra.mxu0 %v1622
    %v1825 = vpop.f32.mrf.mxu0
    %v1826 = vadd.f32 0.0, %v1825
    %v1827 = vpop.f32.mrf.mxu0
    %1828 = vmatprep.mubr.f32.mxu0 0.0
    %1829 = vmatmul.mubr.f32.gmra.mxu0 %v1624
    %v1830 = vpop.f32.mrf.mxu0
    %v1831 = vadd.f32 0.0, %v1830
    %v1832 = vpop.f32.mrf.mxu0
    %1833 = vmatprep.mubr.f32.mxu0 0.0
    %1834 = vmatmul.mubr.f32.gmra.mxu0 %v1626
    %v1835 = vpop.f32.mrf.mxu0
    %v1836 = vadd.f32 0.0, %v1835
    %v1837 = vpop.f32.mrf.mxu0
    %1838 = vmatprep.mubr.f32.mxu0 0.0
    %1839 = vmatmul.mubr.f32.gmra.mxu0 %v1628
    %v1840 = vpop.f32.mrf.mxu0
    %v1841 = vadd.f32 0.0, %v1840
    %v1842 = vpop.f32.mrf.mxu0
    %1843 = vmatprep.mubr.f32.mxu0 0.0
    %1844 = vmatmul.mubr.f32.gmra.mxu0 %v1630
    %v1845 = vpop.f32.mrf.mxu0
    %v1846 = vadd.f32 0.0, %v1845
    %v1847 = vpop.f32.mrf.mxu0
    %1848 = vmatprep.mubr.f32.mxu0 0.0
    %1849 = vmatmul.mubr.f32.gmra.mxu0 %v1632
    %v1850 = vpop.f32.mrf.mxu0
    %v1851 = vadd.f32 0.0, %v1850
    %v1852 = vpop.f32.mrf.mxu0
    %1853 = vmatprep.mubr.f32.mxu0 0.0
    %1854 = vmatmul.mubr.f32.gmra.mxu0 %v1634
    %v1855 = vpop.f32.mrf.mxu0
    %v1856 = vadd.f32 0.0, %v1855
    %v1857 = vpop.f32.mrf.mxu0
    %1858 = vmatprep.mubr.f32.mxu0 0.0
    %1859 = vmatmul.mubr.f32.gmra.mxu0 %v1636
    %v1860 = vpop.f32.mrf.mxu0
    %v1861 = vadd.f32 0.0, %v1860
    %v1862 = vpop.f32.mrf.mxu0
    %1863 = vmatprep.mubr.f32.mxu0 0.0
    %1864 = vmatmul.mubr.f32.gmra.mxu0 %v1638
    %v1865 = vpop.f32.mrf.mxu0
    %v1866 = vadd.f32 0.0, %v1865
    %v1867 = vpop.f32.mrf.mxu0
    %1868 = vmatprep.mubr.f32.mxu0 0.0
    %1869 = vmatmul.mubr.f32.gmra.mxu0 %v1640
    %v1870 = vpop.f32.mrf.mxu0
    %v1871 = vadd.f32 0.0, %v1870
    %v1872 = vpop.f32.mrf.mxu0
    %1873 = vmatprep.mubr.f32.mxu0 0.0
    %1874 = vmatmul.mubr.f32.gmra.mxu0 %v1642
    %v1875 = vpop.f32.mrf.mxu0
    %v1876 = vadd.f32 0.0, %v1875
    %v1877 = vpop.f32.mrf.mxu0
    %1878 = vmatprep.mubr.f32.mxu0 0.0
    %1879 = vmatmul.mubr.f32.gmra.mxu0 %v1644
    %v1880 = vpop.f32.mrf.mxu0
    %v1881 = vadd.f32 0.0, %v1880
    %v1882 = vpop.f32.mrf.mxu0
    %1883 = vmatprep.mubr.f32.mxu0 0.0
    %1884 = vmatmul.mubr.f32.gmra.mxu0 %v1646
    %v1885 = vpop.f32.mrf.mxu0
    %v1886 = vadd.f32 0.0, %v1885
    %v1887 = vpop.f32.mrf.mxu0
    %1888 = vmatprep.mubr.f32.mxu0 0.0
    %1889 = vmatmul.mubr.f32.gmra.mxu0 %v1648
    %v1890 = vpop.f32.mrf.mxu0
    %v1891 = vadd.f32 0.0, %v1890
    %v1892 = vpop.f32.mrf.mxu0
    %1893 = vmatprep.mubr.f32.mxu0 0.0
    %1894 = vmatmul.mubr.f32.gmra.mxu0 %v1650
    %v1895 = vpop.f32.mrf.mxu0
    %v1896 = vadd.f32 0.0, %v1895
    %v1897 = vpop.f32.mrf.mxu0
    %1898 = vmatprep.mubr.f32.mxu0 0.0
    %1899 = vmatmul.mubr.f32.gmra.mxu0 %v1652
    %v1900 = vpop.f32.mrf.mxu0
    %v1901 = vadd.f32 0.0, %v1900
    %v1902 = vpop.f32.mrf.mxu0
    %1903 = vmatprep.mubr.f32.mxu0 0.0
    %1904 = vmatmul.mubr.f32.gmra.mxu0 %v1654
    %v1905 = vpop.f32.mrf.mxu0
    %v1906 = vadd.f32 0.0, %v1905
    %v1907 = vpop.f32.mrf.mxu0
    %1908 = vmatprep.mubr.f32.mxu0 0.0
    %1909 = vmatmul.mubr.f32.gmra.mxu0 %v1656
    %v1910 = vpop.f32.mrf.mxu0
    %v1911 = vadd.f32 0.0, %v1910
    %v1912 = vpop.f32.mrf.mxu0
    %1913 = vmatprep.mubr.f32.mxu0 0.0
    %1914 = vmatmul.mubr.f32.gmra.mxu0 %v1658
    %v1915 = vpop.f32.mrf.mxu0
    %v1916 = vadd.f32 0.0, %v1915
    %v1917 = vpop.f32.mrf.mxu0
    %1918 = vmatprep.mubr.f32.mxu0 0.0
    %1919 = vmatmul.mubr.f32.gmra.mxu0 %v1660
    %v1920 = vpop.f32.mrf.mxu0
    %v1921 = vadd.f32 0.0, %v1920
    %v1922 = vpop.f32.mrf.mxu0
    %1923 = vmatprep.mubr.f32.mxu0 0.0
    %1924 = vmatmul.mubr.f32.gmra.mxu0 %v1662
    %v1925 = vpop.f32.mrf.mxu0
    %v1926 = vadd.f32 0.0, %v1925
    %v1927 = vpop.f32.mrf.mxu0
    %1928 = vmatprep.mubr.f32.mxu0 0.0
    %1929 = vmatmul.mubr.f32.gmra.mxu0 %v1664
    %v1930 = vpop.f32.mrf.mxu0
    %v1931 = vadd.f32 0.0, %v1930
    %v1932 = vpop.f32.mrf.mxu0
    %1933 = vmatprep.mubr.f32.mxu0 0.0
    %1934 = vmatmul.mubr.f32.gmra.mxu0 %v1666
    %v1935 = vpop.f32.mrf.mxu0
    %v1936 = vadd.f32 0.0, %v1935
    %v1937 = vpop.f32.mrf.mxu0
    %1938 = vmatprep.mubr.f32.mxu0 0.0
    %1939 = vmatmul.mubr.f32.gmra.mxu0 %v1668
    %v1940 = vpop.f32.mrf.mxu0
    %v1941 = vadd.f32 0.0, %v1940
    %v1942 = vpop.f32.mrf.mxu0
    %1943 = vmatprep.mubr.f32.mxu0 0.0
    %1944 = vmatmul.mubr.f32.gmra.mxu0 %v1670
    %v1945 = vpop.f32.mrf.mxu0
    %v1946 = vadd.f32 0.0, %v1945
    %v1947 = vpop.f32.mrf.mxu0
    %1948 = vmatprep.mubr.f32.mxu0 0.0
    %1949 = vmatmul.mubr.f32.gmra.mxu0 %v1672
    %v1950 = vpop.f32.mrf.mxu0
    %v1951 = vadd.f32 0.0, %v1950
    %v1952 = vpop.f32.mrf.mxu0
    %1953 = vmatprep.mubr.f32.mxu0 0.0
    %1954 = vmatmul.mubr.f32.gmra.mxu0 %v1674
    %v1955 = vpop.f32.mrf.mxu0
    %v1956 = vadd.f32 0.0, %v1955
    %v1957 = vpop.f32.mrf.mxu0
    %1958 = vmatprep.mubr.f32.mxu0 0.0
    %1959 = vmatmul.mubr.f32.gmra.mxu0 %v1676
    %v1960 = vpop.f32.mrf.mxu0
    %v1961 = vadd.f32 0.0, %v1960
    %v1962 = vpop.f32.mrf.mxu0
    %1963 = vmatprep.mubr.f32.mxu0 0.0
    %1964 = vmatmul.mubr.f32.gmra.mxu0 %v1678
    %v1965 = vpop.f32.mrf.mxu0
    %v1966 = vadd.f32 0.0, %v1965
    %v1967 = vpop.f32.mrf.mxu0
    %1968 = vmatprep.mubr.f32.mxu0 0.0
    %1969 = vmatmul.mubr.f32.gmra.mxu0 %v1680
    %v1970 = vpop.f32.mrf.mxu0
    %v1971 = vadd.f32 0.0, %v1970
    %v1972 = vpop.f32.mrf.mxu0
    %1973 = vmatprep.mubr.f32.mxu0 0.0
    %1974 = vmatmul.mubr.f32.gmra.mxu0 %v1682
    %v1975 = vpop.f32.mrf.mxu0
    %v1976 = vadd.f32 0.0, %v1975
    %v1977 = vpop.f32.mrf.mxu0
    %1978 = vmatprep.mubr.f32.mxu0 0.0
    %1979 = vmatmul.mubr.f32.gmra.mxu0 %v1684
    %v1980 = vpop.f32.mrf.mxu0
    %v1981 = vadd.f32 0.0, %v1980
    %v1982 = vpop.f32.mrf.mxu0
    %1983 = vmatprep.mubr.f32.mxu0 0.0
    %1984 = vmatmul.mubr.f32.gmra.mxu0 %v1686
    %v1985 = vpop.f32.mrf.mxu0
    %v1986 = vadd.f32 0.0, %v1985
    %v1987 = vpop.f32.mrf.mxu0
    %1988 = vmatprep.mubr.f32.mxu0 0.0
    %1989 = vmatmul.mubr.f32.gmra.mxu0 %v1688
    %v1990 = vpop.f32.mrf.mxu0
    %v1991 = vadd.f32 0.0, %v1990
    %v1992 = vpop.f32.mrf.mxu0
    %1993 = vmatprep.mubr.f32.mxu0 0.0
    %1994 = vmatmul.mubr.f32.gmra.mxu0 %v1690
    %v1995 = vpop.f32.mrf.mxu0
    %v1996 = vadd.f32 0.0, %v1995
    %v1997 = vpop.f32.mrf.mxu0
    %1998 = vmatprep.mubr.f32.mxu0 0.0
    %1999 = vmatmul.mubr.f32.gmra.mxu0 %v1692
    %v2000 = vpop.f32.mrf.mxu0
    %v2001 = vadd.f32 0.0, %v2000
    %v2002 = vpop.f32.mrf.mxu0
    %2003 = vmatprep.mubr.f32.mxu0 0.0
    %2004 = vmatmul.mubr.f32.gmra.mxu0 %v1694
    %v2005 = vpop.f32.mrf.mxu0
    %v2006 = vadd.f32 0.0, %v2005
    %v2007 = vpop.f32.mrf.mxu0
    %2008 = vmatprep.mubr.f32.mxu0 0.0
    %2009 = vmatmul.mubr.f32.gmra.mxu0 %v1696
    %v2010 = vpop.f32.mrf.mxu0
    %v2011 = vadd.f32 0.0, %v2010
    %v2012 = vpop.f32.mrf.mxu0
    %2013 = vmatprep.mubr.f32.mxu0 0.0
    %2014 = vmatmul.mubr.f32.gmra.mxu0 %v1698
    %v2015 = vpop.f32.mrf.mxu0
    %v2016 = vadd.f32 0.0, %v2015
    %v2017 = vpop.f32.mrf.mxu0
    %2018 = vmatprep.mubr.f32.mxu0 0.0
    %2019 = vmatmul.mubr.f32.gmra.mxu0 %v1700
    %v2020 = vpop.f32.mrf.mxu0
    %v2021 = vadd.f32 0.0, %v2020
    %v2022 = vpop.f32.mrf.mxu0
    %2023 = vmatprep.mubr.f32.mxu0 0.0
    %2024 = vmatmul.mubr.f32.gmra.mxu0 %v1702
    %v2025 = vpop.f32.mrf.mxu0
    %v2026 = vadd.f32 0.0, %v2025
    %v2027 = vpop.f32.mrf.mxu0
    %2028 = vmatprep.mubr.f32.mxu0 0.0
    %2029 = vmatmul.mubr.f32.gmra.mxu0 %v1704
    %v2030 = vpop.f32.mrf.mxu0
    %v2031 = vadd.f32 0.0, %v2030
    %v2032 = vpop.f32.mrf.mxu0
    %2033 = vmatprep.mubr.f32.mxu0 0.0
    %2034 = vmatmul.mubr.f32.gmra.mxu0 %v1706
    %v2035 = vpop.f32.mrf.mxu0
    %v2036 = vadd.f32 0.0, %v2035
    %v2037 = vpop.f32.mrf.mxu0
    %2038 = vmatprep.mubr.f32.mxu0 0.0
    %2039 = vmatmul.mubr.f32.gmra.mxu0 %v1708
    %v2040 = vpop.f32.mrf.mxu0
    %v2041 = vadd.f32 0.0, %v2040
    %v2042 = vpop.f32.mrf.mxu0
    %2043 = vmatprep.mubr.f32.mxu0 0.0
    %2044 = vmatmul.mubr.f32.gmra.mxu0 %v1710
    %v2045 = vpop.f32.mrf.mxu0
    %v2046 = vadd.f32 0.0, %v2045
    %v2047 = vpop.f32.mrf.mxu0
    %2048 = vmatprep.mubr.f32.mxu0 0.0
    %2049 = vmatmul.mubr.f32.gmra.mxu0 %v1712
    %v2050 = vpop.f32.mrf.mxu0
    %v2051 = vadd.f32 0.0, %v2050
    %v2052 = vpop.f32.mrf.mxu0
    %2053 = vmatprep.mubr.f32.mxu0 0.0
    %2054 = vmatmul.mubr.f32.gmra.mxu0 %v1714
    %v2055 = vpop.f32.mrf.mxu0
    %v2056 = vadd.f32 0.0, %v2055
    %v2057 = vpop.f32.mrf.mxu0
    %2058 = vmatprep.mubr.f32.mxu0 0.0
    %2059 = vmatmul.mubr.f32.gmra.mxu0 %v1716
    %v2060 = vpop.f32.mrf.mxu0
    %v2061 = vadd.f32 0.0, %v2060
    %v2062 = vpop.f32.mrf.mxu0
    %2063 = vmatprep.mubr.f32.mxu0 0.0
    %2064 = vmatmul.mubr.f32.gmra.mxu0 %v1718
    %v2065 = vpop.f32.mrf.mxu0
    %v2066 = vadd.f32 0.0, %v2065
    %v2067 = vpop.f32.mrf.mxu0
    %2068 = vmatprep.mubr.f32.mxu0 0.0
    %2069 = vmatmul.mubr.f32.gmra.mxu0 %v1720
    %v2070 = vpop.f32.mrf.mxu0
    %v2071 = vadd.f32 0.0, %v2070
    %v2072 = vpop.f32.mrf.mxu0
    %2073 = vmatprep.mubr.f32.mxu0 0.0
    %2074 = vmatmul.mubr.f32.gmra.mxu0 %v1722
    %v2075 = vpop.f32.mrf.mxu0
    %v2076 = vadd.f32 0.0, %v2075
    %v2077 = vpop.f32.mrf.mxu0
    %2078 = vmatprep.mubr.f32.mxu0 0.0
    %2079 = vmatmul.mubr.f32.gmra.mxu0 %v1724
    %v2080 = vpop.f32.mrf.mxu0
    %v2081 = vadd.f32 0.0, %v2080
    %v2082 = vpop.f32.mrf.mxu0
    %2083 = vmatprep.mubr.f32.mxu0 0.0
    %2084 = vmatmul.mubr.f32.gmra.mxu0 %v1726
    %v2085 = vpop.f32.mrf.mxu0
    %v2086 = vadd.f32 0.0, %v2085
    %v2087 = vpop.f32.mrf.mxu0
    %2088 = vmatprep.mubr.f32.mxu0 0.0
    %2089 = vmatmul.mubr.f32.gmra.mxu0 %v1728
    %v2090 = vpop.f32.mrf.mxu0
    %v2091 = vadd.f32 0.0, %v2090
    %v2092 = vpop.f32.mrf.mxu0
    %2093 = vmatprep.mubr.f32.mxu0 0.0
    %2094 = vmatmul.mubr.f32.gmra.mxu0 %v1730
    %v2095 = vpop.f32.mrf.mxu0
    %v2096 = vadd.f32 0.0, %v2095
    %v2097 = vpop.f32.mrf.mxu0
    %2098 = vmatprep.mubr.f32.mxu0 0.0
    %2099 = vmatmul.mubr.f32.gmra.mxu0 %v1732
    %v2100 = vpop.f32.mrf.mxu0
    %v2101 = vadd.f32 0.0, %v2100
    %v2102 = vpop.f32.mrf.mxu0
    %2103 = vmatprep.mubr.f32.mxu0 0.0
    %2104 = vmatmul.mubr.f32.gmra.mxu0 %v1734
    %v2105 = vpop.f32.mrf.mxu0
    %v2106 = vadd.f32 0.0, %v2105
    %v2107 = vpop.f32.mrf.mxu0
    %2108 = vmatprep.mubr.f32.mxu0 0.0
    %2109 = vmatmul.mubr.f32.gmra.mxu0 %v1736
    %v2110 = vpop.f32.mrf.mxu0
    %v2111 = vadd.f32 0.0, %v2110
    %v2112 = vpop.f32.mrf.mxu0
    %2113 = vmatprep.mubr.f32.mxu0 0.0
    %2114 = vmatmul.mubr.f32.gmra.mxu0 %v1738
    %v2115 = vpop.f32.mrf.mxu0
    %v2116 = vadd.f32 0.0, %v2115
    %v2117 = vpop.f32.mrf.mxu0
    %2118 = vmatprep.mubr.f32.mxu0 0.0
    %2119 = vmatmul.mubr.f32.gmra.mxu0 %v1740
    %v2120 = vpop.f32.mrf.mxu0
    %v2121 = vadd.f32 0.0, %v2120
    %v2122 = vpop.f32.mrf.mxu0
    %2123 = vmatprep.mubr.f32.mxu0 0.0
    %2124 = vmatmul.mubr.f32.gmra.mxu0 %v1742
    %v2125 = vpop.f32.mrf.mxu0
    %v2126 = vadd.f32 0.0, %v2125
    %v2127 = vpop.f32.mrf.mxu0
    %2128 = vmatprep.mubr.f32.mxu0 0.0
    %2129 = vmatmul.mubr.f32.gmra.mxu0 %v1744
    %v2130 = vpop.f32.mrf.mxu0
    %v2131 = vadd.f32 0.0, %v2130
    %v2132 = vpop.f32.mrf.mxu0
    %2133 = vdwg.mxu0
    %v2134 = vadd.f32 %v1137, %v1816
    %v2135 = vadd.f32 %v1142, %v1821
    %v2136 = vadd.f32 %v1147, %v1826
    %v2137 = vadd.f32 %v1152, %v1831
    %v2138 = vadd.f32 %v1157, %v1836
    %v2139 = vadd.f32 %v1162, %v1841
    %v2140 = vadd.f32 %v1167, %v1846
    %v2141 = vadd.f32 %v1172, %v1851
    %v2142 = vadd.f32 %v1177, %v1856
    %v2143 = vadd.f32 %v1182, %v1861
    %v2144 = vadd.f32 %v1187, %v1866
    %v2145 = vadd.f32 %v1192, %v1871
    %v2146 = vadd.f32 %v1197, %v1876
    %v2147 = vadd.f32 %v1202, %v1881
    %v2148 = vadd.f32 %v1207, %v1886
    %v2149 = vadd.f32 %v1212, %v1891
    %v2150 = vadd.f32 %v1217, %v1896
    %v2151 = vadd.f32 %v1222, %v1901
    %v2152 = vadd.f32 %v1227, %v1906
    %v2153 = vadd.f32 %v1232, %v1911
    %v2154 = vadd.f32 %v1237, %v1916
    %v2155 = vadd.f32 %v1242, %v1921
    %v2156 = vadd.f32 %v1247, %v1926
    %v2157 = vadd.f32 %v1252, %v1931
    %v2158 = vadd.f32 %v1257, %v1936
    %v2159 = vadd.f32 %v1262, %v1941
    %v2160 = vadd.f32 %v1267, %v1946
    %v2161 = vadd.f32 %v1272, %v1951
    %v2162 = vadd.f32 %v1277, %v1956
    %v2163 = vadd.f32 %v1282, %v1961
    %v2164 = vadd.f32 %v1287, %v1966
    %v2165 = vadd.f32 %v1292, %v1971
    %v2166 = vadd.f32 %v1297, %v1976
    %v2167 = vadd.f32 %v1302, %v1981
    %v2168 = vadd.f32 %v1307, %v1986
    %v2169 = vadd.f32 %v1312, %v1991
    %v2170 = vadd.f32 %v1317, %v1996
    %v2171 = vadd.f32 %v1322, %v2001
    %v2172 = vadd.f32 %v1327, %v2006
    %v2173 = vadd.f32 %v1332, %v2011
    %v2174 = vadd.f32 %v1337, %v2016
    %v2175 = vadd.f32 %v1342, %v2021
    %v2176 = vadd.f32 %v1347, %v2026
    %v2177 = vadd.f32 %v1352, %v2031
    %v2178 = vadd.f32 %v1357, %v2036
    %v2179 = vadd.f32 %v1362, %v2041
    %v2180 = vadd.f32 %v1367, %v2046
    %v2181 = vadd.f32 %v1372, %v2051
    %v2182 = vadd.f32 %v1377, %v2056
    %v2183 = vadd.f32 %v1382, %v2061
    %v2184 = vadd.f32 %v1387, %v2066
    %v2185 = vadd.f32 %v1392, %v2071
    %v2186 = vadd.f32 %v1397, %v2076
    %v2187 = vadd.f32 %v1402, %v2081
    %v2188 = vadd.f32 %v1407, %v2086
    %v2189 = vadd.f32 %v1412, %v2091
    %v2190 = vadd.f32 %v1417, %v2096
    %v2191 = vadd.f32 %v1422, %v2101
    %v2192 = vadd.f32 %v1427, %v2106
    %v2193 = vadd.f32 %v1432, %v2111
    %v2194 = vadd.f32 %v1437, %v2116
    %v2195 = vadd.f32 %v1442, %v2121
    %v2196 = vadd.f32 %v1447, %v2126
    %v2197 = vadd.f32 %v1452, %v2131
    %s2198 = scalar_lea.vmem %s1, 12
    %v2199 = vld [vmem:[%s2198] sm:$0xf]
    %v2201 = vsel %vm421, %v101, 0
    %v2204 = vsel %vm421, %v102, 0
    %v2207 = vsel %vm421, %v155, 0
    %v2210 = vsel %vm421, %v156, 0
    %v2213 = vsel %vm550, %v2199, 0
    %2215 = vmatprep.subr.mxu0 0.0
    %2216 = vmatpush1.msra.mxu0 0.0
    %2217 = vmatprep.subr.mxu0 0.0
    %2218 = vmatpush1.msra.mxu0 0.0
    %2219 = vmatprep.subr.mxu0 0.0
    %2220 = vmatpush1.msra.mxu0 0.0
    %2221 = vmatprep.subr.mxu0 0.0
    %2222 = vmatpush1.msra.mxu0 0.0
    %2223 = vmatprep.subr.mxu0 0.0
    %2224 = vmatpush1.msra.mxu0 0.0
    %2225 = vmatprep.subr.mxu0 0.0
    %2226 = vmatpush1.msra.mxu0 0.0
    %2227 = vmatprep.subr.mxu0 0.0
    %2228 = vmatpush1.msra.mxu0 0.0
    %2229 = vmatprep.subr.mxu0 0.0
    %2230 = vmatpush1.msra.mxu0 0.0
    %2231 = vmatprep.subr.mxu0 0.0
    %2232 = vmatpush1.msra.mxu0 0.0
    %2233 = vmatprep.subr.mxu0 0.0
    %2234 = vmatpush1.msra.mxu0 0.0
    %2235 = vmatprep.subr.mxu0 0.0
    %2236 = vmatpush1.msra.mxu0 0.0
    %2237 = vmatprep.subr.mxu0 0.0
    %2238 = vmatpush1.msra.mxu0 0.0
    %2239 = vmatprep.subr.mxu0 0.0
    %2240 = vmatpush1.msra.mxu0 0.0
    %2241 = vmatprep.subr.mxu0 0.0
    %2242 = vmatpush1.msra.mxu0 0.0
    %2243 = vmatprep.subr.mxu0 0.0
    %2244 = vmatpush1.msra.mxu0 0.0
    %2245 = vmatprep.subr.mxu0 0.0
    %2246 = vmatpush1.msra.mxu0 %v2213
    %2247 = vmatprep.subr.mxu0 0.0
    %2248 = vmatpush2.msra.mxu0 0.0
    %2249 = vmatprep.subr.mxu0 0.0
    %2250 = vmatpush2.msra.mxu0 0.0
    %2251 = vmatprep.subr.mxu0 0.0
    %2252 = vmatpush2.msra.mxu0 0.0
    %2253 = vmatprep.subr.mxu0 0.0
    %2254 = vmatpush2.msra.mxu0 0.0
    %2255 = vmatprep.subr.mxu0 0.0
    %2256 = vmatpush2.msra.mxu0 0.0
    %2257 = vmatprep.subr.mxu0 0.0
    %2258 = vmatpush2.msra.mxu0 0.0
    %2259 = vmatprep.subr.mxu0 0.0
    %2260 = vmatpush2.msra.mxu0 0.0
    %2261 = vmatprep.subr.mxu0 0.0
    %2262 = vmatpush2.msra.mxu0 0.0
    %2263 = vmatprep.subr.mxu0 0.0
    %2264 = vmatpush2.msra.mxu0 0.0
    %2265 = vmatprep.subr.mxu0 0.0
    %2266 = vmatpush2.msra.mxu0 0.0
    %2267 = vmatprep.subr.mxu0 0.0
    %2268 = vmatpush2.msra.mxu0 0.0
    %2269 = vmatprep.subr.mxu0 0.0
    %2270 = vmatpush2.msra.mxu0 0.0
    %2271 = vmatprep.subr.mxu0 0.0
    %2272 = vmatpush2.msra.mxu0 0.0
    %2273 = vmatprep.subr.mxu0 0.0
    %2274 = vmatpush2.msra.mxu0 0.0
    %2275 = vmatprep.subr.mxu0 0.0
    %2276 = vmatpush2.msra.mxu0 0.0
    %2277 = vmatprep.subr.mxu0 0.0
    %2278 = vmatpush2.msra.mxu0 0.0
    %2279 = vmatprep.mubr.f32.mxu0 0.0
    %2280 = vmatmul.mubr.f32.gmra.mxu0 %v943
    %v2281 = vpop.f32.mrf.mxu0
    %v2282 = vadd.f32 0.0, %v2281
    %v2283 = vpop.f32.mrf.mxu0
    %2284 = vmatprep.mubr.f32.mxu0 0.0
    %2285 = vmatmul.mubr.f32.gmra.mxu0 %v945
    %v2286 = vpop.f32.mrf.mxu0
    %v2287 = vadd.f32 0.0, %v2286
    %v2288 = vpop.f32.mrf.mxu0
    %2289 = vmatprep.mubr.f32.mxu0 0.0
    %2290 = vmatmul.mubr.f32.gmra.mxu0 %v947
    %v2291 = vpop.f32.mrf.mxu0
    %v2292 = vadd.f32 0.0, %v2291
    %v2293 = vpop.f32.mrf.mxu0
    %2294 = vmatprep.mubr.f32.mxu0 0.0
    %2295 = vmatmul.mubr.f32.gmra.mxu0 %v949
    %v2296 = vpop.f32.mrf.mxu0
    %v2297 = vadd.f32 0.0, %v2296
    %v2298 = vpop.f32.mrf.mxu0
    %2299 = vmatprep.mubr.f32.mxu0 0.0
    %2300 = vmatmul.mubr.f32.gmra.mxu0 %v951
    %v2301 = vpop.f32.mrf.mxu0
    %v2302 = vadd.f32 0.0, %v2301
    %v2303 = vpop.f32.mrf.mxu0
    %2304 = vmatprep.mubr.f32.mxu0 0.0
    %2305 = vmatmul.mubr.f32.gmra.mxu0 %v953
    %v2306 = vpop.f32.mrf.mxu0
    %v2307 = vadd.f32 0.0, %v2306
    %v2308 = vpop.f32.mrf.mxu0
    %2309 = vmatprep.mubr.f32.mxu0 0.0
    %2310 = vmatmul.mubr.f32.gmra.mxu0 %v955
    %v2311 = vpop.f32.mrf.mxu0
    %v2312 = vadd.f32 0.0, %v2311
    %v2313 = vpop.f32.mrf.mxu0
    %2314 = vmatprep.mubr.f32.mxu0 0.0
    %2315 = vmatmul.mubr.f32.gmra.mxu0 %v957
    %v2316 = vpop.f32.mrf.mxu0
    %v2317 = vadd.f32 0.0, %v2316
    %v2318 = vpop.f32.mrf.mxu0
    %2319 = vmatprep.mubr.f32.mxu0 0.0
    %2320 = vmatmul.mubr.f32.gmra.mxu0 %v959
    %v2321 = vpop.f32.mrf.mxu0
    %v2322 = vadd.f32 0.0, %v2321
    %v2323 = vpop.f32.mrf.mxu0
    %2324 = vmatprep.mubr.f32.mxu0 0.0
    %2325 = vmatmul.mubr.f32.gmra.mxu0 %v961
    %v2326 = vpop.f32.mrf.mxu0
    %v2327 = vadd.f32 0.0, %v2326
    %v2328 = vpop.f32.mrf.mxu0
    %2329 = vmatprep.mubr.f32.mxu0 0.0
    %2330 = vmatmul.mubr.f32.gmra.mxu0 %v963
    %v2331 = vpop.f32.mrf.mxu0
    %v2332 = vadd.f32 0.0, %v2331
    %v2333 = vpop.f32.mrf.mxu0
    %2334 = vmatprep.mubr.f32.mxu0 0.0
    %2335 = vmatmul.mubr.f32.gmra.mxu0 %v965
    %v2336 = vpop.f32.mrf.mxu0
    %v2337 = vadd.f32 0.0, %v2336
    %v2338 = vpop.f32.mrf.mxu0
    %2339 = vmatprep.mubr.f32.mxu0 0.0
    %2340 = vmatmul.mubr.f32.gmra.mxu0 %v967
    %v2341 = vpop.f32.mrf.mxu0
    %v2342 = vadd.f32 0.0, %v2341
    %v2343 = vpop.f32.mrf.mxu0
    %2344 = vmatprep.mubr.f32.mxu0 0.0
    %2345 = vmatmul.mubr.f32.gmra.mxu0 %v969
    %v2346 = vpop.f32.mrf.mxu0
    %v2347 = vadd.f32 0.0, %v2346
    %v2348 = vpop.f32.mrf.mxu0
    %2349 = vmatprep.mubr.f32.mxu0 0.0
    %2350 = vmatmul.mubr.f32.gmra.mxu0 %v971
    %v2351 = vpop.f32.mrf.mxu0
    %v2352 = vadd.f32 0.0, %v2351
    %v2353 = vpop.f32.mrf.mxu0
    %2354 = vmatprep.mubr.f32.mxu0 0.0
    %2355 = vmatmul.mubr.f32.gmra.mxu0 %v973
    %v2356 = vpop.f32.mrf.mxu0
    %v2357 = vadd.f32 0.0, %v2356
    %v2358 = vpop.f32.mrf.mxu0
    %2359 = vmatprep.mubr.f32.mxu0 0.0
    %2360 = vmatmul.mubr.f32.gmra.mxu0 %v975
    %v2361 = vpop.f32.mrf.mxu0
    %v2362 = vadd.f32 0.0, %v2361
    %v2363 = vpop.f32.mrf.mxu0
    %2364 = vmatprep.mubr.f32.mxu0 0.0
    %2365 = vmatmul.mubr.f32.gmra.mxu0 %v977
    %v2366 = vpop.f32.mrf.mxu0
    %v2367 = vadd.f32 0.0, %v2366
    %v2368 = vpop.f32.mrf.mxu0
    %2369 = vmatprep.mubr.f32.mxu0 0.0
    %2370 = vmatmul.mubr.f32.gmra.mxu0 %v979
    %v2371 = vpop.f32.mrf.mxu0
    %v2372 = vadd.f32 0.0, %v2371
    %v2373 = vpop.f32.mrf.mxu0
    %2374 = vmatprep.mubr.f32.mxu0 0.0
    %2375 = vmatmul.mubr.f32.gmra.mxu0 %v981
    %v2376 = vpop.f32.mrf.mxu0
    %v2377 = vadd.f32 0.0, %v2376
    %v2378 = vpop.f32.mrf.mxu0
    %2379 = vmatprep.mubr.f32.mxu0 0.0
    %2380 = vmatmul.mubr.f32.gmra.mxu0 %v983
    %v2381 = vpop.f32.mrf.mxu0
    %v2382 = vadd.f32 0.0, %v2381
    %v2383 = vpop.f32.mrf.mxu0
    %2384 = vmatprep.mubr.f32.mxu0 0.0
    %2385 = vmatmul.mubr.f32.gmra.mxu0 %v985
    %v2386 = vpop.f32.mrf.mxu0
    %v2387 = vadd.f32 0.0, %v2386
    %v2388 = vpop.f32.mrf.mxu0
    %2389 = vmatprep.mubr.f32.mxu0 0.0
    %2390 = vmatmul.mubr.f32.gmra.mxu0 %v987
    %v2391 = vpop.f32.mrf.mxu0
    %v2392 = vadd.f32 0.0, %v2391
    %v2393 = vpop.f32.mrf.mxu0
    %2394 = vmatprep.mubr.f32.mxu0 0.0
    %2395 = vmatmul.mubr.f32.gmra.mxu0 %v989
    %v2396 = vpop.f32.mrf.mxu0
    %v2397 = vadd.f32 0.0, %v2396
    %v2398 = vpop.f32.mrf.mxu0
    %2399 = vmatprep.mubr.f32.mxu0 0.0
    %2400 = vmatmul.mubr.f32.gmra.mxu0 %v991
    %v2401 = vpop.f32.mrf.mxu0
    %v2402 = vadd.f32 0.0, %v2401
    %v2403 = vpop.f32.mrf.mxu0
    %2404 = vmatprep.mubr.f32.mxu0 0.0
    %2405 = vmatmul.mubr.f32.gmra.mxu0 %v993
    %v2406 = vpop.f32.mrf.mxu0
    %v2407 = vadd.f32 0.0, %v2406
    %v2408 = vpop.f32.mrf.mxu0
    %2409 = vmatprep.mubr.f32.mxu0 0.0
    %2410 = vmatmul.mubr.f32.gmra.mxu0 %v995
    %v2411 = vpop.f32.mrf.mxu0
    %v2412 = vadd.f32 0.0, %v2411
    %v2413 = vpop.f32.mrf.mxu0
    %2414 = vmatprep.mubr.f32.mxu0 0.0
    %2415 = vmatmul.mubr.f32.gmra.mxu0 %v997
    %v2416 = vpop.f32.mrf.mxu0
    %v2417 = vadd.f32 0.0, %v2416
    %v2418 = vpop.f32.mrf.mxu0
    %2419 = vmatprep.mubr.f32.mxu0 0.0
    %2420 = vmatmul.mubr.f32.gmra.mxu0 %v999
    %v2421 = vpop.f32.mrf.mxu0
    %v2422 = vadd.f32 0.0, %v2421
    %v2423 = vpop.f32.mrf.mxu0
    %2424 = vmatprep.mubr.f32.mxu0 0.0
    %2425 = vmatmul.mubr.f32.gmra.mxu0 %v1001
    %v2426 = vpop.f32.mrf.mxu0
    %v2427 = vadd.f32 0.0, %v2426
    %v2428 = vpop.f32.mrf.mxu0
    %2429 = vmatprep.mubr.f32.mxu0 0.0
    %2430 = vmatmul.mubr.f32.gmra.mxu0 %v2201
    %v2431 = vpop.f32.mrf.mxu0
    %v2432 = vadd.f32 0.0, %v2431
    %v2433 = vpop.f32.mrf.mxu0
    %2434 = vmatprep.mubr.f32.mxu0 0.0
    %2435 = vmatmul.mubr.f32.gmra.mxu0 %v2204
    %v2436 = vpop.f32.mrf.mxu0
    %v2437 = vadd.f32 0.0, %v2436
    %v2438 = vpop.f32.mrf.mxu0
    %2439 = vmatprep.mubr.f32.mxu0 0.0
    %2440 = vmatmul.mubr.f32.gmra.mxu0 %v1007
    %v2441 = vpop.f32.mrf.mxu0
    %v2442 = vadd.f32 0.0, %v2441
    %v2443 = vpop.f32.mrf.mxu0
    %2444 = vmatprep.mubr.f32.mxu0 0.0
    %2445 = vmatmul.mubr.f32.gmra.mxu0 %v1009
    %v2446 = vpop.f32.mrf.mxu0
    %v2447 = vadd.f32 0.0, %v2446
    %v2448 = vpop.f32.mrf.mxu0
    %2449 = vmatprep.mubr.f32.mxu0 0.0
    %2450 = vmatmul.mubr.f32.gmra.mxu0 %v1011
    %v2451 = vpop.f32.mrf.mxu0
    %v2452 = vadd.f32 0.0, %v2451
    %v2453 = vpop.f32.mrf.mxu0
    %2454 = vmatprep.mubr.f32.mxu0 0.0
    %2455 = vmatmul.mubr.f32.gmra.mxu0 %v1013
    %v2456 = vpop.f32.mrf.mxu0
    %v2457 = vadd.f32 0.0, %v2456
    %v2458 = vpop.f32.mrf.mxu0
    %2459 = vmatprep.mubr.f32.mxu0 0.0
    %2460 = vmatmul.mubr.f32.gmra.mxu0 %v1015
    %v2461 = vpop.f32.mrf.mxu0
    %v2462 = vadd.f32 0.0, %v2461
    %v2463 = vpop.f32.mrf.mxu0
    %2464 = vmatprep.mubr.f32.mxu0 0.0
    %2465 = vmatmul.mubr.f32.gmra.mxu0 %v1017
    %v2466 = vpop.f32.mrf.mxu0
    %v2467 = vadd.f32 0.0, %v2466
    %v2468 = vpop.f32.mrf.mxu0
    %2469 = vmatprep.mubr.f32.mxu0 0.0
    %2470 = vmatmul.mubr.f32.gmra.mxu0 %v1019
    %v2471 = vpop.f32.mrf.mxu0
    %v2472 = vadd.f32 0.0, %v2471
    %v2473 = vpop.f32.mrf.mxu0
    %2474 = vmatprep.mubr.f32.mxu0 0.0
    %2475 = vmatmul.mubr.f32.gmra.mxu0 %v1021
    %v2476 = vpop.f32.mrf.mxu0
    %v2477 = vadd.f32 0.0, %v2476
    %v2478 = vpop.f32.mrf.mxu0
    %2479 = vmatprep.mubr.f32.mxu0 0.0
    %2480 = vmatmul.mubr.f32.gmra.mxu0 %v1023
    %v2481 = vpop.f32.mrf.mxu0
    %v2482 = vadd.f32 0.0, %v2481
    %v2483 = vpop.f32.mrf.mxu0
    %2484 = vmatprep.mubr.f32.mxu0 0.0
    %2485 = vmatmul.mubr.f32.gmra.mxu0 %v1025
    %v2486 = vpop.f32.mrf.mxu0
    %v2487 = vadd.f32 0.0, %v2486
    %v2488 = vpop.f32.mrf.mxu0
    %2489 = vmatprep.mubr.f32.mxu0 0.0
    %2490 = vmatmul.mubr.f32.gmra.mxu0 %v1027
    %v2491 = vpop.f32.mrf.mxu0
    %v2492 = vadd.f32 0.0, %v2491
    %v2493 = vpop.f32.mrf.mxu0
    %2494 = vmatprep.mubr.f32.mxu0 0.0
    %2495 = vmatmul.mubr.f32.gmra.mxu0 %v1029
    %v2496 = vpop.f32.mrf.mxu0
    %v2497 = vadd.f32 0.0, %v2496
    %v2498 = vpop.f32.mrf.mxu0
    %2499 = vmatprep.mubr.f32.mxu0 0.0
    %2500 = vmatmul.mubr.f32.gmra.mxu0 %v1031
    %v2501 = vpop.f32.mrf.mxu0
    %v2502 = vadd.f32 0.0, %v2501
    %v2503 = vpop.f32.mrf.mxu0
    %2504 = vmatprep.mubr.f32.mxu0 0.0
    %2505 = vmatmul.mubr.f32.gmra.mxu0 %v1033
    %v2506 = vpop.f32.mrf.mxu0
    %v2507 = vadd.f32 0.0, %v2506
    %v2508 = vpop.f32.mrf.mxu0
    %2509 = vmatprep.mubr.f32.mxu0 0.0
    %2510 = vmatmul.mubr.f32.gmra.mxu0 %v1035
    %v2511 = vpop.f32.mrf.mxu0
    %v2512 = vadd.f32 0.0, %v2511
    %v2513 = vpop.f32.mrf.mxu0
    %2514 = vmatprep.mubr.f32.mxu0 0.0
    %2515 = vmatmul.mubr.f32.gmra.mxu0 %v1037
    %v2516 = vpop.f32.mrf.mxu0
    %v2517 = vadd.f32 0.0, %v2516
    %v2518 = vpop.f32.mrf.mxu0
    %2519 = vmatprep.mubr.f32.mxu0 0.0
    %2520 = vmatmul.mubr.f32.gmra.mxu0 %v1039
    %v2521 = vpop.f32.mrf.mxu0
    %v2522 = vadd.f32 0.0, %v2521
    %v2523 = vpop.f32.mrf.mxu0
    %2524 = vmatprep.mubr.f32.mxu0 0.0
    %2525 = vmatmul.mubr.f32.gmra.mxu0 %v1041
    %v2526 = vpop.f32.mrf.mxu0
    %v2527 = vadd.f32 0.0, %v2526
    %v2528 = vpop.f32.mrf.mxu0
    %2529 = vmatprep.mubr.f32.mxu0 0.0
    %2530 = vmatmul.mubr.f32.gmra.mxu0 %v1043
    %v2531 = vpop.f32.mrf.mxu0
    %v2532 = vadd.f32 0.0, %v2531
    %v2533 = vpop.f32.mrf.mxu0
    %2534 = vmatprep.mubr.f32.mxu0 0.0
    %2535 = vmatmul.mubr.f32.gmra.mxu0 %v1045
    %v2536 = vpop.f32.mrf.mxu0
    %v2537 = vadd.f32 0.0, %v2536
    %v2538 = vpop.f32.mrf.mxu0
    %2539 = vmatprep.mubr.f32.mxu0 0.0
    %2540 = vmatmul.mubr.f32.gmra.mxu0 %v1047
    %v2541 = vpop.f32.mrf.mxu0
    %v2542 = vadd.f32 0.0, %v2541
    %v2543 = vpop.f32.mrf.mxu0
    %2544 = vmatprep.mubr.f32.mxu0 0.0
    %2545 = vmatmul.mubr.f32.gmra.mxu0 %v1049
    %v2546 = vpop.f32.mrf.mxu0
    %v2547 = vadd.f32 0.0, %v2546
    %v2548 = vpop.f32.mrf.mxu0
    %2549 = vmatprep.mubr.f32.mxu0 0.0
    %2550 = vmatmul.mubr.f32.gmra.mxu0 %v1051
    %v2551 = vpop.f32.mrf.mxu0
    %v2552 = vadd.f32 0.0, %v2551
    %v2553 = vpop.f32.mrf.mxu0
    %2554 = vmatprep.mubr.f32.mxu0 0.0
    %2555 = vmatmul.mubr.f32.gmra.mxu0 %v1053
    %v2556 = vpop.f32.mrf.mxu0
    %v2557 = vadd.f32 0.0, %v2556
    %v2558 = vpop.f32.mrf.mxu0
    %2559 = vmatprep.mubr.f32.mxu0 0.0
    %2560 = vmatmul.mubr.f32.gmra.mxu0 %v1055
    %v2561 = vpop.f32.mrf.mxu0
    %v2562 = vadd.f32 0.0, %v2561
    %v2563 = vpop.f32.mrf.mxu0
    %2564 = vmatprep.mubr.f32.mxu0 0.0
    %2565 = vmatmul.mubr.f32.gmra.mxu0 %v1057
    %v2566 = vpop.f32.mrf.mxu0
    %v2567 = vadd.f32 0.0, %v2566
    %v2568 = vpop.f32.mrf.mxu0
    %2569 = vmatprep.mubr.f32.mxu0 0.0
    %2570 = vmatmul.mubr.f32.gmra.mxu0 %v1059
    %v2571 = vpop.f32.mrf.mxu0
    %v2572 = vadd.f32 0.0, %v2571
    %v2573 = vpop.f32.mrf.mxu0
    %2574 = vmatprep.mubr.f32.mxu0 0.0
    %2575 = vmatmul.mubr.f32.gmra.mxu0 %v1061
    %v2576 = vpop.f32.mrf.mxu0
    %v2577 = vadd.f32 0.0, %v2576
    %v2578 = vpop.f32.mrf.mxu0
    %2579 = vmatprep.mubr.f32.mxu0 0.0
    %2580 = vmatmul.mubr.f32.gmra.mxu0 %v1063
    %v2581 = vpop.f32.mrf.mxu0
    %v2582 = vadd.f32 0.0, %v2581
    %v2583 = vpop.f32.mrf.mxu0
    %2584 = vmatprep.mubr.f32.mxu0 0.0
    %2585 = vmatmul.mubr.f32.gmra.mxu0 %v1065
    %v2586 = vpop.f32.mrf.mxu0
    %v2587 = vadd.f32 0.0, %v2586
    %v2588 = vpop.f32.mrf.mxu0
    %2589 = vmatprep.mubr.f32.mxu0 0.0
    %2590 = vmatmul.mubr.f32.gmra.mxu0 %v2207
    %v2591 = vpop.f32.mrf.mxu0
    %v2592 = vadd.f32 0.0, %v2591
    %v2593 = vpop.f32.mrf.mxu0
    %2594 = vmatprep.mubr.f32.mxu0 0.0
    %2595 = vmatmul.mubr.f32.gmra.mxu0 %v2210
    %v2596 = vpop.f32.mrf.mxu0
    %v2597 = vadd.f32 0.0, %v2596
    %v2598 = vpop.f32.mrf.mxu0
    %2599 = vdwg.mxu0
    %v2600 = vadd.f32 %v2134, %v2282
    %v2601 = vadd.f32 %v2135, %v2287
    %v2602 = vadd.f32 %v2136, %v2292
    %v2603 = vadd.f32 %v2137, %v2297
    %v2604 = vadd.f32 %v2138, %v2302
    %v2605 = vadd.f32 %v2139, %v2307
    %v2606 = vadd.f32 %v2140, %v2312
    %v2607 = vadd.f32 %v2141, %v2317
    %v2608 = vadd.f32 %v2142, %v2322
    %v2609 = vadd.f32 %v2143, %v2327
    %v2610 = vadd.f32 %v2144, %v2332
    %v2611 = vadd.f32 %v2145, %v2337
    %v2612 = vadd.f32 %v2146, %v2342
    %v2613 = vadd.f32 %v2147, %v2347
    %v2614 = vadd.f32 %v2148, %v2352
    %v2615 = vadd.f32 %v2149, %v2357
    %v2616 = vadd.f32 %v2150, %v2362
    %v2617 = vadd.f32 %v2151, %v2367
    %v2618 = vadd.f32 %v2152, %v2372
    %v2619 = vadd.f32 %v2153, %v2377
    %v2620 = vadd.f32 %v2154, %v2382
    %v2621 = vadd.f32 %v2155, %v2387
    %v2622 = vadd.f32 %v2156, %v2392
    %v2623 = vadd.f32 %v2157, %v2397
    %v2624 = vadd.f32 %v2158, %v2402
    %v2625 = vadd.f32 %v2159, %v2407
    %v2626 = vadd.f32 %v2160, %v2412
    %v2627 = vadd.f32 %v2161, %v2417
    %v2628 = vadd.f32 %v2162, %v2422
    %v2629 = vadd.f32 %v2163, %v2427
    %v2630 = vadd.f32 %v2164, %v2432
    %v2631 = vadd.f32 %v2165, %v2437
    %v2632 = vadd.f32 %v2166, %v2442
    %v2633 = vadd.f32 %v2167, %v2447
    %v2634 = vadd.f32 %v2168, %v2452
    %v2635 = vadd.f32 %v2169, %v2457
    %v2636 = vadd.f32 %v2170, %v2462
    %v2637 = vadd.f32 %v2171, %v2467
    %v2638 = vadd.f32 %v2172, %v2472
    %v2639 = vadd.f32 %v2173, %v2477
    %v2640 = vadd.f32 %v2174, %v2482
    %v2641 = vadd.f32 %v2175, %v2487
    %v2642 = vadd.f32 %v2176, %v2492
    %v2643 = vadd.f32 %v2177, %v2497
    %v2644 = vadd.f32 %v2178, %v2502
    %v2645 = vadd.f32 %v2179, %v2507
    %v2646 = vadd.f32 %v2180, %v2512
    %v2647 = vadd.f32 %v2181, %v2517
    %v2648 = vadd.f32 %v2182, %v2522
    %v2649 = vadd.f32 %v2183, %v2527
    %v2650 = vadd.f32 %v2184, %v2532
    %v2651 = vadd.f32 %v2185, %v2537
    %v2652 = vadd.f32 %v2186, %v2542
    %v2653 = vadd.f32 %v2187, %v2547
    %v2654 = vadd.f32 %v2188, %v2552
    %v2655 = vadd.f32 %v2189, %v2557
    %v2656 = vadd.f32 %v2190, %v2562
    %v2657 = vadd.f32 %v2191, %v2567
    %v2658 = vadd.f32 %v2192, %v2572
    %v2659 = vadd.f32 %v2193, %v2577
    %v2660 = vadd.f32 %v2194, %v2582
    %v2661 = vadd.f32 %v2195, %v2587
    %v2662 = vadd.f32 %v2196, %v2592
    %v2663 = vadd.f32 %v2197, %v2597
    %v2666 = vrot.slane %v101, 1
    %v2667 = vrot.slane %v102, 1
    %v2668 = vsel %vm258, %v2666, %v2667
    %v2669 = vrot.slane %v103, 1
    %v2670 = vsel %vm258, %v2667, %v2669
    %v2671 = vrot.slane %v155, 1
    %v2672 = vrot.slane %v156, 1
    %v2673 = vsel %vm258, %v2671, %v2672
    %v2674 = vrot.slane %v157, 1
    %v2675 = vsel %vm258, %v2672, %v2674
    %s2676 = scalar_lea.vmem %s1, 16
    %v2677 = vld [vmem:[%s2676] sm:$0xf]
    %v2678 = vsel %vm421, %v2668, 0
    %v2680 = vsel %vm421, %v2670, 0
    %v2682 = vsel %vm421, %v2673, 0
    %v2684 = vsel %vm421, %v2675, 0
    %v2687 = vsel %vm550, %v2677, 0
    %2689 = vmatprep.subr.mxu0 0.0
    %2690 = vmatpush1.msra.mxu0 0.0
    %2691 = vmatprep.subr.mxu0 0.0
    %2692 = vmatpush1.msra.mxu0 0.0
    %2693 = vmatprep.subr.mxu0 0.0
    %2694 = vmatpush1.msra.mxu0 0.0
    %2695 = vmatprep.subr.mxu0 0.0
    %2696 = vmatpush1.msra.mxu0 0.0
    %2697 = vmatprep.subr.mxu0 0.0
    %2698 = vmatpush1.msra.mxu0 0.0
    %2699 = vmatprep.subr.mxu0 0.0
    %2700 = vmatpush1.msra.mxu0 0.0
    %2701 = vmatprep.subr.mxu0 0.0
    %2702 = vmatpush1.msra.mxu0 0.0
    %2703 = vmatprep.subr.mxu0 0.0
    %2704 = vmatpush1.msra.mxu0 0.0
    %2705 = vmatprep.subr.mxu0 0.0
    %2706 = vmatpush1.msra.mxu0 0.0
    %2707 = vmatprep.subr.mxu0 0.0
    %2708 = vmatpush1.msra.mxu0 0.0
    %2709 = vmatprep.subr.mxu0 0.0
    %2710 = vmatpush1.msra.mxu0 0.0
    %2711 = vmatprep.subr.mxu0 0.0
    %2712 = vmatpush1.msra.mxu0 0.0
    %2713 = vmatprep.subr.mxu0 0.0
    %2714 = vmatpush1.msra.mxu0 0.0
    %2715 = vmatprep.subr.mxu0 0.0
    %2716 = vmatpush1.msra.mxu0 0.0
    %2717 = vmatprep.subr.mxu0 0.0
    %2718 = vmatpush1.msra.mxu0 0.0
    %2719 = vmatprep.subr.mxu0 0.0
    %2720 = vmatpush1.msra.mxu0 %v2687
    %2721 = vmatprep.subr.mxu0 0.0
    %2722 = vmatpush2.msra.mxu0 0.0
    %2723 = vmatprep.subr.mxu0 0.0
    %2724 = vmatpush2.msra.mxu0 0.0
    %2725 = vmatprep.subr.mxu0 0.0
    %2726 = vmatpush2.msra.mxu0 0.0
    %2727 = vmatprep.subr.mxu0 0.0
    %2728 = vmatpush2.msra.mxu0 0.0
    %2729 = vmatprep.subr.mxu0 0.0
    %2730 = vmatpush2.msra.mxu0 0.0
    %2731 = vmatprep.subr.mxu0 0.0
    %2732 = vmatpush2.msra.mxu0 0.0
    %2733 = vmatprep.subr.mxu0 0.0
    %2734 = vmatpush2.msra.mxu0 0.0
    %2735 = vmatprep.subr.mxu0 0.0
    %2736 = vmatpush2.msra.mxu0 0.0
    %2737 = vmatprep.subr.mxu0 0.0
    %2738 = vmatpush2.msra.mxu0 0.0
    %2739 = vmatprep.subr.mxu0 0.0
    %2740 = vmatpush2.msra.mxu0 0.0
    %2741 = vmatprep.subr.mxu0 0.0
    %2742 = vmatpush2.msra.mxu0 0.0
    %2743 = vmatprep.subr.mxu0 0.0
    %2744 = vmatpush2.msra.mxu0 0.0
    %2745 = vmatprep.subr.mxu0 0.0
    %2746 = vmatpush2.msra.mxu0 0.0
    %2747 = vmatprep.subr.mxu0 0.0
    %2748 = vmatpush2.msra.mxu0 0.0
    %2749 = vmatprep.subr.mxu0 0.0
    %2750 = vmatpush2.msra.mxu0 0.0
    %2751 = vmatprep.subr.mxu0 0.0
    %2752 = vmatpush2.msra.mxu0 0.0
    %2753 = vmatprep.mubr.f32.mxu0 0.0
    %2754 = vmatmul.mubr.f32.gmra.mxu0 %v426
    %v2755 = vpop.f32.mrf.mxu0
    %v2756 = vadd.f32 0.0, %v2755
    %v2757 = vpop.f32.mrf.mxu0
    %2758 = vmatprep.mubr.f32.mxu0 0.0
    %2759 = vmatmul.mubr.f32.gmra.mxu0 %v428
    %v2760 = vpop.f32.mrf.mxu0
    %v2761 = vadd.f32 0.0, %v2760
    %v2762 = vpop.f32.mrf.mxu0
    %2763 = vmatprep.mubr.f32.mxu0 0.0
    %2764 = vmatmul.mubr.f32.gmra.mxu0 %v430
    %v2765 = vpop.f32.mrf.mxu0
    %v2766 = vadd.f32 0.0, %v2765
    %v2767 = vpop.f32.mrf.mxu0
    %2768 = vmatprep.mubr.f32.mxu0 0.0
    %2769 = vmatmul.mubr.f32.gmra.mxu0 %v432
    %v2770 = vpop.f32.mrf.mxu0
    %v2771 = vadd.f32 0.0, %v2770
    %v2772 = vpop.f32.mrf.mxu0
    %2773 = vmatprep.mubr.f32.mxu0 0.0
    %2774 = vmatmul.mubr.f32.gmra.mxu0 %v434
    %v2775 = vpop.f32.mrf.mxu0
    %v2776 = vadd.f32 0.0, %v2775
    %v2777 = vpop.f32.mrf.mxu0
    %2778 = vmatprep.mubr.f32.mxu0 0.0
    %2779 = vmatmul.mubr.f32.gmra.mxu0 %v436
    %v2780 = vpop.f32.mrf.mxu0
    %v2781 = vadd.f32 0.0, %v2780
    %v2782 = vpop.f32.mrf.mxu0
    %2783 = vmatprep.mubr.f32.mxu0 0.0
    %2784 = vmatmul.mubr.f32.gmra.mxu0 %v438
    %v2785 = vpop.f32.mrf.mxu0
    %v2786 = vadd.f32 0.0, %v2785
    %v2787 = vpop.f32.mrf.mxu0
    %2788 = vmatprep.mubr.f32.mxu0 0.0
    %2789 = vmatmul.mubr.f32.gmra.mxu0 %v440
    %v2790 = vpop.f32.mrf.mxu0
    %v2791 = vadd.f32 0.0, %v2790
    %v2792 = vpop.f32.mrf.mxu0
    %2793 = vmatprep.mubr.f32.mxu0 0.0
    %2794 = vmatmul.mubr.f32.gmra.mxu0 %v442
    %v2795 = vpop.f32.mrf.mxu0
    %v2796 = vadd.f32 0.0, %v2795
    %v2797 = vpop.f32.mrf.mxu0
    %2798 = vmatprep.mubr.f32.mxu0 0.0
    %2799 = vmatmul.mubr.f32.gmra.mxu0 %v444
    %v2800 = vpop.f32.mrf.mxu0
    %v2801 = vadd.f32 0.0, %v2800
    %v2802 = vpop.f32.mrf.mxu0
    %2803 = vmatprep.mubr.f32.mxu0 0.0
    %2804 = vmatmul.mubr.f32.gmra.mxu0 %v446
    %v2805 = vpop.f32.mrf.mxu0
    %v2806 = vadd.f32 0.0, %v2805
    %v2807 = vpop.f32.mrf.mxu0
    %2808 = vmatprep.mubr.f32.mxu0 0.0
    %2809 = vmatmul.mubr.f32.gmra.mxu0 %v448
    %v2810 = vpop.f32.mrf.mxu0
    %v2811 = vadd.f32 0.0, %v2810
    %v2812 = vpop.f32.mrf.mxu0
    %2813 = vmatprep.mubr.f32.mxu0 0.0
    %2814 = vmatmul.mubr.f32.gmra.mxu0 %v450
    %v2815 = vpop.f32.mrf.mxu0
    %v2816 = vadd.f32 0.0, %v2815
    %v2817 = vpop.f32.mrf.mxu0
    %2818 = vmatprep.mubr.f32.mxu0 0.0
    %2819 = vmatmul.mubr.f32.gmra.mxu0 %v452
    %v2820 = vpop.f32.mrf.mxu0
    %v2821 = vadd.f32 0.0, %v2820
    %v2822 = vpop.f32.mrf.mxu0
    %2823 = vmatprep.mubr.f32.mxu0 0.0
    %2824 = vmatmul.mubr.f32.gmra.mxu0 %v454
    %v2825 = vpop.f32.mrf.mxu0
    %v2826 = vadd.f32 0.0, %v2825
    %v2827 = vpop.f32.mrf.mxu0
    %2828 = vmatprep.mubr.f32.mxu0 0.0
    %2829 = vmatmul.mubr.f32.gmra.mxu0 %v456
    %v2830 = vpop.f32.mrf.mxu0
    %v2831 = vadd.f32 0.0, %v2830
    %v2832 = vpop.f32.mrf.mxu0
    %2833 = vmatprep.mubr.f32.mxu0 0.0
    %2834 = vmatmul.mubr.f32.gmra.mxu0 %v458
    %v2835 = vpop.f32.mrf.mxu0
    %v2836 = vadd.f32 0.0, %v2835
    %v2837 = vpop.f32.mrf.mxu0
    %2838 = vmatprep.mubr.f32.mxu0 0.0
    %2839 = vmatmul.mubr.f32.gmra.mxu0 %v460
    %v2840 = vpop.f32.mrf.mxu0
    %v2841 = vadd.f32 0.0, %v2840
    %v2842 = vpop.f32.mrf.mxu0
    %2843 = vmatprep.mubr.f32.mxu0 0.0
    %2844 = vmatmul.mubr.f32.gmra.mxu0 %v462
    %v2845 = vpop.f32.mrf.mxu0
    %v2846 = vadd.f32 0.0, %v2845
    %v2847 = vpop.f32.mrf.mxu0
    %2848 = vmatprep.mubr.f32.mxu0 0.0
    %2849 = vmatmul.mubr.f32.gmra.mxu0 %v464
    %v2850 = vpop.f32.mrf.mxu0
    %v2851 = vadd.f32 0.0, %v2850
    %v2852 = vpop.f32.mrf.mxu0
    %2853 = vmatprep.mubr.f32.mxu0 0.0
    %2854 = vmatmul.mubr.f32.gmra.mxu0 %v466
    %v2855 = vpop.f32.mrf.mxu0
    %v2856 = vadd.f32 0.0, %v2855
    %v2857 = vpop.f32.mrf.mxu0
    %2858 = vmatprep.mubr.f32.mxu0 0.0
    %2859 = vmatmul.mubr.f32.gmra.mxu0 %v468
    %v2860 = vpop.f32.mrf.mxu0
    %v2861 = vadd.f32 0.0, %v2860
    %v2862 = vpop.f32.mrf.mxu0
    %2863 = vmatprep.mubr.f32.mxu0 0.0
    %2864 = vmatmul.mubr.f32.gmra.mxu0 %v470
    %v2865 = vpop.f32.mrf.mxu0
    %v2866 = vadd.f32 0.0, %v2865
    %v2867 = vpop.f32.mrf.mxu0
    %2868 = vmatprep.mubr.f32.mxu0 0.0
    %2869 = vmatmul.mubr.f32.gmra.mxu0 %v472
    %v2870 = vpop.f32.mrf.mxu0
    %v2871 = vadd.f32 0.0, %v2870
    %v2872 = vpop.f32.mrf.mxu0
    %2873 = vmatprep.mubr.f32.mxu0 0.0
    %2874 = vmatmul.mubr.f32.gmra.mxu0 %v474
    %v2875 = vpop.f32.mrf.mxu0
    %v2876 = vadd.f32 0.0, %v2875
    %v2877 = vpop.f32.mrf.mxu0
    %2878 = vmatprep.mubr.f32.mxu0 0.0
    %2879 = vmatmul.mubr.f32.gmra.mxu0 %v476
    %v2880 = vpop.f32.mrf.mxu0
    %v2881 = vadd.f32 0.0, %v2880
    %v2882 = vpop.f32.mrf.mxu0
    %2883 = vmatprep.mubr.f32.mxu0 0.0
    %2884 = vmatmul.mubr.f32.gmra.mxu0 %v478
    %v2885 = vpop.f32.mrf.mxu0
    %v2886 = vadd.f32 0.0, %v2885
    %v2887 = vpop.f32.mrf.mxu0
    %2888 = vmatprep.mubr.f32.mxu0 0.0
    %2889 = vmatmul.mubr.f32.gmra.mxu0 %v480
    %v2890 = vpop.f32.mrf.mxu0
    %v2891 = vadd.f32 0.0, %v2890
    %v2892 = vpop.f32.mrf.mxu0
    %2893 = vmatprep.mubr.f32.mxu0 0.0
    %2894 = vmatmul.mubr.f32.gmra.mxu0 %v482
    %v2895 = vpop.f32.mrf.mxu0
    %v2896 = vadd.f32 0.0, %v2895
    %v2897 = vpop.f32.mrf.mxu0
    %2898 = vmatprep.mubr.f32.mxu0 0.0
    %2899 = vmatmul.mubr.f32.gmra.mxu0 %v484
    %v2900 = vpop.f32.mrf.mxu0
    %v2901 = vadd.f32 0.0, %v2900
    %v2902 = vpop.f32.mrf.mxu0
    %2903 = vmatprep.mubr.f32.mxu0 0.0
    %2904 = vmatmul.mubr.f32.gmra.mxu0 %v2678
    %v2905 = vpop.f32.mrf.mxu0
    %v2906 = vadd.f32 0.0, %v2905
    %v2907 = vpop.f32.mrf.mxu0
    %2908 = vmatprep.mubr.f32.mxu0 0.0
    %2909 = vmatmul.mubr.f32.gmra.mxu0 %v2680
    %v2910 = vpop.f32.mrf.mxu0
    %v2911 = vadd.f32 0.0, %v2910
    %v2912 = vpop.f32.mrf.mxu0
    %2913 = vmatprep.mubr.f32.mxu0 0.0
    %2914 = vmatmul.mubr.f32.gmra.mxu0 %v490
    %v2915 = vpop.f32.mrf.mxu0
    %v2916 = vadd.f32 0.0, %v2915
    %v2917 = vpop.f32.mrf.mxu0
    %2918 = vmatprep.mubr.f32.mxu0 0.0
    %2919 = vmatmul.mubr.f32.gmra.mxu0 %v492
    %v2920 = vpop.f32.mrf.mxu0
    %v2921 = vadd.f32 0.0, %v2920
    %v2922 = vpop.f32.mrf.mxu0
    %2923 = vmatprep.mubr.f32.mxu0 0.0
    %2924 = vmatmul.mubr.f32.gmra.mxu0 %v494
    %v2925 = vpop.f32.mrf.mxu0
    %v2926 = vadd.f32 0.0, %v2925
    %v2927 = vpop.f32.mrf.mxu0
    %2928 = vmatprep.mubr.f32.mxu0 0.0
    %2929 = vmatmul.mubr.f32.gmra.mxu0 %v496
    %v2930 = vpop.f32.mrf.mxu0
    %v2931 = vadd.f32 0.0, %v2930
    %v2932 = vpop.f32.mrf.mxu0
    %2933 = vmatprep.mubr.f32.mxu0 0.0
    %2934 = vmatmul.mubr.f32.gmra.mxu0 %v498
    %v2935 = vpop.f32.mrf.mxu0
    %v2936 = vadd.f32 0.0, %v2935
    %v2937 = vpop.f32.mrf.mxu0
    %2938 = vmatprep.mubr.f32.mxu0 0.0
    %2939 = vmatmul.mubr.f32.gmra.mxu0 %v500
    %v2940 = vpop.f32.mrf.mxu0
    %v2941 = vadd.f32 0.0, %v2940
    %v2942 = vpop.f32.mrf.mxu0
    %2943 = vmatprep.mubr.f32.mxu0 0.0
    %2944 = vmatmul.mubr.f32.gmra.mxu0 %v502
    %v2945 = vpop.f32.mrf.mxu0
    %v2946 = vadd.f32 0.0, %v2945
    %v2947 = vpop.f32.mrf.mxu0
    %2948 = vmatprep.mubr.f32.mxu0 0.0
    %2949 = vmatmul.mubr.f32.gmra.mxu0 %v504
    %v2950 = vpop.f32.mrf.mxu0
    %v2951 = vadd.f32 0.0, %v2950
    %v2952 = vpop.f32.mrf.mxu0
    %2953 = vmatprep.mubr.f32.mxu0 0.0
    %2954 = vmatmul.mubr.f32.gmra.mxu0 %v506
    %v2955 = vpop.f32.mrf.mxu0
    %v2956 = vadd.f32 0.0, %v2955
    %v2957 = vpop.f32.mrf.mxu0
    %2958 = vmatprep.mubr.f32.mxu0 0.0
    %2959 = vmatmul.mubr.f32.gmra.mxu0 %v508
    %v2960 = vpop.f32.mrf.mxu0
    %v2961 = vadd.f32 0.0, %v2960
    %v2962 = vpop.f32.mrf.mxu0
    %2963 = vmatprep.mubr.f32.mxu0 0.0
    %2964 = vmatmul.mubr.f32.gmra.mxu0 %v510
    %v2965 = vpop.f32.mrf.mxu0
    %v2966 = vadd.f32 0.0, %v2965
    %v2967 = vpop.f32.mrf.mxu0
    %2968 = vmatprep.mubr.f32.mxu0 0.0
    %2969 = vmatmul.mubr.f32.gmra.mxu0 %v512
    %v2970 = vpop.f32.mrf.mxu0
    %v2971 = vadd.f32 0.0, %v2970
    %v2972 = vpop.f32.mrf.mxu0
    %2973 = vmatprep.mubr.f32.mxu0 0.0
    %2974 = vmatmul.mubr.f32.gmra.mxu0 %v514
    %v2975 = vpop.f32.mrf.mxu0
    %v2976 = vadd.f32 0.0, %v2975
    %v2977 = vpop.f32.mrf.mxu0
    %2978 = vmatprep.mubr.f32.mxu0 0.0
    %2979 = vmatmul.mubr.f32.gmra.mxu0 %v516
    %v2980 = vpop.f32.mrf.mxu0
    %v2981 = vadd.f32 0.0, %v2980
    %v2982 = vpop.f32.mrf.mxu0
    %2983 = vmatprep.mubr.f32.mxu0 0.0
    %2984 = vmatmul.mubr.f32.gmra.mxu0 %v518
    %v2985 = vpop.f32.mrf.mxu0
    %v2986 = vadd.f32 0.0, %v2985
    %v2987 = vpop.f32.mrf.mxu0
    %2988 = vmatprep.mubr.f32.mxu0 0.0
    %2989 = vmatmul.mubr.f32.gmra.mxu0 %v520
    %v2990 = vpop.f32.mrf.mxu0
    %v2991 = vadd.f32 0.0, %v2990
    %v2992 = vpop.f32.mrf.mxu0
    %2993 = vmatprep.mubr.f32.mxu0 0.0
    %2994 = vmatmul.mubr.f32.gmra.mxu0 %v522
    %v2995 = vpop.f32.mrf.mxu0
    %v2996 = vadd.f32 0.0, %v2995
    %v2997 = vpop.f32.mrf.mxu0
    %2998 = vmatprep.mubr.f32.mxu0 0.0
    %2999 = vmatmul.mubr.f32.gmra.mxu0 %v524
    %v3000 = vpop.f32.mrf.mxu0
    %v3001 = vadd.f32 0.0, %v3000
    %v3002 = vpop.f32.mrf.mxu0
    %3003 = vmatprep.mubr.f32.mxu0 0.0
    %3004 = vmatmul.mubr.f32.gmra.mxu0 %v526
    %v3005 = vpop.f32.mrf.mxu0
    %v3006 = vadd.f32 0.0, %v3005
    %v3007 = vpop.f32.mrf.mxu0
    %3008 = vmatprep.mubr.f32.mxu0 0.0
    %3009 = vmatmul.mubr.f32.gmra.mxu0 %v528
    %v3010 = vpop.f32.mrf.mxu0
    %v3011 = vadd.f32 0.0, %v3010
    %v3012 = vpop.f32.mrf.mxu0
    %3013 = vmatprep.mubr.f32.mxu0 0.0
    %3014 = vmatmul.mubr.f32.gmra.mxu0 %v530
    %v3015 = vpop.f32.mrf.mxu0
    %v3016 = vadd.f32 0.0, %v3015
    %v3017 = vpop.f32.mrf.mxu0
    %3018 = vmatprep.mubr.f32.mxu0 0.0
    %3019 = vmatmul.mubr.f32.gmra.mxu0 %v532
    %v3020 = vpop.f32.mrf.mxu0
    %v3021 = vadd.f32 0.0, %v3020
    %v3022 = vpop.f32.mrf.mxu0
    %3023 = vmatprep.mubr.f32.mxu0 0.0
    %3024 = vmatmul.mubr.f32.gmra.mxu0 %v534
    %v3025 = vpop.f32.mrf.mxu0
    %v3026 = vadd.f32 0.0, %v3025
    %v3027 = vpop.f32.mrf.mxu0
    %3028 = vmatprep.mubr.f32.mxu0 0.0
    %3029 = vmatmul.mubr.f32.gmra.mxu0 %v536
    %v3030 = vpop.f32.mrf.mxu0
    %v3031 = vadd.f32 0.0, %v3030
    %v3032 = vpop.f32.mrf.mxu0
    %3033 = vmatprep.mubr.f32.mxu0 0.0
    %3034 = vmatmul.mubr.f32.gmra.mxu0 %v538
    %v3035 = vpop.f32.mrf.mxu0
    %v3036 = vadd.f32 0.0, %v3035
    %v3037 = vpop.f32.mrf.mxu0
    %3038 = vmatprep.mubr.f32.mxu0 0.0
    %3039 = vmatmul.mubr.f32.gmra.mxu0 %v540
    %v3040 = vpop.f32.mrf.mxu0
    %v3041 = vadd.f32 0.0, %v3040
    %v3042 = vpop.f32.mrf.mxu0
    %3043 = vmatprep.mubr.f32.mxu0 0.0
    %3044 = vmatmul.mubr.f32.gmra.mxu0 %v542
    %v3045 = vpop.f32.mrf.mxu0
    %v3046 = vadd.f32 0.0, %v3045
    %v3047 = vpop.f32.mrf.mxu0
    %3048 = vmatprep.mubr.f32.mxu0 0.0
    %3049 = vmatmul.mubr.f32.gmra.mxu0 %v544
    %v3050 = vpop.f32.mrf.mxu0
    %v3051 = vadd.f32 0.0, %v3050
    %v3052 = vpop.f32.mrf.mxu0
    %3053 = vmatprep.mubr.f32.mxu0 0.0
    %3054 = vmatmul.mubr.f32.gmra.mxu0 %v546
    %v3055 = vpop.f32.mrf.mxu0
    %v3056 = vadd.f32 0.0, %v3055
    %v3057 = vpop.f32.mrf.mxu0
    %3058 = vmatprep.mubr.f32.mxu0 0.0
    %3059 = vmatmul.mubr.f32.gmra.mxu0 %v548
    %v3060 = vpop.f32.mrf.mxu0
    %v3061 = vadd.f32 0.0, %v3060
    %v3062 = vpop.f32.mrf.mxu0
    %3063 = vmatprep.mubr.f32.mxu0 0.0
    %3064 = vmatmul.mubr.f32.gmra.mxu0 %v2682
    %v3065 = vpop.f32.mrf.mxu0
    %v3066 = vadd.f32 0.0, %v3065
    %v3067 = vpop.f32.mrf.mxu0
    %3068 = vmatprep.mubr.f32.mxu0 0.0
    %3069 = vmatmul.mubr.f32.gmra.mxu0 %v2684
    %v3070 = vpop.f32.mrf.mxu0
    %v3071 = vadd.f32 0.0, %v3070
    %v3072 = vpop.f32.mrf.mxu0
    %3073 = vdwg.mxu0
    %v3074 = vadd.f32 %v2600, %v2756
    %v3075 = vadd.f32 %v2601, %v2761
    %v3076 = vadd.f32 %v2602, %v2766
    %v3077 = vadd.f32 %v2603, %v2771
    %v3078 = vadd.f32 %v2604, %v2776
    %v3079 = vadd.f32 %v2605, %v2781
    %v3080 = vadd.f32 %v2606, %v2786
    %v3081 = vadd.f32 %v2607, %v2791
    %v3082 = vadd.f32 %v2608, %v2796
    %v3083 = vadd.f32 %v2609, %v2801
    %v3084 = vadd.f32 %v2610, %v2806
    %v3085 = vadd.f32 %v2611, %v2811
    %v3086 = vadd.f32 %v2612, %v2816
    %v3087 = vadd.f32 %v2613, %v2821
    %v3088 = vadd.f32 %v2614, %v2826
    %v3089 = vadd.f32 %v2615, %v2831
    %v3090 = vadd.f32 %v2616, %v2836
    %v3091 = vadd.f32 %v2617, %v2841
    %v3092 = vadd.f32 %v2618, %v2846
    %v3093 = vadd.f32 %v2619, %v2851
    %v3094 = vadd.f32 %v2620, %v2856
    %v3095 = vadd.f32 %v2621, %v2861
    %v3096 = vadd.f32 %v2622, %v2866
    %v3097 = vadd.f32 %v2623, %v2871
    %v3098 = vadd.f32 %v2624, %v2876
    %v3099 = vadd.f32 %v2625, %v2881
    %v3100 = vadd.f32 %v2626, %v2886
    %v3101 = vadd.f32 %v2627, %v2891
    %v3102 = vadd.f32 %v2628, %v2896
    %v3103 = vadd.f32 %v2629, %v2901
    %v3104 = vadd.f32 %v2630, %v2906
    %v3105 = vadd.f32 %v2631, %v2911
    %v3106 = vadd.f32 %v2632, %v2916
    %v3107 = vadd.f32 %v2633, %v2921
    %v3108 = vadd.f32 %v2634, %v2926
    %v3109 = vadd.f32 %v2635, %v2931
    %v3110 = vadd.f32 %v2636, %v2936
    %v3111 = vadd.f32 %v2637, %v2941
    %v3112 = vadd.f32 %v2638, %v2946
    %v3113 = vadd.f32 %v2639, %v2951
    %v3114 = vadd.f32 %v2640, %v2956
    %v3115 = vadd.f32 %v2641, %v2961
    %v3116 = vadd.f32 %v2642, %v2966
    %v3117 = vadd.f32 %v2643, %v2971
    %v3118 = vadd.f32 %v2644, %v2976
    %v3119 = vadd.f32 %v2645, %v2981
    %v3120 = vadd.f32 %v2646, %v2986
    %v3121 = vadd.f32 %v2647, %v2991
    %v3122 = vadd.f32 %v2648, %v2996
    %v3123 = vadd.f32 %v2649, %v3001
    %v3124 = vadd.f32 %v2650, %v3006
    %v3125 = vadd.f32 %v2651, %v3011
    %v3126 = vadd.f32 %v2652, %v3016
    %v3127 = vadd.f32 %v2653, %v3021
    %v3128 = vadd.f32 %v2654, %v3026
    %v3129 = vadd.f32 %v2655, %v3031
    %v3130 = vadd.f32 %v2656, %v3036
    %v3131 = vadd.f32 %v2657, %v3041
    %v3132 = vadd.f32 %v2658, %v3046
    %v3133 = vadd.f32 %v2659, %v3051
    %v3134 = vadd.f32 %v2660, %v3056
    %v3135 = vadd.f32 %v2661, %v3061
    %v3136 = vadd.f32 %v2662, %v3066
    %v3137 = vadd.f32 %v2663, %v3071
    %v3138 = vrot.slane %v101, 2
    %v3139 = vrot.slane %v102, 2
    %v3140 = vsel %vm1455, %v3138, %v3139
    %v3141 = vrot.slane %v103, 2
    %v3142 = vsel %vm1455, %v3139, %v3141
    %v3143 = vrot.slane %v155, 2
    %v3144 = vrot.slane %v156, 2
    %v3145 = vsel %vm1455, %v3143, %v3144
    %v3146 = vrot.slane %v157, 2
    %v3147 = vsel %vm1455, %v3144, %v3146
    %s3148 = scalar_lea.vmem %s1, 20
    %v3149 = vld [vmem:[%s3148] sm:$0xf]
    %v3150 = vsel %vm421, %v3140, 0
    %v3152 = vsel %vm421, %v3142, 0
    %v3154 = vsel %vm421, %v3145, 0
    %v3156 = vsel %vm421, %v3147, 0
    %v3159 = vsel %vm550, %v3149, 0
    %3161 = vmatprep.subr.mxu0 0.0
    %3162 = vmatpush1.msra.mxu0 0.0
    %3163 = vmatprep.subr.mxu0 0.0
    %3164 = vmatpush1.msra.mxu0 0.0
    %3165 = vmatprep.subr.mxu0 0.0
    %3166 = vmatpush1.msra.mxu0 0.0
    %3167 = vmatprep.subr.mxu0 0.0
    %3168 = vmatpush1.msra.mxu0 0.0
    %3169 = vmatprep.subr.mxu0 0.0
    %3170 = vmatpush1.msra.mxu0 0.0
    %3171 = vmatprep.subr.mxu0 0.0
    %3172 = vmatpush1.msra.mxu0 0.0
    %3173 = vmatprep.subr.mxu0 0.0
    %3174 = vmatpush1.msra.mxu0 0.0
    %3175 = vmatprep.subr.mxu0 0.0
    %3176 = vmatpush1.msra.mxu0 0.0
    %3177 = vmatprep.subr.mxu0 0.0
    %3178 = vmatpush1.msra.mxu0 0.0
    %3179 = vmatprep.subr.mxu0 0.0
    %3180 = vmatpush1.msra.mxu0 0.0
    %3181 = vmatprep.subr.mxu0 0.0
    %3182 = vmatpush1.msra.mxu0 0.0
    %3183 = vmatprep.subr.mxu0 0.0
    %3184 = vmatpush1.msra.mxu0 0.0
    %3185 = vmatprep.subr.mxu0 0.0
    %3186 = vmatpush1.msra.mxu0 0.0
    %3187 = vmatprep.subr.mxu0 0.0
    %3188 = vmatpush1.msra.mxu0 0.0
    %3189 = vmatprep.subr.mxu0 0.0
    %3190 = vmatpush1.msra.mxu0 0.0
    %3191 = vmatprep.subr.mxu0 0.0
    %3192 = vmatpush1.msra.mxu0 %v3159
    %3193 = vmatprep.subr.mxu0 0.0
    %3194 = vmatpush2.msra.mxu0 0.0
    %3195 = vmatprep.subr.mxu0 0.0
    %3196 = vmatpush2.msra.mxu0 0.0
    %3197 = vmatprep.subr.mxu0 0.0
    %3198 = vmatpush2.msra.mxu0 0.0
    %3199 = vmatprep.subr.mxu0 0.0
    %3200 = vmatpush2.msra.mxu0 0.0
    %3201 = vmatprep.subr.mxu0 0.0
    %3202 = vmatpush2.msra.mxu0 0.0
    %3203 = vmatprep.subr.mxu0 0.0
    %3204 = vmatpush2.msra.mxu0 0.0
    %3205 = vmatprep.subr.mxu0 0.0
    %3206 = vmatpush2.msra.mxu0 0.0
    %3207 = vmatprep.subr.mxu0 0.0
    %3208 = vmatpush2.msra.mxu0 0.0
    %3209 = vmatprep.subr.mxu0 0.0
    %3210 = vmatpush2.msra.mxu0 0.0
    %3211 = vmatprep.subr.mxu0 0.0
    %3212 = vmatpush2.msra.mxu0 0.0
    %3213 = vmatprep.subr.mxu0 0.0
    %3214 = vmatpush2.msra.mxu0 0.0
    %3215 = vmatprep.subr.mxu0 0.0
    %3216 = vmatpush2.msra.mxu0 0.0
    %3217 = vmatprep.subr.mxu0 0.0
    %3218 = vmatpush2.msra.mxu0 0.0
    %3219 = vmatprep.subr.mxu0 0.0
    %3220 = vmatpush2.msra.mxu0 0.0
    %3221 = vmatprep.subr.mxu0 0.0
    %3222 = vmatpush2.msra.mxu0 0.0
    %3223 = vmatprep.subr.mxu0 0.0
    %3224 = vmatpush2.msra.mxu0 0.0
    %3225 = vmatprep.mubr.f32.mxu0 0.0
    %3226 = vmatmul.mubr.f32.gmra.mxu0 %v1622
    %v3227 = vpop.f32.mrf.mxu0
    %v3228 = vadd.f32 0.0, %v3227
    %v3229 = vpop.f32.mrf.mxu0
    %3230 = vmatprep.mubr.f32.mxu0 0.0
    %3231 = vmatmul.mubr.f32.gmra.mxu0 %v1624
    %v3232 = vpop.f32.mrf.mxu0
    %v3233 = vadd.f32 0.0, %v3232
    %v3234 = vpop.f32.mrf.mxu0
    %3235 = vmatprep.mubr.f32.mxu0 0.0
    %3236 = vmatmul.mubr.f32.gmra.mxu0 %v1626
    %v3237 = vpop.f32.mrf.mxu0
    %v3238 = vadd.f32 0.0, %v3237
    %v3239 = vpop.f32.mrf.mxu0
    %3240 = vmatprep.mubr.f32.mxu0 0.0
    %3241 = vmatmul.mubr.f32.gmra.mxu0 %v1628
    %v3242 = vpop.f32.mrf.mxu0
    %v3243 = vadd.f32 0.0, %v3242
    %v3244 = vpop.f32.mrf.mxu0
    %3245 = vmatprep.mubr.f32.mxu0 0.0
    %3246 = vmatmul.mubr.f32.gmra.mxu0 %v1630
    %v3247 = vpop.f32.mrf.mxu0
    %v3248 = vadd.f32 0.0, %v3247
    %v3249 = vpop.f32.mrf.mxu0
    %3250 = vmatprep.mubr.f32.mxu0 0.0
    %3251 = vmatmul.mubr.f32.gmra.mxu0 %v1632
    %v3252 = vpop.f32.mrf.mxu0
    %v3253 = vadd.f32 0.0, %v3252
    %v3254 = vpop.f32.mrf.mxu0
    %3255 = vmatprep.mubr.f32.mxu0 0.0
    %3256 = vmatmul.mubr.f32.gmra.mxu0 %v1634
    %v3257 = vpop.f32.mrf.mxu0
    %v3258 = vadd.f32 0.0, %v3257
    %v3259 = vpop.f32.mrf.mxu0
    %3260 = vmatprep.mubr.f32.mxu0 0.0
    %3261 = vmatmul.mubr.f32.gmra.mxu0 %v1636
    %v3262 = vpop.f32.mrf.mxu0
    %v3263 = vadd.f32 0.0, %v3262
    %v3264 = vpop.f32.mrf.mxu0
    %3265 = vmatprep.mubr.f32.mxu0 0.0
    %3266 = vmatmul.mubr.f32.gmra.mxu0 %v1638
    %v3267 = vpop.f32.mrf.mxu0
    %v3268 = vadd.f32 0.0, %v3267
    %v3269 = vpop.f32.mrf.mxu0
    %3270 = vmatprep.mubr.f32.mxu0 0.0
    %3271 = vmatmul.mubr.f32.gmra.mxu0 %v1640
    %v3272 = vpop.f32.mrf.mxu0
    %v3273 = vadd.f32 0.0, %v3272
    %v3274 = vpop.f32.mrf.mxu0
    %3275 = vmatprep.mubr.f32.mxu0 0.0
    %3276 = vmatmul.mubr.f32.gmra.mxu0 %v1642
    %v3277 = vpop.f32.mrf.mxu0
    %v3278 = vadd.f32 0.0, %v3277
    %v3279 = vpop.f32.mrf.mxu0
    %3280 = vmatprep.mubr.f32.mxu0 0.0
    %3281 = vmatmul.mubr.f32.gmra.mxu0 %v1644
    %v3282 = vpop.f32.mrf.mxu0
    %v3283 = vadd.f32 0.0, %v3282
    %v3284 = vpop.f32.mrf.mxu0
    %3285 = vmatprep.mubr.f32.mxu0 0.0
    %3286 = vmatmul.mubr.f32.gmra.mxu0 %v1646
    %v3287 = vpop.f32.mrf.mxu0
    %v3288 = vadd.f32 0.0, %v3287
    %v3289 = vpop.f32.mrf.mxu0
    %3290 = vmatprep.mubr.f32.mxu0 0.0
    %3291 = vmatmul.mubr.f32.gmra.mxu0 %v1648
    %v3292 = vpop.f32.mrf.mxu0
    %v3293 = vadd.f32 0.0, %v3292
    %v3294 = vpop.f32.mrf.mxu0
    %3295 = vmatprep.mubr.f32.mxu0 0.0
    %3296 = vmatmul.mubr.f32.gmra.mxu0 %v1650
    %v3297 = vpop.f32.mrf.mxu0
    %v3298 = vadd.f32 0.0, %v3297
    %v3299 = vpop.f32.mrf.mxu0
    %3300 = vmatprep.mubr.f32.mxu0 0.0
    %3301 = vmatmul.mubr.f32.gmra.mxu0 %v1652
    %v3302 = vpop.f32.mrf.mxu0
    %v3303 = vadd.f32 0.0, %v3302
    %v3304 = vpop.f32.mrf.mxu0
    %3305 = vmatprep.mubr.f32.mxu0 0.0
    %3306 = vmatmul.mubr.f32.gmra.mxu0 %v1654
    %v3307 = vpop.f32.mrf.mxu0
    %v3308 = vadd.f32 0.0, %v3307
    %v3309 = vpop.f32.mrf.mxu0
    %3310 = vmatprep.mubr.f32.mxu0 0.0
    %3311 = vmatmul.mubr.f32.gmra.mxu0 %v1656
    %v3312 = vpop.f32.mrf.mxu0
    %v3313 = vadd.f32 0.0, %v3312
    %v3314 = vpop.f32.mrf.mxu0
    %3315 = vmatprep.mubr.f32.mxu0 0.0
    %3316 = vmatmul.mubr.f32.gmra.mxu0 %v1658
    %v3317 = vpop.f32.mrf.mxu0
    %v3318 = vadd.f32 0.0, %v3317
    %v3319 = vpop.f32.mrf.mxu0
    %3320 = vmatprep.mubr.f32.mxu0 0.0
    %3321 = vmatmul.mubr.f32.gmra.mxu0 %v1660
    %v3322 = vpop.f32.mrf.mxu0
    %v3323 = vadd.f32 0.0, %v3322
    %v3324 = vpop.f32.mrf.mxu0
    %3325 = vmatprep.mubr.f32.mxu0 0.0
    %3326 = vmatmul.mubr.f32.gmra.mxu0 %v1662
    %v3327 = vpop.f32.mrf.mxu0
    %v3328 = vadd.f32 0.0, %v3327
    %v3329 = vpop.f32.mrf.mxu0
    %3330 = vmatprep.mubr.f32.mxu0 0.0
    %3331 = vmatmul.mubr.f32.gmra.mxu0 %v1664
    %v3332 = vpop.f32.mrf.mxu0
    %v3333 = vadd.f32 0.0, %v3332
    %v3334 = vpop.f32.mrf.mxu0
    %3335 = vmatprep.mubr.f32.mxu0 0.0
    %3336 = vmatmul.mubr.f32.gmra.mxu0 %v1666
    %v3337 = vpop.f32.mrf.mxu0
    %v3338 = vadd.f32 0.0, %v3337
    %v3339 = vpop.f32.mrf.mxu0
    %3340 = vmatprep.mubr.f32.mxu0 0.0
    %3341 = vmatmul.mubr.f32.gmra.mxu0 %v1668
    %v3342 = vpop.f32.mrf.mxu0
    %v3343 = vadd.f32 0.0, %v3342
    %v3344 = vpop.f32.mrf.mxu0
    %3345 = vmatprep.mubr.f32.mxu0 0.0
    %3346 = vmatmul.mubr.f32.gmra.mxu0 %v1670
    %v3347 = vpop.f32.mrf.mxu0
    %v3348 = vadd.f32 0.0, %v3347
    %v3349 = vpop.f32.mrf.mxu0
    %3350 = vmatprep.mubr.f32.mxu0 0.0
    %3351 = vmatmul.mubr.f32.gmra.mxu0 %v1672
    %v3352 = vpop.f32.mrf.mxu0
    %v3353 = vadd.f32 0.0, %v3352
    %v3354 = vpop.f32.mrf.mxu0
    %3355 = vmatprep.mubr.f32.mxu0 0.0
    %3356 = vmatmul.mubr.f32.gmra.mxu0 %v1674
    %v3357 = vpop.f32.mrf.mxu0
    %v3358 = vadd.f32 0.0, %v3357
    %v3359 = vpop.f32.mrf.mxu0
    %3360 = vmatprep.mubr.f32.mxu0 0.0
    %3361 = vmatmul.mubr.f32.gmra.mxu0 %v1676
    %v3362 = vpop.f32.mrf.mxu0
    %v3363 = vadd.f32 0.0, %v3362
    %v3364 = vpop.f32.mrf.mxu0
    %3365 = vmatprep.mubr.f32.mxu0 0.0
    %3366 = vmatmul.mubr.f32.gmra.mxu0 %v1678
    %v3367 = vpop.f32.mrf.mxu0
    %v3368 = vadd.f32 0.0, %v3367
    %v3369 = vpop.f32.mrf.mxu0
    %3370 = vmatprep.mubr.f32.mxu0 0.0
    %3371 = vmatmul.mubr.f32.gmra.mxu0 %v1680
    %v3372 = vpop.f32.mrf.mxu0
    %v3373 = vadd.f32 0.0, %v3372
    %v3374 = vpop.f32.mrf.mxu0
    %3375 = vmatprep.mubr.f32.mxu0 0.0
    %3376 = vmatmul.mubr.f32.gmra.mxu0 %v3150
    %v3377 = vpop.f32.mrf.mxu0
    %v3378 = vadd.f32 0.0, %v3377
    %v3379 = vpop.f32.mrf.mxu0
    %3380 = vmatprep.mubr.f32.mxu0 0.0
    %3381 = vmatmul.mubr.f32.gmra.mxu0 %v3152
    %v3382 = vpop.f32.mrf.mxu0
    %v3383 = vadd.f32 0.0, %v3382
    %v3384 = vpop.f32.mrf.mxu0
    %3385 = vmatprep.mubr.f32.mxu0 0.0
    %3386 = vmatmul.mubr.f32.gmra.mxu0 %v1686
    %v3387 = vpop.f32.mrf.mxu0
    %v3388 = vadd.f32 0.0, %v3387
    %v3389 = vpop.f32.mrf.mxu0
    %3390 = vmatprep.mubr.f32.mxu0 0.0
    %3391 = vmatmul.mubr.f32.gmra.mxu0 %v1688
    %v3392 = vpop.f32.mrf.mxu0
    %v3393 = vadd.f32 0.0, %v3392
    %v3394 = vpop.f32.mrf.mxu0
    %3395 = vmatprep.mubr.f32.mxu0 0.0
    %3396 = vmatmul.mubr.f32.gmra.mxu0 %v1690
    %v3397 = vpop.f32.mrf.mxu0
    %v3398 = vadd.f32 0.0, %v3397
    %v3399 = vpop.f32.mrf.mxu0
    %3400 = vmatprep.mubr.f32.mxu0 0.0
    %3401 = vmatmul.mubr.f32.gmra.mxu0 %v1692
    %v3402 = vpop.f32.mrf.mxu0
    %v3403 = vadd.f32 0.0, %v3402
    %v3404 = vpop.f32.mrf.mxu0
    %3405 = vmatprep.mubr.f32.mxu0 0.0
    %3406 = vmatmul.mubr.f32.gmra.mxu0 %v1694
    %v3407 = vpop.f32.mrf.mxu0
    %v3408 = vadd.f32 0.0, %v3407
    %v3409 = vpop.f32.mrf.mxu0
    %3410 = vmatprep.mubr.f32.mxu0 0.0
    %3411 = vmatmul.mubr.f32.gmra.mxu0 %v1696
    %v3412 = vpop.f32.mrf.mxu0
    %v3413 = vadd.f32 0.0, %v3412
    %v3414 = vpop.f32.mrf.mxu0
    %3415 = vmatprep.mubr.f32.mxu0 0.0
    %3416 = vmatmul.mubr.f32.gmra.mxu0 %v1698
    %v3417 = vpop.f32.mrf.mxu0
    %v3418 = vadd.f32 0.0, %v3417
    %v3419 = vpop.f32.mrf.mxu0
    %3420 = vmatprep.mubr.f32.mxu0 0.0
    %3421 = vmatmul.mubr.f32.gmra.mxu0 %v1700
    %v3422 = vpop.f32.mrf.mxu0
    %v3423 = vadd.f32 0.0, %v3422
    %v3424 = vpop.f32.mrf.mxu0
    %3425 = vmatprep.mubr.f32.mxu0 0.0
    %3426 = vmatmul.mubr.f32.gmra.mxu0 %v1702
    %v3427 = vpop.f32.mrf.mxu0
    %v3428 = vadd.f32 0.0, %v3427
    %v3429 = vpop.f32.mrf.mxu0
    %3430 = vmatprep.mubr.f32.mxu0 0.0
    %3431 = vmatmul.mubr.f32.gmra.mxu0 %v1704
    %v3432 = vpop.f32.mrf.mxu0
    %v3433 = vadd.f32 0.0, %v3432
    %v3434 = vpop.f32.mrf.mxu0
    %3435 = vmatprep.mubr.f32.mxu0 0.0
    %3436 = vmatmul.mubr.f32.gmra.mxu0 %v1706
    %v3437 = vpop.f32.mrf.mxu0
    %v3438 = vadd.f32 0.0, %v3437
    %v3439 = vpop.f32.mrf.mxu0
    %3440 = vmatprep.mubr.f32.mxu0 0.0
    %3441 = vmatmul.mubr.f32.gmra.mxu0 %v1708
    %v3442 = vpop.f32.mrf.mxu0
    %v3443 = vadd.f32 0.0, %v3442
    %v3444 = vpop.f32.mrf.mxu0
    %3445 = vmatprep.mubr.f32.mxu0 0.0
    %3446 = vmatmul.mubr.f32.gmra.mxu0 %v1710
    %v3447 = vpop.f32.mrf.mxu0
    %v3448 = vadd.f32 0.0, %v3447
    %v3449 = vpop.f32.mrf.mxu0
    %3450 = vmatprep.mubr.f32.mxu0 0.0
    %3451 = vmatmul.mubr.f32.gmra.mxu0 %v1712
    %v3452 = vpop.f32.mrf.mxu0
    %v3453 = vadd.f32 0.0, %v3452
    %v3454 = vpop.f32.mrf.mxu0
    %3455 = vmatprep.mubr.f32.mxu0 0.0
    %3456 = vmatmul.mubr.f32.gmra.mxu0 %v1714
    %v3457 = vpop.f32.mrf.mxu0
    %v3458 = vadd.f32 0.0, %v3457
    %v3459 = vpop.f32.mrf.mxu0
    %3460 = vmatprep.mubr.f32.mxu0 0.0
    %3461 = vmatmul.mubr.f32.gmra.mxu0 %v1716
    %v3462 = vpop.f32.mrf.mxu0
    %v3463 = vadd.f32 0.0, %v3462
    %v3464 = vpop.f32.mrf.mxu0
    %3465 = vmatprep.mubr.f32.mxu0 0.0
    %3466 = vmatmul.mubr.f32.gmra.mxu0 %v1718
    %v3467 = vpop.f32.mrf.mxu0
    %v3468 = vadd.f32 0.0, %v3467
    %v3469 = vpop.f32.mrf.mxu0
    %3470 = vmatprep.mubr.f32.mxu0 0.0
    %3471 = vmatmul.mubr.f32.gmra.mxu0 %v1720
    %v3472 = vpop.f32.mrf.mxu0
    %v3473 = vadd.f32 0.0, %v3472
    %v3474 = vpop.f32.mrf.mxu0
    %3475 = vmatprep.mubr.f32.mxu0 0.0
    %3476 = vmatmul.mubr.f32.gmra.mxu0 %v1722
    %v3477 = vpop.f32.mrf.mxu0
    %v3478 = vadd.f32 0.0, %v3477
    %v3479 = vpop.f32.mrf.mxu0
    %3480 = vmatprep.mubr.f32.mxu0 0.0
    %3481 = vmatmul.mubr.f32.gmra.mxu0 %v1724
    %v3482 = vpop.f32.mrf.mxu0
    %v3483 = vadd.f32 0.0, %v3482
    %v3484 = vpop.f32.mrf.mxu0
    %3485 = vmatprep.mubr.f32.mxu0 0.0
    %3486 = vmatmul.mubr.f32.gmra.mxu0 %v1726
    %v3487 = vpop.f32.mrf.mxu0
    %v3488 = vadd.f32 0.0, %v3487
    %v3489 = vpop.f32.mrf.mxu0
    %3490 = vmatprep.mubr.f32.mxu0 0.0
    %3491 = vmatmul.mubr.f32.gmra.mxu0 %v1728
    %v3492 = vpop.f32.mrf.mxu0
    %v3493 = vadd.f32 0.0, %v3492
    %v3494 = vpop.f32.mrf.mxu0
    %3495 = vmatprep.mubr.f32.mxu0 0.0
    %3496 = vmatmul.mubr.f32.gmra.mxu0 %v1730
    %v3497 = vpop.f32.mrf.mxu0
    %v3498 = vadd.f32 0.0, %v3497
    %v3499 = vpop.f32.mrf.mxu0
    %3500 = vmatprep.mubr.f32.mxu0 0.0
    %3501 = vmatmul.mubr.f32.gmra.mxu0 %v1732
    %v3502 = vpop.f32.mrf.mxu0
    %v3503 = vadd.f32 0.0, %v3502
    %v3504 = vpop.f32.mrf.mxu0
    %3505 = vmatprep.mubr.f32.mxu0 0.0
    %3506 = vmatmul.mubr.f32.gmra.mxu0 %v1734
    %v3507 = vpop.f32.mrf.mxu0
    %v3508 = vadd.f32 0.0, %v3507
    %v3509 = vpop.f32.mrf.mxu0
    %3510 = vmatprep.mubr.f32.mxu0 0.0
    %3511 = vmatmul.mubr.f32.gmra.mxu0 %v1736
    %v3512 = vpop.f32.mrf.mxu0
    %v3513 = vadd.f32 0.0, %v3512
    %v3514 = vpop.f32.mrf.mxu0
    %3515 = vmatprep.mubr.f32.mxu0 0.0
    %3516 = vmatmul.mubr.f32.gmra.mxu0 %v1738
    %v3517 = vpop.f32.mrf.mxu0
    %v3518 = vadd.f32 0.0, %v3517
    %v3519 = vpop.f32.mrf.mxu0
    %3520 = vmatprep.mubr.f32.mxu0 0.0
    %3521 = vmatmul.mubr.f32.gmra.mxu0 %v1740
    %v3522 = vpop.f32.mrf.mxu0
    %v3523 = vadd.f32 0.0, %v3522
    %v3524 = vpop.f32.mrf.mxu0
    %3525 = vmatprep.mubr.f32.mxu0 0.0
    %3526 = vmatmul.mubr.f32.gmra.mxu0 %v1742
    %v3527 = vpop.f32.mrf.mxu0
    %v3528 = vadd.f32 0.0, %v3527
    %v3529 = vpop.f32.mrf.mxu0
    %3530 = vmatprep.mubr.f32.mxu0 0.0
    %3531 = vmatmul.mubr.f32.gmra.mxu0 %v1744
    %v3532 = vpop.f32.mrf.mxu0
    %v3533 = vadd.f32 0.0, %v3532
    %v3534 = vpop.f32.mrf.mxu0
    %3535 = vmatprep.mubr.f32.mxu0 0.0
    %3536 = vmatmul.mubr.f32.gmra.mxu0 %v3154
    %v3537 = vpop.f32.mrf.mxu0
    %v3538 = vadd.f32 0.0, %v3537
    %v3539 = vpop.f32.mrf.mxu0
    %3540 = vmatprep.mubr.f32.mxu0 0.0
    %3541 = vmatmul.mubr.f32.gmra.mxu0 %v3156
    %v3542 = vpop.f32.mrf.mxu0
    %v3543 = vadd.f32 0.0, %v3542
    %v3544 = vpop.f32.mrf.mxu0
    %3545 = vdwg.mxu0
    %v3546 = vadd.f32 %v3074, %v3228
    %v3547 = vadd.f32 %v3075, %v3233
    %v3548 = vadd.f32 %v3076, %v3238
    %v3549 = vadd.f32 %v3077, %v3243
    %v3550 = vadd.f32 %v3078, %v3248
    %v3551 = vadd.f32 %v3079, %v3253
    %v3552 = vadd.f32 %v3080, %v3258
    %v3553 = vadd.f32 %v3081, %v3263
    %v3554 = vadd.f32 %v3082, %v3268
    %v3555 = vadd.f32 %v3083, %v3273
    %v3556 = vadd.f32 %v3084, %v3278
    %v3557 = vadd.f32 %v3085, %v3283
    %v3558 = vadd.f32 %v3086, %v3288
    %v3559 = vadd.f32 %v3087, %v3293
    %v3560 = vadd.f32 %v3088, %v3298
    %v3561 = vadd.f32 %v3089, %v3303
    %v3562 = vadd.f32 %v3090, %v3308
    %v3563 = vadd.f32 %v3091, %v3313
    %v3564 = vadd.f32 %v3092, %v3318
    %v3565 = vadd.f32 %v3093, %v3323
    %v3566 = vadd.f32 %v3094, %v3328
    %v3567 = vadd.f32 %v3095, %v3333
    %v3568 = vadd.f32 %v3096, %v3338
    %v3569 = vadd.f32 %v3097, %v3343
    %v3570 = vadd.f32 %v3098, %v3348
    %v3571 = vadd.f32 %v3099, %v3353
    %v3572 = vadd.f32 %v3100, %v3358
    %v3573 = vadd.f32 %v3101, %v3363
    %v3574 = vadd.f32 %v3102, %v3368
    %v3575 = vadd.f32 %v3103, %v3373
    %v3576 = vadd.f32 %v3104, %v3378
    %v3577 = vadd.f32 %v3105, %v3383
    %v3578 = vadd.f32 %v3106, %v3388
    %v3579 = vadd.f32 %v3107, %v3393
    %v3580 = vadd.f32 %v3108, %v3398
    %v3581 = vadd.f32 %v3109, %v3403
    %v3582 = vadd.f32 %v3110, %v3408
    %v3583 = vadd.f32 %v3111, %v3413
    %v3584 = vadd.f32 %v3112, %v3418
    %v3585 = vadd.f32 %v3113, %v3423
    %v3586 = vadd.f32 %v3114, %v3428
    %v3587 = vadd.f32 %v3115, %v3433
    %v3588 = vadd.f32 %v3116, %v3438
    %v3589 = vadd.f32 %v3117, %v3443
    %v3590 = vadd.f32 %v3118, %v3448
    %v3591 = vadd.f32 %v3119, %v3453
    %v3592 = vadd.f32 %v3120, %v3458
    %v3593 = vadd.f32 %v3121, %v3463
    %v3594 = vadd.f32 %v3122, %v3468
    %v3595 = vadd.f32 %v3123, %v3473
    %v3596 = vadd.f32 %v3124, %v3478
    %v3597 = vadd.f32 %v3125, %v3483
    %v3598 = vadd.f32 %v3126, %v3488
    %v3599 = vadd.f32 %v3127, %v3493
    %v3600 = vadd.f32 %v3128, %v3498
    %v3601 = vadd.f32 %v3129, %v3503
    %v3602 = vadd.f32 %v3130, %v3508
    %v3603 = vadd.f32 %v3131, %v3513
    %v3604 = vadd.f32 %v3132, %v3518
    %v3605 = vadd.f32 %v3133, %v3523
    %v3606 = vadd.f32 %v3134, %v3528
    %v3607 = vadd.f32 %v3135, %v3533
    %v3608 = vadd.f32 %v3136, %v3538
    %v3609 = vadd.f32 %v3137, %v3543
    %s3610 = scalar_lea.vmem %s1, 24
    %v3611 = vld [vmem:[%s3610] sm:$0xf]
    %v3613 = vsel %vm421, %v104, 0
    %v3616 = vsel %vm421, %v105, 0
    %v3619 = vsel %vm421, %v158, 0
    %v3622 = vsel %vm421, %v159, 0
    %v3625 = vsel %vm550, %v3611, 0
    %3627 = vmatprep.subr.mxu0 0.0
    %3628 = vmatpush1.msra.mxu0 0.0
    %3629 = vmatprep.subr.mxu0 0.0
    %3630 = vmatpush1.msra.mxu0 0.0
    %3631 = vmatprep.subr.mxu0 0.0
    %3632 = vmatpush1.msra.mxu0 0.0
    %3633 = vmatprep.subr.mxu0 0.0
    %3634 = vmatpush1.msra.mxu0 0.0
    %3635 = vmatprep.subr.mxu0 0.0
    %3636 = vmatpush1.msra.mxu0 0.0
    %3637 = vmatprep.subr.mxu0 0.0
    %3638 = vmatpush1.msra.mxu0 0.0
    %3639 = vmatprep.subr.mxu0 0.0
    %3640 = vmatpush1.msra.mxu0 0.0
    %3641 = vmatprep.subr.mxu0 0.0
    %3642 = vmatpush1.msra.mxu0 0.0
    %3643 = vmatprep.subr.mxu0 0.0
    %3644 = vmatpush1.msra.mxu0 0.0
    %3645 = vmatprep.subr.mxu0 0.0
    %3646 = vmatpush1.msra.mxu0 0.0
    %3647 = vmatprep.subr.mxu0 0.0
    %3648 = vmatpush1.msra.mxu0 0.0
    %3649 = vmatprep.subr.mxu0 0.0
    %3650 = vmatpush1.msra.mxu0 0.0
    %3651 = vmatprep.subr.mxu0 0.0
    %3652 = vmatpush1.msra.mxu0 0.0
    %3653 = vmatprep.subr.mxu0 0.0
    %3654 = vmatpush1.msra.mxu0 0.0
    %3655 = vmatprep.subr.mxu0 0.0
    %3656 = vmatpush1.msra.mxu0 0.0
    %3657 = vmatprep.subr.mxu0 0.0
    %3658 = vmatpush1.msra.mxu0 %v3625
    %3659 = vmatprep.subr.mxu0 0.0
    %3660 = vmatpush2.msra.mxu0 0.0
    %3661 = vmatprep.subr.mxu0 0.0
    %3662 = vmatpush2.msra.mxu0 0.0
    %3663 = vmatprep.subr.mxu0 0.0
    %3664 = vmatpush2.msra.mxu0 0.0
    %3665 = vmatprep.subr.mxu0 0.0
    %3666 = vmatpush2.msra.mxu0 0.0
    %3667 = vmatprep.subr.mxu0 0.0
    %3668 = vmatpush2.msra.mxu0 0.0
    %3669 = vmatprep.subr.mxu0 0.0
    %3670 = vmatpush2.msra.mxu0 0.0
    %3671 = vmatprep.subr.mxu0 0.0
    %3672 = vmatpush2.msra.mxu0 0.0
    %3673 = vmatprep.subr.mxu0 0.0
    %3674 = vmatpush2.msra.mxu0 0.0
    %3675 = vmatprep.subr.mxu0 0.0
    %3676 = vmatpush2.msra.mxu0 0.0
    %3677 = vmatprep.subr.mxu0 0.0
    %3678 = vmatpush2.msra.mxu0 0.0
    %3679 = vmatprep.subr.mxu0 0.0
    %3680 = vmatpush2.msra.mxu0 0.0
    %3681 = vmatprep.subr.mxu0 0.0
    %3682 = vmatpush2.msra.mxu0 0.0
    %3683 = vmatprep.subr.mxu0 0.0
    %3684 = vmatpush2.msra.mxu0 0.0
    %3685 = vmatprep.subr.mxu0 0.0
    %3686 = vmatpush2.msra.mxu0 0.0
    %3687 = vmatprep.subr.mxu0 0.0
    %3688 = vmatpush2.msra.mxu0 0.0
    %3689 = vmatprep.subr.mxu0 0.0
    %3690 = vmatpush2.msra.mxu0 0.0
    %3691 = vmatprep.mubr.f32.mxu0 0.0
    %3692 = vmatmul.mubr.f32.gmra.mxu0 %v947
    %v3693 = vpop.f32.mrf.mxu0
    %v3694 = vadd.f32 0.0, %v3693
    %v3695 = vpop.f32.mrf.mxu0
    %3696 = vmatprep.mubr.f32.mxu0 0.0
    %3697 = vmatmul.mubr.f32.gmra.mxu0 %v949
    %v3698 = vpop.f32.mrf.mxu0
    %v3699 = vadd.f32 0.0, %v3698
    %v3700 = vpop.f32.mrf.mxu0
    %3701 = vmatprep.mubr.f32.mxu0 0.0
    %3702 = vmatmul.mubr.f32.gmra.mxu0 %v951
    %v3703 = vpop.f32.mrf.mxu0
    %v3704 = vadd.f32 0.0, %v3703
    %v3705 = vpop.f32.mrf.mxu0
    %3706 = vmatprep.mubr.f32.mxu0 0.0
    %3707 = vmatmul.mubr.f32.gmra.mxu0 %v953
    %v3708 = vpop.f32.mrf.mxu0
    %v3709 = vadd.f32 0.0, %v3708
    %v3710 = vpop.f32.mrf.mxu0
    %3711 = vmatprep.mubr.f32.mxu0 0.0
    %3712 = vmatmul.mubr.f32.gmra.mxu0 %v955
    %v3713 = vpop.f32.mrf.mxu0
    %v3714 = vadd.f32 0.0, %v3713
    %v3715 = vpop.f32.mrf.mxu0
    %3716 = vmatprep.mubr.f32.mxu0 0.0
    %3717 = vmatmul.mubr.f32.gmra.mxu0 %v957
    %v3718 = vpop.f32.mrf.mxu0
    %v3719 = vadd.f32 0.0, %v3718
    %v3720 = vpop.f32.mrf.mxu0
    %3721 = vmatprep.mubr.f32.mxu0 0.0
    %3722 = vmatmul.mubr.f32.gmra.mxu0 %v959
    %v3723 = vpop.f32.mrf.mxu0
    %v3724 = vadd.f32 0.0, %v3723
    %v3725 = vpop.f32.mrf.mxu0
    %3726 = vmatprep.mubr.f32.mxu0 0.0
    %3727 = vmatmul.mubr.f32.gmra.mxu0 %v961
    %v3728 = vpop.f32.mrf.mxu0
    %v3729 = vadd.f32 0.0, %v3728
    %v3730 = vpop.f32.mrf.mxu0
    %3731 = vmatprep.mubr.f32.mxu0 0.0
    %3732 = vmatmul.mubr.f32.gmra.mxu0 %v963
    %v3733 = vpop.f32.mrf.mxu0
    %v3734 = vadd.f32 0.0, %v3733
    %v3735 = vpop.f32.mrf.mxu0
    %3736 = vmatprep.mubr.f32.mxu0 0.0
    %3737 = vmatmul.mubr.f32.gmra.mxu0 %v965
    %v3738 = vpop.f32.mrf.mxu0
    %v3739 = vadd.f32 0.0, %v3738
    %v3740 = vpop.f32.mrf.mxu0
    %3741 = vmatprep.mubr.f32.mxu0 0.0
    %3742 = vmatmul.mubr.f32.gmra.mxu0 %v967
    %v3743 = vpop.f32.mrf.mxu0
    %v3744 = vadd.f32 0.0, %v3743
    %v3745 = vpop.f32.mrf.mxu0
    %3746 = vmatprep.mubr.f32.mxu0 0.0
    %3747 = vmatmul.mubr.f32.gmra.mxu0 %v969
    %v3748 = vpop.f32.mrf.mxu0
    %v3749 = vadd.f32 0.0, %v3748
    %v3750 = vpop.f32.mrf.mxu0
    %3751 = vmatprep.mubr.f32.mxu0 0.0
    %3752 = vmatmul.mubr.f32.gmra.mxu0 %v971
    %v3753 = vpop.f32.mrf.mxu0
    %v3754 = vadd.f32 0.0, %v3753
    %v3755 = vpop.f32.mrf.mxu0
    %3756 = vmatprep.mubr.f32.mxu0 0.0
    %3757 = vmatmul.mubr.f32.gmra.mxu0 %v973
    %v3758 = vpop.f32.mrf.mxu0
    %v3759 = vadd.f32 0.0, %v3758
    %v3760 = vpop.f32.mrf.mxu0
    %3761 = vmatprep.mubr.f32.mxu0 0.0
    %3762 = vmatmul.mubr.f32.gmra.mxu0 %v975
    %v3763 = vpop.f32.mrf.mxu0
    %v3764 = vadd.f32 0.0, %v3763
    %v3765 = vpop.f32.mrf.mxu0
    %3766 = vmatprep.mubr.f32.mxu0 0.0
    %3767 = vmatmul.mubr.f32.gmra.mxu0 %v977
    %v3768 = vpop.f32.mrf.mxu0
    %v3769 = vadd.f32 0.0, %v3768
    %v3770 = vpop.f32.mrf.mxu0
    %3771 = vmatprep.mubr.f32.mxu0 0.0
    %3772 = vmatmul.mubr.f32.gmra.mxu0 %v979
    %v3773 = vpop.f32.mrf.mxu0
    %v3774 = vadd.f32 0.0, %v3773
    %v3775 = vpop.f32.mrf.mxu0
    %3776 = vmatprep.mubr.f32.mxu0 0.0
    %3777 = vmatmul.mubr.f32.gmra.mxu0 %v981
    %v3778 = vpop.f32.mrf.mxu0
    %v3779 = vadd.f32 0.0, %v3778
    %v3780 = vpop.f32.mrf.mxu0
    %3781 = vmatprep.mubr.f32.mxu0 0.0
    %3782 = vmatmul.mubr.f32.gmra.mxu0 %v983
    %v3783 = vpop.f32.mrf.mxu0
    %v3784 = vadd.f32 0.0, %v3783
    %v3785 = vpop.f32.mrf.mxu0
    %3786 = vmatprep.mubr.f32.mxu0 0.0
    %3787 = vmatmul.mubr.f32.gmra.mxu0 %v985
    %v3788 = vpop.f32.mrf.mxu0
    %v3789 = vadd.f32 0.0, %v3788
    %v3790 = vpop.f32.mrf.mxu0
    %3791 = vmatprep.mubr.f32.mxu0 0.0
    %3792 = vmatmul.mubr.f32.gmra.mxu0 %v987
    %v3793 = vpop.f32.mrf.mxu0
    %v3794 = vadd.f32 0.0, %v3793
    %v3795 = vpop.f32.mrf.mxu0
    %3796 = vmatprep.mubr.f32.mxu0 0.0
    %3797 = vmatmul.mubr.f32.gmra.mxu0 %v989
    %v3798 = vpop.f32.mrf.mxu0
    %v3799 = vadd.f32 0.0, %v3798
    %v3800 = vpop.f32.mrf.mxu0
    %3801 = vmatprep.mubr.f32.mxu0 0.0
    %3802 = vmatmul.mubr.f32.gmra.mxu0 %v991
    %v3803 = vpop.f32.mrf.mxu0
    %v3804 = vadd.f32 0.0, %v3803
    %v3805 = vpop.f32.mrf.mxu0
    %3806 = vmatprep.mubr.f32.mxu0 0.0
    %3807 = vmatmul.mubr.f32.gmra.mxu0 %v993
    %v3808 = vpop.f32.mrf.mxu0
    %v3809 = vadd.f32 0.0, %v3808
    %v3810 = vpop.f32.mrf.mxu0
    %3811 = vmatprep.mubr.f32.mxu0 0.0
    %3812 = vmatmul.mubr.f32.gmra.mxu0 %v995
    %v3813 = vpop.f32.mrf.mxu0
    %v3814 = vadd.f32 0.0, %v3813
    %v3815 = vpop.f32.mrf.mxu0
    %3816 = vmatprep.mubr.f32.mxu0 0.0
    %3817 = vmatmul.mubr.f32.gmra.mxu0 %v997
    %v3818 = vpop.f32.mrf.mxu0
    %v3819 = vadd.f32 0.0, %v3818
    %v3820 = vpop.f32.mrf.mxu0
    %3821 = vmatprep.mubr.f32.mxu0 0.0
    %3822 = vmatmul.mubr.f32.gmra.mxu0 %v999
    %v3823 = vpop.f32.mrf.mxu0
    %v3824 = vadd.f32 0.0, %v3823
    %v3825 = vpop.f32.mrf.mxu0
    %3826 = vmatprep.mubr.f32.mxu0 0.0
    %3827 = vmatmul.mubr.f32.gmra.mxu0 %v1001
    %v3828 = vpop.f32.mrf.mxu0
    %v3829 = vadd.f32 0.0, %v3828
    %v3830 = vpop.f32.mrf.mxu0
    %3831 = vmatprep.mubr.f32.mxu0 0.0
    %3832 = vmatmul.mubr.f32.gmra.mxu0 %v2201
    %v3833 = vpop.f32.mrf.mxu0
    %v3834 = vadd.f32 0.0, %v3833
    %v3835 = vpop.f32.mrf.mxu0
    %3836 = vmatprep.mubr.f32.mxu0 0.0
    %3837 = vmatmul.mubr.f32.gmra.mxu0 %v2204
    %v3838 = vpop.f32.mrf.mxu0
    %v3839 = vadd.f32 0.0, %v3838
    %v3840 = vpop.f32.mrf.mxu0
    %3841 = vmatprep.mubr.f32.mxu0 0.0
    %3842 = vmatmul.mubr.f32.gmra.mxu0 %v3613
    %v3843 = vpop.f32.mrf.mxu0
    %v3844 = vadd.f32 0.0, %v3843
    %v3845 = vpop.f32.mrf.mxu0
    %3846 = vmatprep.mubr.f32.mxu0 0.0
    %3847 = vmatmul.mubr.f32.gmra.mxu0 %v3616
    %v3848 = vpop.f32.mrf.mxu0
    %v3849 = vadd.f32 0.0, %v3848
    %v3850 = vpop.f32.mrf.mxu0
    %3851 = vmatprep.mubr.f32.mxu0 0.0
    %3852 = vmatmul.mubr.f32.gmra.mxu0 %v1011
    %v3853 = vpop.f32.mrf.mxu0
    %v3854 = vadd.f32 0.0, %v3853
    %v3855 = vpop.f32.mrf.mxu0
    %3856 = vmatprep.mubr.f32.mxu0 0.0
    %3857 = vmatmul.mubr.f32.gmra.mxu0 %v1013
    %v3858 = vpop.f32.mrf.mxu0
    %v3859 = vadd.f32 0.0, %v3858
    %v3860 = vpop.f32.mrf.mxu0
    %3861 = vmatprep.mubr.f32.mxu0 0.0
    %3862 = vmatmul.mubr.f32.gmra.mxu0 %v1015
    %v3863 = vpop.f32.mrf.mxu0
    %v3864 = vadd.f32 0.0, %v3863
    %v3865 = vpop.f32.mrf.mxu0
    %3866 = vmatprep.mubr.f32.mxu0 0.0
    %3867 = vmatmul.mubr.f32.gmra.mxu0 %v1017
    %v3868 = vpop.f32.mrf.mxu0
    %v3869 = vadd.f32 0.0, %v3868
    %v3870 = vpop.f32.mrf.mxu0
    %3871 = vmatprep.mubr.f32.mxu0 0.0
    %3872 = vmatmul.mubr.f32.gmra.mxu0 %v1019
    %v3873 = vpop.f32.mrf.mxu0
    %v3874 = vadd.f32 0.0, %v3873
    %v3875 = vpop.f32.mrf.mxu0
    %3876 = vmatprep.mubr.f32.mxu0 0.0
    %3877 = vmatmul.mubr.f32.gmra.mxu0 %v1021
    %v3878 = vpop.f32.mrf.mxu0
    %v3879 = vadd.f32 0.0, %v3878
    %v3880 = vpop.f32.mrf.mxu0
    %3881 = vmatprep.mubr.f32.mxu0 0.0
    %3882 = vmatmul.mubr.f32.gmra.mxu0 %v1023
    %v3883 = vpop.f32.mrf.mxu0
    %v3884 = vadd.f32 0.0, %v3883
    %v3885 = vpop.f32.mrf.mxu0
    %3886 = vmatprep.mubr.f32.mxu0 0.0
    %3887 = vmatmul.mubr.f32.gmra.mxu0 %v1025
    %v3888 = vpop.f32.mrf.mxu0
    %v3889 = vadd.f32 0.0, %v3888
    %v3890 = vpop.f32.mrf.mxu0
    %3891 = vmatprep.mubr.f32.mxu0 0.0
    %3892 = vmatmul.mubr.f32.gmra.mxu0 %v1027
    %v3893 = vpop.f32.mrf.mxu0
    %v3894 = vadd.f32 0.0, %v3893
    %v3895 = vpop.f32.mrf.mxu0
    %3896 = vmatprep.mubr.f32.mxu0 0.0
    %3897 = vmatmul.mubr.f32.gmra.mxu0 %v1029
    %v3898 = vpop.f32.mrf.mxu0
    %v3899 = vadd.f32 0.0, %v3898
    %v3900 = vpop.f32.mrf.mxu0
    %3901 = vmatprep.mubr.f32.mxu0 0.0
    %3902 = vmatmul.mubr.f32.gmra.mxu0 %v1031
    %v3903 = vpop.f32.mrf.mxu0
    %v3904 = vadd.f32 0.0, %v3903
    %v3905 = vpop.f32.mrf.mxu0
    %3906 = vmatprep.mubr.f32.mxu0 0.0
    %3907 = vmatmul.mubr.f32.gmra.mxu0 %v1033
    %v3908 = vpop.f32.mrf.mxu0
    %v3909 = vadd.f32 0.0, %v3908
    %v3910 = vpop.f32.mrf.mxu0
    %3911 = vmatprep.mubr.f32.mxu0 0.0
    %3912 = vmatmul.mubr.f32.gmra.mxu0 %v1035
    %v3913 = vpop.f32.mrf.mxu0
    %v3914 = vadd.f32 0.0, %v3913
    %v3915 = vpop.f32.mrf.mxu0
    %3916 = vmatprep.mubr.f32.mxu0 0.0
    %3917 = vmatmul.mubr.f32.gmra.mxu0 %v1037
    %v3918 = vpop.f32.mrf.mxu0
    %v3919 = vadd.f32 0.0, %v3918
    %v3920 = vpop.f32.mrf.mxu0
    %3921 = vmatprep.mubr.f32.mxu0 0.0
    %3922 = vmatmul.mubr.f32.gmra.mxu0 %v1039
    %v3923 = vpop.f32.mrf.mxu0
    %v3924 = vadd.f32 0.0, %v3923
    %v3925 = vpop.f32.mrf.mxu0
    %3926 = vmatprep.mubr.f32.mxu0 0.0
    %3927 = vmatmul.mubr.f32.gmra.mxu0 %v1041
    %v3928 = vpop.f32.mrf.mxu0
    %v3929 = vadd.f32 0.0, %v3928
    %v3930 = vpop.f32.mrf.mxu0
    %3931 = vmatprep.mubr.f32.mxu0 0.0
    %3932 = vmatmul.mubr.f32.gmra.mxu0 %v1043
    %v3933 = vpop.f32.mrf.mxu0
    %v3934 = vadd.f32 0.0, %v3933
    %v3935 = vpop.f32.mrf.mxu0
    %3936 = vmatprep.mubr.f32.mxu0 0.0
    %3937 = vmatmul.mubr.f32.gmra.mxu0 %v1045
    %v3938 = vpop.f32.mrf.mxu0
    %v3939 = vadd.f32 0.0, %v3938
    %v3940 = vpop.f32.mrf.mxu0
    %3941 = vmatprep.mubr.f32.mxu0 0.0
    %3942 = vmatmul.mubr.f32.gmra.mxu0 %v1047
    %v3943 = vpop.f32.mrf.mxu0
    %v3944 = vadd.f32 0.0, %v3943
    %v3945 = vpop.f32.mrf.mxu0
    %3946 = vmatprep.mubr.f32.mxu0 0.0
    %3947 = vmatmul.mubr.f32.gmra.mxu0 %v1049
    %v3948 = vpop.f32.mrf.mxu0
    %v3949 = vadd.f32 0.0, %v3948
    %v3950 = vpop.f32.mrf.mxu0
    %3951 = vmatprep.mubr.f32.mxu0 0.0
    %3952 = vmatmul.mubr.f32.gmra.mxu0 %v1051
    %v3953 = vpop.f32.mrf.mxu0
    %v3954 = vadd.f32 0.0, %v3953
    %v3955 = vpop.f32.mrf.mxu0
    %3956 = vmatprep.mubr.f32.mxu0 0.0
    %3957 = vmatmul.mubr.f32.gmra.mxu0 %v1053
    %v3958 = vpop.f32.mrf.mxu0
    %v3959 = vadd.f32 0.0, %v3958
    %v3960 = vpop.f32.mrf.mxu0
    %3961 = vmatprep.mubr.f32.mxu0 0.0
    %3962 = vmatmul.mubr.f32.gmra.mxu0 %v1055
    %v3963 = vpop.f32.mrf.mxu0
    %v3964 = vadd.f32 0.0, %v3963
    %v3965 = vpop.f32.mrf.mxu0
    %3966 = vmatprep.mubr.f32.mxu0 0.0
    %3967 = vmatmul.mubr.f32.gmra.mxu0 %v1057
    %v3968 = vpop.f32.mrf.mxu0
    %v3969 = vadd.f32 0.0, %v3968
    %v3970 = vpop.f32.mrf.mxu0
    %3971 = vmatprep.mubr.f32.mxu0 0.0
    %3972 = vmatmul.mubr.f32.gmra.mxu0 %v1059
    %v3973 = vpop.f32.mrf.mxu0
    %v3974 = vadd.f32 0.0, %v3973
    %v3975 = vpop.f32.mrf.mxu0
    %3976 = vmatprep.mubr.f32.mxu0 0.0
    %3977 = vmatmul.mubr.f32.gmra.mxu0 %v1061
    %v3978 = vpop.f32.mrf.mxu0
    %v3979 = vadd.f32 0.0, %v3978
    %v3980 = vpop.f32.mrf.mxu0
    %3981 = vmatprep.mubr.f32.mxu0 0.0
    %3982 = vmatmul.mubr.f32.gmra.mxu0 %v1063
    %v3983 = vpop.f32.mrf.mxu0
    %v3984 = vadd.f32 0.0, %v3983
    %v3985 = vpop.f32.mrf.mxu0
    %3986 = vmatprep.mubr.f32.mxu0 0.0
    %3987 = vmatmul.mubr.f32.gmra.mxu0 %v1065
    %v3988 = vpop.f32.mrf.mxu0
    %v3989 = vadd.f32 0.0, %v3988
    %v3990 = vpop.f32.mrf.mxu0
    %3991 = vmatprep.mubr.f32.mxu0 0.0
    %3992 = vmatmul.mubr.f32.gmra.mxu0 %v2207
    %v3993 = vpop.f32.mrf.mxu0
    %v3994 = vadd.f32 0.0, %v3993
    %v3995 = vpop.f32.mrf.mxu0
    %3996 = vmatprep.mubr.f32.mxu0 0.0
    %3997 = vmatmul.mubr.f32.gmra.mxu0 %v2210
    %v3998 = vpop.f32.mrf.mxu0
    %v3999 = vadd.f32 0.0, %v3998
    %v4000 = vpop.f32.mrf.mxu0
    %4001 = vmatprep.mubr.f32.mxu0 0.0
    %4002 = vmatmul.mubr.f32.gmra.mxu0 %v3619
    %v4003 = vpop.f32.mrf.mxu0
    %v4004 = vadd.f32 0.0, %v4003
    %v4005 = vpop.f32.mrf.mxu0
    %4006 = vmatprep.mubr.f32.mxu0 0.0
    %4007 = vmatmul.mubr.f32.gmra.mxu0 %v3622
    %v4008 = vpop.f32.mrf.mxu0
    %v4009 = vadd.f32 0.0, %v4008
    %v4010 = vpop.f32.mrf.mxu0
    %4011 = vdwg.mxu0
    %v4012 = vadd.f32 %v3546, %v3694
    %v4013 = vadd.f32 %v3547, %v3699
    %v4014 = vadd.f32 %v3548, %v3704
    %v4015 = vadd.f32 %v3549, %v3709
    %v4016 = vadd.f32 %v3550, %v3714
    %v4017 = vadd.f32 %v3551, %v3719
    %v4018 = vadd.f32 %v3552, %v3724
    %v4019 = vadd.f32 %v3553, %v3729
    %v4020 = vadd.f32 %v3554, %v3734
    %v4021 = vadd.f32 %v3555, %v3739
    %v4022 = vadd.f32 %v3556, %v3744
    %v4023 = vadd.f32 %v3557, %v3749
    %v4024 = vadd.f32 %v3558, %v3754
    %v4025 = vadd.f32 %v3559, %v3759
    %v4026 = vadd.f32 %v3560, %v3764
    %v4027 = vadd.f32 %v3561, %v3769
    %v4028 = vadd.f32 %v3562, %v3774
    %v4029 = vadd.f32 %v3563, %v3779
    %v4030 = vadd.f32 %v3564, %v3784
    %v4031 = vadd.f32 %v3565, %v3789
    %v4032 = vadd.f32 %v3566, %v3794
    %v4033 = vadd.f32 %v3567, %v3799
    %v4034 = vadd.f32 %v3568, %v3804
    %v4035 = vadd.f32 %v3569, %v3809
    %v4036 = vadd.f32 %v3570, %v3814
    %v4037 = vadd.f32 %v3571, %v3819
    %v4038 = vadd.f32 %v3572, %v3824
    %v4039 = vadd.f32 %v3573, %v3829
    %v4040 = vadd.f32 %v3574, %v3834
    %v4041 = vadd.f32 %v3575, %v3839
    %v4042 = vadd.f32 %v3576, %v3844
    %v4043 = vadd.f32 %v3577, %v3849
    %v4044 = vadd.f32 %v3578, %v3854
    %v4045 = vadd.f32 %v3579, %v3859
    %v4046 = vadd.f32 %v3580, %v3864
    %v4047 = vadd.f32 %v3581, %v3869
    %v4048 = vadd.f32 %v3582, %v3874
    %v4049 = vadd.f32 %v3583, %v3879
    %v4050 = vadd.f32 %v3584, %v3884
    %v4051 = vadd.f32 %v3585, %v3889
    %v4052 = vadd.f32 %v3586, %v3894
    %v4053 = vadd.f32 %v3587, %v3899
    %v4054 = vadd.f32 %v3588, %v3904
    %v4055 = vadd.f32 %v3589, %v3909
    %v4056 = vadd.f32 %v3590, %v3914
    %v4057 = vadd.f32 %v3591, %v3919
    %v4058 = vadd.f32 %v3592, %v3924
    %v4059 = vadd.f32 %v3593, %v3929
    %v4060 = vadd.f32 %v3594, %v3934
    %v4061 = vadd.f32 %v3595, %v3939
    %v4062 = vadd.f32 %v3596, %v3944
    %v4063 = vadd.f32 %v3597, %v3949
    %v4064 = vadd.f32 %v3598, %v3954
    %v4065 = vadd.f32 %v3599, %v3959
    %v4066 = vadd.f32 %v3600, %v3964
    %v4067 = vadd.f32 %v3601, %v3969
    %v4068 = vadd.f32 %v3602, %v3974
    %v4069 = vadd.f32 %v3603, %v3979
    %v4070 = vadd.f32 %v3604, %v3984
    %v4071 = vadd.f32 %v3605, %v3989
    %v4072 = vadd.f32 %v3606, %v3994
    %v4073 = vadd.f32 %v3607, %v3999
    %v4074 = vadd.f32 %v3608, %v4004
    %v4075 = vadd.f32 %v3609, %v4009
    %v4078 = vrot.slane %v104, 1
    %v4079 = vrot.slane %v105, 1
    %v4080 = vsel %vm258, %v4078, %v4079
    %v4081 = vrot.slane %v106, 1
    %v4082 = vsel %vm258, %v4079, %v4081
    %v4083 = vrot.slane %v158, 1
    %v4084 = vrot.slane %v159, 1
    %v4085 = vsel %vm258, %v4083, %v4084
    %v4086 = vrot.slane %v160, 1
    %v4087 = vsel %vm258, %v4084, %v4086
    %s4088 = scalar_lea.vmem %s1, 28
    %v4089 = vld [vmem:[%s4088] sm:$0xf]
    %v4090 = vsel %vm421, %v4080, 0
    %v4092 = vsel %vm421, %v4082, 0
    %v4094 = vsel %vm421, %v4085, 0
    %v4096 = vsel %vm421, %v4087, 0
    %v4099 = vsel %vm550, %v4089, 0
    %4101 = vmatprep.subr.mxu0 0.0
    %4102 = vmatpush1.msra.mxu0 0.0
    %4103 = vmatprep.subr.mxu0 0.0
    %4104 = vmatpush1.msra.mxu0 0.0
    %4105 = vmatprep.subr.mxu0 0.0
    %4106 = vmatpush1.msra.mxu0 0.0
    %4107 = vmatprep.subr.mxu0 0.0
    %4108 = vmatpush1.msra.mxu0 0.0
    %4109 = vmatprep.subr.mxu0 0.0
    %4110 = vmatpush1.msra.mxu0 0.0
    %4111 = vmatprep.subr.mxu0 0.0
    %4112 = vmatpush1.msra.mxu0 0.0
    %4113 = vmatprep.subr.mxu0 0.0
    %4114 = vmatpush1.msra.mxu0 0.0
    %4115 = vmatprep.subr.mxu0 0.0
    %4116 = vmatpush1.msra.mxu0 0.0
    %4117 = vmatprep.subr.mxu0 0.0
    %4118 = vmatpush1.msra.mxu0 0.0
    %4119 = vmatprep.subr.mxu0 0.0
    %4120 = vmatpush1.msra.mxu0 0.0
    %4121 = vmatprep.subr.mxu0 0.0
    %4122 = vmatpush1.msra.mxu0 0.0
    %4123 = vmatprep.subr.mxu0 0.0
    %4124 = vmatpush1.msra.mxu0 0.0
    %4125 = vmatprep.subr.mxu0 0.0
    %4126 = vmatpush1.msra.mxu0 0.0
    %4127 = vmatprep.subr.mxu0 0.0
    %4128 = vmatpush1.msra.mxu0 0.0
    %4129 = vmatprep.subr.mxu0 0.0
    %4130 = vmatpush1.msra.mxu0 0.0
    %4131 = vmatprep.subr.mxu0 0.0
    %4132 = vmatpush1.msra.mxu0 %v4099
    %4133 = vmatprep.subr.mxu0 0.0
    %4134 = vmatpush2.msra.mxu0 0.0
    %4135 = vmatprep.subr.mxu0 0.0
    %4136 = vmatpush2.msra.mxu0 0.0
    %4137 = vmatprep.subr.mxu0 0.0
    %4138 = vmatpush2.msra.mxu0 0.0
    %4139 = vmatprep.subr.mxu0 0.0
    %4140 = vmatpush2.msra.mxu0 0.0
    %4141 = vmatprep.subr.mxu0 0.0
    %4142 = vmatpush2.msra.mxu0 0.0
    %4143 = vmatprep.subr.mxu0 0.0
    %4144 = vmatpush2.msra.mxu0 0.0
    %4145 = vmatprep.subr.mxu0 0.0
    %4146 = vmatpush2.msra.mxu0 0.0
    %4147 = vmatprep.subr.mxu0 0.0
    %4148 = vmatpush2.msra.mxu0 0.0
    %4149 = vmatprep.subr.mxu0 0.0
    %4150 = vmatpush2.msra.mxu0 0.0
    %4151 = vmatprep.subr.mxu0 0.0
    %4152 = vmatpush2.msra.mxu0 0.0
    %4153 = vmatprep.subr.mxu0 0.0
    %4154 = vmatpush2.msra.mxu0 0.0
    %4155 = vmatprep.subr.mxu0 0.0
    %4156 = vmatpush2.msra.mxu0 0.0
    %4157 = vmatprep.subr.mxu0 0.0
    %4158 = vmatpush2.msra.mxu0 0.0
    %4159 = vmatprep.subr.mxu0 0.0
    %4160 = vmatpush2.msra.mxu0 0.0
    %4161 = vmatprep.subr.mxu0 0.0
    %4162 = vmatpush2.msra.mxu0 0.0
    %4163 = vmatprep.subr.mxu0 0.0
    %4164 = vmatpush2.msra.mxu0 0.0
    %4165 = vmatprep.mubr.f32.mxu0 0.0
    %4166 = vmatmul.mubr.f32.gmra.mxu0 %v430
    %v4167 = vpop.f32.mrf.mxu0
    %v4168 = vadd.f32 0.0, %v4167
    %v4169 = vpop.f32.mrf.mxu0
    %4170 = vmatprep.mubr.f32.mxu0 0.0
    %4171 = vmatmul.mubr.f32.gmra.mxu0 %v432
    %v4172 = vpop.f32.mrf.mxu0
    %v4173 = vadd.f32 0.0, %v4172
    %v4174 = vpop.f32.mrf.mxu0
    %4175 = vmatprep.mubr.f32.mxu0 0.0
    %4176 = vmatmul.mubr.f32.gmra.mxu0 %v434
    %v4177 = vpop.f32.mrf.mxu0
    %v4178 = vadd.f32 0.0, %v4177
    %v4179 = vpop.f32.mrf.mxu0
    %4180 = vmatprep.mubr.f32.mxu0 0.0
    %4181 = vmatmul.mubr.f32.gmra.mxu0 %v436
    %v4182 = vpop.f32.mrf.mxu0
    %v4183 = vadd.f32 0.0, %v4182
    %v4184 = vpop.f32.mrf.mxu0
    %4185 = vmatprep.mubr.f32.mxu0 0.0
    %4186 = vmatmul.mubr.f32.gmra.mxu0 %v438
    %v4187 = vpop.f32.mrf.mxu0
    %v4188 = vadd.f32 0.0, %v4187
    %v4189 = vpop.f32.mrf.mxu0
    %4190 = vmatprep.mubr.f32.mxu0 0.0
    %4191 = vmatmul.mubr.f32.gmra.mxu0 %v440
    %v4192 = vpop.f32.mrf.mxu0
    %v4193 = vadd.f32 0.0, %v4192
    %v4194 = vpop.f32.mrf.mxu0
    %4195 = vmatprep.mubr.f32.mxu0 0.0
    %4196 = vmatmul.mubr.f32.gmra.mxu0 %v442
    %v4197 = vpop.f32.mrf.mxu0
    %v4198 = vadd.f32 0.0, %v4197
    %v4199 = vpop.f32.mrf.mxu0
    %4200 = vmatprep.mubr.f32.mxu0 0.0
    %4201 = vmatmul.mubr.f32.gmra.mxu0 %v444
    %v4202 = vpop.f32.mrf.mxu0
    %v4203 = vadd.f32 0.0, %v4202
    %v4204 = vpop.f32.mrf.mxu0
    %4205 = vmatprep.mubr.f32.mxu0 0.0
    %4206 = vmatmul.mubr.f32.gmra.mxu0 %v446
    %v4207 = vpop.f32.mrf.mxu0
    %v4208 = vadd.f32 0.0, %v4207
    %v4209 = vpop.f32.mrf.mxu0
    %4210 = vmatprep.mubr.f32.mxu0 0.0
    %4211 = vmatmul.mubr.f32.gmra.mxu0 %v448
    %v4212 = vpop.f32.mrf.mxu0
    %v4213 = vadd.f32 0.0, %v4212
    %v4214 = vpop.f32.mrf.mxu0
    %4215 = vmatprep.mubr.f32.mxu0 0.0
    %4216 = vmatmul.mubr.f32.gmra.mxu0 %v450
    %v4217 = vpop.f32.mrf.mxu0
    %v4218 = vadd.f32 0.0, %v4217
    %v4219 = vpop.f32.mrf.mxu0
    %4220 = vmatprep.mubr.f32.mxu0 0.0
    %4221 = vmatmul.mubr.f32.gmra.mxu0 %v452
    %v4222 = vpop.f32.mrf.mxu0
    %v4223 = vadd.f32 0.0, %v4222
    %v4224 = vpop.f32.mrf.mxu0
    %4225 = vmatprep.mubr.f32.mxu0 0.0
    %4226 = vmatmul.mubr.f32.gmra.mxu0 %v454
    %v4227 = vpop.f32.mrf.mxu0
    %v4228 = vadd.f32 0.0, %v4227
    %v4229 = vpop.f32.mrf.mxu0
    %4230 = vmatprep.mubr.f32.mxu0 0.0
    %4231 = vmatmul.mubr.f32.gmra.mxu0 %v456
    %v4232 = vpop.f32.mrf.mxu0
    %v4233 = vadd.f32 0.0, %v4232
    %v4234 = vpop.f32.mrf.mxu0
    %4235 = vmatprep.mubr.f32.mxu0 0.0
    %4236 = vmatmul.mubr.f32.gmra.mxu0 %v458
    %v4237 = vpop.f32.mrf.mxu0
    %v4238 = vadd.f32 0.0, %v4237
    %v4239 = vpop.f32.mrf.mxu0
    %4240 = vmatprep.mubr.f32.mxu0 0.0
    %4241 = vmatmul.mubr.f32.gmra.mxu0 %v460
    %v4242 = vpop.f32.mrf.mxu0
    %v4243 = vadd.f32 0.0, %v4242
    %v4244 = vpop.f32.mrf.mxu0
    %4245 = vmatprep.mubr.f32.mxu0 0.0
    %4246 = vmatmul.mubr.f32.gmra.mxu0 %v462
    %v4247 = vpop.f32.mrf.mxu0
    %v4248 = vadd.f32 0.0, %v4247
    %v4249 = vpop.f32.mrf.mxu0
    %4250 = vmatprep.mubr.f32.mxu0 0.0
    %4251 = vmatmul.mubr.f32.gmra.mxu0 %v464
    %v4252 = vpop.f32.mrf.mxu0
    %v4253 = vadd.f32 0.0, %v4252
    %v4254 = vpop.f32.mrf.mxu0
    %4255 = vmatprep.mubr.f32.mxu0 0.0
    %4256 = vmatmul.mubr.f32.gmra.mxu0 %v466
    %v4257 = vpop.f32.mrf.mxu0
    %v4258 = vadd.f32 0.0, %v4257
    %v4259 = vpop.f32.mrf.mxu0
    %4260 = vmatprep.mubr.f32.mxu0 0.0
    %4261 = vmatmul.mubr.f32.gmra.mxu0 %v468
    %v4262 = vpop.f32.mrf.mxu0
    %v4263 = vadd.f32 0.0, %v4262
    %v4264 = vpop.f32.mrf.mxu0
    %4265 = vmatprep.mubr.f32.mxu0 0.0
    %4266 = vmatmul.mubr.f32.gmra.mxu0 %v470
    %v4267 = vpop.f32.mrf.mxu0
    %v4268 = vadd.f32 0.0, %v4267
    %v4269 = vpop.f32.mrf.mxu0
    %4270 = vmatprep.mubr.f32.mxu0 0.0
    %4271 = vmatmul.mubr.f32.gmra.mxu0 %v472
    %v4272 = vpop.f32.mrf.mxu0
    %v4273 = vadd.f32 0.0, %v4272
    %v4274 = vpop.f32.mrf.mxu0
    %4275 = vmatprep.mubr.f32.mxu0 0.0
    %4276 = vmatmul.mubr.f32.gmra.mxu0 %v474
    %v4277 = vpop.f32.mrf.mxu0
    %v4278 = vadd.f32 0.0, %v4277
    %v4279 = vpop.f32.mrf.mxu0
    %4280 = vmatprep.mubr.f32.mxu0 0.0
    %4281 = vmatmul.mubr.f32.gmra.mxu0 %v476
    %v4282 = vpop.f32.mrf.mxu0
    %v4283 = vadd.f32 0.0, %v4282
    %v4284 = vpop.f32.mrf.mxu0
    %4285 = vmatprep.mubr.f32.mxu0 0.0
    %4286 = vmatmul.mubr.f32.gmra.mxu0 %v478
    %v4287 = vpop.f32.mrf.mxu0
    %v4288 = vadd.f32 0.0, %v4287
    %v4289 = vpop.f32.mrf.mxu0
    %4290 = vmatprep.mubr.f32.mxu0 0.0
    %4291 = vmatmul.mubr.f32.gmra.mxu0 %v480
    %v4292 = vpop.f32.mrf.mxu0
    %v4293 = vadd.f32 0.0, %v4292
    %v4294 = vpop.f32.mrf.mxu0
    %4295 = vmatprep.mubr.f32.mxu0 0.0
    %4296 = vmatmul.mubr.f32.gmra.mxu0 %v482
    %v4297 = vpop.f32.mrf.mxu0
    %v4298 = vadd.f32 0.0, %v4297
    %v4299 = vpop.f32.mrf.mxu0
    %4300 = vmatprep.mubr.f32.mxu0 0.0
    %4301 = vmatmul.mubr.f32.gmra.mxu0 %v484
    %v4302 = vpop.f32.mrf.mxu0
    %v4303 = vadd.f32 0.0, %v4302
    %v4304 = vpop.f32.mrf.mxu0
    %4305 = vmatprep.mubr.f32.mxu0 0.0
    %4306 = vmatmul.mubr.f32.gmra.mxu0 %v2678
    %v4307 = vpop.f32.mrf.mxu0
    %v4308 = vadd.f32 0.0, %v4307
    %v4309 = vpop.f32.mrf.mxu0
    %4310 = vmatprep.mubr.f32.mxu0 0.0
    %4311 = vmatmul.mubr.f32.gmra.mxu0 %v2680
    %v4312 = vpop.f32.mrf.mxu0
    %v4313 = vadd.f32 0.0, %v4312
    %v4314 = vpop.f32.mrf.mxu0
    %4315 = vmatprep.mubr.f32.mxu0 0.0
    %4316 = vmatmul.mubr.f32.gmra.mxu0 %v4090
    %v4317 = vpop.f32.mrf.mxu0
    %v4318 = vadd.f32 0.0, %v4317
    %v4319 = vpop.f32.mrf.mxu0
    %4320 = vmatprep.mubr.f32.mxu0 0.0
    %4321 = vmatmul.mubr.f32.gmra.mxu0 %v4092
    %v4322 = vpop.f32.mrf.mxu0
    %v4323 = vadd.f32 0.0, %v4322
    %v4324 = vpop.f32.mrf.mxu0
    %4325 = vmatprep.mubr.f32.mxu0 0.0
    %4326 = vmatmul.mubr.f32.gmra.mxu0 %v494
    %v4327 = vpop.f32.mrf.mxu0
    %v4328 = vadd.f32 0.0, %v4327
    %v4329 = vpop.f32.mrf.mxu0
    %4330 = vmatprep.mubr.f32.mxu0 0.0
    %4331 = vmatmul.mubr.f32.gmra.mxu0 %v496
    %v4332 = vpop.f32.mrf.mxu0
    %v4333 = vadd.f32 0.0, %v4332
    %v4334 = vpop.f32.mrf.mxu0
    %4335 = vmatprep.mubr.f32.mxu0 0.0
    %4336 = vmatmul.mubr.f32.gmra.mxu0 %v498
    %v4337 = vpop.f32.mrf.mxu0
    %v4338 = vadd.f32 0.0, %v4337
    %v4339 = vpop.f32.mrf.mxu0
    %4340 = vmatprep.mubr.f32.mxu0 0.0
    %4341 = vmatmul.mubr.f32.gmra.mxu0 %v500
    %v4342 = vpop.f32.mrf.mxu0
    %v4343 = vadd.f32 0.0, %v4342
    %v4344 = vpop.f32.mrf.mxu0
    %4345 = vmatprep.mubr.f32.mxu0 0.0
    %4346 = vmatmul.mubr.f32.gmra.mxu0 %v502
    %v4347 = vpop.f32.mrf.mxu0
    %v4348 = vadd.f32 0.0, %v4347
    %v4349 = vpop.f32.mrf.mxu0
    %4350 = vmatprep.mubr.f32.mxu0 0.0
    %4351 = vmatmul.mubr.f32.gmra.mxu0 %v504
    %v4352 = vpop.f32.mrf.mxu0
    %v4353 = vadd.f32 0.0, %v4352
    %v4354 = vpop.f32.mrf.mxu0
    %4355 = vmatprep.mubr.f32.mxu0 0.0
    %4356 = vmatmul.mubr.f32.gmra.mxu0 %v506
    %v4357 = vpop.f32.mrf.mxu0
    %v4358 = vadd.f32 0.0, %v4357
    %v4359 = vpop.f32.mrf.mxu0
    %4360 = vmatprep.mubr.f32.mxu0 0.0
    %4361 = vmatmul.mubr.f32.gmra.mxu0 %v508
    %v4362 = vpop.f32.mrf.mxu0
    %v4363 = vadd.f32 0.0, %v4362
    %v4364 = vpop.f32.mrf.mxu0
    %4365 = vmatprep.mubr.f32.mxu0 0.0
    %4366 = vmatmul.mubr.f32.gmra.mxu0 %v510
    %v4367 = vpop.f32.mrf.mxu0
    %v4368 = vadd.f32 0.0, %v4367
    %v4369 = vpop.f32.mrf.mxu0
    %4370 = vmatprep.mubr.f32.mxu0 0.0
    %4371 = vmatmul.mubr.f32.gmra.mxu0 %v512
    %v4372 = vpop.f32.mrf.mxu0
    %v4373 = vadd.f32 0.0, %v4372
    %v4374 = vpop.f32.mrf.mxu0
    %4375 = vmatprep.mubr.f32.mxu0 0.0
    %4376 = vmatmul.mubr.f32.gmra.mxu0 %v514
    %v4377 = vpop.f32.mrf.mxu0
    %v4378 = vadd.f32 0.0, %v4377
    %v4379 = vpop.f32.mrf.mxu0
    %4380 = vmatprep.mubr.f32.mxu0 0.0
    %4381 = vmatmul.mubr.f32.gmra.mxu0 %v516
    %v4382 = vpop.f32.mrf.mxu0
    %v4383 = vadd.f32 0.0, %v4382
    %v4384 = vpop.f32.mrf.mxu0
    %4385 = vmatprep.mubr.f32.mxu0 0.0
    %4386 = vmatmul.mubr.f32.gmra.mxu0 %v518
    %v4387 = vpop.f32.mrf.mxu0
    %v4388 = vadd.f32 0.0, %v4387
    %v4389 = vpop.f32.mrf.mxu0
    %4390 = vmatprep.mubr.f32.mxu0 0.0
    %4391 = vmatmul.mubr.f32.gmra.mxu0 %v520
    %v4392 = vpop.f32.mrf.mxu0
    %v4393 = vadd.f32 0.0, %v4392
    %v4394 = vpop.f32.mrf.mxu0
    %4395 = vmatprep.mubr.f32.mxu0 0.0
    %4396 = vmatmul.mubr.f32.gmra.mxu0 %v522
    %v4397 = vpop.f32.mrf.mxu0
    %v4398 = vadd.f32 0.0, %v4397
    %v4399 = vpop.f32.mrf.mxu0
    %4400 = vmatprep.mubr.f32.mxu0 0.0
    %4401 = vmatmul.mubr.f32.gmra.mxu0 %v524
    %v4402 = vpop.f32.mrf.mxu0
    %v4403 = vadd.f32 0.0, %v4402
    %v4404 = vpop.f32.mrf.mxu0
    %4405 = vmatprep.mubr.f32.mxu0 0.0
    %4406 = vmatmul.mubr.f32.gmra.mxu0 %v526
    %v4407 = vpop.f32.mrf.mxu0
    %v4408 = vadd.f32 0.0, %v4407
    %v4409 = vpop.f32.mrf.mxu0
    %4410 = vmatprep.mubr.f32.mxu0 0.0
    %4411 = vmatmul.mubr.f32.gmra.mxu0 %v528
    %v4412 = vpop.f32.mrf.mxu0
    %v4413 = vadd.f32 0.0, %v4412
    %v4414 = vpop.f32.mrf.mxu0
    %4415 = vmatprep.mubr.f32.mxu0 0.0
    %4416 = vmatmul.mubr.f32.gmra.mxu0 %v530
    %v4417 = vpop.f32.mrf.mxu0
    %v4418 = vadd.f32 0.0, %v4417
    %v4419 = vpop.f32.mrf.mxu0
    %4420 = vmatprep.mubr.f32.mxu0 0.0
    %4421 = vmatmul.mubr.f32.gmra.mxu0 %v532
    %v4422 = vpop.f32.mrf.mxu0
    %v4423 = vadd.f32 0.0, %v4422
    %v4424 = vpop.f32.mrf.mxu0
    %4425 = vmatprep.mubr.f32.mxu0 0.0
    %4426 = vmatmul.mubr.f32.gmra.mxu0 %v534
    %v4427 = vpop.f32.mrf.mxu0
    %v4428 = vadd.f32 0.0, %v4427
    %v4429 = vpop.f32.mrf.mxu0
    %4430 = vmatprep.mubr.f32.mxu0 0.0
    %4431 = vmatmul.mubr.f32.gmra.mxu0 %v536
    %v4432 = vpop.f32.mrf.mxu0
    %v4433 = vadd.f32 0.0, %v4432
    %v4434 = vpop.f32.mrf.mxu0
    %4435 = vmatprep.mubr.f32.mxu0 0.0
    %4436 = vmatmul.mubr.f32.gmra.mxu0 %v538
    %v4437 = vpop.f32.mrf.mxu0
    %v4438 = vadd.f32 0.0, %v4437
    %v4439 = vpop.f32.mrf.mxu0
    %4440 = vmatprep.mubr.f32.mxu0 0.0
    %4441 = vmatmul.mubr.f32.gmra.mxu0 %v540
    %v4442 = vpop.f32.mrf.mxu0
    %v4443 = vadd.f32 0.0, %v4442
    %v4444 = vpop.f32.mrf.mxu0
    %4445 = vmatprep.mubr.f32.mxu0 0.0
    %4446 = vmatmul.mubr.f32.gmra.mxu0 %v542
    %v4447 = vpop.f32.mrf.mxu0
    %v4448 = vadd.f32 0.0, %v4447
    %v4449 = vpop.f32.mrf.mxu0
    %4450 = vmatprep.mubr.f32.mxu0 0.0
    %4451 = vmatmul.mubr.f32.gmra.mxu0 %v544
    %v4452 = vpop.f32.mrf.mxu0
    %v4453 = vadd.f32 0.0, %v4452
    %v4454 = vpop.f32.mrf.mxu0
    %4455 = vmatprep.mubr.f32.mxu0 0.0
    %4456 = vmatmul.mubr.f32.gmra.mxu0 %v546
    %v4457 = vpop.f32.mrf.mxu0
    %v4458 = vadd.f32 0.0, %v4457
    %v4459 = vpop.f32.mrf.mxu0
    %4460 = vmatprep.mubr.f32.mxu0 0.0
    %4461 = vmatmul.mubr.f32.gmra.mxu0 %v548
    %v4462 = vpop.f32.mrf.mxu0
    %v4463 = vadd.f32 0.0, %v4462
    %v4464 = vpop.f32.mrf.mxu0
    %4465 = vmatprep.mubr.f32.mxu0 0.0
    %4466 = vmatmul.mubr.f32.gmra.mxu0 %v2682
    %v4467 = vpop.f32.mrf.mxu0
    %v4468 = vadd.f32 0.0, %v4467
    %v4469 = vpop.f32.mrf.mxu0
    %4470 = vmatprep.mubr.f32.mxu0 0.0
    %4471 = vmatmul.mubr.f32.gmra.mxu0 %v2684
    %v4472 = vpop.f32.mrf.mxu0
    %v4473 = vadd.f32 0.0, %v4472
    %v4474 = vpop.f32.mrf.mxu0
    %4475 = vmatprep.mubr.f32.mxu0 0.0
    %4476 = vmatmul.mubr.f32.gmra.mxu0 %v4094
    %v4477 = vpop.f32.mrf.mxu0
    %v4478 = vadd.f32 0.0, %v4477
    %v4479 = vpop.f32.mrf.mxu0
    %4480 = vmatprep.mubr.f32.mxu0 0.0
    %4481 = vmatmul.mubr.f32.gmra.mxu0 %v4096
    %v4482 = vpop.f32.mrf.mxu0
    %v4483 = vadd.f32 0.0, %v4482
    %v4484 = vpop.f32.mrf.mxu0
    %4485 = vdwg.mxu0
    %v4486 = vadd.f32 %v4012, %v4168
    %v4487 = vadd.f32 %v4013, %v4173
    %v4488 = vadd.f32 %v4014, %v4178
    %v4489 = vadd.f32 %v4015, %v4183
    %v4490 = vadd.f32 %v4016, %v4188
    %v4491 = vadd.f32 %v4017, %v4193
    %v4492 = vadd.f32 %v4018, %v4198
    %v4493 = vadd.f32 %v4019, %v4203
    %v4494 = vadd.f32 %v4020, %v4208
    %v4495 = vadd.f32 %v4021, %v4213
    %v4496 = vadd.f32 %v4022, %v4218
    %v4497 = vadd.f32 %v4023, %v4223
    %v4498 = vadd.f32 %v4024, %v4228
    %v4499 = vadd.f32 %v4025, %v4233
    %v4500 = vadd.f32 %v4026, %v4238
    %v4501 = vadd.f32 %v4027, %v4243
    %v4502 = vadd.f32 %v4028, %v4248
    %v4503 = vadd.f32 %v4029, %v4253
    %v4504 = vadd.f32 %v4030, %v4258
    %v4505 = vadd.f32 %v4031, %v4263
    %v4506 = vadd.f32 %v4032, %v4268
    %v4507 = vadd.f32 %v4033, %v4273
    %v4508 = vadd.f32 %v4034, %v4278
    %v4509 = vadd.f32 %v4035, %v4283
    %v4510 = vadd.f32 %v4036, %v4288
    %v4511 = vadd.f32 %v4037, %v4293
    %v4512 = vadd.f32 %v4038, %v4298
    %v4513 = vadd.f32 %v4039, %v4303
    %v4514 = vadd.f32 %v4040, %v4308
    %v4515 = vadd.f32 %v4041, %v4313
    %v4516 = vadd.f32 %v4042, %v4318
    %v4517 = vadd.f32 %v4043, %v4323
    %v4518 = vadd.f32 %v4044, %v4328
    %v4519 = vadd.f32 %v4045, %v4333
    %v4520 = vadd.f32 %v4046, %v4338
    %v4521 = vadd.f32 %v4047, %v4343
    %v4522 = vadd.f32 %v4048, %v4348
    %v4523 = vadd.f32 %v4049, %v4353
    %v4524 = vadd.f32 %v4050, %v4358
    %v4525 = vadd.f32 %v4051, %v4363
    %v4526 = vadd.f32 %v4052, %v4368
    %v4527 = vadd.f32 %v4053, %v4373
    %v4528 = vadd.f32 %v4054, %v4378
    %v4529 = vadd.f32 %v4055, %v4383
    %v4530 = vadd.f32 %v4056, %v4388
    %v4531 = vadd.f32 %v4057, %v4393
    %v4532 = vadd.f32 %v4058, %v4398
    %v4533 = vadd.f32 %v4059, %v4403
    %v4534 = vadd.f32 %v4060, %v4408
    %v4535 = vadd.f32 %v4061, %v4413
    %v4536 = vadd.f32 %v4062, %v4418
    %v4537 = vadd.f32 %v4063, %v4423
    %v4538 = vadd.f32 %v4064, %v4428
    %v4539 = vadd.f32 %v4065, %v4433
    %v4540 = vadd.f32 %v4066, %v4438
    %v4541 = vadd.f32 %v4067, %v4443
    %v4542 = vadd.f32 %v4068, %v4448
    %v4543 = vadd.f32 %v4069, %v4453
    %v4544 = vadd.f32 %v4070, %v4458
    %v4545 = vadd.f32 %v4071, %v4463
    %v4546 = vadd.f32 %v4072, %v4468
    %v4547 = vadd.f32 %v4073, %v4473
    %v4548 = vadd.f32 %v4074, %v4478
    %v4549 = vadd.f32 %v4075, %v4483
    %v4550 = vrot.slane %v104, 2
    %v4551 = vrot.slane %v105, 2
    %v4552 = vsel %vm1455, %v4550, %v4551
    %v4553 = vrot.slane %v106, 2
    %v4554 = vsel %vm1455, %v4551, %v4553
    %v4555 = vrot.slane %v158, 2
    %v4556 = vrot.slane %v159, 2
    %v4557 = vsel %vm1455, %v4555, %v4556
    %v4558 = vrot.slane %v160, 2
    %v4559 = vsel %vm1455, %v4556, %v4558
    %s4560 = scalar_lea.vmem %s1, 32
    %v4561 = vld [vmem:[%s4560] sm:$0xf]
    %v4562 = vsel %vm421, %v4552, 0
    %v4564 = vsel %vm421, %v4554, 0
    %v4566 = vsel %vm421, %v4557, 0
    %v4568 = vsel %vm421, %v4559, 0
    %v4571 = vsel %vm550, %v4561, 0
    %4573 = vmatprep.subr.mxu0 0.0
    %4574 = vmatpush1.msra.mxu0 0.0
    %4575 = vmatprep.subr.mxu0 0.0
    %4576 = vmatpush1.msra.mxu0 0.0
    %4577 = vmatprep.subr.mxu0 0.0
    %4578 = vmatpush1.msra.mxu0 0.0
    %4579 = vmatprep.subr.mxu0 0.0
    %4580 = vmatpush1.msra.mxu0 0.0
    %4581 = vmatprep.subr.mxu0 0.0
    %4582 = vmatpush1.msra.mxu0 0.0
    %4583 = vmatprep.subr.mxu0 0.0
    %4584 = vmatpush1.msra.mxu0 0.0
    %4585 = vmatprep.subr.mxu0 0.0
    %4586 = vmatpush1.msra.mxu0 0.0
    %4587 = vmatprep.subr.mxu0 0.0
    %4588 = vmatpush1.msra.mxu0 0.0
    %4589 = vmatprep.subr.mxu0 0.0
    %4590 = vmatpush1.msra.mxu0 0.0
    %4591 = vmatprep.subr.mxu0 0.0
    %4592 = vmatpush1.msra.mxu0 0.0
    %4593 = vmatprep.subr.mxu0 0.0
    %4594 = vmatpush1.msra.mxu0 0.0
    %4595 = vmatprep.subr.mxu0 0.0
    %4596 = vmatpush1.msra.mxu0 0.0
    %4597 = vmatprep.subr.mxu0 0.0
    %4598 = vmatpush1.msra.mxu0 0.0
    %4599 = vmatprep.subr.mxu0 0.0
    %4600 = vmatpush1.msra.mxu0 0.0
    %4601 = vmatprep.subr.mxu0 0.0
    %4602 = vmatpush1.msra.mxu0 0.0
    %4603 = vmatprep.subr.mxu0 0.0
    %4604 = vmatpush1.msra.mxu0 %v4571
    %4605 = vmatprep.subr.mxu0 0.0
    %4606 = vmatpush2.msra.mxu0 0.0
    %4607 = vmatprep.subr.mxu0 0.0
    %4608 = vmatpush2.msra.mxu0 0.0
    %4609 = vmatprep.subr.mxu0 0.0
    %4610 = vmatpush2.msra.mxu0 0.0
    %4611 = vmatprep.subr.mxu0 0.0
    %4612 = vmatpush2.msra.mxu0 0.0
    %4613 = vmatprep.subr.mxu0 0.0
    %4614 = vmatpush2.msra.mxu0 0.0
    %4615 = vmatprep.subr.mxu0 0.0
    %4616 = vmatpush2.msra.mxu0 0.0
    %4617 = vmatprep.subr.mxu0 0.0
    %4618 = vmatpush2.msra.mxu0 0.0
    %4619 = vmatprep.subr.mxu0 0.0
    %4620 = vmatpush2.msra.mxu0 0.0
    %4621 = vmatprep.subr.mxu0 0.0
    %4622 = vmatpush2.msra.mxu0 0.0
    %4623 = vmatprep.subr.mxu0 0.0
    %4624 = vmatpush2.msra.mxu0 0.0
    %4625 = vmatprep.subr.mxu0 0.0
    %4626 = vmatpush2.msra.mxu0 0.0
    %4627 = vmatprep.subr.mxu0 0.0
    %4628 = vmatpush2.msra.mxu0 0.0
    %4629 = vmatprep.subr.mxu0 0.0
    %4630 = vmatpush2.msra.mxu0 0.0
    %4631 = vmatprep.subr.mxu0 0.0
    %4632 = vmatpush2.msra.mxu0 0.0
    %4633 = vmatprep.subr.mxu0 0.0
    %4634 = vmatpush2.msra.mxu0 0.0
    %4635 = vmatprep.subr.mxu0 0.0
    %4636 = vmatpush2.msra.mxu0 0.0
    %4637 = vmatprep.mubr.f32.mxu0 0.0
    %4638 = vmatmul.mubr.f32.gmra.mxu0 %v1626
    %v4639 = vpop.f32.mrf.mxu0
    %v4640 = vadd.f32 0.0, %v4639
    %v4641 = vpop.f32.mrf.mxu0
    %4642 = vmatprep.mubr.f32.mxu0 0.0
    %4643 = vmatmul.mubr.f32.gmra.mxu0 %v1628
    %v4644 = vpop.f32.mrf.mxu0
    %v4645 = vadd.f32 0.0, %v4644
    %v4646 = vpop.f32.mrf.mxu0
    %4647 = vmatprep.mubr.f32.mxu0 0.0
    %4648 = vmatmul.mubr.f32.gmra.mxu0 %v1630
    %v4649 = vpop.f32.mrf.mxu0
    %v4650 = vadd.f32 0.0, %v4649
    %v4651 = vpop.f32.mrf.mxu0
    %4652 = vmatprep.mubr.f32.mxu0 0.0
    %4653 = vmatmul.mubr.f32.gmra.mxu0 %v1632
    %v4654 = vpop.f32.mrf.mxu0
    %v4655 = vadd.f32 0.0, %v4654
    %v4656 = vpop.f32.mrf.mxu0
    %4657 = vmatprep.mubr.f32.mxu0 0.0
    %4658 = vmatmul.mubr.f32.gmra.mxu0 %v1634
    %v4659 = vpop.f32.mrf.mxu0
    %v4660 = vadd.f32 0.0, %v4659
    %v4661 = vpop.f32.mrf.mxu0
    %4662 = vmatprep.mubr.f32.mxu0 0.0
    %4663 = vmatmul.mubr.f32.gmra.mxu0 %v1636
    %v4664 = vpop.f32.mrf.mxu0
    %v4665 = vadd.f32 0.0, %v4664
    %v4666 = vpop.f32.mrf.mxu0
    %4667 = vmatprep.mubr.f32.mxu0 0.0
    %4668 = vmatmul.mubr.f32.gmra.mxu0 %v1638
    %v4669 = vpop.f32.mrf.mxu0
    %v4670 = vadd.f32 0.0, %v4669
    %v4671 = vpop.f32.mrf.mxu0
    %4672 = vmatprep.mubr.f32.mxu0 0.0
    %4673 = vmatmul.mubr.f32.gmra.mxu0 %v1640
    %v4674 = vpop.f32.mrf.mxu0
    %v4675 = vadd.f32 0.0, %v4674
    %v4676 = vpop.f32.mrf.mxu0
    %4677 = vmatprep.mubr.f32.mxu0 0.0
    %4678 = vmatmul.mubr.f32.gmra.mxu0 %v1642
    %v4679 = vpop.f32.mrf.mxu0
    %v4680 = vadd.f32 0.0, %v4679
    %v4681 = vpop.f32.mrf.mxu0
    %4682 = vmatprep.mubr.f32.mxu0 0.0
    %4683 = vmatmul.mubr.f32.gmra.mxu0 %v1644
    %v4684 = vpop.f32.mrf.mxu0
    %v4685 = vadd.f32 0.0, %v4684
    %v4686 = vpop.f32.mrf.mxu0
    %4687 = vmatprep.mubr.f32.mxu0 0.0
    %4688 = vmatmul.mubr.f32.gmra.mxu0 %v1646
    %v4689 = vpop.f32.mrf.mxu0
    %v4690 = vadd.f32 0.0, %v4689
    %v4691 = vpop.f32.mrf.mxu0
    %4692 = vmatprep.mubr.f32.mxu0 0.0
    %4693 = vmatmul.mubr.f32.gmra.mxu0 %v1648
    %v4694 = vpop.f32.mrf.mxu0
    %v4695 = vadd.f32 0.0, %v4694
    %v4696 = vpop.f32.mrf.mxu0
    %4697 = vmatprep.mubr.f32.mxu0 0.0
    %4698 = vmatmul.mubr.f32.gmra.mxu0 %v1650
    %v4699 = vpop.f32.mrf.mxu0
    %v4700 = vadd.f32 0.0, %v4699
    %v4701 = vpop.f32.mrf.mxu0
    %4702 = vmatprep.mubr.f32.mxu0 0.0
    %4703 = vmatmul.mubr.f32.gmra.mxu0 %v1652
    %v4704 = vpop.f32.mrf.mxu0
    %v4705 = vadd.f32 0.0, %v4704
    %v4706 = vpop.f32.mrf.mxu0
    %4707 = vmatprep.mubr.f32.mxu0 0.0
    %4708 = vmatmul.mubr.f32.gmra.mxu0 %v1654
    %v4709 = vpop.f32.mrf.mxu0
    %v4710 = vadd.f32 0.0, %v4709
    %v4711 = vpop.f32.mrf.mxu0
    %4712 = vmatprep.mubr.f32.mxu0 0.0
    %4713 = vmatmul.mubr.f32.gmra.mxu0 %v1656
    %v4714 = vpop.f32.mrf.mxu0
    %v4715 = vadd.f32 0.0, %v4714
    %v4716 = vpop.f32.mrf.mxu0
    %4717 = vmatprep.mubr.f32.mxu0 0.0
    %4718 = vmatmul.mubr.f32.gmra.mxu0 %v1658
    %v4719 = vpop.f32.mrf.mxu0
    %v4720 = vadd.f32 0.0, %v4719
    %v4721 = vpop.f32.mrf.mxu0
    %4722 = vmatprep.mubr.f32.mxu0 0.0
    %4723 = vmatmul.mubr.f32.gmra.mxu0 %v1660
    %v4724 = vpop.f32.mrf.mxu0
    %v4725 = vadd.f32 0.0, %v4724
    %v4726 = vpop.f32.mrf.mxu0
    %4727 = vmatprep.mubr.f32.mxu0 0.0
    %4728 = vmatmul.mubr.f32.gmra.mxu0 %v1662
    %v4729 = vpop.f32.mrf.mxu0
    %v4730 = vadd.f32 0.0, %v4729
    %v4731 = vpop.f32.mrf.mxu0
    %4732 = vmatprep.mubr.f32.mxu0 0.0
    %4733 = vmatmul.mubr.f32.gmra.mxu0 %v1664
    %v4734 = vpop.f32.mrf.mxu0
    %v4735 = vadd.f32 0.0, %v4734
    %v4736 = vpop.f32.mrf.mxu0
    %4737 = vmatprep.mubr.f32.mxu0 0.0
    %4738 = vmatmul.mubr.f32.gmra.mxu0 %v1666
    %v4739 = vpop.f32.mrf.mxu0
    %v4740 = vadd.f32 0.0, %v4739
    %v4741 = vpop.f32.mrf.mxu0
    %4742 = vmatprep.mubr.f32.mxu0 0.0
    %4743 = vmatmul.mubr.f32.gmra.mxu0 %v1668
    %v4744 = vpop.f32.mrf.mxu0
    %v4745 = vadd.f32 0.0, %v4744
    %v4746 = vpop.f32.mrf.mxu0
    %4747 = vmatprep.mubr.f32.mxu0 0.0
    %4748 = vmatmul.mubr.f32.gmra.mxu0 %v1670
    %v4749 = vpop.f32.mrf.mxu0
    %v4750 = vadd.f32 0.0, %v4749
    %v4751 = vpop.f32.mrf.mxu0
    %4752 = vmatprep.mubr.f32.mxu0 0.0
    %4753 = vmatmul.mubr.f32.gmra.mxu0 %v1672
    %v4754 = vpop.f32.mrf.mxu0
    %v4755 = vadd.f32 0.0, %v4754
    %v4756 = vpop.f32.mrf.mxu0
    %4757 = vmatprep.mubr.f32.mxu0 0.0
    %4758 = vmatmul.mubr.f32.gmra.mxu0 %v1674
    %v4759 = vpop.f32.mrf.mxu0
    %v4760 = vadd.f32 0.0, %v4759
    %v4761 = vpop.f32.mrf.mxu0
    %4762 = vmatprep.mubr.f32.mxu0 0.0
    %4763 = vmatmul.mubr.f32.gmra.mxu0 %v1676
    %v4764 = vpop.f32.mrf.mxu0
    %v4765 = vadd.f32 0.0, %v4764
    %v4766 = vpop.f32.mrf.mxu0
    %4767 = vmatprep.mubr.f32.mxu0 0.0
    %4768 = vmatmul.mubr.f32.gmra.mxu0 %v1678
    %v4769 = vpop.f32.mrf.mxu0
    %v4770 = vadd.f32 0.0, %v4769
    %v4771 = vpop.f32.mrf.mxu0
    %4772 = vmatprep.mubr.f32.mxu0 0.0
    %4773 = vmatmul.mubr.f32.gmra.mxu0 %v1680
    %v4774 = vpop.f32.mrf.mxu0
    %v4775 = vadd.f32 0.0, %v4774
    %v4776 = vpop.f32.mrf.mxu0
    %4777 = vmatprep.mubr.f32.mxu0 0.0
    %4778 = vmatmul.mubr.f32.gmra.mxu0 %v3150
    %v4779 = vpop.f32.mrf.mxu0
    %v4780 = vadd.f32 0.0, %v4779
    %v4781 = vpop.f32.mrf.mxu0
    %4782 = vmatprep.mubr.f32.mxu0 0.0
    %4783 = vmatmul.mubr.f32.gmra.mxu0 %v3152
    %v4784 = vpop.f32.mrf.mxu0
    %v4785 = vadd.f32 0.0, %v4784
    %v4786 = vpop.f32.mrf.mxu0
    %4787 = vmatprep.mubr.f32.mxu0 0.0
    %4788 = vmatmul.mubr.f32.gmra.mxu0 %v4562
    %v4789 = vpop.f32.mrf.mxu0
    %v4790 = vadd.f32 0.0, %v4789
    %v4791 = vpop.f32.mrf.mxu0
    %4792 = vmatprep.mubr.f32.mxu0 0.0
    %4793 = vmatmul.mubr.f32.gmra.mxu0 %v4564
    %v4794 = vpop.f32.mrf.mxu0
    %v4795 = vadd.f32 0.0, %v4794
    %v4796 = vpop.f32.mrf.mxu0
    %4797 = vmatprep.mubr.f32.mxu0 0.0
    %4798 = vmatmul.mubr.f32.gmra.mxu0 %v1690
    %v4799 = vpop.f32.mrf.mxu0
    %v4800 = vadd.f32 0.0, %v4799
    %v4801 = vpop.f32.mrf.mxu0
    %4802 = vmatprep.mubr.f32.mxu0 0.0
    %4803 = vmatmul.mubr.f32.gmra.mxu0 %v1692
    %v4804 = vpop.f32.mrf.mxu0
    %v4805 = vadd.f32 0.0, %v4804
    %v4806 = vpop.f32.mrf.mxu0
    %4807 = vmatprep.mubr.f32.mxu0 0.0
    %4808 = vmatmul.mubr.f32.gmra.mxu0 %v1694
    %v4809 = vpop.f32.mrf.mxu0
    %v4810 = vadd.f32 0.0, %v4809
    %v4811 = vpop.f32.mrf.mxu0
    %4812 = vmatprep.mubr.f32.mxu0 0.0
    %4813 = vmatmul.mubr.f32.gmra.mxu0 %v1696
    %v4814 = vpop.f32.mrf.mxu0
    %v4815 = vadd.f32 0.0, %v4814
    %v4816 = vpop.f32.mrf.mxu0
    %4817 = vmatprep.mubr.f32.mxu0 0.0
    %4818 = vmatmul.mubr.f32.gmra.mxu0 %v1698
    %v4819 = vpop.f32.mrf.mxu0
    %v4820 = vadd.f32 0.0, %v4819
    %v4821 = vpop.f32.mrf.mxu0
    %4822 = vmatprep.mubr.f32.mxu0 0.0
    %4823 = vmatmul.mubr.f32.gmra.mxu0 %v1700
    %v4824 = vpop.f32.mrf.mxu0
    %v4825 = vadd.f32 0.0, %v4824
    %v4826 = vpop.f32.mrf.mxu0
    %4827 = vmatprep.mubr.f32.mxu0 0.0
    %4828 = vmatmul.mubr.f32.gmra.mxu0 %v1702
    %v4829 = vpop.f32.mrf.mxu0
    %v4830 = vadd.f32 0.0, %v4829
    %v4831 = vpop.f32.mrf.mxu0
    %4832 = vmatprep.mubr.f32.mxu0 0.0
    %4833 = vmatmul.mubr.f32.gmra.mxu0 %v1704
    %v4834 = vpop.f32.mrf.mxu0
    %v4835 = vadd.f32 0.0, %v4834
    %v4836 = vpop.f32.mrf.mxu0
    %4837 = vmatprep.mubr.f32.mxu0 0.0
    %4838 = vmatmul.mubr.f32.gmra.mxu0 %v1706
    %v4839 = vpop.f32.mrf.mxu0
    %v4840 = vadd.f32 0.0, %v4839
    %v4841 = vpop.f32.mrf.mxu0
    %4842 = vmatprep.mubr.f32.mxu0 0.0
    %4843 = vmatmul.mubr.f32.gmra.mxu0 %v1708
    %v4844 = vpop.f32.mrf.mxu0
    %v4845 = vadd.f32 0.0, %v4844
    %v4846 = vpop.f32.mrf.mxu0
    %4847 = vmatprep.mubr.f32.mxu0 0.0
    %4848 = vmatmul.mubr.f32.gmra.mxu0 %v1710
    %v4849 = vpop.f32.mrf.mxu0
    %v4850 = vadd.f32 0.0, %v4849
    %v4851 = vpop.f32.mrf.mxu0
    %4852 = vmatprep.mubr.f32.mxu0 0.0
    %4853 = vmatmul.mubr.f32.gmra.mxu0 %v1712
    %v4854 = vpop.f32.mrf.mxu0
    %v4855 = vadd.f32 0.0, %v4854
    %v4856 = vpop.f32.mrf.mxu0
    %4857 = vmatprep.mubr.f32.mxu0 0.0
    %4858 = vmatmul.mubr.f32.gmra.mxu0 %v1714
    %v4859 = vpop.f32.mrf.mxu0
    %v4860 = vadd.f32 0.0, %v4859
    %v4861 = vpop.f32.mrf.mxu0
    %4862 = vmatprep.mubr.f32.mxu0 0.0
    %4863 = vmatmul.mubr.f32.gmra.mxu0 %v1716
    %v4864 = vpop.f32.mrf.mxu0
    %v4865 = vadd.f32 0.0, %v4864
    %v4866 = vpop.f32.mrf.mxu0
    %4867 = vmatprep.mubr.f32.mxu0 0.0
    %4868 = vmatmul.mubr.f32.gmra.mxu0 %v1718
    %v4869 = vpop.f32.mrf.mxu0
    %v4870 = vadd.f32 0.0, %v4869
    %v4871 = vpop.f32.mrf.mxu0
    %4872 = vmatprep.mubr.f32.mxu0 0.0
    %4873 = vmatmul.mubr.f32.gmra.mxu0 %v1720
    %v4874 = vpop.f32.mrf.mxu0
    %v4875 = vadd.f32 0.0, %v4874
    %v4876 = vpop.f32.mrf.mxu0
    %4877 = vmatprep.mubr.f32.mxu0 0.0
    %4878 = vmatmul.mubr.f32.gmra.mxu0 %v1722
    %v4879 = vpop.f32.mrf.mxu0
    %v4880 = vadd.f32 0.0, %v4879
    %v4881 = vpop.f32.mrf.mxu0
    %4882 = vmatprep.mubr.f32.mxu0 0.0
    %4883 = vmatmul.mubr.f32.gmra.mxu0 %v1724
    %v4884 = vpop.f32.mrf.mxu0
    %v4885 = vadd.f32 0.0, %v4884
    %v4886 = vpop.f32.mrf.mxu0
    %4887 = vmatprep.mubr.f32.mxu0 0.0
    %4888 = vmatmul.mubr.f32.gmra.mxu0 %v1726
    %v4889 = vpop.f32.mrf.mxu0
    %v4890 = vadd.f32 0.0, %v4889
    %v4891 = vpop.f32.mrf.mxu0
    %4892 = vmatprep.mubr.f32.mxu0 0.0
    %4893 = vmatmul.mubr.f32.gmra.mxu0 %v1728
    %v4894 = vpop.f32.mrf.mxu0
    %v4895 = vadd.f32 0.0, %v4894
    %v4896 = vpop.f32.mrf.mxu0
    %4897 = vmatprep.mubr.f32.mxu0 0.0
    %4898 = vmatmul.mubr.f32.gmra.mxu0 %v1730
    %v4899 = vpop.f32.mrf.mxu0
    %v4900 = vadd.f32 0.0, %v4899
    %v4901 = vpop.f32.mrf.mxu0
    %4902 = vmatprep.mubr.f32.mxu0 0.0
    %4903 = vmatmul.mubr.f32.gmra.mxu0 %v1732
    %v4904 = vpop.f32.mrf.mxu0
    %v4905 = vadd.f32 0.0, %v4904
    %v4906 = vpop.f32.mrf.mxu0
    %4907 = vmatprep.mubr.f32.mxu0 0.0
    %4908 = vmatmul.mubr.f32.gmra.mxu0 %v1734
    %v4909 = vpop.f32.mrf.mxu0
    %v4910 = vadd.f32 0.0, %v4909
    %v4911 = vpop.f32.mrf.mxu0
    %4912 = vmatprep.mubr.f32.mxu0 0.0
    %4913 = vmatmul.mubr.f32.gmra.mxu0 %v1736
    %v4914 = vpop.f32.mrf.mxu0
    %v4915 = vadd.f32 0.0, %v4914
    %v4916 = vpop.f32.mrf.mxu0
    %4917 = vmatprep.mubr.f32.mxu0 0.0
    %4918 = vmatmul.mubr.f32.gmra.mxu0 %v1738
    %v4919 = vpop.f32.mrf.mxu0
    %v4920 = vadd.f32 0.0, %v4919
    %v4921 = vpop.f32.mrf.mxu0
    %4922 = vmatprep.mubr.f32.mxu0 0.0
    %4923 = vmatmul.mubr.f32.gmra.mxu0 %v1740
    %v4924 = vpop.f32.mrf.mxu0
    %v4925 = vadd.f32 0.0, %v4924
    %v4926 = vpop.f32.mrf.mxu0
    %4927 = vmatprep.mubr.f32.mxu0 0.0
    %4928 = vmatmul.mubr.f32.gmra.mxu0 %v1742
    %v4929 = vpop.f32.mrf.mxu0
    %v4930 = vadd.f32 0.0, %v4929
    %v4931 = vpop.f32.mrf.mxu0
    %4932 = vmatprep.mubr.f32.mxu0 0.0
    %4933 = vmatmul.mubr.f32.gmra.mxu0 %v1744
    %v4934 = vpop.f32.mrf.mxu0
    %v4935 = vadd.f32 0.0, %v4934
    %v4936 = vpop.f32.mrf.mxu0
    %4937 = vmatprep.mubr.f32.mxu0 0.0
    %4938 = vmatmul.mubr.f32.gmra.mxu0 %v3154
    %v4939 = vpop.f32.mrf.mxu0
    %v4940 = vadd.f32 0.0, %v4939
    %v4941 = vpop.f32.mrf.mxu0
    %4942 = vmatprep.mubr.f32.mxu0 0.0
    %4943 = vmatmul.mubr.f32.gmra.mxu0 %v3156
    %v4944 = vpop.f32.mrf.mxu0
    %v4945 = vadd.f32 0.0, %v4944
    %v4946 = vpop.f32.mrf.mxu0
    %4947 = vmatprep.mubr.f32.mxu0 0.0
    %4948 = vmatmul.mubr.f32.gmra.mxu0 %v4566
    %v4949 = vpop.f32.mrf.mxu0
    %v4950 = vadd.f32 0.0, %v4949
    %v4951 = vpop.f32.mrf.mxu0
    %4952 = vmatprep.mubr.f32.mxu0 0.0
    %4953 = vmatmul.mubr.f32.gmra.mxu0 %v4568
    %v4954 = vpop.f32.mrf.mxu0
    %v4955 = vadd.f32 0.0, %v4954
    %v4956 = vpop.f32.mrf.mxu0
    %4957 = vdwg.mxu0
    %v4958 = vadd.f32 %v4486, %v4640
    %v4959 = vadd.f32 %v4487, %v4645
    %v4960 = vadd.f32 %v4488, %v4650
    %v4961 = vadd.f32 %v4489, %v4655
    %v4962 = vadd.f32 %v4490, %v4660
    %v4963 = vadd.f32 %v4491, %v4665
    %v4964 = vadd.f32 %v4492, %v4670
    %v4965 = vadd.f32 %v4493, %v4675
    %v4966 = vadd.f32 %v4494, %v4680
    %v4967 = vadd.f32 %v4495, %v4685
    %v4968 = vadd.f32 %v4496, %v4690
    %v4969 = vadd.f32 %v4497, %v4695
    %v4970 = vadd.f32 %v4498, %v4700
    %v4971 = vadd.f32 %v4499, %v4705
    %v4972 = vadd.f32 %v4500, %v4710
    %v4973 = vadd.f32 %v4501, %v4715
    %v4974 = vadd.f32 %v4502, %v4720
    %v4975 = vadd.f32 %v4503, %v4725
    %v4976 = vadd.f32 %v4504, %v4730
    %v4977 = vadd.f32 %v4505, %v4735
    %v4978 = vadd.f32 %v4506, %v4740
    %v4979 = vadd.f32 %v4507, %v4745
    %v4980 = vadd.f32 %v4508, %v4750
    %v4981 = vadd.f32 %v4509, %v4755
    %v4982 = vadd.f32 %v4510, %v4760
    %v4983 = vadd.f32 %v4511, %v4765
    %v4984 = vadd.f32 %v4512, %v4770
    %v4985 = vadd.f32 %v4513, %v4775
    %v4986 = vadd.f32 %v4514, %v4780
    %v4987 = vadd.f32 %v4515, %v4785
    %v4988 = vadd.f32 %v4516, %v4790
    %v4989 = vadd.f32 %v4517, %v4795
    %v4990 = vadd.f32 %v4518, %v4800
    %v4991 = vadd.f32 %v4519, %v4805
    %v4992 = vadd.f32 %v4520, %v4810
    %v4993 = vadd.f32 %v4521, %v4815
    %v4994 = vadd.f32 %v4522, %v4820
    %v4995 = vadd.f32 %v4523, %v4825
    %v4996 = vadd.f32 %v4524, %v4830
    %v4997 = vadd.f32 %v4525, %v4835
    %v4998 = vadd.f32 %v4526, %v4840
    %v4999 = vadd.f32 %v4527, %v4845
    %v5000 = vadd.f32 %v4528, %v4850
    %v5001 = vadd.f32 %v4529, %v4855
    %v5002 = vadd.f32 %v4530, %v4860
    %v5003 = vadd.f32 %v4531, %v4865
    %v5004 = vadd.f32 %v4532, %v4870
    %v5005 = vadd.f32 %v4533, %v4875
    %v5006 = vadd.f32 %v4534, %v4880
    %v5007 = vadd.f32 %v4535, %v4885
    %v5008 = vadd.f32 %v4536, %v4890
    %v5009 = vadd.f32 %v4537, %v4895
    %v5010 = vadd.f32 %v4538, %v4900
    %v5011 = vadd.f32 %v4539, %v4905
    %v5012 = vadd.f32 %v4540, %v4910
    %v5013 = vadd.f32 %v4541, %v4915
    %v5014 = vadd.f32 %v4542, %v4920
    %v5015 = vadd.f32 %v4543, %v4925
    %v5016 = vadd.f32 %v4544, %v4930
    %v5017 = vadd.f32 %v4545, %v4935
    %v5018 = vadd.f32 %v4546, %v4940
    %v5019 = vadd.f32 %v4547, %v4945
    %v5020 = vadd.f32 %v4548, %v4950
    %v5021 = vadd.f32 %v4549, %v4955
    %v5022 = vld [vmem:[%s2] sm:$0x1]
    %v5024 = vlaneseq
    %v5025 = vshrl.u32 %v5024, 7
    %v5026 = vsub.s32 0, %v5025
    %v5027 = vrot.slane %v5022, %v5026
    %v5029 = vadd.f32 %v4958, %v5027
    %v5030 = vadd.f32 %v4959, %v5027
    %v5031 = vadd.f32 %v4960, %v5027
    %v5032 = vadd.f32 %v4961, %v5027
    %v5033 = vadd.f32 %v4962, %v5027
    %v5034 = vadd.f32 %v4963, %v5027
    %v5035 = vadd.f32 %v4964, %v5027
    %v5036 = vadd.f32 %v4965, %v5027
    %v5037 = vadd.f32 %v4966, %v5027
    %v5038 = vadd.f32 %v4967, %v5027
    %v5039 = vadd.f32 %v4968, %v5027
    %v5040 = vadd.f32 %v4969, %v5027
    %v5041 = vadd.f32 %v4970, %v5027
    %v5042 = vadd.f32 %v4971, %v5027
    %v5043 = vadd.f32 %v4972, %v5027
    %v5044 = vadd.f32 %v4973, %v5027
    %v5045 = vadd.f32 %v4974, %v5027
    %v5046 = vadd.f32 %v4975, %v5027
    %v5047 = vadd.f32 %v4976, %v5027
    %v5048 = vadd.f32 %v4977, %v5027
    %v5049 = vadd.f32 %v4978, %v5027
    %v5050 = vadd.f32 %v4979, %v5027
    %v5051 = vadd.f32 %v4980, %v5027
    %v5052 = vadd.f32 %v4981, %v5027
    %v5053 = vadd.f32 %v4982, %v5027
    %v5054 = vadd.f32 %v4983, %v5027
    %v5055 = vadd.f32 %v4984, %v5027
    %v5056 = vadd.f32 %v4985, %v5027
    %v5057 = vadd.f32 %v4986, %v5027
    %v5058 = vadd.f32 %v4987, %v5027
    %v5059 = vadd.f32 %v4988, %v5027
    %v5060 = vadd.f32 %v4989, %v5027
    %v5061 = vadd.f32 %v4990, %v5027
    %v5062 = vadd.f32 %v4991, %v5027
    %v5063 = vadd.f32 %v4992, %v5027
    %v5064 = vadd.f32 %v4993, %v5027
    %v5065 = vadd.f32 %v4994, %v5027
    %v5066 = vadd.f32 %v4995, %v5027
    %v5067 = vadd.f32 %v4996, %v5027
    %v5068 = vadd.f32 %v4997, %v5027
    %v5069 = vadd.f32 %v4998, %v5027
    %v5070 = vadd.f32 %v4999, %v5027
    %v5071 = vadd.f32 %v5000, %v5027
    %v5072 = vadd.f32 %v5001, %v5027
    %v5073 = vadd.f32 %v5002, %v5027
    %v5074 = vadd.f32 %v5003, %v5027
    %v5075 = vadd.f32 %v5004, %v5027
    %v5076 = vadd.f32 %v5005, %v5027
    %v5077 = vadd.f32 %v5006, %v5027
    %v5078 = vadd.f32 %v5007, %v5027
    %v5079 = vadd.f32 %v5008, %v5027
    %v5080 = vadd.f32 %v5009, %v5027
    %v5081 = vadd.f32 %v5010, %v5027
    %v5082 = vadd.f32 %v5011, %v5027
    %v5083 = vadd.f32 %v5012, %v5027
    %v5084 = vadd.f32 %v5013, %v5027
    %v5085 = vadd.f32 %v5014, %v5027
    %v5086 = vadd.f32 %v5015, %v5027
    %v5087 = vadd.f32 %v5016, %v5027
    %v5088 = vadd.f32 %v5017, %v5027
    %v5089 = vadd.f32 %v5018, %v5027
    %v5090 = vadd.f32 %v5019, %v5027
    %v5091 = vadd.f32 %v5020, %v5027
    %v5092 = vadd.f32 %v5021, %v5027
    %v5093 = vmul.f32 %v5029, 0.5
    %v5094 = vmul.f32 %v5030, 0.5
    %v5095 = vmul.f32 %v5031, 0.5
    %v5096 = vmul.f32 %v5032, 0.5
    %v5097 = vmul.f32 %v5033, 0.5
    %v5098 = vmul.f32 %v5034, 0.5
    %v5099 = vmul.f32 %v5035, 0.5
    %v5100 = vmul.f32 %v5036, 0.5
    %v5101 = vmul.f32 %v5037, 0.5
    %v5102 = vmul.f32 %v5038, 0.5
    %v5103 = vmul.f32 %v5039, 0.5
    %v5104 = vmul.f32 %v5040, 0.5
    %v5105 = vmul.f32 %v5041, 0.5
    %v5106 = vmul.f32 %v5042, 0.5
    %v5107 = vmul.f32 %v5043, 0.5
    %v5108 = vmul.f32 %v5044, 0.5
    %v5109 = vmul.f32 %v5045, 0.5
    %v5110 = vmul.f32 %v5046, 0.5
    %v5111 = vmul.f32 %v5047, 0.5
    %v5112 = vmul.f32 %v5048, 0.5
    %v5113 = vmul.f32 %v5049, 0.5
    %v5114 = vmul.f32 %v5050, 0.5
    %v5115 = vmul.f32 %v5051, 0.5
    %v5116 = vmul.f32 %v5052, 0.5
    %v5117 = vmul.f32 %v5053, 0.5
    %v5118 = vmul.f32 %v5054, 0.5
    %v5119 = vmul.f32 %v5055, 0.5
    %v5120 = vmul.f32 %v5056, 0.5
    %v5121 = vmul.f32 %v5057, 0.5
    %v5122 = vmul.f32 %v5058, 0.5
    %v5123 = vmul.f32 %v5059, 0.5
    %v5124 = vmul.f32 %v5060, 0.5
    %v5125 = vmul.f32 %v5061, 0.5
    %v5126 = vmul.f32 %v5062, 0.5
    %v5127 = vmul.f32 %v5063, 0.5
    %v5128 = vmul.f32 %v5064, 0.5
    %v5129 = vmul.f32 %v5065, 0.5
    %v5130 = vmul.f32 %v5066, 0.5
    %v5131 = vmul.f32 %v5067, 0.5
    %v5132 = vmul.f32 %v5068, 0.5
    %v5133 = vmul.f32 %v5069, 0.5
    %v5134 = vmul.f32 %v5070, 0.5
    %v5135 = vmul.f32 %v5071, 0.5
    %v5136 = vmul.f32 %v5072, 0.5
    %v5137 = vmul.f32 %v5073, 0.5
    %v5138 = vmul.f32 %v5074, 0.5
    %v5139 = vmul.f32 %v5075, 0.5
    %v5140 = vmul.f32 %v5076, 0.5
    %v5141 = vmul.f32 %v5077, 0.5
    %v5142 = vmul.f32 %v5078, 0.5
    %v5143 = vmul.f32 %v5079, 0.5
    %v5144 = vmul.f32 %v5080, 0.5
    %v5145 = vmul.f32 %v5081, 0.5
    %v5146 = vmul.f32 %v5082, 0.5
    %v5147 = vmul.f32 %v5083, 0.5
    %v5148 = vmul.f32 %v5084, 0.5
    %v5149 = vmul.f32 %v5085, 0.5
    %v5150 = vmul.f32 %v5086, 0.5
    %v5151 = vmul.f32 %v5087, 0.5
    %v5152 = vmul.f32 %v5088, 0.5
    %v5153 = vmul.f32 %v5089, 0.5
    %v5154 = vmul.f32 %v5090, 0.5
    %v5155 = vmul.f32 %v5091, 0.5
    %v5156 = vmul.f32 %v5092, 0.5
    %v5157 = vmul.f32 %v5029, 0.044715
    %v5158 = vmul.f32 %v5030, 0.044715
    %v5159 = vmul.f32 %v5031, 0.044715
    %v5160 = vmul.f32 %v5032, 0.044715
    %v5161 = vmul.f32 %v5033, 0.044715
    %v5162 = vmul.f32 %v5034, 0.044715
    %v5163 = vmul.f32 %v5035, 0.044715
    %v5164 = vmul.f32 %v5036, 0.044715
    %v5165 = vmul.f32 %v5037, 0.044715
    %v5166 = vmul.f32 %v5038, 0.044715
    %v5167 = vmul.f32 %v5039, 0.044715
    %v5168 = vmul.f32 %v5040, 0.044715
    %v5169 = vmul.f32 %v5041, 0.044715
    %v5170 = vmul.f32 %v5042, 0.044715
    %v5171 = vmul.f32 %v5043, 0.044715
    %v5172 = vmul.f32 %v5044, 0.044715
    %v5173 = vmul.f32 %v5045, 0.044715
    %v5174 = vmul.f32 %v5046, 0.044715
    %v5175 = vmul.f32 %v5047, 0.044715
    %v5176 = vmul.f32 %v5048, 0.044715
    %v5177 = vmul.f32 %v5049, 0.044715
    %v5178 = vmul.f32 %v5050, 0.044715
    %v5179 = vmul.f32 %v5051, 0.044715
    %v5180 = vmul.f32 %v5052, 0.044715
    %v5181 = vmul.f32 %v5053, 0.044715
    %v5182 = vmul.f32 %v5054, 0.044715
    %v5183 = vmul.f32 %v5055, 0.044715
    %v5184 = vmul.f32 %v5056, 0.044715
    %v5185 = vmul.f32 %v5057, 0.044715
    %v5186 = vmul.f32 %v5058, 0.044715
    %v5187 = vmul.f32 %v5059, 0.044715
    %v5188 = vmul.f32 %v5060, 0.044715
    %v5189 = vmul.f32 %v5061, 0.044715
    %v5190 = vmul.f32 %v5062, 0.044715
    %v5191 = vmul.f32 %v5063, 0.044715
    %v5192 = vmul.f32 %v5064, 0.044715
    %v5193 = vmul.f32 %v5065, 0.044715
    %v5194 = vmul.f32 %v5066, 0.044715
    %v5195 = vmul.f32 %v5067, 0.044715
    %v5196 = vmul.f32 %v5068, 0.044715
    %v5197 = vmul.f32 %v5069, 0.044715
    %v5198 = vmul.f32 %v5070, 0.044715
    %v5199 = vmul.f32 %v5071, 0.044715
    %v5200 = vmul.f32 %v5072, 0.044715
    %v5201 = vmul.f32 %v5073, 0.044715
    %v5202 = vmul.f32 %v5074, 0.044715
    %v5203 = vmul.f32 %v5075, 0.044715
    %v5204 = vmul.f32 %v5076, 0.044715
    %v5205 = vmul.f32 %v5077, 0.044715
    %v5206 = vmul.f32 %v5078, 0.044715
    %v5207 = vmul.f32 %v5079, 0.044715
    %v5208 = vmul.f32 %v5080, 0.044715
    %v5209 = vmul.f32 %v5081, 0.044715
    %v5210 = vmul.f32 %v5082, 0.044715
    %v5211 = vmul.f32 %v5083, 0.044715
    %v5212 = vmul.f32 %v5084, 0.044715
    %v5213 = vmul.f32 %v5085, 0.044715
    %v5214 = vmul.f32 %v5086, 0.044715
    %v5215 = vmul.f32 %v5087, 0.044715
    %v5216 = vmul.f32 %v5088, 0.044715
    %v5217 = vmul.f32 %v5089, 0.044715
    %v5218 = vmul.f32 %v5090, 0.044715
    %v5219 = vmul.f32 %v5091, 0.044715
    %v5220 = vmul.f32 %v5092, 0.044715
    %v5221 = vmul.f32 %v5157, %v5029
    %v5222 = vmul.f32 %v5158, %v5030
    %v5223 = vmul.f32 %v5159, %v5031
    %v5224 = vmul.f32 %v5160, %v5032
    %v5225 = vmul.f32 %v5161, %v5033
    %v5226 = vmul.f32 %v5162, %v5034
    %v5227 = vmul.f32 %v5163, %v5035
    %v5228 = vmul.f32 %v5164, %v5036
    %v5229 = vmul.f32 %v5165, %v5037
    %v5230 = vmul.f32 %v5166, %v5038
    %v5231 = vmul.f32 %v5167, %v5039
    %v5232 = vmul.f32 %v5168, %v5040
    %v5233 = vmul.f32 %v5169, %v5041
    %v5234 = vmul.f32 %v5170, %v5042
    %v5235 = vmul.f32 %v5171, %v5043
    %v5236 = vmul.f32 %v5172, %v5044
    %v5237 = vmul.f32 %v5173, %v5045
    %v5238 = vmul.f32 %v5174, %v5046
    %v5239 = vmul.f32 %v5175, %v5047
    %v5240 = vmul.f32 %v5176, %v5048
    %v5241 = vmul.f32 %v5177, %v5049
    %v5242 = vmul.f32 %v5178, %v5050
    %v5243 = vmul.f32 %v5179, %v5051
    %v5244 = vmul.f32 %v5180, %v5052
    %v5245 = vmul.f32 %v5181, %v5053
    %v5246 = vmul.f32 %v5182, %v5054
    %v5247 = vmul.f32 %v5183, %v5055
    %v5248 = vmul.f32 %v5184, %v5056
    %v5249 = vmul.f32 %v5185, %v5057
    %v5250 = vmul.f32 %v5186, %v5058
    %v5251 = vmul.f32 %v5187, %v5059
    %v5252 = vmul.f32 %v5188, %v5060
    %v5253 = vmul.f32 %v5189, %v5061
    %v5254 = vmul.f32 %v5190, %v5062
    %v5255 = vmul.f32 %v5191, %v5063
    %v5256 = vmul.f32 %v5192, %v5064
    %v5257 = vmul.f32 %v5193, %v5065
    %v5258 = vmul.f32 %v5194, %v5066
    %v5259 = vmul.f32 %v5195, %v5067
    %v5260 = vmul.f32 %v5196, %v5068
    %v5261 = vmul.f32 %v5197, %v5069
    %v5262 = vmul.f32 %v5198, %v5070
    %v5263 = vmul.f32 %v5199, %v5071
    %v5264 = vmul.f32 %v5200, %v5072
    %v5265 = vmul.f32 %v5201, %v5073
    %v5266 = vmul.f32 %v5202, %v5074
    %v5267 = vmul.f32 %v5203, %v5075
    %v5268 = vmul.f32 %v5204, %v5076
    %v5269 = vmul.f32 %v5205, %v5077
    %v5270 = vmul.f32 %v5206, %v5078
    %v5271 = vmul.f32 %v5207, %v5079
    %v5272 = vmul.f32 %v5208, %v5080
    %v5273 = vmul.f32 %v5209, %v5081
    %v5274 = vmul.f32 %v5210, %v5082
    %v5275 = vmul.f32 %v5211, %v5083
    %v5276 = vmul.f32 %v5212, %v5084
    %v5277 = vmul.f32 %v5213, %v5085
    %v5278 = vmul.f32 %v5214, %v5086
    %v5279 = vmul.f32 %v5215, %v5087
    %v5280 = vmul.f32 %v5216, %v5088
    %v5281 = vmul.f32 %v5217, %v5089
    %v5282 = vmul.f32 %v5218, %v5090
    %v5283 = vmul.f32 %v5219, %v5091
    %v5284 = vmul.f32 %v5220, %v5092
    %v5285 = vmul.f32 %v5221, %v5029
    %v5286 = vmul.f32 %v5222, %v5030
    %v5287 = vmul.f32 %v5223, %v5031
    %v5288 = vmul.f32 %v5224, %v5032
    %v5289 = vmul.f32 %v5225, %v5033
    %v5290 = vmul.f32 %v5226, %v5034
    %v5291 = vmul.f32 %v5227, %v5035
    %v5292 = vmul.f32 %v5228, %v5036
    %v5293 = vmul.f32 %v5229, %v5037
    %v5294 = vmul.f32 %v5230, %v5038
    %v5295 = vmul.f32 %v5231, %v5039
    %v5296 = vmul.f32 %v5232, %v5040
    %v5297 = vmul.f32 %v5233, %v5041
    %v5298 = vmul.f32 %v5234, %v5042
    %v5299 = vmul.f32 %v5235, %v5043
    %v5300 = vmul.f32 %v5236, %v5044
    %v5301 = vmul.f32 %v5237, %v5045
    %v5302 = vmul.f32 %v5238, %v5046
    %v5303 = vmul.f32 %v5239, %v5047
    %v5304 = vmul.f32 %v5240, %v5048
    %v5305 = vmul.f32 %v5241, %v5049
    %v5306 = vmul.f32 %v5242, %v5050
    %v5307 = vmul.f32 %v5243, %v5051
    %v5308 = vmul.f32 %v5244, %v5052
    %v5309 = vmul.f32 %v5245, %v5053
    %v5310 = vmul.f32 %v5246, %v5054
    %v5311 = vmul.f32 %v5247, %v5055
    %v5312 = vmul.f32 %v5248, %v5056
    %v5313 = vmul.f32 %v5249, %v5057
    %v5314 = vmul.f32 %v5250, %v5058
    %v5315 = vmul.f32 %v5251, %v5059
    %v5316 = vmul.f32 %v5252, %v5060
    %v5317 = vmul.f32 %v5253, %v5061
    %v5318 = vmul.f32 %v5254, %v5062
    %v5319 = vmul.f32 %v5255, %v5063
    %v5320 = vmul.f32 %v5256, %v5064
    %v5321 = vmul.f32 %v5257, %v5065
    %v5322 = vmul.f32 %v5258, %v5066
    %v5323 = vmul.f32 %v5259, %v5067
    %v5324 = vmul.f32 %v5260, %v5068
    %v5325 = vmul.f32 %v5261, %v5069
    %v5326 = vmul.f32 %v5262, %v5070
    %v5327 = vmul.f32 %v5263, %v5071
    %v5328 = vmul.f32 %v5264, %v5072
    %v5329 = vmul.f32 %v5265, %v5073
    %v5330 = vmul.f32 %v5266, %v5074
    %v5331 = vmul.f32 %v5267, %v5075
    %v5332 = vmul.f32 %v5268, %v5076
    %v5333 = vmul.f32 %v5269, %v5077
    %v5334 = vmul.f32 %v5270, %v5078
    %v5335 = vmul.f32 %v5271, %v5079
    %v5336 = vmul.f32 %v5272, %v5080
    %v5337 = vmul.f32 %v5273, %v5081
    %v5338 = vmul.f32 %v5274, %v5082
    %v5339 = vmul.f32 %v5275, %v5083
    %v5340 = vmul.f32 %v5276, %v5084
    %v5341 = vmul.f32 %v5277, %v5085
    %v5342 = vmul.f32 %v5278, %v5086
    %v5343 = vmul.f32 %v5279, %v5087
    %v5344 = vmul.f32 %v5280, %v5088
    %v5345 = vmul.f32 %v5281, %v5089
    %v5346 = vmul.f32 %v5282, %v5090
    %v5347 = vmul.f32 %v5283, %v5091
    %v5348 = vmul.f32 %v5284, %v5092
    %v5349 = vadd.f32 %v5029, %v5285
    %v5350 = vadd.f32 %v5030, %v5286
    %v5351 = vadd.f32 %v5031, %v5287
    %v5352 = vadd.f32 %v5032, %v5288
    %v5353 = vadd.f32 %v5033, %v5289
    %v5354 = vadd.f32 %v5034, %v5290
    %v5355 = vadd.f32 %v5035, %v5291
    %v5356 = vadd.f32 %v5036, %v5292
    %v5357 = vadd.f32 %v5037, %v5293
    %v5358 = vadd.f32 %v5038, %v5294
    %v5359 = vadd.f32 %v5039, %v5295
    %v5360 = vadd.f32 %v5040, %v5296
    %v5361 = vadd.f32 %v5041, %v5297
    %v5362 = vadd.f32 %v5042, %v5298
    %v5363 = vadd.f32 %v5043, %v5299
    %v5364 = vadd.f32 %v5044, %v5300
    %v5365 = vadd.f32 %v5045, %v5301
    %v5366 = vadd.f32 %v5046, %v5302
    %v5367 = vadd.f32 %v5047, %v5303
    %v5368 = vadd.f32 %v5048, %v5304
    %v5369 = vadd.f32 %v5049, %v5305
    %v5370 = vadd.f32 %v5050, %v5306
    %v5371 = vadd.f32 %v5051, %v5307
    %v5372 = vadd.f32 %v5052, %v5308
    %v5373 = vadd.f32 %v5053, %v5309
    %v5374 = vadd.f32 %v5054, %v5310
    %v5375 = vadd.f32 %v5055, %v5311
    %v5376 = vadd.f32 %v5056, %v5312
    %v5377 = vadd.f32 %v5057, %v5313
    %v5378 = vadd.f32 %v5058, %v5314
    %v5379 = vadd.f32 %v5059, %v5315
    %v5380 = vadd.f32 %v5060, %v5316
    %v5381 = vadd.f32 %v5061, %v5317
    %v5382 = vadd.f32 %v5062, %v5318
    %v5383 = vadd.f32 %v5063, %v5319
    %v5384 = vadd.f32 %v5064, %v5320
    %v5385 = vadd.f32 %v5065, %v5321
    %v5386 = vadd.f32 %v5066, %v5322
    %v5387 = vadd.f32 %v5067, %v5323
    %v5388 = vadd.f32 %v5068, %v5324
    %v5389 = vadd.f32 %v5069, %v5325
    %v5390 = vadd.f32 %v5070, %v5326
    %v5391 = vadd.f32 %v5071, %v5327
    %v5392 = vadd.f32 %v5072, %v5328
    %v5393 = vadd.f32 %v5073, %v5329
    %v5394 = vadd.f32 %v5074, %v5330
    %v5395 = vadd.f32 %v5075, %v5331
    %v5396 = vadd.f32 %v5076, %v5332
    %v5397 = vadd.f32 %v5077, %v5333
    %v5398 = vadd.f32 %v5078, %v5334
    %v5399 = vadd.f32 %v5079, %v5335
    %v5400 = vadd.f32 %v5080, %v5336
    %v5401 = vadd.f32 %v5081, %v5337
    %v5402 = vadd.f32 %v5082, %v5338
    %v5403 = vadd.f32 %v5083, %v5339
    %v5404 = vadd.f32 %v5084, %v5340
    %v5405 = vadd.f32 %v5085, %v5341
    %v5406 = vadd.f32 %v5086, %v5342
    %v5407 = vadd.f32 %v5087, %v5343
    %v5408 = vadd.f32 %v5088, %v5344
    %v5409 = vadd.f32 %v5089, %v5345
    %v5410 = vadd.f32 %v5090, %v5346
    %v5411 = vadd.f32 %v5091, %v5347
    %v5412 = vadd.f32 %v5092, %v5348
    %v5413 = vmul.f32 %v5349, 0.7978846
    %v5414 = vmul.f32 %v5350, 0.7978846
    %v5415 = vmul.f32 %v5351, 0.7978846
    %v5416 = vmul.f32 %v5352, 0.7978846
    %v5417 = vmul.f32 %v5353, 0.7978846
    %v5418 = vmul.f32 %v5354, 0.7978846
    %v5419 = vmul.f32 %v5355, 0.7978846
    %v5420 = vmul.f32 %v5356, 0.7978846
    %v5421 = vmul.f32 %v5357, 0.7978846
    %v5422 = vmul.f32 %v5358, 0.7978846
    %v5423 = vmul.f32 %v5359, 0.7978846
    %v5424 = vmul.f32 %v5360, 0.7978846
    %v5425 = vmul.f32 %v5361, 0.7978846
    %v5426 = vmul.f32 %v5362, 0.7978846
    %v5427 = vmul.f32 %v5363, 0.7978846
    %v5428 = vmul.f32 %v5364, 0.7978846
    %v5429 = vmul.f32 %v5365, 0.7978846
    %v5430 = vmul.f32 %v5366, 0.7978846
    %v5431 = vmul.f32 %v5367, 0.7978846
    %v5432 = vmul.f32 %v5368, 0.7978846
    %v5433 = vmul.f32 %v5369, 0.7978846
    %v5434 = vmul.f32 %v5370, 0.7978846
    %v5435 = vmul.f32 %v5371, 0.7978846
    %v5436 = vmul.f32 %v5372, 0.7978846
    %v5437 = vmul.f32 %v5373, 0.7978846
    %v5438 = vmul.f32 %v5374, 0.7978846
    %v5439 = vmul.f32 %v5375, 0.7978846
    %v5440 = vmul.f32 %v5376, 0.7978846
    %v5441 = vmul.f32 %v5377, 0.7978846
    %v5442 = vmul.f32 %v5378, 0.7978846
    %v5443 = vmul.f32 %v5379, 0.7978846
    %v5444 = vmul.f32 %v5380, 0.7978846
    %v5445 = vmul.f32 %v5381, 0.7978846
    %v5446 = vmul.f32 %v5382, 0.7978846
    %v5447 = vmul.f32 %v5383, 0.7978846
    %v5448 = vmul.f32 %v5384, 0.7978846
    %v5449 = vmul.f32 %v5385, 0.7978846
    %v5450 = vmul.f32 %v5386, 0.7978846
    %v5451 = vmul.f32 %v5387, 0.7978846
    %v5452 = vmul.f32 %v5388, 0.7978846
    %v5453 = vmul.f32 %v5389, 0.7978846
    %v5454 = vmul.f32 %v5390, 0.7978846
    %v5455 = vmul.f32 %v5391, 0.7978846
    %v5456 = vmul.f32 %v5392, 0.7978846
    %v5457 = vmul.f32 %v5393, 0.7978846
    %v5458 = vmul.f32 %v5394, 0.7978846
    %v5459 = vmul.f32 %v5395, 0.7978846
    %v5460 = vmul.f32 %v5396, 0.7978846
    %v5461 = vmul.f32 %v5397, 0.7978846
    %v5462 = vmul.f32 %v5398, 0.7978846
    %v5463 = vmul.f32 %v5399, 0.7978846
    %v5464 = vmul.f32 %v5400, 0.7978846
    %v5465 = vmul.f32 %v5401, 0.7978846
    %v5466 = vmul.f32 %v5402, 0.7978846
    %v5467 = vmul.f32 %v5403, 0.7978846
    %v5468 = vmul.f32 %v5404, 0.7978846
    %v5469 = vmul.f32 %v5405, 0.7978846
    %v5470 = vmul.f32 %v5406, 0.7978846
    %v5471 = vmul.f32 %v5407, 0.7978846
    %v5472 = vmul.f32 %v5408, 0.7978846
    %v5473 = vmul.f32 %v5409, 0.7978846
    %v5474 = vmul.f32 %v5410, 0.7978846
    %v5475 = vmul.f32 %v5411, 0.7978846
    %v5476 = vmul.f32 %v5412, 0.7978846
    %v5477 = vtanh.pop %v5413
    %v5478 = vtanh.pop %v5414
    %v5479 = vtanh.pop %v5415
    %v5480 = vtanh.pop %v5416
    %v5481 = vtanh.pop %v5417
    %v5482 = vtanh.pop %v5418
    %v5483 = vtanh.pop %v5419
    %v5484 = vtanh.pop %v5420
    %v5485 = vtanh.pop %v5421
    %v5486 = vtanh.pop %v5422
    %v5487 = vtanh.pop %v5423
    %v5488 = vtanh.pop %v5424
    %v5489 = vtanh.pop %v5425
    %v5490 = vtanh.pop %v5426
    %v5491 = vtanh.pop %v5427
    %v5492 = vtanh.pop %v5428
    %v5493 = vtanh.pop %v5429
    %v5494 = vtanh.pop %v5430
    %v5495 = vtanh.pop %v5431
    %v5496 = vtanh.pop %v5432
    %v5497 = vtanh.pop %v5433
    %v5498 = vtanh.pop %v5434
    %v5499 = vtanh.pop %v5435
    %v5500 = vtanh.pop %v5436
    %v5501 = vtanh.pop %v5437
    %v5502 = vtanh.pop %v5438
    %v5503 = vtanh.pop %v5439
    %v5504 = vtanh.pop %v5440
    %v5505 = vtanh.pop %v5441
    %v5506 = vtanh.pop %v5442
    %v5507 = vtanh.pop %v5443
    %v5508 = vtanh.pop %v5444
    %v5509 = vtanh.pop %v5445
    %v5510 = vtanh.pop %v5446
    %v5511 = vtanh.pop %v5447
    %v5512 = vtanh.pop %v5448
    %v5513 = vtanh.pop %v5449
    %v5514 = vtanh.pop %v5450
    %v5515 = vtanh.pop %v5451
    %v5516 = vtanh.pop %v5452
    %v5517 = vtanh.pop %v5453
    %v5518 = vtanh.pop %v5454
    %v5519 = vtanh.pop %v5455
    %v5520 = vtanh.pop %v5456
    %v5521 = vtanh.pop %v5457
    %v5522 = vtanh.pop %v5458
    %v5523 = vtanh.pop %v5459
    %v5524 = vtanh.pop %v5460
    %v5525 = vtanh.pop %v5461
    %v5526 = vtanh.pop %v5462
    %v5527 = vtanh.pop %v5463
    %v5528 = vtanh.pop %v5464
    %v5529 = vtanh.pop %v5465
    %v5530 = vtanh.pop %v5466
    %v5531 = vtanh.pop %v5467
    %v5532 = vtanh.pop %v5468
    %v5533 = vtanh.pop %v5469
    %v5534 = vtanh.pop %v5470
    %v5535 = vtanh.pop %v5471
    %v5536 = vtanh.pop %v5472
    %v5537 = vtanh.pop %v5473
    %v5538 = vtanh.pop %v5474
    %v5539 = vtanh.pop %v5475
    %v5540 = vtanh.pop %v5476
    %v5541 = vadd.f32 %v5477, 1.0
    %v5542 = vadd.f32 %v5478, 1.0
    %v5543 = vadd.f32 %v5479, 1.0
    %v5544 = vadd.f32 %v5480, 1.0
    %v5545 = vadd.f32 %v5481, 1.0
    %v5546 = vadd.f32 %v5482, 1.0
    %v5547 = vadd.f32 %v5483, 1.0
    %v5548 = vadd.f32 %v5484, 1.0
    %v5549 = vadd.f32 %v5485, 1.0
    %v5550 = vadd.f32 %v5486, 1.0
    %v5551 = vadd.f32 %v5487, 1.0
    %v5552 = vadd.f32 %v5488, 1.0
    %v5553 = vadd.f32 %v5489, 1.0
    %v5554 = vadd.f32 %v5490, 1.0
    %v5555 = vadd.f32 %v5491, 1.0
    %v5556 = vadd.f32 %v5492, 1.0
    %v5557 = vadd.f32 %v5493, 1.0
    %v5558 = vadd.f32 %v5494, 1.0
    %v5559 = vadd.f32 %v5495, 1.0
    %v5560 = vadd.f32 %v5496, 1.0
    %v5561 = vadd.f32 %v5497, 1.0
    %v5562 = vadd.f32 %v5498, 1.0
    %v5563 = vadd.f32 %v5499, 1.0
    %v5564 = vadd.f32 %v5500, 1.0
    %v5565 = vadd.f32 %v5501, 1.0
    %v5566 = vadd.f32 %v5502, 1.0
    %v5567 = vadd.f32 %v5503, 1.0
    %v5568 = vadd.f32 %v5504, 1.0
    %v5569 = vadd.f32 %v5505, 1.0
    %v5570 = vadd.f32 %v5506, 1.0
    %v5571 = vadd.f32 %v5507, 1.0
    %v5572 = vadd.f32 %v5508, 1.0
    %v5573 = vadd.f32 %v5509, 1.0
    %v5574 = vadd.f32 %v5510, 1.0
    %v5575 = vadd.f32 %v5511, 1.0
    %v5576 = vadd.f32 %v5512, 1.0
    %v5577 = vadd.f32 %v5513, 1.0
    %v5578 = vadd.f32 %v5514, 1.0
    %v5579 = vadd.f32 %v5515, 1.0
    %v5580 = vadd.f32 %v5516, 1.0
    %v5581 = vadd.f32 %v5517, 1.0
    %v5582 = vadd.f32 %v5518, 1.0
    %v5583 = vadd.f32 %v5519, 1.0
    %v5584 = vadd.f32 %v5520, 1.0
    %v5585 = vadd.f32 %v5521, 1.0
    %v5586 = vadd.f32 %v5522, 1.0
    %v5587 = vadd.f32 %v5523, 1.0
    %v5588 = vadd.f32 %v5524, 1.0
    %v5589 = vadd.f32 %v5525, 1.0
    %v5590 = vadd.f32 %v5526, 1.0
    %v5591 = vadd.f32 %v5527, 1.0
    %v5592 = vadd.f32 %v5528, 1.0
    %v5593 = vadd.f32 %v5529, 1.0
    %v5594 = vadd.f32 %v5530, 1.0
    %v5595 = vadd.f32 %v5531, 1.0
    %v5596 = vadd.f32 %v5532, 1.0
    %v5597 = vadd.f32 %v5533, 1.0
    %v5598 = vadd.f32 %v5534, 1.0
    %v5599 = vadd.f32 %v5535, 1.0
    %v5600 = vadd.f32 %v5536, 1.0
    %v5601 = vadd.f32 %v5537, 1.0
    %v5602 = vadd.f32 %v5538, 1.0
    %v5603 = vadd.f32 %v5539, 1.0
    %v5604 = vadd.f32 %v5540, 1.0
    %v5605 = vmul.f32 %v5093, %v5541
    %v5606 = vmul.f32 %v5094, %v5542
    %v5607 = vmul.f32 %v5095, %v5543
    %v5608 = vmul.f32 %v5096, %v5544
    %v5609 = vmul.f32 %v5097, %v5545
    %v5610 = vmul.f32 %v5098, %v5546
    %v5611 = vmul.f32 %v5099, %v5547
    %v5612 = vmul.f32 %v5100, %v5548
    %v5613 = vmul.f32 %v5101, %v5549
    %v5614 = vmul.f32 %v5102, %v5550
    %v5615 = vmul.f32 %v5103, %v5551
    %v5616 = vmul.f32 %v5104, %v5552
    %v5617 = vmul.f32 %v5105, %v5553
    %v5618 = vmul.f32 %v5106, %v5554
    %v5619 = vmul.f32 %v5107, %v5555
    %v5620 = vmul.f32 %v5108, %v5556
    %v5621 = vmul.f32 %v5109, %v5557
    %v5622 = vmul.f32 %v5110, %v5558
    %v5623 = vmul.f32 %v5111, %v5559
    %v5624 = vmul.f32 %v5112, %v5560
    %v5625 = vmul.f32 %v5113, %v5561
    %v5626 = vmul.f32 %v5114, %v5562
    %v5627 = vmul.f32 %v5115, %v5563
    %v5628 = vmul.f32 %v5116, %v5564
    %v5629 = vmul.f32 %v5117, %v5565
    %v5630 = vmul.f32 %v5118, %v5566
    %v5631 = vmul.f32 %v5119, %v5567
    %v5632 = vmul.f32 %v5120, %v5568
    %v5633 = vmul.f32 %v5121, %v5569
    %v5634 = vmul.f32 %v5122, %v5570
    %v5635 = vmul.f32 %v5123, %v5571
    %v5636 = vmul.f32 %v5124, %v5572
    %v5637 = vmul.f32 %v5125, %v5573
    %v5638 = vmul.f32 %v5126, %v5574
    %v5639 = vmul.f32 %v5127, %v5575
    %v5640 = vmul.f32 %v5128, %v5576
    %v5641 = vmul.f32 %v5129, %v5577
    %v5642 = vmul.f32 %v5130, %v5578
    %v5643 = vmul.f32 %v5131, %v5579
    %v5644 = vmul.f32 %v5132, %v5580
    %v5645 = vmul.f32 %v5133, %v5581
    %v5646 = vmul.f32 %v5134, %v5582
    %v5647 = vmul.f32 %v5135, %v5583
    %v5648 = vmul.f32 %v5136, %v5584
    %v5649 = vmul.f32 %v5137, %v5585
    %v5650 = vmul.f32 %v5138, %v5586
    %v5651 = vmul.f32 %v5139, %v5587
    %v5652 = vmul.f32 %v5140, %v5588
    %v5653 = vmul.f32 %v5141, %v5589
    %v5654 = vmul.f32 %v5142, %v5590
    %v5655 = vmul.f32 %v5143, %v5591
    %v5656 = vmul.f32 %v5144, %v5592
    %v5657 = vmul.f32 %v5145, %v5593
    %v5658 = vmul.f32 %v5146, %v5594
    %v5659 = vmul.f32 %v5147, %v5595
    %v5660 = vmul.f32 %v5148, %v5596
    %v5661 = vmul.f32 %v5149, %v5597
    %v5662 = vmul.f32 %v5150, %v5598
    %v5663 = vmul.f32 %v5151, %v5599
    %v5664 = vmul.f32 %v5152, %v5600
    %v5665 = vmul.f32 %v5153, %v5601
    %v5666 = vmul.f32 %v5154, %v5602
    %v5667 = vmul.f32 %v5155, %v5603
    %v5668 = vmul.f32 %v5156, %v5604
    %v5669 = vmax.f32 %v5605, %v5607
    %v5670 = vmax.f32 %v5606, %v5608
    %v5671 = vmax.f32 %v5609, %v5611
    %v5672 = vmax.f32 %v5610, %v5612
    %v5673 = vmax.f32 %v5613, %v5615
    %v5674 = vmax.f32 %v5614, %v5616
    %v5675 = vmax.f32 %v5617, %v5619
    %v5676 = vmax.f32 %v5618, %v5620
    %v5677 = vmax.f32 %v5621, %v5623
    %v5678 = vmax.f32 %v5622, %v5624
    %v5679 = vmax.f32 %v5625, %v5627
    %v5680 = vmax.f32 %v5626, %v5628
    %v5681 = vmax.f32 %v5629, %v5631
    %v5682 = vmax.f32 %v5630, %v5632
    %v5683 = vmax.f32 %v5633, %v5635
    %v5684 = vmax.f32 %v5634, %v5636
    %v5685 = vmax.f32 %v5637, %v5639
    %v5686 = vmax.f32 %v5638, %v5640
    %v5687 = vmax.f32 %v5641, %v5643
    %v5688 = vmax.f32 %v5642, %v5644
    %v5689 = vmax.f32 %v5645, %v5647
    %v5690 = vmax.f32 %v5646, %v5648
    %v5691 = vmax.f32 %v5649, %v5651
    %v5692 = vmax.f32 %v5650, %v5652
    %v5693 = vmax.f32 %v5653, %v5655
    %v5694 = vmax.f32 %v5654, %v5656
    %v5695 = vmax.f32 %v5657, %v5659
    %v5696 = vmax.f32 %v5658, %v5660
    %v5697 = vmax.f32 %v5661, %v5663
    %v5698 = vmax.f32 %v5662, %v5664
    %v5699 = vmax.f32 %v5665, %v5667
    %v5700 = vmax.f32 %v5666, %v5668
    %v5701 = vmax.f32 %v5671, %v5607
    %v5702 = vmax.f32 %v5672, %v5608
    %v5703 = vmax.f32 %v5673, %v5611
    %v5704 = vmax.f32 %v5674, %v5612
    %v5705 = vmax.f32 %v5675, %v5615
    %v5706 = vmax.f32 %v5676, %v5616
    %v5707 = vmax.f32 %v5677, %v5619
    %v5708 = vmax.f32 %v5678, %v5620
    %v5709 = vmax.f32 %v5679, %v5623
    %v5710 = vmax.f32 %v5680, %v5624
    %v5711 = vmax.f32 %v5681, %v5627
    %v5712 = vmax.f32 %v5682, %v5628
    %v5713 = vmax.f32 %v5683, %v5631
    %v5714 = vmax.f32 %v5684, %v5632
    %v5715 = vmax.f32 %v5687, %v5639
    %v5716 = vmax.f32 %v5688, %v5640
    %v5717 = vmax.f32 %v5689, %v5643
    %v5718 = vmax.f32 %v5690, %v5644
    %v5719 = vmax.f32 %v5691, %v5647
    %v5720 = vmax.f32 %v5692, %v5648
    %v5721 = vmax.f32 %v5693, %v5651
    %v5722 = vmax.f32 %v5694, %v5652
    %v5723 = vmax.f32 %v5695, %v5655
    %v5724 = vmax.f32 %v5696, %v5656
    %v5725 = vmax.f32 %v5697, %v5659
    %v5726 = vmax.f32 %v5698, %v5660
    %v5727 = vmax.f32 %v5699, %v5663
    %v5728 = vmax.f32 %v5700, %v5664
    %v5729 = vld [vmem:[#allocation2] sm:$0xff]
    %v5730 = vld [vmem:[#allocation2 + $0x8] sm:$0xff]
    %v5731 = vld [vmem:[#allocation2 + $0x10] sm:$0xff]
    %v5732 = vld [vmem:[#allocation2 + $0x18] sm:$0xff]
    %v5733 = vld [vmem:[#allocation2 + $0x20] sm:$0xff]
    %v5734 = vld [vmem:[#allocation2 + $0x28] sm:$0xff]
    %v5735 = vld [vmem:[#allocation2 + $0x30] sm:$0xff]
    %v5736 = vld [vmem:[#allocation2 + $0x38] sm:$0xff]
    %v5737 = vld [vmem:[#allocation2 + $0x40] sm:$0xff]
    %v5738 = vld [vmem:[#allocation2 + $0x48] sm:$0xff]
    %v5739 = vld [vmem:[#allocation2 + $0x50] sm:$0xff]
    %v5740 = vld [vmem:[#allocation2 + $0x58] sm:$0xff]
    %v5741 = vld [vmem:[#allocation2 + $0x60] sm:$0xff]
    %v5742 = vld [vmem:[#allocation2 + $0x68] sm:$0xff]
    %v5743 = vld [vmem:[#allocation2 + $0x70] sm:$0xff]
    %v5744 = vld [vmem:[#allocation2 + $0x78] sm:$0xff]
    %v5745 = vld [vmem:[#allocation2 + $0x80] sm:$0xff]
    %v5746 = vld [vmem:[#allocation2 + $0x88] sm:$0xff]
    %v5747 = vld [vmem:[#allocation2 + $0x90] sm:$0xff]
    %v5748 = vld [vmem:[#allocation2 + $0x98] sm:$0xff]
    %v5749 = vld [vmem:[#allocation2 + $0xa0] sm:$0xff]
    %v5750 = vld [vmem:[#allocation2 + $0xa8] sm:$0xff]
    %v5751 = vld [vmem:[#allocation2 + $0xb0] sm:$0xff]
    %v5752 = vld [vmem:[#allocation2 + $0xb8] sm:$0xff]
    %v5753 = vld [vmem:[#allocation2 + $0xc0] sm:$0xff]
    %v5754 = vld [vmem:[#allocation2 + $0xc8] sm:$0xff]
    %v5755 = vld [vmem:[#allocation2 + $0xd0] sm:$0xff]
    %v5756 = vld [vmem:[#allocation2 + $0xd8] sm:$0xff]
    %v5757 = vld [vmem:[#allocation2 + $0xe0] sm:$0xff]
    %v5758 = vld [vmem:[#allocation2 + $0xe8] sm:$0xff]
    %v5759 = vld [vmem:[#allocation2 + $0xf0] sm:$0xff]
    %v5760 = vld [vmem:[#allocation2 + $0xf8] sm:$0xff]
    %v5761 = vld [vmem:[#allocation2 + $0x100] sm:$0xff]
    %v5762 = vld [vmem:[#allocation2 + $0x108] sm:$0xff]
    %v5763 = vld [vmem:[#allocation2 + $0x110] sm:$0xff]
    %v5764 = vld [vmem:[#allocation2 + $0x118] sm:$0xff]
    %v5765 = vld [vmem:[#allocation2 + $0x120] sm:$0xff]
    %v5766 = vld [vmem:[#allocation2 + $0x128] sm:$0xff]
    %v5767 = vld [vmem:[#allocation2 + $0x130] sm:$0xff]
    %v5768 = vld [vmem:[#allocation2 + $0x138] sm:$0xff]
    %v5769 = vld [vmem:[#allocation2 + $0x140] sm:$0xff]
    %v5770 = vld [vmem:[#allocation2 + $0x148] sm:$0xff]
    %v5771 = vld [vmem:[#allocation2 + $0x150] sm:$0xff]
    %v5772 = vld [vmem:[#allocation2 + $0x158] sm:$0xff]
    %v5773 = vld [vmem:[#allocation2 + $0x160] sm:$0xff]
    %v5774 = vld [vmem:[#allocation2 + $0x168] sm:$0xff]
    %v5775 = vld [vmem:[#allocation2 + $0x170] sm:$0xff]
    %v5776 = vld [vmem:[#allocation2 + $0x178] sm:$0xff]
    %v5777 = vld [vmem:[#allocation2 + $0x180] sm:$0xff]
    %v5778 = vld [vmem:[#allocation2 + $0x188] sm:$0xff]
    %v5779 = vld [vmem:[#allocation2 + $0x190] sm:$0xff]
    %v5780 = vld [vmem:[#allocation2 + $0x198] sm:$0xff]
    %v5781 = vld [vmem:[#allocation2 + $0x1a0] sm:$0xff]
    %v5782 = vld [vmem:[#allocation2 + $0x1a8] sm:$0xff]
    %v5783 = vld [vmem:[#allocation2 + $0x1b0] sm:$0xff]
    %v5784 = vld [vmem:[#allocation2 + $0x1b8] sm:$0xff]
    %v5785 = vld [vmem:[#allocation2 + $0x1c0] sm:$0xff]
    %v5786 = vld [vmem:[#allocation2 + $0x1c8] sm:$0xff]
    %v5787 = vld [vmem:[#allocation2 + $0x1d0] sm:$0xff]
    %v5788 = vld [vmem:[#allocation2 + $0x1d8] sm:$0xff]
    %v5789 = vld [vmem:[#allocation2 + $0x1e0] sm:$0xff]
    %v5790 = vld [vmem:[#allocation2 + $0x1e8] sm:$0xff]
    %v5791 = vld [vmem:[#allocation2 + $0x1f0] sm:$0xff]
    %v5792 = vld [vmem:[#allocation2 + $0x1f8] sm:$0xff]
    %v5793 = vld [vmem:[#allocation2 + $0x200] sm:$0xff]
    %v5794 = vld [vmem:[#allocation2 + $0x208] sm:$0xff]
    %v5795 = vld [vmem:[#allocation2 + $0x210] sm:$0xff]
    %v5796 = vld [vmem:[#allocation2 + $0x218] sm:$0xff]
    %v5797 = vld [vmem:[#allocation2 + $0x220] sm:$0xff]
    %v5798 = vld [vmem:[#allocation2 + $0x228] sm:$0xff]
    %v5799 = vld [vmem:[#allocation2 + $0x230] sm:$0xff]
    %v5800 = vld [vmem:[#allocation2 + $0x238] sm:$0xff]
    %v5801 = vld [vmem:[#allocation2 + $0x240] sm:$0xff]
    %v5802 = vld [vmem:[#allocation2 + $0x248] sm:$0xff]
    %v5803 = vld [vmem:[#allocation2 + $0x250] sm:$0xff]
    %v5804 = vld [vmem:[#allocation2 + $0x258] sm:$0xff]
    %v5805 = vld [vmem:[#allocation2 + $0x260] sm:$0xff]
    %v5806 = vld [vmem:[#allocation2 + $0x268] sm:$0xff]
    %v5807 = vld [vmem:[#allocation2 + $0x270] sm:$0xff]
    %v5808 = vld [vmem:[#allocation2 + $0x278] sm:$0xff]
    %5809 = vmatprep.subr.mxu0 0.0
    %5810 = vmatpush1.msra.mxu0 %v5714
    %5811 = vmatprep.subr.mxu0 0.0
    %5812 = vmatpush1.msra.mxu0 %v5713
    %5813 = vmatprep.subr.mxu0 0.0
    %5814 = vmatpush1.msra.mxu0 %v5712
    %5815 = vmatprep.subr.mxu0 0.0
    %5816 = vmatpush1.msra.mxu0 %v5711
    %5817 = vmatprep.subr.mxu0 0.0
    %5818 = vmatpush1.msra.mxu0 %v5710
    %5819 = vmatprep.subr.mxu0 0.0
    %5820 = vmatpush1.msra.mxu0 %v5709
    %5821 = vmatprep.subr.mxu0 0.0
    %5822 = vmatpush1.msra.mxu0 %v5708
    %5823 = vmatprep.subr.mxu0 0.0
    %5824 = vmatpush1.msra.mxu0 %v5707
    %5825 = vmatprep.subr.mxu0 0.0
    %5826 = vmatpush1.msra.mxu0 %v5706
    %5827 = vmatprep.subr.mxu0 0.0
    %5828 = vmatpush1.msra.mxu0 %v5705
    %5829 = vmatprep.subr.mxu0 0.0
    %5830 = vmatpush1.msra.mxu0 %v5704
    %5831 = vmatprep.subr.mxu0 0.0
    %5832 = vmatpush1.msra.mxu0 %v5703
    %5833 = vmatprep.subr.mxu0 0.0
    %5834 = vmatpush1.msra.mxu0 %v5702
    %5835 = vmatprep.subr.mxu0 0.0
    %5836 = vmatpush1.msra.mxu0 %v5701
    %5837 = vmatprep.subr.mxu0 0.0
    %5838 = vmatpush1.msra.mxu0 %v5670
    %5839 = vmatprep.subr.mxu0 0.0
    %5840 = vmatpush1.msra.mxu0 %v5669
    %5841 = vmatprep.subr.mxu0 0.0
    %5842 = vmatpush2.msra.mxu0 %v5728
    %5843 = vmatprep.subr.mxu0 0.0
    %5844 = vmatpush2.msra.mxu0 %v5727
    %5845 = vmatprep.subr.mxu0 0.0
    %5846 = vmatpush2.msra.mxu0 %v5726
    %5847 = vmatprep.subr.mxu0 0.0
    %5848 = vmatpush2.msra.mxu0 %v5725
    %5849 = vmatprep.subr.mxu0 0.0
    %5850 = vmatpush2.msra.mxu0 %v5724
    %5851 = vmatprep.subr.mxu0 0.0
    %5852 = vmatpush2.msra.mxu0 %v5723
    %5853 = vmatprep.subr.mxu0 0.0
    %5854 = vmatpush2.msra.mxu0 %v5722
    %5855 = vmatprep.subr.mxu0 0.0
    %5856 = vmatpush2.msra.mxu0 %v5721
    %5857 = vmatprep.subr.mxu0 0.0
    %5858 = vmatpush2.msra.mxu0 %v5720
    %5859 = vmatprep.subr.mxu0 0.0
    %5860 = vmatpush2.msra.mxu0 %v5719
    %5861 = vmatprep.subr.mxu0 0.0
    %5862 = vmatpush2.msra.mxu0 %v5718
    %5863 = vmatprep.subr.mxu0 0.0
    %5864 = vmatpush2.msra.mxu0 %v5717
    %5865 = vmatprep.subr.mxu0 0.0
    %5866 = vmatpush2.msra.mxu0 %v5716
    %5867 = vmatprep.subr.mxu0 0.0
    %5868 = vmatpush2.msra.mxu0 %v5715
    %5869 = vmatprep.subr.mxu0 0.0
    %5870 = vmatpush2.msra.mxu0 %v5686
    %5871 = vmatprep.subr.mxu0 0.0
    %5872 = vmatpush2.msra.mxu0 %v5685
    %5873 = vmatprep.mubr.f32.mxu0 %v5730
    %5874 = vmatmul.mubr.f32.gmra.mxu0 %v5729
    %v5875 = vpop.f32.mrf.mxu0
    %v5876 = vadd.f32 0.0, %v5875
    %v5877 = vpop.f32.mrf.mxu0
    %5878 = vmatprep.mubr.f32.mxu0 %v5732
    %5879 = vmatmul.mubr.f32.gmra.mxu0 %v5731
    %v5880 = vpop.f32.mrf.mxu0
    %v5881 = vadd.f32 0.0, %v5880
    %v5882 = vpop.f32.mrf.mxu0
    %5883 = vmatprep.mubr.f32.mxu0 %v5734
    %5884 = vmatmul.mubr.f32.gmra.mxu0 %v5733
    %v5885 = vpop.f32.mrf.mxu0
    %v5886 = vadd.f32 0.0, %v5885
    %v5887 = vpop.f32.mrf.mxu0
    %5888 = vmatprep.mubr.f32.mxu0 %v5736
    %5889 = vmatmul.mubr.f32.gmra.mxu0 %v5735
    %v5890 = vpop.f32.mrf.mxu0
    %v5891 = vadd.f32 0.0, %v5890
    %v5892 = vpop.f32.mrf.mxu0
    %5893 = vmatprep.mubr.f32.mxu0 %v5738
    %5894 = vmatmul.mubr.f32.gmra.mxu0 %v5737
    %v5895 = vpop.f32.mrf.mxu0
    %v5896 = vadd.f32 0.0, %v5895
    %v5897 = vpop.f32.mrf.mxu0
    %5898 = vmatprep.mubr.f32.mxu0 %v5740
    %5899 = vmatmul.mubr.f32.gmra.mxu0 %v5739
    %v5900 = vpop.f32.mrf.mxu0
    %v5901 = vadd.f32 0.0, %v5900
    %v5902 = vpop.f32.mrf.mxu0
    %5903 = vmatprep.mubr.f32.mxu0 %v5742
    %5904 = vmatmul.mubr.f32.gmra.mxu0 %v5741
    %v5905 = vpop.f32.mrf.mxu0
    %v5906 = vadd.f32 0.0, %v5905
    %v5907 = vpop.f32.mrf.mxu0
    %5908 = vmatprep.mubr.f32.mxu0 %v5744
    %5909 = vmatmul.mubr.f32.gmra.mxu0 %v5743
    %v5910 = vpop.f32.mrf.mxu0
    %v5911 = vadd.f32 0.0, %v5910
    %v5912 = vpop.f32.mrf.mxu0
    %5913 = vmatprep.mubr.f32.mxu0 %v5746
    %5914 = vmatmul.mubr.f32.gmra.mxu0 %v5745
    %v5915 = vpop.f32.mrf.mxu0
    %v5916 = vadd.f32 0.0, %v5915
    %v5917 = vpop.f32.mrf.mxu0
    %5918 = vmatprep.mubr.f32.mxu0 %v5748
    %5919 = vmatmul.mubr.f32.gmra.mxu0 %v5747
    %v5920 = vpop.f32.mrf.mxu0
    %v5921 = vadd.f32 0.0, %v5920
    %v5922 = vpop.f32.mrf.mxu0
    %5923 = vmatprep.mubr.f32.mxu0 %v5750
    %5924 = vmatmul.mubr.f32.gmra.mxu0 %v5749
    %v5925 = vpop.f32.mrf.mxu0
    %v5926 = vadd.f32 0.0, %v5925
    %v5927 = vpop.f32.mrf.mxu0
    %5928 = vmatprep.mubr.f32.mxu0 %v5752
    %5929 = vmatmul.mubr.f32.gmra.mxu0 %v5751
    %v5930 = vpop.f32.mrf.mxu0
    %v5931 = vadd.f32 0.0, %v5930
    %v5932 = vpop.f32.mrf.mxu0
    %5933 = vmatprep.mubr.f32.mxu0 %v5754
    %5934 = vmatmul.mubr.f32.gmra.mxu0 %v5753
    %v5935 = vpop.f32.mrf.mxu0
    %v5936 = vadd.f32 0.0, %v5935
    %v5937 = vpop.f32.mrf.mxu0
    %5938 = vmatprep.mubr.f32.mxu0 %v5756
    %5939 = vmatmul.mubr.f32.gmra.mxu0 %v5755
    %v5940 = vpop.f32.mrf.mxu0
    %v5941 = vadd.f32 0.0, %v5940
    %v5942 = vpop.f32.mrf.mxu0
    %5943 = vmatprep.mubr.f32.mxu0 %v5758
    %5944 = vmatmul.mubr.f32.gmra.mxu0 %v5757
    %v5945 = vpop.f32.mrf.mxu0
    %v5946 = vadd.f32 0.0, %v5945
    %v5947 = vpop.f32.mrf.mxu0
    %5948 = vmatprep.mubr.f32.mxu0 %v5760
    %5949 = vmatmul.mubr.f32.gmra.mxu0 %v5759
    %v5950 = vpop.f32.mrf.mxu0
    %v5951 = vadd.f32 0.0, %v5950
    %v5952 = vpop.f32.mrf.mxu0
    %5953 = vmatprep.mubr.f32.mxu0 %v5762
    %5954 = vmatmul.mubr.f32.gmra.mxu0 %v5761
    %v5955 = vpop.f32.mrf.mxu0
    %v5956 = vadd.f32 0.0, %v5955
    %v5957 = vpop.f32.mrf.mxu0
    %5958 = vmatprep.mubr.f32.mxu0 %v5764
    %5959 = vmatmul.mubr.f32.gmra.mxu0 %v5763
    %v5960 = vpop.f32.mrf.mxu0
    %v5961 = vadd.f32 0.0, %v5960
    %v5962 = vpop.f32.mrf.mxu0
    %5963 = vmatprep.mubr.f32.mxu0 %v5766
    %5964 = vmatmul.mubr.f32.gmra.mxu0 %v5765
    %v5965 = vpop.f32.mrf.mxu0
    %v5966 = vadd.f32 0.0, %v5965
    %v5967 = vpop.f32.mrf.mxu0
    %5968 = vmatprep.mubr.f32.mxu0 %v5768
    %5969 = vmatmul.mubr.f32.gmra.mxu0 %v5767
    %v5970 = vpop.f32.mrf.mxu0
    %v5971 = vadd.f32 0.0, %v5970
    %v5972 = vpop.f32.mrf.mxu0
    %5973 = vmatprep.mubr.f32.mxu0 %v5770
    %5974 = vmatmul.mubr.f32.gmra.mxu0 %v5769
    %v5975 = vpop.f32.mrf.mxu0
    %v5976 = vadd.f32 0.0, %v5975
    %v5977 = vpop.f32.mrf.mxu0
    %5978 = vmatprep.mubr.f32.mxu0 %v5772
    %5979 = vmatmul.mubr.f32.gmra.mxu0 %v5771
    %v5980 = vpop.f32.mrf.mxu0
    %v5981 = vadd.f32 0.0, %v5980
    %v5982 = vpop.f32.mrf.mxu0
    %5983 = vmatprep.mubr.f32.mxu0 %v5774
    %5984 = vmatmul.mubr.f32.gmra.mxu0 %v5773
    %v5985 = vpop.f32.mrf.mxu0
    %v5986 = vadd.f32 0.0, %v5985
    %v5987 = vpop.f32.mrf.mxu0
    %5988 = vmatprep.mubr.f32.mxu0 %v5776
    %5989 = vmatmul.mubr.f32.gmra.mxu0 %v5775
    %v5990 = vpop.f32.mrf.mxu0
    %v5991 = vadd.f32 0.0, %v5990
    %v5992 = vpop.f32.mrf.mxu0
    %5993 = vmatprep.mubr.f32.mxu0 %v5778
    %5994 = vmatmul.mubr.f32.gmra.mxu0 %v5777
    %v5995 = vpop.f32.mrf.mxu0
    %v5996 = vadd.f32 0.0, %v5995
    %v5997 = vpop.f32.mrf.mxu0
    %5998 = vmatprep.mubr.f32.mxu0 %v5780
    %5999 = vmatmul.mubr.f32.gmra.mxu0 %v5779
    %v6000 = vpop.f32.mrf.mxu0
    %v6001 = vadd.f32 0.0, %v6000
    %v6002 = vpop.f32.mrf.mxu0
    %6003 = vmatprep.mubr.f32.mxu0 %v5782
    %6004 = vmatmul.mubr.f32.gmra.mxu0 %v5781
    %v6005 = vpop.f32.mrf.mxu0
    %v6006 = vadd.f32 0.0, %v6005
    %v6007 = vpop.f32.mrf.mxu0
    %6008 = vmatprep.mubr.f32.mxu0 %v5784
    %6009 = vmatmul.mubr.f32.gmra.mxu0 %v5783
    %v6010 = vpop.f32.mrf.mxu0
    %v6011 = vadd.f32 0.0, %v6010
    %v6012 = vpop.f32.mrf.mxu0
    %6013 = vmatprep.mubr.f32.mxu0 %v5786
    %6014 = vmatmul.mubr.f32.gmra.mxu0 %v5785
    %v6015 = vpop.f32.mrf.mxu0
    %v6016 = vadd.f32 0.0, %v6015
    %v6017 = vpop.f32.mrf.mxu0
    %6018 = vmatprep.mubr.f32.mxu0 %v5788
    %6019 = vmatmul.mubr.f32.gmra.mxu0 %v5787
    %v6020 = vpop.f32.mrf.mxu0
    %v6021 = vadd.f32 0.0, %v6020
    %v6022 = vpop.f32.mrf.mxu0
    %6023 = vmatprep.mubr.f32.mxu0 %v5790
    %6024 = vmatmul.mubr.f32.gmra.mxu0 %v5789
    %v6025 = vpop.f32.mrf.mxu0
    %v6026 = vadd.f32 0.0, %v6025
    %v6027 = vpop.f32.mrf.mxu0
    %6028 = vmatprep.mubr.f32.mxu0 %v5792
    %6029 = vmatmul.mubr.f32.gmra.mxu0 %v5791
    %v6030 = vpop.f32.mrf.mxu0
    %v6031 = vadd.f32 0.0, %v6030
    %v6032 = vpop.f32.mrf.mxu0
    %6033 = vmatprep.mubr.f32.mxu0 %v5794
    %6034 = vmatmul.mubr.f32.gmra.mxu0 %v5793
    %v6035 = vpop.f32.mrf.mxu0
    %v6036 = vadd.f32 0.0, %v6035
    %v6037 = vpop.f32.mrf.mxu0
    %6038 = vmatprep.mubr.f32.mxu0 %v5796
    %6039 = vmatmul.mubr.f32.gmra.mxu0 %v5795
    %v6040 = vpop.f32.mrf.mxu0
    %v6041 = vadd.f32 0.0, %v6040
    %v6042 = vpop.f32.mrf.mxu0
    %6043 = vmatprep.mubr.f32.mxu0 %v5798
    %6044 = vmatmul.mubr.f32.gmra.mxu0 %v5797
    %v6045 = vpop.f32.mrf.mxu0
    %v6046 = vadd.f32 0.0, %v6045
    %v6047 = vpop.f32.mrf.mxu0
    %6048 = vmatprep.mubr.f32.mxu0 %v5800
    %6049 = vmatmul.mubr.f32.gmra.mxu0 %v5799
    %v6050 = vpop.f32.mrf.mxu0
    %v6051 = vadd.f32 0.0, %v6050
    %v6052 = vpop.f32.mrf.mxu0
    %6053 = vmatprep.mubr.f32.mxu0 %v5802
    %6054 = vmatmul.mubr.f32.gmra.mxu0 %v5801
    %v6055 = vpop.f32.mrf.mxu0
    %v6056 = vadd.f32 0.0, %v6055
    %v6057 = vpop.f32.mrf.mxu0
    %6058 = vmatprep.mubr.f32.mxu0 %v5804
    %6059 = vmatmul.mubr.f32.gmra.mxu0 %v5803
    %v6060 = vpop.f32.mrf.mxu0
    %v6061 = vadd.f32 0.0, %v6060
    %v6062 = vpop.f32.mrf.mxu0
    %6063 = vmatprep.mubr.f32.mxu0 %v5806
    %6064 = vmatmul.mubr.f32.gmra.mxu0 %v5805
    %v6065 = vpop.f32.mrf.mxu0
    %v6066 = vadd.f32 0.0, %v6065
    %v6067 = vpop.f32.mrf.mxu0
    %6068 = vmatprep.mubr.f32.mxu0 %v5808
    %6069 = vmatmul.mubr.f32.gmra.mxu0 %v5807
    %v6070 = vpop.f32.mrf.mxu0
    %v6071 = vadd.f32 0.0, %v6070
    %v6072 = vpop.f32.mrf.mxu0
    %6073 = vdwg.mxu0
    %s6074 = scalar_lea.vmem [#allocation2], 640
    %v6075 = vld [vmem:[%s6074] sm:$0xff]
    %v6076 = vld [vmem:[%s6074 + $0x8] sm:$0xff]
    %v6077 = vld [vmem:[%s6074 + $0x10] sm:$0xff]
    %v6078 = vld [vmem:[%s6074 + $0x18] sm:$0xff]
    %v6079 = vld [vmem:[%s6074 + $0x20] sm:$0xff]
    %v6080 = vld [vmem:[%s6074 + $0x28] sm:$0xff]
    %v6081 = vld [vmem:[%s6074 + $0x30] sm:$0xff]
    %v6082 = vld [vmem:[%s6074 + $0x38] sm:$0xff]
    %v6083 = vld [vmem:[%s6074 + $0x40] sm:$0xff]
    %v6084 = vld [vmem:[%s6074 + $0x48] sm:$0xff]
    %v6085 = vld [vmem:[%s6074 + $0x50] sm:$0xff]
    %v6086 = vld [vmem:[%s6074 + $0x58] sm:$0xff]
    %v6087 = vld [vmem:[%s6074 + $0x60] sm:$0xff]
    %v6088 = vld [vmem:[%s6074 + $0x68] sm:$0xff]
    %v6089 = vld [vmem:[%s6074 + $0x70] sm:$0xff]
    %v6090 = vld [vmem:[%s6074 + $0x78] sm:$0xff]
    %v6091 = vld [vmem:[%s6074 + $0x80] sm:$0xff]
    %v6092 = vld [vmem:[%s6074 + $0x88] sm:$0xff]
    %v6093 = vld [vmem:[%s6074 + $0x90] sm:$0xff]
    %v6094 = vld [vmem:[%s6074 + $0x98] sm:$0xff]
    %v6095 = vld [vmem:[%s6074 + $0xa0] sm:$0xff]
    %v6096 = vld [vmem:[%s6074 + $0xa8] sm:$0xff]
    %v6097 = vld [vmem:[%s6074 + $0xb0] sm:$0xff]
    %v6098 = vld [vmem:[%s6074 + $0xb8] sm:$0xff]
    %v6099 = vld [vmem:[%s6074 + $0xc0] sm:$0xff]
    %v6100 = vld [vmem:[%s6074 + $0xc8] sm:$0xff]
    %v6101 = vld [vmem:[%s6074 + $0xd0] sm:$0xff]
    %v6102 = vld [vmem:[%s6074 + $0xd8] sm:$0xff]
    %v6103 = vld [vmem:[%s6074 + $0xe0] sm:$0xff]
    %v6104 = vld [vmem:[%s6074 + $0xe8] sm:$0xff]
    %v6105 = vld [vmem:[%s6074 + $0xf0] sm:$0xff]
    %v6106 = vld [vmem:[%s6074 + $0xf8] sm:$0xff]
    %v6107 = vld [vmem:[%s6074 + $0x100] sm:$0xff]
    %v6108 = vld [vmem:[%s6074 + $0x108] sm:$0xff]
    %v6109 = vld [vmem:[%s6074 + $0x110] sm:$0xff]
    %v6110 = vld [vmem:[%s6074 + $0x118] sm:$0xff]
    %v6111 = vld [vmem:[%s6074 + $0x120] sm:$0xff]
    %v6112 = vld [vmem:[%s6074 + $0x128] sm:$0xff]
    %v6113 = vld [vmem:[%s6074 + $0x130] sm:$0xff]
    %v6114 = vld [vmem:[%s6074 + $0x138] sm:$0xff]
    %v6115 = vld [vmem:[%s6074 + $0x140] sm:$0xff]
    %v6116 = vld [vmem:[%s6074 + $0x148] sm:$0xff]
    %v6117 = vld [vmem:[%s6074 + $0x150] sm:$0xff]
    %v6118 = vld [vmem:[%s6074 + $0x158] sm:$0xff]
    %v6119 = vld [vmem:[%s6074 + $0x160] sm:$0xff]
    %v6120 = vld [vmem:[%s6074 + $0x168] sm:$0xff]
    %v6121 = vld [vmem:[%s6074 + $0x170] sm:$0xff]
    %v6122 = vld [vmem:[%s6074 + $0x178] sm:$0xff]
    %v6123 = vld [vmem:[%s6074 + $0x180] sm:$0xff]
    %v6124 = vld [vmem:[%s6074 + $0x188] sm:$0xff]
    %v6125 = vld [vmem:[%s6074 + $0x190] sm:$0xff]
    %v6126 = vld [vmem:[%s6074 + $0x198] sm:$0xff]
    %v6127 = vld [vmem:[%s6074 + $0x1a0] sm:$0xff]
    %v6128 = vld [vmem:[%s6074 + $0x1a8] sm:$0xff]
    %v6129 = vld [vmem:[%s6074 + $0x1b0] sm:$0xff]
    %v6130 = vld [vmem:[%s6074 + $0x1b8] sm:$0xff]
    %v6131 = vld [vmem:[%s6074 + $0x1c0] sm:$0xff]
    %v6132 = vld [vmem:[%s6074 + $0x1c8] sm:$0xff]
    %v6133 = vld [vmem:[%s6074 + $0x1d0] sm:$0xff]
    %v6134 = vld [vmem:[%s6074 + $0x1d8] sm:$0xff]
    %v6135 = vld [vmem:[%s6074 + $0x1e0] sm:$0xff]
    %v6136 = vld [vmem:[%s6074 + $0x1e8] sm:$0xff]
    %v6137 = vld [vmem:[%s6074 + $0x1f0] sm:$0xff]
    %v6138 = vld [vmem:[%s6074 + $0x1f8] sm:$0xff]
    %v6139 = vld [vmem:[%s6074 + $0x200] sm:$0xff]
    %v6140 = vld [vmem:[%s6074 + $0x208] sm:$0xff]
    %v6141 = vld [vmem:[%s6074 + $0x210] sm:$0xff]
    %v6142 = vld [vmem:[%s6074 + $0x218] sm:$0xff]
    %v6143 = vld [vmem:[%s6074 + $0x220] sm:$0xff]
    %v6144 = vld [vmem:[%s6074 + $0x228] sm:$0xff]
    %v6145 = vld [vmem:[%s6074 + $0x230] sm:$0xff]
    %v6146 = vld [vmem:[%s6074 + $0x238] sm:$0xff]
    %v6147 = vld [vmem:[%s6074 + $0x240] sm:$0xff]
    %v6148 = vld [vmem:[%s6074 + $0x248] sm:$0xff]
    %v6149 = vld [vmem:[%s6074 + $0x250] sm:$0xff]
    %v6150 = vld [vmem:[%s6074 + $0x258] sm:$0xff]
    %v6151 = vld [vmem:[%s6074 + $0x260] sm:$0xff]
    %v6152 = vld [vmem:[%s6074 + $0x268] sm:$0xff]
    %v6153 = vld [vmem:[%s6074 + $0x270] sm:$0xff]
    %v6154 = vld [vmem:[%s6074 + $0x278] sm:$0xff]
    %6155 = vmatprep.subr.mxu0 0.0
    %6156 = vmatpush1.msra.mxu0 %v5714
    %6157 = vmatprep.subr.mxu0 0.0
    %6158 = vmatpush1.msra.mxu0 %v5713
    %6159 = vmatprep.subr.mxu0 0.0
    %6160 = vmatpush1.msra.mxu0 %v5712
    %6161 = vmatprep.subr.mxu0 0.0
    %6162 = vmatpush1.msra.mxu0 %v5711
    %6163 = vmatprep.subr.mxu0 0.0
    %6164 = vmatpush1.msra.mxu0 %v5710
    %6165 = vmatprep.subr.mxu0 0.0
    %6166 = vmatpush1.msra.mxu0 %v5709
    %6167 = vmatprep.subr.mxu0 0.0
    %6168 = vmatpush1.msra.mxu0 %v5708
    %6169 = vmatprep.subr.mxu0 0.0
    %6170 = vmatpush1.msra.mxu0 %v5707
    %6171 = vmatprep.subr.mxu0 0.0
    %6172 = vmatpush1.msra.mxu0 %v5706
    %6173 = vmatprep.subr.mxu0 0.0
    %6174 = vmatpush1.msra.mxu0 %v5705
    %6175 = vmatprep.subr.mxu0 0.0
    %6176 = vmatpush1.msra.mxu0 %v5704
    %6177 = vmatprep.subr.mxu0 0.0
    %6178 = vmatpush1.msra.mxu0 %v5703
    %6179 = vmatprep.subr.mxu0 0.0
    %6180 = vmatpush1.msra.mxu0 %v5702
    %6181 = vmatprep.subr.mxu0 0.0
    %6182 = vmatpush1.msra.mxu0 %v5701
    %6183 = vmatprep.subr.mxu0 0.0
    %6184 = vmatpush1.msra.mxu0 %v5670
    %6185 = vmatprep.subr.mxu0 0.0
    %6186 = vmatpush1.msra.mxu0 %v5669
    %6187 = vmatprep.subr.mxu0 0.0
    %6188 = vmatpush2.msra.mxu0 %v5728
    %6189 = vmatprep.subr.mxu0 0.0
    %6190 = vmatpush2.msra.mxu0 %v5727
    %6191 = vmatprep.subr.mxu0 0.0
    %6192 = vmatpush2.msra.mxu0 %v5726
    %6193 = vmatprep.subr.mxu0 0.0
    %6194 = vmatpush2.msra.mxu0 %v5725
    %6195 = vmatprep.subr.mxu0 0.0
    %6196 = vmatpush2.msra.mxu0 %v5724
    %6197 = vmatprep.subr.mxu0 0.0
    %6198 = vmatpush2.msra.mxu0 %v5723
    %6199 = vmatprep.subr.mxu0 0.0
    %6200 = vmatpush2.msra.mxu0 %v5722
    %6201 = vmatprep.subr.mxu0 0.0
    %6202 = vmatpush2.msra.mxu0 %v5721
    %6203 = vmatprep.subr.mxu0 0.0
    %6204 = vmatpush2.msra.mxu0 %v5720
    %6205 = vmatprep.subr.mxu0 0.0
    %6206 = vmatpush2.msra.mxu0 %v5719
    %6207 = vmatprep.subr.mxu0 0.0
    %6208 = vmatpush2.msra.mxu0 %v5718
    %6209 = vmatprep.subr.mxu0 0.0
    %6210 = vmatpush2.msra.mxu0 %v5717
    %6211 = vmatprep.subr.mxu0 0.0
    %6212 = vmatpush2.msra.mxu0 %v5716
    %6213 = vmatprep.subr.mxu0 0.0
    %6214 = vmatpush2.msra.mxu0 %v5715
    %6215 = vmatprep.subr.mxu0 0.0
    %6216 = vmatpush2.msra.mxu0 %v5686
    %6217 = vmatprep.subr.mxu0 0.0
    %6218 = vmatpush2.msra.mxu0 %v5685
    %6219 = vmatprep.mubr.f32.mxu0 %v6076
    %6220 = vmatmul.mubr.f32.gmra.mxu0 %v6075
    %v6221 = vpop.f32.mrf.mxu0
    %v6222 = vadd.f32 0.0, %v6221
    %v6223 = vpop.f32.mrf.mxu0
    %6224 = vmatprep.mubr.f32.mxu0 %v6078
    %6225 = vmatmul.mubr.f32.gmra.mxu0 %v6077
    %v6226 = vpop.f32.mrf.mxu0
    %v6227 = vadd.f32 0.0, %v6226
    %v6228 = vpop.f32.mrf.mxu0
    %6229 = vmatprep.mubr.f32.mxu0 %v6080
    %6230 = vmatmul.mubr.f32.gmra.mxu0 %v6079
    %v6231 = vpop.f32.mrf.mxu0
    %v6232 = vadd.f32 0.0, %v6231
    %v6233 = vpop.f32.mrf.mxu0
    %6234 = vmatprep.mubr.f32.mxu0 %v6082
    %6235 = vmatmul.mubr.f32.gmra.mxu0 %v6081
    %v6236 = vpop.f32.mrf.mxu0
    %v6237 = vadd.f32 0.0, %v6236
    %v6238 = vpop.f32.mrf.mxu0
    %6239 = vmatprep.mubr.f32.mxu0 %v6084
    %6240 = vmatmul.mubr.f32.gmra.mxu0 %v6083
    %v6241 = vpop.f32.mrf.mxu0
    %v6242 = vadd.f32 0.0, %v6241
    %v6243 = vpop.f32.mrf.mxu0
    %6244 = vmatprep.mubr.f32.mxu0 %v6086
    %6245 = vmatmul.mubr.f32.gmra.mxu0 %v6085
    %v6246 = vpop.f32.mrf.mxu0
    %v6247 = vadd.f32 0.0, %v6246
    %v6248 = vpop.f32.mrf.mxu0
    %6249 = vmatprep.mubr.f32.mxu0 %v6088
    %6250 = vmatmul.mubr.f32.gmra.mxu0 %v6087
    %v6251 = vpop.f32.mrf.mxu0
    %v6252 = vadd.f32 0.0, %v6251
    %v6253 = vpop.f32.mrf.mxu0
    %6254 = vmatprep.mubr.f32.mxu0 %v6090
    %6255 = vmatmul.mubr.f32.gmra.mxu0 %v6089
    %v6256 = vpop.f32.mrf.mxu0
    %v6257 = vadd.f32 0.0, %v6256
    %v6258 = vpop.f32.mrf.mxu0
    %6259 = vmatprep.mubr.f32.mxu0 %v6092
    %6260 = vmatmul.mubr.f32.gmra.mxu0 %v6091
    %v6261 = vpop.f32.mrf.mxu0
    %v6262 = vadd.f32 0.0, %v6261
    %v6263 = vpop.f32.mrf.mxu0
    %6264 = vmatprep.mubr.f32.mxu0 %v6094
    %6265 = vmatmul.mubr.f32.gmra.mxu0 %v6093
    %v6266 = vpop.f32.mrf.mxu0
    %v6267 = vadd.f32 0.0, %v6266
    %v6268 = vpop.f32.mrf.mxu0
    %6269 = vmatprep.mubr.f32.mxu0 %v6096
    %6270 = vmatmul.mubr.f32.gmra.mxu0 %v6095
    %v6271 = vpop.f32.mrf.mxu0
    %v6272 = vadd.f32 0.0, %v6271
    %v6273 = vpop.f32.mrf.mxu0
    %6274 = vmatprep.mubr.f32.mxu0 %v6098
    %6275 = vmatmul.mubr.f32.gmra.mxu0 %v6097
    %v6276 = vpop.f32.mrf.mxu0
    %v6277 = vadd.f32 0.0, %v6276
    %v6278 = vpop.f32.mrf.mxu0
    %6279 = vmatprep.mubr.f32.mxu0 %v6100
    %6280 = vmatmul.mubr.f32.gmra.mxu0 %v6099
    %v6281 = vpop.f32.mrf.mxu0
    %v6282 = vadd.f32 0.0, %v6281
    %v6283 = vpop.f32.mrf.mxu0
    %6284 = vmatprep.mubr.f32.mxu0 %v6102
    %6285 = vmatmul.mubr.f32.gmra.mxu0 %v6101
    %v6286 = vpop.f32.mrf.mxu0
    %v6287 = vadd.f32 0.0, %v6286
    %v6288 = vpop.f32.mrf.mxu0
    %6289 = vmatprep.mubr.f32.mxu0 %v6104
    %6290 = vmatmul.mubr.f32.gmra.mxu0 %v6103
    %v6291 = vpop.f32.mrf.mxu0
    %v6292 = vadd.f32 0.0, %v6291
    %v6293 = vpop.f32.mrf.mxu0
    %6294 = vmatprep.mubr.f32.mxu0 %v6106
    %6295 = vmatmul.mubr.f32.gmra.mxu0 %v6105
    %v6296 = vpop.f32.mrf.mxu0
    %v6297 = vadd.f32 0.0, %v6296
    %v6298 = vpop.f32.mrf.mxu0
    %6299 = vmatprep.mubr.f32.mxu0 %v6108
    %6300 = vmatmul.mubr.f32.gmra.mxu0 %v6107
    %v6301 = vpop.f32.mrf.mxu0
    %v6302 = vadd.f32 0.0, %v6301
    %v6303 = vpop.f32.mrf.mxu0
    %6304 = vmatprep.mubr.f32.mxu0 %v6110
    %6305 = vmatmul.mubr.f32.gmra.mxu0 %v6109
    %v6306 = vpop.f32.mrf.mxu0
    %v6307 = vadd.f32 0.0, %v6306
    %v6308 = vpop.f32.mrf.mxu0
    %6309 = vmatprep.mubr.f32.mxu0 %v6112
    %6310 = vmatmul.mubr.f32.gmra.mxu0 %v6111
    %v6311 = vpop.f32.mrf.mxu0
    %v6312 = vadd.f32 0.0, %v6311
    %v6313 = vpop.f32.mrf.mxu0
    %6314 = vmatprep.mubr.f32.mxu0 %v6114
    %6315 = vmatmul.mubr.f32.gmra.mxu0 %v6113
    %v6316 = vpop.f32.mrf.mxu0
    %v6317 = vadd.f32 0.0, %v6316
    %v6318 = vpop.f32.mrf.mxu0
    %6319 = vmatprep.mubr.f32.mxu0 %v6116
    %6320 = vmatmul.mubr.f32.gmra.mxu0 %v6115
    %v6321 = vpop.f32.mrf.mxu0
    %v6322 = vadd.f32 0.0, %v6321
    %v6323 = vpop.f32.mrf.mxu0
    %6324 = vmatprep.mubr.f32.mxu0 %v6118
    %6325 = vmatmul.mubr.f32.gmra.mxu0 %v6117
    %v6326 = vpop.f32.mrf.mxu0
    %v6327 = vadd.f32 0.0, %v6326
    %v6328 = vpop.f32.mrf.mxu0
    %6329 = vmatprep.mubr.f32.mxu0 %v6120
    %6330 = vmatmul.mubr.f32.gmra.mxu0 %v6119
    %v6331 = vpop.f32.mrf.mxu0
    %v6332 = vadd.f32 0.0, %v6331
    %v6333 = vpop.f32.mrf.mxu0
    %6334 = vmatprep.mubr.f32.mxu0 %v6122
    %6335 = vmatmul.mubr.f32.gmra.mxu0 %v6121
    %v6336 = vpop.f32.mrf.mxu0
    %v6337 = vadd.f32 0.0, %v6336
    %v6338 = vpop.f32.mrf.mxu0
    %6339 = vmatprep.mubr.f32.mxu0 %v6124
    %6340 = vmatmul.mubr.f32.gmra.mxu0 %v6123
    %v6341 = vpop.f32.mrf.mxu0
    %v6342 = vadd.f32 0.0, %v6341
    %v6343 = vpop.f32.mrf.mxu0
    %6344 = vmatprep.mubr.f32.mxu0 %v6126
    %6345 = vmatmul.mubr.f32.gmra.mxu0 %v6125
    %v6346 = vpop.f32.mrf.mxu0
    %v6347 = vadd.f32 0.0, %v6346
    %v6348 = vpop.f32.mrf.mxu0
    %6349 = vmatprep.mubr.f32.mxu0 %v6128
    %6350 = vmatmul.mubr.f32.gmra.mxu0 %v6127
    %v6351 = vpop.f32.mrf.mxu0
    %v6352 = vadd.f32 0.0, %v6351
    %v6353 = vpop.f32.mrf.mxu0
    %6354 = vmatprep.mubr.f32.mxu0 %v6130
    %6355 = vmatmul.mubr.f32.gmra.mxu0 %v6129
    %v6356 = vpop.f32.mrf.mxu0
    %v6357 = vadd.f32 0.0, %v6356
    %v6358 = vpop.f32.mrf.mxu0
    %6359 = vmatprep.mubr.f32.mxu0 %v6132
    %6360 = vmatmul.mubr.f32.gmra.mxu0 %v6131
    %v6361 = vpop.f32.mrf.mxu0
    %v6362 = vadd.f32 0.0, %v6361
    %v6363 = vpop.f32.mrf.mxu0
    %6364 = vmatprep.mubr.f32.mxu0 %v6134
    %6365 = vmatmul.mubr.f32.gmra.mxu0 %v6133
    %v6366 = vpop.f32.mrf.mxu0
    %v6367 = vadd.f32 0.0, %v6366
    %v6368 = vpop.f32.mrf.mxu0
    %6369 = vmatprep.mubr.f32.mxu0 %v6136
    %6370 = vmatmul.mubr.f32.gmra.mxu0 %v6135
    %v6371 = vpop.f32.mrf.mxu0
    %v6372 = vadd.f32 0.0, %v6371
    %v6373 = vpop.f32.mrf.mxu0
    %6374 = vmatprep.mubr.f32.mxu0 %v6138
    %6375 = vmatmul.mubr.f32.gmra.mxu0 %v6137
    %v6376 = vpop.f32.mrf.mxu0
    %v6377 = vadd.f32 0.0, %v6376
    %v6378 = vpop.f32.mrf.mxu0
    %6379 = vmatprep.mubr.f32.mxu0 %v6140
    %6380 = vmatmul.mubr.f32.gmra.mxu0 %v6139
    %v6381 = vpop.f32.mrf.mxu0
    %v6382 = vadd.f32 0.0, %v6381
    %v6383 = vpop.f32.mrf.mxu0
    %6384 = vmatprep.mubr.f32.mxu0 %v6142
    %6385 = vmatmul.mubr.f32.gmra.mxu0 %v6141
    %v6386 = vpop.f32.mrf.mxu0
    %v6387 = vadd.f32 0.0, %v6386
    %v6388 = vpop.f32.mrf.mxu0
    %6389 = vmatprep.mubr.f32.mxu0 %v6144
    %6390 = vmatmul.mubr.f32.gmra.mxu0 %v6143
    %v6391 = vpop.f32.mrf.mxu0
    %v6392 = vadd.f32 0.0, %v6391
    %v6393 = vpop.f32.mrf.mxu0
    %6394 = vmatprep.mubr.f32.mxu0 %v6146
    %6395 = vmatmul.mubr.f32.gmra.mxu0 %v6145
    %v6396 = vpop.f32.mrf.mxu0
    %v6397 = vadd.f32 0.0, %v6396
    %v6398 = vpop.f32.mrf.mxu0
    %6399 = vmatprep.mubr.f32.mxu0 %v6148
    %6400 = vmatmul.mubr.f32.gmra.mxu0 %v6147
    %v6401 = vpop.f32.mrf.mxu0
    %v6402 = vadd.f32 0.0, %v6401
    %v6403 = vpop.f32.mrf.mxu0
    %6404 = vmatprep.mubr.f32.mxu0 %v6150
    %6405 = vmatmul.mubr.f32.gmra.mxu0 %v6149
    %v6406 = vpop.f32.mrf.mxu0
    %v6407 = vadd.f32 0.0, %v6406
    %v6408 = vpop.f32.mrf.mxu0
    %6409 = vmatprep.mubr.f32.mxu0 %v6152
    %6410 = vmatmul.mubr.f32.gmra.mxu0 %v6151
    %v6411 = vpop.f32.mrf.mxu0
    %v6412 = vadd.f32 0.0, %v6411
    %v6413 = vpop.f32.mrf.mxu0
    %6414 = vmatprep.mubr.f32.mxu0 %v6154
    %6415 = vmatmul.mubr.f32.gmra.mxu0 %v6153
    %v6416 = vpop.f32.mrf.mxu0
    %v6417 = vadd.f32 0.0, %v6416
    %v6418 = vpop.f32.mrf.mxu0
    %6419 = vdwg.mxu0
    %v6420 = vmax.f32 %v5876, %v6222
    %v6421 = vmax.f32 %v5881, %v6227
    %v6422 = vmax.f32 %v5886, %v6232
    %v6423 = vmax.f32 %v5891, %v6237
    %v6424 = vmax.f32 %v5896, %v6242
    %v6425 = vmax.f32 %v5901, %v6247
    %v6426 = vmax.f32 %v5906, %v6252
    %v6427 = vmax.f32 %v5911, %v6257
    %v6428 = vmax.f32 %v5916, %v6262
    %v6429 = vmax.f32 %v5921, %v6267
    %v6430 = vmax.f32 %v5926, %v6272
    %v6431 = vmax.f32 %v5931, %v6277
    %v6432 = vmax.f32 %v5936, %v6282
    %v6433 = vmax.f32 %v5941, %v6287
    %v6434 = vmax.f32 %v5946, %v6292
    %v6435 = vmax.f32 %v5951, %v6297
    %v6436 = vmax.f32 %v5956, %v6302
    %v6437 = vmax.f32 %v5961, %v6307
    %v6438 = vmax.f32 %v5966, %v6312
    %v6439 = vmax.f32 %v5971, %v6317
    %v6440 = vmax.f32 %v5976, %v6322
    %v6441 = vmax.f32 %v5981, %v6327
    %v6442 = vmax.f32 %v5986, %v6332
    %v6443 = vmax.f32 %v5991, %v6337
    %v6444 = vmax.f32 %v5996, %v6342
    %v6445 = vmax.f32 %v6001, %v6347
    %v6446 = vmax.f32 %v6006, %v6352
    %v6447 = vmax.f32 %v6011, %v6357
    %v6448 = vmax.f32 %v6016, %v6362
    %v6449 = vmax.f32 %v6021, %v6367
    %v6450 = vmax.f32 %v6026, %v6372
    %v6451 = vmax.f32 %v6031, %v6377
    %v6452 = vmax.f32 %v6036, %v6382
    %v6453 = vmax.f32 %v6041, %v6387
    %v6454 = vmax.f32 %v6046, %v6392
    %v6455 = vmax.f32 %v6051, %v6397
    %v6456 = vmax.f32 %v6056, %v6402
    %v6457 = vmax.f32 %v6061, %v6407
    %v6458 = vmax.f32 %v6066, %v6412
    %v6459 = vmax.f32 %v6071, %v6417
    %s6460 = scalar_lea.vmem [#allocation2], 1280
    %v6461 = vld [vmem:[%s6460] sm:$0xff]
    %v6462 = vld [vmem:[%s6460 + $0x8] sm:$0xff]
    %v6463 = vld [vmem:[%s6460 + $0x10] sm:$0xff]
    %v6464 = vld [vmem:[%s6460 + $0x18] sm:$0xff]
    %v6465 = vld [vmem:[%s6460 + $0x20] sm:$0xff]
    %v6466 = vld [vmem:[%s6460 + $0x28] sm:$0xff]
    %v6467 = vld [vmem:[%s6460 + $0x30] sm:$0xff]
    %v6468 = vld [vmem:[%s6460 + $0x38] sm:$0xff]
    %v6469 = vld [vmem:[%s6460 + $0x40] sm:$0xff]
    %v6470 = vld [vmem:[%s6460 + $0x48] sm:$0xff]
    %v6471 = vld [vmem:[%s6460 + $0x50] sm:$0xff]
    %v6472 = vld [vmem:[%s6460 + $0x58] sm:$0xff]
    %v6473 = vld [vmem:[%s6460 + $0x60] sm:$0xff]
    %v6474 = vld [vmem:[%s6460 + $0x68] sm:$0xff]
    %v6475 = vld [vmem:[%s6460 + $0x70] sm:$0xff]
    %v6476 = vld [vmem:[%s6460 + $0x78] sm:$0xff]
    %v6477 = vld [vmem:[%s6460 + $0x80] sm:$0xff]
    %v6478 = vld [vmem:[%s6460 + $0x88] sm:$0xff]
    %v6479 = vld [vmem:[%s6460 + $0x90] sm:$0xff]
    %v6480 = vld [vmem:[%s6460 + $0x98] sm:$0xff]
    %v6481 = vld [vmem:[%s6460 + $0xa0] sm:$0xff]
    %v6482 = vld [vmem:[%s6460 + $0xa8] sm:$0xff]
    %v6483 = vld [vmem:[%s6460 + $0xb0] sm:$0xff]
    %v6484 = vld [vmem:[%s6460 + $0xb8] sm:$0xff]
    %v6485 = vld [vmem:[%s6460 + $0xc0] sm:$0xff]
    %v6486 = vld [vmem:[%s6460 + $0xc8] sm:$0xff]
    %v6487 = vld [vmem:[%s6460 + $0xd0] sm:$0xff]
    %v6488 = vld [vmem:[%s6460 + $0xd8] sm:$0xff]
    %v6489 = vld [vmem:[%s6460 + $0xe0] sm:$0xff]
    %v6490 = vld [vmem:[%s6460 + $0xe8] sm:$0xff]
    %v6491 = vld [vmem:[%s6460 + $0xf0] sm:$0xff]
    %v6492 = vld [vmem:[%s6460 + $0xf8] sm:$0xff]
    %v6493 = vld [vmem:[%s6460 + $0x100] sm:$0xff]
    %v6494 = vld [vmem:[%s6460 + $0x108] sm:$0xff]
    %v6495 = vld [vmem:[%s6460 + $0x110] sm:$0xff]
    %v6496 = vld [vmem:[%s6460 + $0x118] sm:$0xff]
    %v6497 = vld [vmem:[%s6460 + $0x120] sm:$0xff]
    %v6498 = vld [vmem:[%s6460 + $0x128] sm:$0xff]
    %v6499 = vld [vmem:[%s6460 + $0x130] sm:$0xff]
    %v6500 = vld [vmem:[%s6460 + $0x138] sm:$0xff]
    %v6501 = vld [vmem:[%s6460 + $0x140] sm:$0xff]
    %v6502 = vld [vmem:[%s6460 + $0x148] sm:$0xff]
    %v6503 = vld [vmem:[%s6460 + $0x150] sm:$0xff]
    %v6504 = vld [vmem:[%s6460 + $0x158] sm:$0xff]
    %v6505 = vld [vmem:[%s6460 + $0x160] sm:$0xff]
    %v6506 = vld [vmem:[%s6460 + $0x168] sm:$0xff]
    %v6507 = vld [vmem:[%s6460 + $0x170] sm:$0xff]
    %v6508 = vld [vmem:[%s6460 + $0x178] sm:$0xff]
    %v6509 = vld [vmem:[%s6460 + $0x180] sm:$0xff]
    %v6510 = vld [vmem:[%s6460 + $0x188] sm:$0xff]
    %v6511 = vld [vmem:[%s6460 + $0x190] sm:$0xff]
    %v6512 = vld [vmem:[%s6460 + $0x198] sm:$0xff]
    %v6513 = vld [vmem:[%s6460 + $0x1a0] sm:$0xff]
    %v6514 = vld [vmem:[%s6460 + $0x1a8] sm:$0xff]
    %v6515 = vld [vmem:[%s6460 + $0x1b0] sm:$0xff]
    %v6516 = vld [vmem:[%s6460 + $0x1b8] sm:$0xff]
    %v6517 = vld [vmem:[%s6460 + $0x1c0] sm:$0xff]
    %v6518 = vld [vmem:[%s6460 + $0x1c8] sm:$0xff]
    %v6519 = vld [vmem:[%s6460 + $0x1d0] sm:$0xff]
    %v6520 = vld [vmem:[%s6460 + $0x1d8] sm:$0xff]
    %v6521 = vld [vmem:[%s6460 + $0x1e0] sm:$0xff]
    %v6522 = vld [vmem:[%s6460 + $0x1e8] sm:$0xff]
    %v6523 = vld [vmem:[%s6460 + $0x1f0] sm:$0xff]
    %v6524 = vld [vmem:[%s6460 + $0x1f8] sm:$0xff]
    %v6525 = vld [vmem:[%s6460 + $0x200] sm:$0xff]
    %v6526 = vld [vmem:[%s6460 + $0x208] sm:$0xff]
    %v6527 = vld [vmem:[%s6460 + $0x210] sm:$0xff]
    %v6528 = vld [vmem:[%s6460 + $0x218] sm:$0xff]
    %v6529 = vld [vmem:[%s6460 + $0x220] sm:$0xff]
    %v6530 = vld [vmem:[%s6460 + $0x228] sm:$0xff]
    %v6531 = vld [vmem:[%s6460 + $0x230] sm:$0xff]
    %v6532 = vld [vmem:[%s6460 + $0x238] sm:$0xff]
    %v6533 = vld [vmem:[%s6460 + $0x240] sm:$0xff]
    %v6534 = vld [vmem:[%s6460 + $0x248] sm:$0xff]
    %v6535 = vld [vmem:[%s6460 + $0x250] sm:$0xff]
    %v6536 = vld [vmem:[%s6460 + $0x258] sm:$0xff]
    %v6537 = vld [vmem:[%s6460 + $0x260] sm:$0xff]
    %v6538 = vld [vmem:[%s6460 + $0x268] sm:$0xff]
    %v6539 = vld [vmem:[%s6460 + $0x270] sm:$0xff]
    %v6540 = vld [vmem:[%s6460 + $0x278] sm:$0xff]
    %6541 = vmatprep.subr.mxu0 0.0
    %6542 = vmatpush1.msra.mxu0 %v5714
    %6543 = vmatprep.subr.mxu0 0.0
    %6544 = vmatpush1.msra.mxu0 %v5713
    %6545 = vmatprep.subr.mxu0 0.0
    %6546 = vmatpush1.msra.mxu0 %v5712
    %6547 = vmatprep.subr.mxu0 0.0
    %6548 = vmatpush1.msra.mxu0 %v5711
    %6549 = vmatprep.subr.mxu0 0.0
    %6550 = vmatpush1.msra.mxu0 %v5710
    %6551 = vmatprep.subr.mxu0 0.0
    %6552 = vmatpush1.msra.mxu0 %v5709
    %6553 = vmatprep.subr.mxu0 0.0
    %6554 = vmatpush1.msra.mxu0 %v5708
    %6555 = vmatprep.subr.mxu0 0.0
    %6556 = vmatpush1.msra.mxu0 %v5707
    %6557 = vmatprep.subr.mxu0 0.0
    %6558 = vmatpush1.msra.mxu0 %v5706
    %6559 = vmatprep.subr.mxu0 0.0
    %6560 = vmatpush1.msra.mxu0 %v5705
    %6561 = vmatprep.subr.mxu0 0.0
    %6562 = vmatpush1.msra.mxu0 %v5704
    %6563 = vmatprep.subr.mxu0 0.0
    %6564 = vmatpush1.msra.mxu0 %v5703
    %6565 = vmatprep.subr.mxu0 0.0
    %6566 = vmatpush1.msra.mxu0 %v5702
    %6567 = vmatprep.subr.mxu0 0.0
    %6568 = vmatpush1.msra.mxu0 %v5701
    %6569 = vmatprep.subr.mxu0 0.0
    %6570 = vmatpush1.msra.mxu0 %v5670
    %6571 = vmatprep.subr.mxu0 0.0
    %6572 = vmatpush1.msra.mxu0 %v5669
    %6573 = vmatprep.subr.mxu0 0.0
    %6574 = vmatpush2.msra.mxu0 %v5728
    %6575 = vmatprep.subr.mxu0 0.0
    %6576 = vmatpush2.msra.mxu0 %v5727
    %6577 = vmatprep.subr.mxu0 0.0
    %6578 = vmatpush2.msra.mxu0 %v5726
    %6579 = vmatprep.subr.mxu0 0.0
    %6580 = vmatpush2.msra.mxu0 %v5725
    %6581 = vmatprep.subr.mxu0 0.0
    %6582 = vmatpush2.msra.mxu0 %v5724
    %6583 = vmatprep.subr.mxu0 0.0
    %6584 = vmatpush2.msra.mxu0 %v5723
    %6585 = vmatprep.subr.mxu0 0.0
    %6586 = vmatpush2.msra.mxu0 %v5722
    %6587 = vmatprep.subr.mxu0 0.0
    %6588 = vmatpush2.msra.mxu0 %v5721
    %6589 = vmatprep.subr.mxu0 0.0
    %6590 = vmatpush2.msra.mxu0 %v5720
    %6591 = vmatprep.subr.mxu0 0.0
    %6592 = vmatpush2.msra.mxu0 %v5719
    %6593 = vmatprep.subr.mxu0 0.0
    %6594 = vmatpush2.msra.mxu0 %v5718
    %6595 = vmatprep.subr.mxu0 0.0
    %6596 = vmatpush2.msra.mxu0 %v5717
    %6597 = vmatprep.subr.mxu0 0.0
    %6598 = vmatpush2.msra.mxu0 %v5716
    %6599 = vmatprep.subr.mxu0 0.0
    %6600 = vmatpush2.msra.mxu0 %v5715
    %6601 = vmatprep.subr.mxu0 0.0
    %6602 = vmatpush2.msra.mxu0 %v5686
    %6603 = vmatprep.subr.mxu0 0.0
    %6604 = vmatpush2.msra.mxu0 %v5685
    %6605 = vmatprep.mubr.f32.mxu0 %v6462
    %6606 = vmatmul.mubr.f32.gmra.mxu0 %v6461
    %v6607 = vpop.f32.mrf.mxu0
    %v6608 = vadd.f32 0.0, %v6607
    %v6609 = vpop.f32.mrf.mxu0
    %6610 = vmatprep.mubr.f32.mxu0 %v6464
    %6611 = vmatmul.mubr.f32.gmra.mxu0 %v6463
    %v6612 = vpop.f32.mrf.mxu0
    %v6613 = vadd.f32 0.0, %v6612
    %v6614 = vpop.f32.mrf.mxu0
    %6615 = vmatprep.mubr.f32.mxu0 %v6466
    %6616 = vmatmul.mubr.f32.gmra.mxu0 %v6465
    %v6617 = vpop.f32.mrf.mxu0
    %v6618 = vadd.f32 0.0, %v6617
    %v6619 = vpop.f32.mrf.mxu0
    %6620 = vmatprep.mubr.f32.mxu0 %v6468
    %6621 = vmatmul.mubr.f32.gmra.mxu0 %v6467
    %v6622 = vpop.f32.mrf.mxu0
    %v6623 = vadd.f32 0.0, %v6622
    %v6624 = vpop.f32.mrf.mxu0
    %6625 = vmatprep.mubr.f32.mxu0 %v6470
    %6626 = vmatmul.mubr.f32.gmra.mxu0 %v6469
    %v6627 = vpop.f32.mrf.mxu0
    %v6628 = vadd.f32 0.0, %v6627
    %v6629 = vpop.f32.mrf.mxu0
    %6630 = vmatprep.mubr.f32.mxu0 %v6472
    %6631 = vmatmul.mubr.f32.gmra.mxu0 %v6471
    %v6632 = vpop.f32.mrf.mxu0
    %v6633 = vadd.f32 0.0, %v6632
    %v6634 = vpop.f32.mrf.mxu0
    %6635 = vmatprep.mubr.f32.mxu0 %v6474
    %6636 = vmatmul.mubr.f32.gmra.mxu0 %v6473
    %v6637 = vpop.f32.mrf.mxu0
    %v6638 = vadd.f32 0.0, %v6637
    %v6639 = vpop.f32.mrf.mxu0
    %6640 = vmatprep.mubr.f32.mxu0 %v6476
    %6641 = vmatmul.mubr.f32.gmra.mxu0 %v6475
    %v6642 = vpop.f32.mrf.mxu0
    %v6643 = vadd.f32 0.0, %v6642
    %v6644 = vpop.f32.mrf.mxu0
    %6645 = vmatprep.mubr.f32.mxu0 %v6478
    %6646 = vmatmul.mubr.f32.gmra.mxu0 %v6477
    %v6647 = vpop.f32.mrf.mxu0
    %v6648 = vadd.f32 0.0, %v6647
    %v6649 = vpop.f32.mrf.mxu0
    %6650 = vmatprep.mubr.f32.mxu0 %v6480
    %6651 = vmatmul.mubr.f32.gmra.mxu0 %v6479
    %v6652 = vpop.f32.mrf.mxu0
    %v6653 = vadd.f32 0.0, %v6652
    %v6654 = vpop.f32.mrf.mxu0
    %6655 = vmatprep.mubr.f32.mxu0 %v6482
    %6656 = vmatmul.mubr.f32.gmra.mxu0 %v6481
    %v6657 = vpop.f32.mrf.mxu0
    %v6658 = vadd.f32 0.0, %v6657
    %v6659 = vpop.f32.mrf.mxu0
    %6660 = vmatprep.mubr.f32.mxu0 %v6484
    %6661 = vmatmul.mubr.f32.gmra.mxu0 %v6483
    %v6662 = vpop.f32.mrf.mxu0
    %v6663 = vadd.f32 0.0, %v6662
    %v6664 = vpop.f32.mrf.mxu0
    %6665 = vmatprep.mubr.f32.mxu0 %v6486
    %6666 = vmatmul.mubr.f32.gmra.mxu0 %v6485
    %v6667 = vpop.f32.mrf.mxu0
    %v6668 = vadd.f32 0.0, %v6667
    %v6669 = vpop.f32.mrf.mxu0
    %6670 = vmatprep.mubr.f32.mxu0 %v6488
    %6671 = vmatmul.mubr.f32.gmra.mxu0 %v6487
    %v6672 = vpop.f32.mrf.mxu0
    %v6673 = vadd.f32 0.0, %v6672
    %v6674 = vpop.f32.mrf.mxu0
    %6675 = vmatprep.mubr.f32.mxu0 %v6490
    %6676 = vmatmul.mubr.f32.gmra.mxu0 %v6489
    %v6677 = vpop.f32.mrf.mxu0
    %v6678 = vadd.f32 0.0, %v6677
    %v6679 = vpop.f32.mrf.mxu0
    %6680 = vmatprep.mubr.f32.mxu0 %v6492
    %6681 = vmatmul.mubr.f32.gmra.mxu0 %v6491
    %v6682 = vpop.f32.mrf.mxu0
    %v6683 = vadd.f32 0.0, %v6682
    %v6684 = vpop.f32.mrf.mxu0
    %6685 = vmatprep.mubr.f32.mxu0 %v6494
    %6686 = vmatmul.mubr.f32.gmra.mxu0 %v6493
    %v6687 = vpop.f32.mrf.mxu0
    %v6688 = vadd.f32 0.0, %v6687
    %v6689 = vpop.f32.mrf.mxu0
    %6690 = vmatprep.mubr.f32.mxu0 %v6496
    %6691 = vmatmul.mubr.f32.gmra.mxu0 %v6495
    %v6692 = vpop.f32.mrf.mxu0
    %v6693 = vadd.f32 0.0, %v6692
    %v6694 = vpop.f32.mrf.mxu0
    %6695 = vmatprep.mubr.f32.mxu0 %v6498
    %6696 = vmatmul.mubr.f32.gmra.mxu0 %v6497
    %v6697 = vpop.f32.mrf.mxu0
    %v6698 = vadd.f32 0.0, %v6697
    %v6699 = vpop.f32.mrf.mxu0
    %6700 = vmatprep.mubr.f32.mxu0 %v6500
    %6701 = vmatmul.mubr.f32.gmra.mxu0 %v6499
    %v6702 = vpop.f32.mrf.mxu0
    %v6703 = vadd.f32 0.0, %v6702
    %v6704 = vpop.f32.mrf.mxu0
    %6705 = vmatprep.mubr.f32.mxu0 %v6502
    %6706 = vmatmul.mubr.f32.gmra.mxu0 %v6501
    %v6707 = vpop.f32.mrf.mxu0
    %v6708 = vadd.f32 0.0, %v6707
    %v6709 = vpop.f32.mrf.mxu0
    %6710 = vmatprep.mubr.f32.mxu0 %v6504
    %6711 = vmatmul.mubr.f32.gmra.mxu0 %v6503
    %v6712 = vpop.f32.mrf.mxu0
    %v6713 = vadd.f32 0.0, %v6712
    %v6714 = vpop.f32.mrf.mxu0
    %6715 = vmatprep.mubr.f32.mxu0 %v6506
    %6716 = vmatmul.mubr.f32.gmra.mxu0 %v6505
    %v6717 = vpop.f32.mrf.mxu0
    %v6718 = vadd.f32 0.0, %v6717
    %v6719 = vpop.f32.mrf.mxu0
    %6720 = vmatprep.mubr.f32.mxu0 %v6508
    %6721 = vmatmul.mubr.f32.gmra.mxu0 %v6507
    %v6722 = vpop.f32.mrf.mxu0
    %v6723 = vadd.f32 0.0, %v6722
    %v6724 = vpop.f32.mrf.mxu0
    %6725 = vmatprep.mubr.f32.mxu0 %v6510
    %6726 = vmatmul.mubr.f32.gmra.mxu0 %v6509
    %v6727 = vpop.f32.mrf.mxu0
    %v6728 = vadd.f32 0.0, %v6727
    %v6729 = vpop.f32.mrf.mxu0
    %6730 = vmatprep.mubr.f32.mxu0 %v6512
    %6731 = vmatmul.mubr.f32.gmra.mxu0 %v6511
    %v6732 = vpop.f32.mrf.mxu0
    %v6733 = vadd.f32 0.0, %v6732
    %v6734 = vpop.f32.mrf.mxu0
    %6735 = vmatprep.mubr.f32.mxu0 %v6514
    %6736 = vmatmul.mubr.f32.gmra.mxu0 %v6513
    %v6737 = vpop.f32.mrf.mxu0
    %v6738 = vadd.f32 0.0, %v6737
    %v6739 = vpop.f32.mrf.mxu0
    %6740 = vmatprep.mubr.f32.mxu0 %v6516
    %6741 = vmatmul.mubr.f32.gmra.mxu0 %v6515
    %v6742 = vpop.f32.mrf.mxu0
    %v6743 = vadd.f32 0.0, %v6742
    %v6744 = vpop.f32.mrf.mxu0
    %6745 = vmatprep.mubr.f32.mxu0 %v6518
    %6746 = vmatmul.mubr.f32.gmra.mxu0 %v6517
    %v6747 = vpop.f32.mrf.mxu0
    %v6748 = vadd.f32 0.0, %v6747
    %v6749 = vpop.f32.mrf.mxu0
    %6750 = vmatprep.mubr.f32.mxu0 %v6520
    %6751 = vmatmul.mubr.f32.gmra.mxu0 %v6519
    %v6752 = vpop.f32.mrf.mxu0
    %v6753 = vadd.f32 0.0, %v6752
    %v6754 = vpop.f32.mrf.mxu0
    %6755 = vmatprep.mubr.f32.mxu0 %v6522
    %6756 = vmatmul.mubr.f32.gmra.mxu0 %v6521
    %v6757 = vpop.f32.mrf.mxu0
    %v6758 = vadd.f32 0.0, %v6757
    %v6759 = vpop.f32.mrf.mxu0
    %6760 = vmatprep.mubr.f32.mxu0 %v6524
    %6761 = vmatmul.mubr.f32.gmra.mxu0 %v6523
    %v6762 = vpop.f32.mrf.mxu0
    %v6763 = vadd.f32 0.0, %v6762
    %v6764 = vpop.f32.mrf.mxu0
    %6765 = vmatprep.mubr.f32.mxu0 %v6526
    %6766 = vmatmul.mubr.f32.gmra.mxu0 %v6525
    %v6767 = vpop.f32.mrf.mxu0
    %v6768 = vadd.f32 0.0, %v6767
    %v6769 = vpop.f32.mrf.mxu0
    %6770 = vmatprep.mubr.f32.mxu0 %v6528
    %6771 = vmatmul.mubr.f32.gmra.mxu0 %v6527
    %v6772 = vpop.f32.mrf.mxu0
    %v6773 = vadd.f32 0.0, %v6772
    %v6774 = vpop.f32.mrf.mxu0
    %6775 = vmatprep.mubr.f32.mxu0 %v6530
    %6776 = vmatmul.mubr.f32.gmra.mxu0 %v6529
    %v6777 = vpop.f32.mrf.mxu0
    %v6778 = vadd.f32 0.0, %v6777
    %v6779 = vpop.f32.mrf.mxu0
    %6780 = vmatprep.mubr.f32.mxu0 %v6532
    %6781 = vmatmul.mubr.f32.gmra.mxu0 %v6531
    %v6782 = vpop.f32.mrf.mxu0
    %v6783 = vadd.f32 0.0, %v6782
    %v6784 = vpop.f32.mrf.mxu0
    %6785 = vmatprep.mubr.f32.mxu0 %v6534
    %6786 = vmatmul.mubr.f32.gmra.mxu0 %v6533
    %v6787 = vpop.f32.mrf.mxu0
    %v6788 = vadd.f32 0.0, %v6787
    %v6789 = vpop.f32.mrf.mxu0
    %6790 = vmatprep.mubr.f32.mxu0 %v6536
    %6791 = vmatmul.mubr.f32.gmra.mxu0 %v6535
    %v6792 = vpop.f32.mrf.mxu0
    %v6793 = vadd.f32 0.0, %v6792
    %v6794 = vpop.f32.mrf.mxu0
    %6795 = vmatprep.mubr.f32.mxu0 %v6538
    %6796 = vmatmul.mubr.f32.gmra.mxu0 %v6537
    %v6797 = vpop.f32.mrf.mxu0
    %v6798 = vadd.f32 0.0, %v6797
    %v6799 = vpop.f32.mrf.mxu0
    %6800 = vmatprep.mubr.f32.mxu0 %v6540
    %6801 = vmatmul.mubr.f32.gmra.mxu0 %v6539
    %v6802 = vpop.f32.mrf.mxu0
    %v6803 = vadd.f32 0.0, %v6802
    %v6804 = vpop.f32.mrf.mxu0
    %6805 = vdwg.mxu0
    %v6806 = vmax.f32 %v6420, %v6608
    %v6807 = vmax.f32 %v6421, %v6613
    %v6808 = vmax.f32 %v6422, %v6618
    %v6809 = vmax.f32 %v6423, %v6623
    %v6810 = vmax.f32 %v6424, %v6628
    %v6811 = vmax.f32 %v6425, %v6633
    %v6812 = vmax.f32 %v6426, %v6638
    %v6813 = vmax.f32 %v6427, %v6643
    %v6814 = vmax.f32 %v6428, %v6648
    %v6815 = vmax.f32 %v6429, %v6653
    %v6816 = vmax.f32 %v6430, %v6658
    %v6817 = vmax.f32 %v6431, %v6663
    %v6818 = vmax.f32 %v6432, %v6668
    %v6819 = vmax.f32 %v6433, %v6673
    %v6820 = vmax.f32 %v6434, %v6678
    %v6821 = vmax.f32 %v6435, %v6683
    %v6822 = vmax.f32 %v6436, %v6688
    %v6823 = vmax.f32 %v6437, %v6693
    %v6824 = vmax.f32 %v6438, %v6698
    %v6825 = vmax.f32 %v6439, %v6703
    %v6826 = vmax.f32 %v6440, %v6708
    %v6827 = vmax.f32 %v6441, %v6713
    %v6828 = vmax.f32 %v6442, %v6718
    %v6829 = vmax.f32 %v6443, %v6723
    %v6830 = vmax.f32 %v6444, %v6728
    %v6831 = vmax.f32 %v6445, %v6733
    %v6832 = vmax.f32 %v6446, %v6738
    %v6833 = vmax.f32 %v6447, %v6743
    %v6834 = vmax.f32 %v6448, %v6748
    %v6835 = vmax.f32 %v6449, %v6753
    %v6836 = vmax.f32 %v6450, %v6758
    %v6837 = vmax.f32 %v6451, %v6763
    %v6838 = vmax.f32 %v6452, %v6768
    %v6839 = vmax.f32 %v6453, %v6773
    %v6840 = vmax.f32 %v6454, %v6778
    %v6841 = vmax.f32 %v6455, %v6783
    %v6842 = vmax.f32 %v6456, %v6788
    %v6843 = vmax.f32 %v6457, %v6793
    %v6844 = vmax.f32 %v6458, %v6798
    %v6845 = vmax.f32 %v6459, %v6803
    %v6846 = vld [vmem:[%s4] sm:$0xff]
    %v6847 = vld [vmem:[%s4 + $0x8] sm:$0xff]
    %v6880 = vrot.slane %v6806, 1
    %v6881 = vrot.slane %v6807, 1
    %v6882 = vsel %vm258, %v6880, %v6881
    %v6883 = vrot.slane %v6808, 1
    %v6884 = vrot.slane %v6809, 1
    %v6885 = vsel %vm258, %v6883, %v6884
    %v6886 = vrot.slane %v6810, 1
    %v6887 = vrot.slane %v6811, 1
    %v6888 = vsel %vm258, %v6886, %v6887
    %v6889 = vrot.slane %v6812, 1
    %v6890 = vrot.slane %v6813, 1
    %v6891 = vsel %vm258, %v6889, %v6890
    %v6892 = vrot.slane %v6814, 1
    %v6893 = vrot.slane %v6815, 1
    %v6894 = vsel %vm258, %v6892, %v6893
    %v6895 = vrot.slane %v6816, 1
    %v6896 = vrot.slane %v6817, 1
    %v6897 = vsel %vm258, %v6895, %v6896
    %v6898 = vrot.slane %v6818, 1
    %v6899 = vrot.slane %v6819, 1
    %v6900 = vsel %vm258, %v6898, %v6899
    %v6901 = vrot.slane %v6820, 1
    %v6902 = vrot.slane %v6821, 1
    %v6903 = vsel %vm258, %v6901, %v6902
    %v6904 = vrot.slane %v6826, 1
    %v6905 = vrot.slane %v6827, 1
    %v6906 = vsel %vm258, %v6904, %v6905
    %v6907 = vrot.slane %v6828, 1
    %v6908 = vrot.slane %v6829, 1
    %v6909 = vsel %vm258, %v6907, %v6908
    %v6910 = vrot.slane %v6830, 1
    %v6911 = vrot.slane %v6831, 1
    %v6912 = vsel %vm258, %v6910, %v6911
    %v6913 = vrot.slane %v6832, 1
    %v6914 = vrot.slane %v6833, 1
    %v6915 = vsel %vm258, %v6913, %v6914
    %v6916 = vrot.slane %v6834, 1
    %v6917 = vrot.slane %v6835, 1
    %v6918 = vsel %vm258, %v6916, %v6917
    %v6919 = vrot.slane %v6836, 1
    %v6920 = vrot.slane %v6837, 1
    %v6921 = vsel %vm258, %v6919, %v6920
    %v6922 = vrot.slane %v6838, 1
    %v6923 = vrot.slane %v6839, 1
    %v6924 = vsel %vm258, %v6922, %v6923
    %v6925 = vrot.slane %v6840, 1
    %v6926 = vrot.slane %v6841, 1
    %v6927 = vsel %vm258, %v6925, %v6926
    %s6928 = scalar_lea.vmem %s4, 16
    %v6929 = vld [vmem:[%s6928] sm:$0xff]
    %v6930 = vld [vmem:[%s6928 + $0x8] sm:$0xff]
    %vm6931 = vcmask 130048
    %v6932 = vsel %vm6931, %v6882, 0
    %v6934 = vsel %vm6931, %v6885, 0
    %v6936 = vsel %vm6931, %v6888, 0
    %v6938 = vsel %vm6931, %v6891, 0
    %v6940 = vsel %vm6931, %v6894, 0
    %v6942 = vsel %vm6931, %v6897, 0
    %v6944 = vsel %vm6931, %v6900, 0
    %v6946 = vsel %vm6931, %v6903, 0
    %v6948 = vsel %vm6931, %v6906, 0
    %v6950 = vsel %vm6931, %v6909, 0
    %v6952 = vsel %vm6931, %v6912, 0
    %v6954 = vsel %vm6931, %v6915, 0
    %v6956 = vsel %vm6931, %v6918, 0
    %v6958 = vsel %vm6931, %v6921, 0
    %v6960 = vsel %vm6931, %v6924, 0
    %v6962 = vsel %vm6931, %v6927, 0
    %6964 = vmatprep.subr.mxu0 0.0
    %6965 = vmatpush1.msra.mxu0 0.0
    %6966 = vmatprep.subr.mxu0 0.0
    %6967 = vmatpush1.msra.mxu0 0.0
    %6968 = vmatprep.subr.mxu0 0.0
    %6969 = vmatpush1.msra.mxu0 0.0
    %6970 = vmatprep.subr.mxu0 0.0
    %6971 = vmatpush1.msra.mxu0 0.0
    %6972 = vmatprep.subr.mxu0 0.0
    %6973 = vmatpush1.msra.mxu0 0.0
    %6974 = vmatprep.subr.mxu0 0.0
    %6975 = vmatpush1.msra.mxu0 0.0
    %6976 = vmatprep.subr.mxu0 0.0
    %6977 = vmatpush1.msra.mxu0 0.0
    %6978 = vmatprep.subr.mxu0 0.0
    %6979 = vmatpush1.msra.mxu0 0.0
    %6980 = vmatprep.subr.mxu0 0.0
    %6981 = vmatpush1.msra.mxu0 0.0
    %6982 = vmatprep.subr.mxu0 0.0
    %6983 = vmatpush1.msra.mxu0 0.0
    %6984 = vmatprep.subr.mxu0 0.0
    %6985 = vmatpush1.msra.mxu0 0.0
    %6986 = vmatprep.subr.mxu0 0.0
    %6987 = vmatpush1.msra.mxu0 0.0
    %6988 = vmatprep.subr.mxu0 0.0
    %6989 = vmatpush1.msra.mxu0 0.0
    %6990 = vmatprep.subr.mxu0 0.0
    %6991 = vmatpush1.msra.mxu0 0.0
    %6992 = vmatprep.subr.mxu0 0.0
    %6993 = vmatpush1.msra.mxu0 %v6930
    %6994 = vmatprep.subr.mxu0 0.0
    %6995 = vmatpush1.msra.mxu0 %v6929
    %6996 = vmatprep.subr.mxu0 0.0
    %6997 = vmatpush2.msra.mxu0 0.0
    %6998 = vmatprep.subr.mxu0 0.0
    %6999 = vmatpush2.msra.mxu0 0.0
    %7000 = vmatprep.subr.mxu0 0.0
    %7001 = vmatpush2.msra.mxu0 0.0
    %7002 = vmatprep.subr.mxu0 0.0
    %7003 = vmatpush2.msra.mxu0 0.0
    %7004 = vmatprep.subr.mxu0 0.0
    %7005 = vmatpush2.msra.mxu0 0.0
    %7006 = vmatprep.subr.mxu0 0.0
    %7007 = vmatpush2.msra.mxu0 0.0
    %7008 = vmatprep.subr.mxu0 0.0
    %7009 = vmatpush2.msra.mxu0 0.0
    %7010 = vmatprep.subr.mxu0 0.0
    %7011 = vmatpush2.msra.mxu0 0.0
    %7012 = vmatprep.subr.mxu0 0.0
    %7013 = vmatpush2.msra.mxu0 0.0
    %7014 = vmatprep.subr.mxu0 0.0
    %7015 = vmatpush2.msra.mxu0 0.0
    %7016 = vmatprep.subr.mxu0 0.0
    %7017 = vmatpush2.msra.mxu0 0.0
    %7018 = vmatprep.subr.mxu0 0.0
    %7019 = vmatpush2.msra.mxu0 0.0
    %7020 = vmatprep.subr.mxu0 0.0
    %7021 = vmatpush2.msra.mxu0 0.0
    %7022 = vmatprep.subr.mxu0 0.0
    %7023 = vmatpush2.msra.mxu0 0.0
    %7024 = vmatprep.subr.mxu0 0.0
    %7025 = vmatpush2.msra.mxu0 0.0
    %7026 = vmatprep.subr.mxu0 0.0
    %7027 = vmatpush2.msra.mxu0 0.0
    %7028 = vmatprep.mubr.f32.mxu0 0.0
    %7029 = vmatmul.mubr.f32.gmra.mxu0 %v6932
    %v7030 = vpop.f32.mrf.mxu0
    %v7031 = vadd.f32 0.0, %v7030
    %v7032 = vpop.f32.mrf.mxu0
    %7033 = vmatprep.mubr.f32.mxu0 0.0
    %7034 = vmatmul.mubr.f32.gmra.mxu0 %v6934
    %v7035 = vpop.f32.mrf.mxu0
    %v7036 = vadd.f32 0.0, %v7035
    %v7037 = vpop.f32.mrf.mxu0
    %7038 = vmatprep.mubr.f32.mxu0 0.0
    %7039 = vmatmul.mubr.f32.gmra.mxu0 %v6936
    %v7040 = vpop.f32.mrf.mxu0
    %v7041 = vadd.f32 0.0, %v7040
    %v7042 = vpop.f32.mrf.mxu0
    %7043 = vmatprep.mubr.f32.mxu0 0.0
    %7044 = vmatmul.mubr.f32.gmra.mxu0 %v6938
    %v7045 = vpop.f32.mrf.mxu0
    %v7046 = vadd.f32 0.0, %v7045
    %v7047 = vpop.f32.mrf.mxu0
    %7048 = vmatprep.mubr.f32.mxu0 0.0
    %7049 = vmatmul.mubr.f32.gmra.mxu0 %v6940
    %v7050 = vpop.f32.mrf.mxu0
    %v7051 = vadd.f32 0.0, %v7050
    %v7052 = vpop.f32.mrf.mxu0
    %7053 = vmatprep.mubr.f32.mxu0 0.0
    %7054 = vmatmul.mubr.f32.gmra.mxu0 %v6942
    %v7055 = vpop.f32.mrf.mxu0
    %v7056 = vadd.f32 0.0, %v7055
    %v7057 = vpop.f32.mrf.mxu0
    %7058 = vmatprep.mubr.f32.mxu0 0.0
    %7059 = vmatmul.mubr.f32.gmra.mxu0 %v6944
    %v7060 = vpop.f32.mrf.mxu0
    %v7061 = vadd.f32 0.0, %v7060
    %v7062 = vpop.f32.mrf.mxu0
    %7063 = vmatprep.mubr.f32.mxu0 0.0
    %7064 = vmatmul.mubr.f32.gmra.mxu0 %v6946
    %v7065 = vpop.f32.mrf.mxu0
    %v7066 = vadd.f32 0.0, %v7065
    %v7067 = vpop.f32.mrf.mxu0
    %7068 = vmatprep.mubr.f32.mxu0 0.0
    %7069 = vmatmul.mubr.f32.gmra.mxu0 %v6948
    %v7070 = vpop.f32.mrf.mxu0
    %v7071 = vadd.f32 0.0, %v7070
    %v7072 = vpop.f32.mrf.mxu0
    %7073 = vmatprep.mubr.f32.mxu0 0.0
    %7074 = vmatmul.mubr.f32.gmra.mxu0 %v6950
    %v7075 = vpop.f32.mrf.mxu0
    %v7076 = vadd.f32 0.0, %v7075
    %v7077 = vpop.f32.mrf.mxu0
    %7078 = vmatprep.mubr.f32.mxu0 0.0
    %7079 = vmatmul.mubr.f32.gmra.mxu0 %v6952
    %v7080 = vpop.f32.mrf.mxu0
    %v7081 = vadd.f32 0.0, %v7080
    %v7082 = vpop.f32.mrf.mxu0
    %7083 = vmatprep.mubr.f32.mxu0 0.0
    %7084 = vmatmul.mubr.f32.gmra.mxu0 %v6954
    %v7085 = vpop.f32.mrf.mxu0
    %v7086 = vadd.f32 0.0, %v7085
    %v7087 = vpop.f32.mrf.mxu0
    %7088 = vmatprep.mubr.f32.mxu0 0.0
    %7089 = vmatmul.mubr.f32.gmra.mxu0 %v6956
    %v7090 = vpop.f32.mrf.mxu0
    %v7091 = vadd.f32 0.0, %v7090
    %v7092 = vpop.f32.mrf.mxu0
    %7093 = vmatprep.mubr.f32.mxu0 0.0
    %7094 = vmatmul.mubr.f32.gmra.mxu0 %v6958
    %v7095 = vpop.f32.mrf.mxu0
    %v7096 = vadd.f32 0.0, %v7095
    %v7097 = vpop.f32.mrf.mxu0
    %7098 = vmatprep.mubr.f32.mxu0 0.0
    %7099 = vmatmul.mubr.f32.gmra.mxu0 %v6960
    %v7100 = vpop.f32.mrf.mxu0
    %v7101 = vadd.f32 0.0, %v7100
    %v7102 = vpop.f32.mrf.mxu0
    %7103 = vmatprep.mubr.f32.mxu0 0.0
    %7104 = vmatmul.mubr.f32.gmra.mxu0 %v6962
    %v7105 = vpop.f32.mrf.mxu0
    %v7106 = vadd.f32 0.0, %v7105
    %v7107 = vpop.f32.mrf.mxu0
    %7108 = vdwg.mxu0
    %v7109 = vsel %vm6931, %v6806, 0
    %v7111 = vsel %vm6931, %v6808, 0
    %v7113 = vsel %vm6931, %v6810, 0
    %v7115 = vsel %vm6931, %v6812, 0
    %v7117 = vsel %vm6931, %v6814, 0
    %v7119 = vsel %vm6931, %v6816, 0
    %v7121 = vsel %vm6931, %v6818, 0
    %v7123 = vsel %vm6931, %v6820, 0
    %v7125 = vsel %vm6931, %v6826, 0
    %v7127 = vsel %vm6931, %v6828, 0
    %v7129 = vsel %vm6931, %v6830, 0
    %v7131 = vsel %vm6931, %v6832, 0
    %v7133 = vsel %vm6931, %v6834, 0
    %v7135 = vsel %vm6931, %v6836, 0
    %v7137 = vsel %vm6931, %v6838, 0
    %v7139 = vsel %vm6931, %v6840, 0
    %7141 = vmatprep.subr.mxu0 0.0
    %7142 = vmatpush1.msra.mxu0 0.0
    %7143 = vmatprep.subr.mxu0 0.0
    %7144 = vmatpush1.msra.mxu0 0.0
    %7145 = vmatprep.subr.mxu0 0.0
    %7146 = vmatpush1.msra.mxu0 0.0
    %7147 = vmatprep.subr.mxu0 0.0
    %7148 = vmatpush1.msra.mxu0 0.0
    %7149 = vmatprep.subr.mxu0 0.0
    %7150 = vmatpush1.msra.mxu0 0.0
    %7151 = vmatprep.subr.mxu0 0.0
    %7152 = vmatpush1.msra.mxu0 0.0
    %7153 = vmatprep.subr.mxu0 0.0
    %7154 = vmatpush1.msra.mxu0 0.0
    %7155 = vmatprep.subr.mxu0 0.0
    %7156 = vmatpush1.msra.mxu0 0.0
    %7157 = vmatprep.subr.mxu0 0.0
    %7158 = vmatpush1.msra.mxu0 0.0
    %7159 = vmatprep.subr.mxu0 0.0
    %7160 = vmatpush1.msra.mxu0 0.0
    %7161 = vmatprep.subr.mxu0 0.0
    %7162 = vmatpush1.msra.mxu0 0.0
    %7163 = vmatprep.subr.mxu0 0.0
    %7164 = vmatpush1.msra.mxu0 0.0
    %7165 = vmatprep.subr.mxu0 0.0
    %7166 = vmatpush1.msra.mxu0 0.0
    %7167 = vmatprep.subr.mxu0 0.0
    %7168 = vmatpush1.msra.mxu0 0.0
    %7169 = vmatprep.subr.mxu0 0.0
    %7170 = vmatpush1.msra.mxu0 %v6847
    %7171 = vmatprep.subr.mxu0 0.0
    %7172 = vmatpush1.msra.mxu0 %v6846
    %7173 = vmatprep.subr.mxu0 0.0
    %7174 = vmatpush2.msra.mxu0 0.0
    %7175 = vmatprep.subr.mxu0 0.0
    %7176 = vmatpush2.msra.mxu0 0.0
    %7177 = vmatprep.subr.mxu0 0.0
    %7178 = vmatpush2.msra.mxu0 0.0
    %7179 = vmatprep.subr.mxu0 0.0
    %7180 = vmatpush2.msra.mxu0 0.0
    %7181 = vmatprep.subr.mxu0 0.0
    %7182 = vmatpush2.msra.mxu0 0.0
    %7183 = vmatprep.subr.mxu0 0.0
    %7184 = vmatpush2.msra.mxu0 0.0
    %7185 = vmatprep.subr.mxu0 0.0
    %7186 = vmatpush2.msra.mxu0 0.0
    %7187 = vmatprep.subr.mxu0 0.0
    %7188 = vmatpush2.msra.mxu0 0.0
    %7189 = vmatprep.subr.mxu0 0.0
    %7190 = vmatpush2.msra.mxu0 0.0
    %7191 = vmatprep.subr.mxu0 0.0
    %7192 = vmatpush2.msra.mxu0 0.0
    %7193 = vmatprep.subr.mxu0 0.0
    %7194 = vmatpush2.msra.mxu0 0.0
    %7195 = vmatprep.subr.mxu0 0.0
    %7196 = vmatpush2.msra.mxu0 0.0
    %7197 = vmatprep.subr.mxu0 0.0
    %7198 = vmatpush2.msra.mxu0 0.0
    %7199 = vmatprep.subr.mxu0 0.0
    %7200 = vmatpush2.msra.mxu0 0.0
    %7201 = vmatprep.subr.mxu0 0.0
    %7202 = vmatpush2.msra.mxu0 0.0
    %7203 = vmatprep.subr.mxu0 0.0
    %7204 = vmatpush2.msra.mxu0 0.0
    %7205 = vmatprep.mubr.f32.mxu0 0.0
    %7206 = vmatmul.mubr.f32.gmra.mxu0 %v7109
    %v7207 = vpop.f32.mrf.mxu0
    %v7208 = vadd.f32 %v7031, %v7207
    %v7209 = vpop.f32.mrf.mxu0
    %7210 = vmatprep.mubr.f32.mxu0 0.0
    %7211 = vmatmul.mubr.f32.gmra.mxu0 %v7111
    %v7212 = vpop.f32.mrf.mxu0
    %v7213 = vadd.f32 %v7036, %v7212
    %v7214 = vpop.f32.mrf.mxu0
    %7215 = vmatprep.mubr.f32.mxu0 0.0
    %7216 = vmatmul.mubr.f32.gmra.mxu0 %v7113
    %v7217 = vpop.f32.mrf.mxu0
    %v7218 = vadd.f32 %v7041, %v7217
    %v7219 = vpop.f32.mrf.mxu0
    %7220 = vmatprep.mubr.f32.mxu0 0.0
    %7221 = vmatmul.mubr.f32.gmra.mxu0 %v7115
    %v7222 = vpop.f32.mrf.mxu0
    %v7223 = vadd.f32 %v7046, %v7222
    %v7224 = vpop.f32.mrf.mxu0
    %7225 = vmatprep.mubr.f32.mxu0 0.0
    %7226 = vmatmul.mubr.f32.gmra.mxu0 %v7117
    %v7227 = vpop.f32.mrf.mxu0
    %v7228 = vadd.f32 %v7051, %v7227
    %v7229 = vpop.f32.mrf.mxu0
    %7230 = vmatprep.mubr.f32.mxu0 0.0
    %7231 = vmatmul.mubr.f32.gmra.mxu0 %v7119
    %v7232 = vpop.f32.mrf.mxu0
    %v7233 = vadd.f32 %v7056, %v7232
    %v7234 = vpop.f32.mrf.mxu0
    %7235 = vmatprep.mubr.f32.mxu0 0.0
    %7236 = vmatmul.mubr.f32.gmra.mxu0 %v7121
    %v7237 = vpop.f32.mrf.mxu0
    %v7238 = vadd.f32 %v7061, %v7237
    %v7239 = vpop.f32.mrf.mxu0
    %7240 = vmatprep.mubr.f32.mxu0 0.0
    %7241 = vmatmul.mubr.f32.gmra.mxu0 %v7123
    %v7242 = vpop.f32.mrf.mxu0
    %v7243 = vadd.f32 %v7066, %v7242
    %v7244 = vpop.f32.mrf.mxu0
    %7245 = vmatprep.mubr.f32.mxu0 0.0
    %7246 = vmatmul.mubr.f32.gmra.mxu0 %v7125
    %v7247 = vpop.f32.mrf.mxu0
    %v7248 = vadd.f32 %v7071, %v7247
    %v7249 = vpop.f32.mrf.mxu0
    %7250 = vmatprep.mubr.f32.mxu0 0.0
    %7251 = vmatmul.mubr.f32.gmra.mxu0 %v7127
    %v7252 = vpop.f32.mrf.mxu0
    %v7253 = vadd.f32 %v7076, %v7252
    %v7254 = vpop.f32.mrf.mxu0
    %7255 = vmatprep.mubr.f32.mxu0 0.0
    %7256 = vmatmul.mubr.f32.gmra.mxu0 %v7129
    %v7257 = vpop.f32.mrf.mxu0
    %v7258 = vadd.f32 %v7081, %v7257
    %v7259 = vpop.f32.mrf.mxu0
    %7260 = vmatprep.mubr.f32.mxu0 0.0
    %7261 = vmatmul.mubr.f32.gmra.mxu0 %v7131
    %v7262 = vpop.f32.mrf.mxu0
    %v7263 = vadd.f32 %v7086, %v7262
    %v7264 = vpop.f32.mrf.mxu0
    %7265 = vmatprep.mubr.f32.mxu0 0.0
    %7266 = vmatmul.mubr.f32.gmra.mxu0 %v7133
    %v7267 = vpop.f32.mrf.mxu0
    %v7268 = vadd.f32 %v7091, %v7267
    %v7269 = vpop.f32.mrf.mxu0
    %7270 = vmatprep.mubr.f32.mxu0 0.0
    %7271 = vmatmul.mubr.f32.gmra.mxu0 %v7135
    %v7272 = vpop.f32.mrf.mxu0
    %v7273 = vadd.f32 %v7096, %v7272
    %v7274 = vpop.f32.mrf.mxu0
    %7275 = vmatprep.mubr.f32.mxu0 0.0
    %7276 = vmatmul.mubr.f32.gmra.mxu0 %v7137
    %v7277 = vpop.f32.mrf.mxu0
    %v7278 = vadd.f32 %v7101, %v7277
    %v7279 = vpop.f32.mrf.mxu0
    %7280 = vmatprep.mubr.f32.mxu0 0.0
    %7281 = vmatmul.mubr.f32.gmra.mxu0 %v7139
    %v7282 = vpop.f32.mrf.mxu0
    %v7283 = vadd.f32 %v7106, %v7282
    %v7284 = vpop.f32.mrf.mxu0
    %7285 = vdwg.mxu0
    %v7286 = vrot.slane %v6806, 2
    %v7287 = vrot.slane %v6807, 2
    %v7288 = vsel %vm1455, %v7286, %v7287
    %v7289 = vrot.slane %v6808, 2
    %v7290 = vrot.slane %v6809, 2
    %v7291 = vsel %vm1455, %v7289, %v7290
    %v7292 = vrot.slane %v6810, 2
    %v7293 = vrot.slane %v6811, 2
    %v7294 = vsel %vm1455, %v7292, %v7293
    %v7295 = vrot.slane %v6812, 2
    %v7296 = vrot.slane %v6813, 2
    %v7297 = vsel %vm1455, %v7295, %v7296
    %v7298 = vrot.slane %v6814, 2
    %v7299 = vrot.slane %v6815, 2
    %v7300 = vsel %vm1455, %v7298, %v7299
    %v7301 = vrot.slane %v6816, 2
    %v7302 = vrot.slane %v6817, 2
    %v7303 = vsel %vm1455, %v7301, %v7302
    %v7304 = vrot.slane %v6818, 2
    %v7305 = vrot.slane %v6819, 2
    %v7306 = vsel %vm1455, %v7304, %v7305
    %v7307 = vrot.slane %v6820, 2
    %v7308 = vrot.slane %v6821, 2
    %v7309 = vsel %vm1455, %v7307, %v7308
    %v7310 = vrot.slane %v6826, 2
    %v7311 = vrot.slane %v6827, 2
    %v7312 = vsel %vm1455, %v7310, %v7311
    %v7313 = vrot.slane %v6828, 2
    %v7314 = vrot.slane %v6829, 2
    %v7315 = vsel %vm1455, %v7313, %v7314
    %v7316 = vrot.slane %v6830, 2
    %v7317 = vrot.slane %v6831, 2
    %v7318 = vsel %vm1455, %v7316, %v7317
    %v7319 = vrot.slane %v6832, 2
    %v7320 = vrot.slane %v6833, 2
    %v7321 = vsel %vm1455, %v7319, %v7320
    %v7322 = vrot.slane %v6834, 2
    %v7323 = vrot.slane %v6835, 2
    %v7324 = vsel %vm1455, %v7322, %v7323
    %v7325 = vrot.slane %v6836, 2
    %v7326 = vrot.slane %v6837, 2
    %v7327 = vsel %vm1455, %v7325, %v7326
    %v7328 = vrot.slane %v6838, 2
    %v7329 = vrot.slane %v6839, 2
    %v7330 = vsel %vm1455, %v7328, %v7329
    %v7331 = vrot.slane %v6840, 2
    %v7332 = vrot.slane %v6841, 2
    %v7333 = vsel %vm1455, %v7331, %v7332
    %s7334 = scalar_lea.vmem %s4, 32
    %v7335 = vld [vmem:[%s7334] sm:$0xff]
    %v7336 = vld [vmem:[%s7334 + $0x8] sm:$0xff]
    %v7337 = vsel %vm6931, %v7288, 0
    %v7339 = vsel %vm6931, %v7291, 0
    %v7341 = vsel %vm6931, %v7294, 0
    %v7343 = vsel %vm6931, %v7297, 0
    %v7345 = vsel %vm6931, %v7300, 0
    %v7347 = vsel %vm6931, %v7303, 0
    %v7349 = vsel %vm6931, %v7306, 0
    %v7351 = vsel %vm6931, %v7309, 0
    %v7353 = vsel %vm6931, %v7312, 0
    %v7355 = vsel %vm6931, %v7315, 0
    %v7357 = vsel %vm6931, %v7318, 0
    %v7359 = vsel %vm6931, %v7321, 0
    %v7361 = vsel %vm6931, %v7324, 0
    %v7363 = vsel %vm6931, %v7327, 0
    %v7365 = vsel %vm6931, %v7330, 0
    %v7367 = vsel %vm6931, %v7333, 0
    %7369 = vmatprep.subr.mxu0 0.0
    %7370 = vmatpush1.msra.mxu0 0.0
    %7371 = vmatprep.subr.mxu0 0.0
    %7372 = vmatpush1.msra.mxu0 0.0
    %7373 = vmatprep.subr.mxu0 0.0
    %7374 = vmatpush1.msra.mxu0 0.0
    %7375 = vmatprep.subr.mxu0 0.0
    %7376 = vmatpush1.msra.mxu0 0.0
    %7377 = vmatprep.subr.mxu0 0.0
    %7378 = vmatpush1.msra.mxu0 0.0
    %7379 = vmatprep.subr.mxu0 0.0
    %7380 = vmatpush1.msra.mxu0 0.0
    %7381 = vmatprep.subr.mxu0 0.0
    %7382 = vmatpush1.msra.mxu0 0.0
    %7383 = vmatprep.subr.mxu0 0.0
    %7384 = vmatpush1.msra.mxu0 0.0
    %7385 = vmatprep.subr.mxu0 0.0
    %7386 = vmatpush1.msra.mxu0 0.0
    %7387 = vmatprep.subr.mxu0 0.0
    %7388 = vmatpush1.msra.mxu0 0.0
    %7389 = vmatprep.subr.mxu0 0.0
    %7390 = vmatpush1.msra.mxu0 0.0
    %7391 = vmatprep.subr.mxu0 0.0
    %7392 = vmatpush1.msra.mxu0 0.0
    %7393 = vmatprep.subr.mxu0 0.0
    %7394 = vmatpush1.msra.mxu0 0.0
    %7395 = vmatprep.subr.mxu0 0.0
    %7396 = vmatpush1.msra.mxu0 0.0
    %7397 = vmatprep.subr.mxu0 0.0
    %7398 = vmatpush1.msra.mxu0 %v7336
    %7399 = vmatprep.subr.mxu0 0.0
    %7400 = vmatpush1.msra.mxu0 %v7335
    %7401 = vmatprep.subr.mxu0 0.0
    %7402 = vmatpush2.msra.mxu0 0.0
    %7403 = vmatprep.subr.mxu0 0.0
    %7404 = vmatpush2.msra.mxu0 0.0
    %7405 = vmatprep.subr.mxu0 0.0
    %7406 = vmatpush2.msra.mxu0 0.0
    %7407 = vmatprep.subr.mxu0 0.0
    %7408 = vmatpush2.msra.mxu0 0.0
    %7409 = vmatprep.subr.mxu0 0.0
    %7410 = vmatpush2.msra.mxu0 0.0
    %7411 = vmatprep.subr.mxu0 0.0
    %7412 = vmatpush2.msra.mxu0 0.0
    %7413 = vmatprep.subr.mxu0 0.0
    %7414 = vmatpush2.msra.mxu0 0.0
    %7415 = vmatprep.subr.mxu0 0.0
    %7416 = vmatpush2.msra.mxu0 0.0
    %7417 = vmatprep.subr.mxu0 0.0
    %7418 = vmatpush2.msra.mxu0 0.0
    %7419 = vmatprep.subr.mxu0 0.0
    %7420 = vmatpush2.msra.mxu0 0.0
    %7421 = vmatprep.subr.mxu0 0.0
    %7422 = vmatpush2.msra.mxu0 0.0
    %7423 = vmatprep.subr.mxu0 0.0
    %7424 = vmatpush2.msra.mxu0 0.0
    %7425 = vmatprep.subr.mxu0 0.0
    %7426 = vmatpush2.msra.mxu0 0.0
    %7427 = vmatprep.subr.mxu0 0.0
    %7428 = vmatpush2.msra.mxu0 0.0
    %7429 = vmatprep.subr.mxu0 0.0
    %7430 = vmatpush2.msra.mxu0 0.0
    %7431 = vmatprep.subr.mxu0 0.0
    %7432 = vmatpush2.msra.mxu0 0.0
    %7433 = vmatprep.mubr.f32.mxu0 0.0
    %7434 = vmatmul.mubr.f32.gmra.mxu0 %v7337
    %v7435 = vpop.f32.mrf.mxu0
    %v7436 = vadd.f32 0.0, %v7435
    %v7437 = vpop.f32.mrf.mxu0
    %7438 = vmatprep.mubr.f32.mxu0 0.0
    %7439 = vmatmul.mubr.f32.gmra.mxu0 %v7339
    %v7440 = vpop.f32.mrf.mxu0
    %v7441 = vadd.f32 0.0, %v7440
    %v7442 = vpop.f32.mrf.mxu0
    %7443 = vmatprep.mubr.f32.mxu0 0.0
    %7444 = vmatmul.mubr.f32.gmra.mxu0 %v7341
    %v7445 = vpop.f32.mrf.mxu0
    %v7446 = vadd.f32 0.0, %v7445
    %v7447 = vpop.f32.mrf.mxu0
    %7448 = vmatprep.mubr.f32.mxu0 0.0
    %7449 = vmatmul.mubr.f32.gmra.mxu0 %v7343
    %v7450 = vpop.f32.mrf.mxu0
    %v7451 = vadd.f32 0.0, %v7450
    %v7452 = vpop.f32.mrf.mxu0
    %7453 = vmatprep.mubr.f32.mxu0 0.0
    %7454 = vmatmul.mubr.f32.gmra.mxu0 %v7345
    %v7455 = vpop.f32.mrf.mxu0
    %v7456 = vadd.f32 0.0, %v7455
    %v7457 = vpop.f32.mrf.mxu0
    %7458 = vmatprep.mubr.f32.mxu0 0.0
    %7459 = vmatmul.mubr.f32.gmra.mxu0 %v7347
    %v7460 = vpop.f32.mrf.mxu0
    %v7461 = vadd.f32 0.0, %v7460
    %v7462 = vpop.f32.mrf.mxu0
    %7463 = vmatprep.mubr.f32.mxu0 0.0
    %7464 = vmatmul.mubr.f32.gmra.mxu0 %v7349
    %v7465 = vpop.f32.mrf.mxu0
    %v7466 = vadd.f32 0.0, %v7465
    %v7467 = vpop.f32.mrf.mxu0
    %7468 = vmatprep.mubr.f32.mxu0 0.0
    %7469 = vmatmul.mubr.f32.gmra.mxu0 %v7351
    %v7470 = vpop.f32.mrf.mxu0
    %v7471 = vadd.f32 0.0, %v7470
    %v7472 = vpop.f32.mrf.mxu0
    %7473 = vmatprep.mubr.f32.mxu0 0.0
    %7474 = vmatmul.mubr.f32.gmra.mxu0 %v7353
    %v7475 = vpop.f32.mrf.mxu0
    %v7476 = vadd.f32 0.0, %v7475
    %v7477 = vpop.f32.mrf.mxu0
    %7478 = vmatprep.mubr.f32.mxu0 0.0
    %7479 = vmatmul.mubr.f32.gmra.mxu0 %v7355
    %v7480 = vpop.f32.mrf.mxu0
    %v7481 = vadd.f32 0.0, %v7480
    %v7482 = vpop.f32.mrf.mxu0
    %7483 = vmatprep.mubr.f32.mxu0 0.0
    %7484 = vmatmul.mubr.f32.gmra.mxu0 %v7357
    %v7485 = vpop.f32.mrf.mxu0
    %v7486 = vadd.f32 0.0, %v7485
    %v7487 = vpop.f32.mrf.mxu0
    %7488 = vmatprep.mubr.f32.mxu0 0.0
    %7489 = vmatmul.mubr.f32.gmra.mxu0 %v7359
    %v7490 = vpop.f32.mrf.mxu0
    %v7491 = vadd.f32 0.0, %v7490
    %v7492 = vpop.f32.mrf.mxu0
    %7493 = vmatprep.mubr.f32.mxu0 0.0
    %7494 = vmatmul.mubr.f32.gmra.mxu0 %v7361
    %v7495 = vpop.f32.mrf.mxu0
    %v7496 = vadd.f32 0.0, %v7495
    %v7497 = vpop.f32.mrf.mxu0
    %7498 = vmatprep.mubr.f32.mxu0 0.0
    %7499 = vmatmul.mubr.f32.gmra.mxu0 %v7363
    %v7500 = vpop.f32.mrf.mxu0
    %v7501 = vadd.f32 0.0, %v7500
    %v7502 = vpop.f32.mrf.mxu0
    %7503 = vmatprep.mubr.f32.mxu0 0.0
    %7504 = vmatmul.mubr.f32.gmra.mxu0 %v7365
    %v7505 = vpop.f32.mrf.mxu0
    %v7506 = vadd.f32 0.0, %v7505
    %v7507 = vpop.f32.mrf.mxu0
    %7508 = vmatprep.mubr.f32.mxu0 0.0
    %7509 = vmatmul.mubr.f32.gmra.mxu0 %v7367
    %v7510 = vpop.f32.mrf.mxu0
    %v7511 = vadd.f32 0.0, %v7510
    %v7512 = vpop.f32.mrf.mxu0
    %7513 = vdwg.mxu0
    %v7514 = vadd.f32 %v7208, %v7436
    %v7515 = vadd.f32 %v7213, %v7441
    %v7516 = vadd.f32 %v7218, %v7446
    %v7517 = vadd.f32 %v7223, %v7451
    %v7518 = vadd.f32 %v7228, %v7456
    %v7519 = vadd.f32 %v7233, %v7461
    %v7520 = vadd.f32 %v7238, %v7466
    %v7521 = vadd.f32 %v7243, %v7471
    %v7522 = vadd.f32 %v7248, %v7476
    %v7523 = vadd.f32 %v7253, %v7481
    %v7524 = vadd.f32 %v7258, %v7486
    %v7525 = vadd.f32 %v7263, %v7491
    %v7526 = vadd.f32 %v7268, %v7496
    %v7527 = vadd.f32 %v7273, %v7501
    %v7528 = vadd.f32 %v7278, %v7506
    %v7529 = vadd.f32 %v7283, %v7511
    %s7530 = scalar_lea.vmem %s4, 48
    %v7531 = vld [vmem:[%s7530] sm:$0xff]
    %v7532 = vld [vmem:[%s7530 + $0x8] sm:$0xff]
    %v7534 = vsel %vm6931, %v6822, 0
    %v7537 = vsel %vm6931, %v6842, 0
    %7539 = vmatprep.subr.mxu0 0.0
    %7540 = vmatpush1.msra.mxu0 0.0
    %7541 = vmatprep.subr.mxu0 0.0
    %7542 = vmatpush1.msra.mxu0 0.0
    %7543 = vmatprep.subr.mxu0 0.0
    %7544 = vmatpush1.msra.mxu0 0.0
    %7545 = vmatprep.subr.mxu0 0.0
    %7546 = vmatpush1.msra.mxu0 0.0
    %7547 = vmatprep.subr.mxu0 0.0
    %7548 = vmatpush1.msra.mxu0 0.0
    %7549 = vmatprep.subr.mxu0 0.0
    %7550 = vmatpush1.msra.mxu0 0.0
    %7551 = vmatprep.subr.mxu0 0.0
    %7552 = vmatpush1.msra.mxu0 0.0
    %7553 = vmatprep.subr.mxu0 0.0
    %7554 = vmatpush1.msra.mxu0 0.0
    %7555 = vmatprep.subr.mxu0 0.0
    %7556 = vmatpush1.msra.mxu0 0.0
    %7557 = vmatprep.subr.mxu0 0.0
    %7558 = vmatpush1.msra.mxu0 0.0
    %7559 = vmatprep.subr.mxu0 0.0
    %7560 = vmatpush1.msra.mxu0 0.0
    %7561 = vmatprep.subr.mxu0 0.0
    %7562 = vmatpush1.msra.mxu0 0.0
    %7563 = vmatprep.subr.mxu0 0.0
    %7564 = vmatpush1.msra.mxu0 0.0
    %7565 = vmatprep.subr.mxu0 0.0
    %7566 = vmatpush1.msra.mxu0 0.0
    %7567 = vmatprep.subr.mxu0 0.0
    %7568 = vmatpush1.msra.mxu0 %v7532
    %7569 = vmatprep.subr.mxu0 0.0
    %7570 = vmatpush1.msra.mxu0 %v7531
    %7571 = vmatprep.subr.mxu0 0.0
    %7572 = vmatpush2.msra.mxu0 0.0
    %7573 = vmatprep.subr.mxu0 0.0
    %7574 = vmatpush2.msra.mxu0 0.0
    %7575 = vmatprep.subr.mxu0 0.0
    %7576 = vmatpush2.msra.mxu0 0.0
    %7577 = vmatprep.subr.mxu0 0.0
    %7578 = vmatpush2.msra.mxu0 0.0
    %7579 = vmatprep.subr.mxu0 0.0
    %7580 = vmatpush2.msra.mxu0 0.0
    %7581 = vmatprep.subr.mxu0 0.0
    %7582 = vmatpush2.msra.mxu0 0.0
    %7583 = vmatprep.subr.mxu0 0.0
    %7584 = vmatpush2.msra.mxu0 0.0
    %7585 = vmatprep.subr.mxu0 0.0
    %7586 = vmatpush2.msra.mxu0 0.0
    %7587 = vmatprep.subr.mxu0 0.0
    %7588 = vmatpush2.msra.mxu0 0.0
    %7589 = vmatprep.subr.mxu0 0.0
    %7590 = vmatpush2.msra.mxu0 0.0
    %7591 = vmatprep.subr.mxu0 0.0
    %7592 = vmatpush2.msra.mxu0 0.0
    %7593 = vmatprep.subr.mxu0 0.0
    %7594 = vmatpush2.msra.mxu0 0.0
    %7595 = vmatprep.subr.mxu0 0.0
    %7596 = vmatpush2.msra.mxu0 0.0
    %7597 = vmatprep.subr.mxu0 0.0
    %7598 = vmatpush2.msra.mxu0 0.0
    %7599 = vmatprep.subr.mxu0 0.0
    %7600 = vmatpush2.msra.mxu0 0.0
    %7601 = vmatprep.subr.mxu0 0.0
    %7602 = vmatpush2.msra.mxu0 0.0
    %7603 = vmatprep.mubr.f32.mxu0 0.0
    %7604 = vmatmul.mubr.f32.gmra.mxu0 %v7111
    %v7605 = vpop.f32.mrf.mxu0
    %v7606 = vadd.f32 0.0, %v7605
    %v7607 = vpop.f32.mrf.mxu0
    %7608 = vmatprep.mubr.f32.mxu0 0.0
    %7609 = vmatmul.mubr.f32.gmra.mxu0 %v7113
    %v7610 = vpop.f32.mrf.mxu0
    %v7611 = vadd.f32 0.0, %v7610
    %v7612 = vpop.f32.mrf.mxu0
    %7613 = vmatprep.mubr.f32.mxu0 0.0
    %7614 = vmatmul.mubr.f32.gmra.mxu0 %v7115
    %v7615 = vpop.f32.mrf.mxu0
    %v7616 = vadd.f32 0.0, %v7615
    %v7617 = vpop.f32.mrf.mxu0
    %7618 = vmatprep.mubr.f32.mxu0 0.0
    %7619 = vmatmul.mubr.f32.gmra.mxu0 %v7117
    %v7620 = vpop.f32.mrf.mxu0
    %v7621 = vadd.f32 0.0, %v7620
    %v7622 = vpop.f32.mrf.mxu0
    %7623 = vmatprep.mubr.f32.mxu0 0.0
    %7624 = vmatmul.mubr.f32.gmra.mxu0 %v7119
    %v7625 = vpop.f32.mrf.mxu0
    %v7626 = vadd.f32 0.0, %v7625
    %v7627 = vpop.f32.mrf.mxu0
    %7628 = vmatprep.mubr.f32.mxu0 0.0
    %7629 = vmatmul.mubr.f32.gmra.mxu0 %v7121
    %v7630 = vpop.f32.mrf.mxu0
    %v7631 = vadd.f32 0.0, %v7630
    %v7632 = vpop.f32.mrf.mxu0
    %7633 = vmatprep.mubr.f32.mxu0 0.0
    %7634 = vmatmul.mubr.f32.gmra.mxu0 %v7123
    %v7635 = vpop.f32.mrf.mxu0
    %v7636 = vadd.f32 0.0, %v7635
    %v7637 = vpop.f32.mrf.mxu0
    %7638 = vmatprep.mubr.f32.mxu0 0.0
    %7639 = vmatmul.mubr.f32.gmra.mxu0 %v7534
    %v7640 = vpop.f32.mrf.mxu0
    %v7641 = vadd.f32 0.0, %v7640
    %v7642 = vpop.f32.mrf.mxu0
    %7643 = vmatprep.mubr.f32.mxu0 0.0
    %7644 = vmatmul.mubr.f32.gmra.mxu0 %v7127
    %v7645 = vpop.f32.mrf.mxu0
    %v7646 = vadd.f32 0.0, %v7645
    %v7647 = vpop.f32.mrf.mxu0
    %7648 = vmatprep.mubr.f32.mxu0 0.0
    %7649 = vmatmul.mubr.f32.gmra.mxu0 %v7129
    %v7650 = vpop.f32.mrf.mxu0
    %v7651 = vadd.f32 0.0, %v7650
    %v7652 = vpop.f32.mrf.mxu0
    %7653 = vmatprep.mubr.f32.mxu0 0.0
    %7654 = vmatmul.mubr.f32.gmra.mxu0 %v7131
    %v7655 = vpop.f32.mrf.mxu0
    %v7656 = vadd.f32 0.0, %v7655
    %v7657 = vpop.f32.mrf.mxu0
    %7658 = vmatprep.mubr.f32.mxu0 0.0
    %7659 = vmatmul.mubr.f32.gmra.mxu0 %v7133
    %v7660 = vpop.f32.mrf.mxu0
    %v7661 = vadd.f32 0.0, %v7660
    %v7662 = vpop.f32.mrf.mxu0
    %7663 = vmatprep.mubr.f32.mxu0 0.0
    %7664 = vmatmul.mubr.f32.gmra.mxu0 %v7135
    %v7665 = vpop.f32.mrf.mxu0
    %v7666 = vadd.f32 0.0, %v7665
    %v7667 = vpop.f32.mrf.mxu0
    %7668 = vmatprep.mubr.f32.mxu0 0.0
    %7669 = vmatmul.mubr.f32.gmra.mxu0 %v7137
    %v7670 = vpop.f32.mrf.mxu0
    %v7671 = vadd.f32 0.0, %v7670
    %v7672 = vpop.f32.mrf.mxu0
    %7673 = vmatprep.mubr.f32.mxu0 0.0
    %7674 = vmatmul.mubr.f32.gmra.mxu0 %v7139
    %v7675 = vpop.f32.mrf.mxu0
    %v7676 = vadd.f32 0.0, %v7675
    %v7677 = vpop.f32.mrf.mxu0
    %7678 = vmatprep.mubr.f32.mxu0 0.0
    %7679 = vmatmul.mubr.f32.gmra.mxu0 %v7537
    %v7680 = vpop.f32.mrf.mxu0
    %v7681 = vadd.f32 0.0, %v7680
    %v7682 = vpop.f32.mrf.mxu0
    %7683 = vdwg.mxu0
    %v7684 = vadd.f32 %v7514, %v7606
    %v7685 = vadd.f32 %v7515, %v7611
    %v7686 = vadd.f32 %v7516, %v7616
    %v7687 = vadd.f32 %v7517, %v7621
    %v7688 = vadd.f32 %v7518, %v7626
    %v7689 = vadd.f32 %v7519, %v7631
    %v7690 = vadd.f32 %v7520, %v7636
    %v7691 = vadd.f32 %v7521, %v7641
    %v7692 = vadd.f32 %v7522, %v7646
    %v7693 = vadd.f32 %v7523, %v7651
    %v7694 = vadd.f32 %v7524, %v7656
    %v7695 = vadd.f32 %v7525, %v7661
    %v7696 = vadd.f32 %v7526, %v7666
    %v7697 = vadd.f32 %v7527, %v7671
    %v7698 = vadd.f32 %v7528, %v7676
    %v7699 = vadd.f32 %v7529, %v7681
    %v7702 = vrot.slane %v6822, 1
    %v7703 = vrot.slane %v6823, 1
    %v7704 = vsel %vm258, %v7702, %v7703
    %v7705 = vrot.slane %v6842, 1
    %v7706 = vrot.slane %v6843, 1
    %v7707 = vsel %vm258, %v7705, %v7706
    %s7708 = scalar_lea.vmem %s4, 64
    %v7709 = vld [vmem:[%s7708] sm:$0xff]
    %v7710 = vld [vmem:[%s7708 + $0x8] sm:$0xff]
    %v7711 = vsel %vm6931, %v7704, 0
    %v7713 = vsel %vm6931, %v7707, 0
    %7715 = vmatprep.subr.mxu0 0.0
    %7716 = vmatpush1.msra.mxu0 0.0
    %7717 = vmatprep.subr.mxu0 0.0
    %7718 = vmatpush1.msra.mxu0 0.0
    %7719 = vmatprep.subr.mxu0 0.0
    %7720 = vmatpush1.msra.mxu0 0.0
    %7721 = vmatprep.subr.mxu0 0.0
    %7722 = vmatpush1.msra.mxu0 0.0
    %7723 = vmatprep.subr.mxu0 0.0
    %7724 = vmatpush1.msra.mxu0 0.0
    %7725 = vmatprep.subr.mxu0 0.0
    %7726 = vmatpush1.msra.mxu0 0.0
    %7727 = vmatprep.subr.mxu0 0.0
    %7728 = vmatpush1.msra.mxu0 0.0
    %7729 = vmatprep.subr.mxu0 0.0
    %7730 = vmatpush1.msra.mxu0 0.0
    %7731 = vmatprep.subr.mxu0 0.0
    %7732 = vmatpush1.msra.mxu0 0.0
    %7733 = vmatprep.subr.mxu0 0.0
    %7734 = vmatpush1.msra.mxu0 0.0
    %7735 = vmatprep.subr.mxu0 0.0
    %7736 = vmatpush1.msra.mxu0 0.0
    %7737 = vmatprep.subr.mxu0 0.0
    %7738 = vmatpush1.msra.mxu0 0.0
    %7739 = vmatprep.subr.mxu0 0.0
    %7740 = vmatpush1.msra.mxu0 0.0
    %7741 = vmatprep.subr.mxu0 0.0
    %7742 = vmatpush1.msra.mxu0 0.0
    %7743 = vmatprep.subr.mxu0 0.0
    %7744 = vmatpush1.msra.mxu0 %v7710
    %7745 = vmatprep.subr.mxu0 0.0
    %7746 = vmatpush1.msra.mxu0 %v7709
    %7747 = vmatprep.subr.mxu0 0.0
    %7748 = vmatpush2.msra.mxu0 0.0
    %7749 = vmatprep.subr.mxu0 0.0
    %7750 = vmatpush2.msra.mxu0 0.0
    %7751 = vmatprep.subr.mxu0 0.0
    %7752 = vmatpush2.msra.mxu0 0.0
    %7753 = vmatprep.subr.mxu0 0.0
    %7754 = vmatpush2.msra.mxu0 0.0
    %7755 = vmatprep.subr.mxu0 0.0
    %7756 = vmatpush2.msra.mxu0 0.0
    %7757 = vmatprep.subr.mxu0 0.0
    %7758 = vmatpush2.msra.mxu0 0.0
    %7759 = vmatprep.subr.mxu0 0.0
    %7760 = vmatpush2.msra.mxu0 0.0
    %7761 = vmatprep.subr.mxu0 0.0
    %7762 = vmatpush2.msra.mxu0 0.0
    %7763 = vmatprep.subr.mxu0 0.0
    %7764 = vmatpush2.msra.mxu0 0.0
    %7765 = vmatprep.subr.mxu0 0.0
    %7766 = vmatpush2.msra.mxu0 0.0
    %7767 = vmatprep.subr.mxu0 0.0
    %7768 = vmatpush2.msra.mxu0 0.0
    %7769 = vmatprep.subr.mxu0 0.0
    %7770 = vmatpush2.msra.mxu0 0.0
    %7771 = vmatprep.subr.mxu0 0.0
    %7772 = vmatpush2.msra.mxu0 0.0
    %7773 = vmatprep.subr.mxu0 0.0
    %7774 = vmatpush2.msra.mxu0 0.0
    %7775 = vmatprep.subr.mxu0 0.0
    %7776 = vmatpush2.msra.mxu0 0.0
    %7777 = vmatprep.subr.mxu0 0.0
    %7778 = vmatpush2.msra.mxu0 0.0
    %7779 = vmatprep.mubr.f32.mxu0 0.0
    %7780 = vmatmul.mubr.f32.gmra.mxu0 %v6934
    %v7781 = vpop.f32.mrf.mxu0
    %v7782 = vadd.f32 0.0, %v7781
    %v7783 = vpop.f32.mrf.mxu0
    %7784 = vmatprep.mubr.f32.mxu0 0.0
    %7785 = vmatmul.mubr.f32.gmra.mxu0 %v6936
    %v7786 = vpop.f32.mrf.mxu0
    %v7787 = vadd.f32 0.0, %v7786
    %v7788 = vpop.f32.mrf.mxu0
    %7789 = vmatprep.mubr.f32.mxu0 0.0
    %7790 = vmatmul.mubr.f32.gmra.mxu0 %v6938
    %v7791 = vpop.f32.mrf.mxu0
    %v7792 = vadd.f32 0.0, %v7791
    %v7793 = vpop.f32.mrf.mxu0
    %7794 = vmatprep.mubr.f32.mxu0 0.0
    %7795 = vmatmul.mubr.f32.gmra.mxu0 %v6940
    %v7796 = vpop.f32.mrf.mxu0
    %v7797 = vadd.f32 0.0, %v7796
    %v7798 = vpop.f32.mrf.mxu0
    %7799 = vmatprep.mubr.f32.mxu0 0.0
    %7800 = vmatmul.mubr.f32.gmra.mxu0 %v6942
    %v7801 = vpop.f32.mrf.mxu0
    %v7802 = vadd.f32 0.0, %v7801
    %v7803 = vpop.f32.mrf.mxu0
    %7804 = vmatprep.mubr.f32.mxu0 0.0
    %7805 = vmatmul.mubr.f32.gmra.mxu0 %v6944
    %v7806 = vpop.f32.mrf.mxu0
    %v7807 = vadd.f32 0.0, %v7806
    %v7808 = vpop.f32.mrf.mxu0
    %7809 = vmatprep.mubr.f32.mxu0 0.0
    %7810 = vmatmul.mubr.f32.gmra.mxu0 %v6946
    %v7811 = vpop.f32.mrf.mxu0
    %v7812 = vadd.f32 0.0, %v7811
    %v7813 = vpop.f32.mrf.mxu0
    %7814 = vmatprep.mubr.f32.mxu0 0.0
    %7815 = vmatmul.mubr.f32.gmra.mxu0 %v7711
    %v7816 = vpop.f32.mrf.mxu0
    %v7817 = vadd.f32 0.0, %v7816
    %v7818 = vpop.f32.mrf.mxu0
    %7819 = vmatprep.mubr.f32.mxu0 0.0
    %7820 = vmatmul.mubr.f32.gmra.mxu0 %v6950
    %v7821 = vpop.f32.mrf.mxu0
    %v7822 = vadd.f32 0.0, %v7821
    %v7823 = vpop.f32.mrf.mxu0
    %7824 = vmatprep.mubr.f32.mxu0 0.0
    %7825 = vmatmul.mubr.f32.gmra.mxu0 %v6952
    %v7826 = vpop.f32.mrf.mxu0
    %v7827 = vadd.f32 0.0, %v7826
    %v7828 = vpop.f32.mrf.mxu0
    %7829 = vmatprep.mubr.f32.mxu0 0.0
    %7830 = vmatmul.mubr.f32.gmra.mxu0 %v6954
    %v7831 = vpop.f32.mrf.mxu0
    %v7832 = vadd.f32 0.0, %v7831
    %v7833 = vpop.f32.mrf.mxu0
    %7834 = vmatprep.mubr.f32.mxu0 0.0
    %7835 = vmatmul.mubr.f32.gmra.mxu0 %v6956
    %v7836 = vpop.f32.mrf.mxu0
    %v7837 = vadd.f32 0.0, %v7836
    %v7838 = vpop.f32.mrf.mxu0
    %7839 = vmatprep.mubr.f32.mxu0 0.0
    %7840 = vmatmul.mubr.f32.gmra.mxu0 %v6958
    %v7841 = vpop.f32.mrf.mxu0
    %v7842 = vadd.f32 0.0, %v7841
    %v7843 = vpop.f32.mrf.mxu0
    %7844 = vmatprep.mubr.f32.mxu0 0.0
    %7845 = vmatmul.mubr.f32.gmra.mxu0 %v6960
    %v7846 = vpop.f32.mrf.mxu0
    %v7847 = vadd.f32 0.0, %v7846
    %v7848 = vpop.f32.mrf.mxu0
    %7849 = vmatprep.mubr.f32.mxu0 0.0
    %7850 = vmatmul.mubr.f32.gmra.mxu0 %v6962
    %v7851 = vpop.f32.mrf.mxu0
    %v7852 = vadd.f32 0.0, %v7851
    %v7853 = vpop.f32.mrf.mxu0
    %7854 = vmatprep.mubr.f32.mxu0 0.0
    %7855 = vmatmul.mubr.f32.gmra.mxu0 %v7713
    %v7856 = vpop.f32.mrf.mxu0
    %v7857 = vadd.f32 0.0, %v7856
    %v7858 = vpop.f32.mrf.mxu0
    %7859 = vdwg.mxu0
    %v7860 = vadd.f32 %v7684, %v7782
    %v7861 = vadd.f32 %v7685, %v7787
    %v7862 = vadd.f32 %v7686, %v7792
    %v7863 = vadd.f32 %v7687, %v7797
    %v7864 = vadd.f32 %v7688, %v7802
    %v7865 = vadd.f32 %v7689, %v7807
    %v7866 = vadd.f32 %v7690, %v7812
    %v7867 = vadd.f32 %v7691, %v7817
    %v7868 = vadd.f32 %v7692, %v7822
    %v7869 = vadd.f32 %v7693, %v7827
    %v7870 = vadd.f32 %v7694, %v7832
    %v7871 = vadd.f32 %v7695, %v7837
    %v7872 = vadd.f32 %v7696, %v7842
    %v7873 = vadd.f32 %v7697, %v7847
    %v7874 = vadd.f32 %v7698, %v7852
    %v7875 = vadd.f32 %v7699, %v7857
    %v7876 = vrot.slane %v6822, 2
    %v7877 = vrot.slane %v6823, 2
    %v7878 = vsel %vm1455, %v7876, %v7877
    %v7879 = vrot.slane %v6842, 2
    %v7880 = vrot.slane %v6843, 2
    %v7881 = vsel %vm1455, %v7879, %v7880
    %s7882 = scalar_lea.vmem %s4, 80
    %v7883 = vld [vmem:[%s7882] sm:$0xff]
    %v7884 = vld [vmem:[%s7882 + $0x8] sm:$0xff]
    %v7885 = vsel %vm6931, %v7878, 0
    %v7887 = vsel %vm6931, %v7881, 0
    %7889 = vmatprep.subr.mxu0 0.0
    %7890 = vmatpush1.msra.mxu0 0.0
    %7891 = vmatprep.subr.mxu0 0.0
    %7892 = vmatpush1.msra.mxu0 0.0
    %7893 = vmatprep.subr.mxu0 0.0
    %7894 = vmatpush1.msra.mxu0 0.0
    %7895 = vmatprep.subr.mxu0 0.0
    %7896 = vmatpush1.msra.mxu0 0.0
    %7897 = vmatprep.subr.mxu0 0.0
    %7898 = vmatpush1.msra.mxu0 0.0
    %7899 = vmatprep.subr.mxu0 0.0
    %7900 = vmatpush1.msra.mxu0 0.0
    %7901 = vmatprep.subr.mxu0 0.0
    %7902 = vmatpush1.msra.mxu0 0.0
    %7903 = vmatprep.subr.mxu0 0.0
    %7904 = vmatpush1.msra.mxu0 0.0
    %7905 = vmatprep.subr.mxu0 0.0
    %7906 = vmatpush1.msra.mxu0 0.0
    %7907 = vmatprep.subr.mxu0 0.0
    %7908 = vmatpush1.msra.mxu0 0.0
    %7909 = vmatprep.subr.mxu0 0.0
    %7910 = vmatpush1.msra.mxu0 0.0
    %7911 = vmatprep.subr.mxu0 0.0
    %7912 = vmatpush1.msra.mxu0 0.0
    %7913 = vmatprep.subr.mxu0 0.0
    %7914 = vmatpush1.msra.mxu0 0.0
    %7915 = vmatprep.subr.mxu0 0.0
    %7916 = vmatpush1.msra.mxu0 0.0
    %7917 = vmatprep.subr.mxu0 0.0
    %7918 = vmatpush1.msra.mxu0 %v7884
    %7919 = vmatprep.subr.mxu0 0.0
    %7920 = vmatpush1.msra.mxu0 %v7883
    %7921 = vmatprep.subr.mxu0 0.0
    %7922 = vmatpush2.msra.mxu0 0.0
    %7923 = vmatprep.subr.mxu0 0.0
    %7924 = vmatpush2.msra.mxu0 0.0
    %7925 = vmatprep.subr.mxu0 0.0
    %7926 = vmatpush2.msra.mxu0 0.0
    %7927 = vmatprep.subr.mxu0 0.0
    %7928 = vmatpush2.msra.mxu0 0.0
    %7929 = vmatprep.subr.mxu0 0.0
    %7930 = vmatpush2.msra.mxu0 0.0
    %7931 = vmatprep.subr.mxu0 0.0
    %7932 = vmatpush2.msra.mxu0 0.0
    %7933 = vmatprep.subr.mxu0 0.0
    %7934 = vmatpush2.msra.mxu0 0.0
    %7935 = vmatprep.subr.mxu0 0.0
    %7936 = vmatpush2.msra.mxu0 0.0
    %7937 = vmatprep.subr.mxu0 0.0
    %7938 = vmatpush2.msra.mxu0 0.0
    %7939 = vmatprep.subr.mxu0 0.0
    %7940 = vmatpush2.msra.mxu0 0.0
    %7941 = vmatprep.subr.mxu0 0.0
    %7942 = vmatpush2.msra.mxu0 0.0
    %7943 = vmatprep.subr.mxu0 0.0
    %7944 = vmatpush2.msra.mxu0 0.0
    %7945 = vmatprep.subr.mxu0 0.0
    %7946 = vmatpush2.msra.mxu0 0.0
    %7947 = vmatprep.subr.mxu0 0.0
    %7948 = vmatpush2.msra.mxu0 0.0
    %7949 = vmatprep.subr.mxu0 0.0
    %7950 = vmatpush2.msra.mxu0 0.0
    %7951 = vmatprep.subr.mxu0 0.0
    %7952 = vmatpush2.msra.mxu0 0.0
    %7953 = vmatprep.mubr.f32.mxu0 0.0
    %7954 = vmatmul.mubr.f32.gmra.mxu0 %v7339
    %v7955 = vpop.f32.mrf.mxu0
    %v7956 = vadd.f32 0.0, %v7955
    %v7957 = vpop.f32.mrf.mxu0
    %7958 = vmatprep.mubr.f32.mxu0 0.0
    %7959 = vmatmul.mubr.f32.gmra.mxu0 %v7341
    %v7960 = vpop.f32.mrf.mxu0
    %v7961 = vadd.f32 0.0, %v7960
    %v7962 = vpop.f32.mrf.mxu0
    %7963 = vmatprep.mubr.f32.mxu0 0.0
    %7964 = vmatmul.mubr.f32.gmra.mxu0 %v7343
    %v7965 = vpop.f32.mrf.mxu0
    %v7966 = vadd.f32 0.0, %v7965
    %v7967 = vpop.f32.mrf.mxu0
    %7968 = vmatprep.mubr.f32.mxu0 0.0
    %7969 = vmatmul.mubr.f32.gmra.mxu0 %v7345
    %v7970 = vpop.f32.mrf.mxu0
    %v7971 = vadd.f32 0.0, %v7970
    %v7972 = vpop.f32.mrf.mxu0
    %7973 = vmatprep.mubr.f32.mxu0 0.0
    %7974 = vmatmul.mubr.f32.gmra.mxu0 %v7347
    %v7975 = vpop.f32.mrf.mxu0
    %v7976 = vadd.f32 0.0, %v7975
    %v7977 = vpop.f32.mrf.mxu0
    %7978 = vmatprep.mubr.f32.mxu0 0.0
    %7979 = vmatmul.mubr.f32.gmra.mxu0 %v7349
    %v7980 = vpop.f32.mrf.mxu0
    %v7981 = vadd.f32 0.0, %v7980
    %v7982 = vpop.f32.mrf.mxu0
    %7983 = vmatprep.mubr.f32.mxu0 0.0
    %7984 = vmatmul.mubr.f32.gmra.mxu0 %v7351
    %v7985 = vpop.f32.mrf.mxu0
    %v7986 = vadd.f32 0.0, %v7985
    %v7987 = vpop.f32.mrf.mxu0
    %7988 = vmatprep.mubr.f32.mxu0 0.0
    %7989 = vmatmul.mubr.f32.gmra.mxu0 %v7885
    %v7990 = vpop.f32.mrf.mxu0
    %v7991 = vadd.f32 0.0, %v7990
    %v7992 = vpop.f32.mrf.mxu0
    %7993 = vmatprep.mubr.f32.mxu0 0.0
    %7994 = vmatmul.mubr.f32.gmra.mxu0 %v7355
    %v7995 = vpop.f32.mrf.mxu0
    %v7996 = vadd.f32 0.0, %v7995
    %v7997 = vpop.f32.mrf.mxu0
    %7998 = vmatprep.mubr.f32.mxu0 0.0
    %7999 = vmatmul.mubr.f32.gmra.mxu0 %v7357
    %v8000 = vpop.f32.mrf.mxu0
    %v8001 = vadd.f32 0.0, %v8000
    %v8002 = vpop.f32.mrf.mxu0
    %8003 = vmatprep.mubr.f32.mxu0 0.0
    %8004 = vmatmul.mubr.f32.gmra.mxu0 %v7359
    %v8005 = vpop.f32.mrf.mxu0
    %v8006 = vadd.f32 0.0, %v8005
    %v8007 = vpop.f32.mrf.mxu0
    %8008 = vmatprep.mubr.f32.mxu0 0.0
    %8009 = vmatmul.mubr.f32.gmra.mxu0 %v7361
    %v8010 = vpop.f32.mrf.mxu0
    %v8011 = vadd.f32 0.0, %v8010
    %v8012 = vpop.f32.mrf.mxu0
    %8013 = vmatprep.mubr.f32.mxu0 0.0
    %8014 = vmatmul.mubr.f32.gmra.mxu0 %v7363
    %v8015 = vpop.f32.mrf.mxu0
    %v8016 = vadd.f32 0.0, %v8015
    %v8017 = vpop.f32.mrf.mxu0
    %8018 = vmatprep.mubr.f32.mxu0 0.0
    %8019 = vmatmul.mubr.f32.gmra.mxu0 %v7365
    %v8020 = vpop.f32.mrf.mxu0
    %v8021 = vadd.f32 0.0, %v8020
    %v8022 = vpop.f32.mrf.mxu0
    %8023 = vmatprep.mubr.f32.mxu0 0.0
    %8024 = vmatmul.mubr.f32.gmra.mxu0 %v7367
    %v8025 = vpop.f32.mrf.mxu0
    %v8026 = vadd.f32 0.0, %v8025
    %v8027 = vpop.f32.mrf.mxu0
    %8028 = vmatprep.mubr.f32.mxu0 0.0
    %8029 = vmatmul.mubr.f32.gmra.mxu0 %v7887
    %v8030 = vpop.f32.mrf.mxu0
    %v8031 = vadd.f32 0.0, %v8030
    %v8032 = vpop.f32.mrf.mxu0
    %8033 = vdwg.mxu0
    %v8034 = vadd.f32 %v7860, %v7956
    %v8035 = vadd.f32 %v7861, %v7961
    %v8036 = vadd.f32 %v7862, %v7966
    %v8037 = vadd.f32 %v7863, %v7971
    %v8038 = vadd.f32 %v7864, %v7976
    %v8039 = vadd.f32 %v7865, %v7981
    %v8040 = vadd.f32 %v7866, %v7986
    %v8041 = vadd.f32 %v7867, %v7991
    %v8042 = vadd.f32 %v7868, %v7996
    %v8043 = vadd.f32 %v7869, %v8001
    %v8044 = vadd.f32 %v7870, %v8006
    %v8045 = vadd.f32 %v7871, %v8011
    %v8046 = vadd.f32 %v7872, %v8016
    %v8047 = vadd.f32 %v7873, %v8021
    %v8048 = vadd.f32 %v7874, %v8026
    %v8049 = vadd.f32 %v7875, %v8031
    %s8050 = scalar_lea.vmem %s4, 96
    %v8051 = vld [vmem:[%s8050] sm:$0xff]
    %v8052 = vld [vmem:[%s8050 + $0x8] sm:$0xff]
    %v8054 = vsel %vm6931, %v6824, 0
    %v8057 = vsel %vm6931, %v6844, 0
    %8059 = vmatprep.subr.mxu0 0.0
    %8060 = vmatpush1.msra.mxu0 0.0
    %8061 = vmatprep.subr.mxu0 0.0
    %8062 = vmatpush1.msra.mxu0 0.0
    %8063 = vmatprep.subr.mxu0 0.0
    %8064 = vmatpush1.msra.mxu0 0.0
    %8065 = vmatprep.subr.mxu0 0.0
    %8066 = vmatpush1.msra.mxu0 0.0
    %8067 = vmatprep.subr.mxu0 0.0
    %8068 = vmatpush1.msra.mxu0 0.0
    %8069 = vmatprep.subr.mxu0 0.0
    %8070 = vmatpush1.msra.mxu0 0.0
    %8071 = vmatprep.subr.mxu0 0.0
    %8072 = vmatpush1.msra.mxu0 0.0
    %8073 = vmatprep.subr.mxu0 0.0
    %8074 = vmatpush1.msra.mxu0 0.0
    %8075 = vmatprep.subr.mxu0 0.0
    %8076 = vmatpush1.msra.mxu0 0.0
    %8077 = vmatprep.subr.mxu0 0.0
    %8078 = vmatpush1.msra.mxu0 0.0
    %8079 = vmatprep.subr.mxu0 0.0
    %8080 = vmatpush1.msra.mxu0 0.0
    %8081 = vmatprep.subr.mxu0 0.0
    %8082 = vmatpush1.msra.mxu0 0.0
    %8083 = vmatprep.subr.mxu0 0.0
    %8084 = vmatpush1.msra.mxu0 0.0
    %8085 = vmatprep.subr.mxu0 0.0
    %8086 = vmatpush1.msra.mxu0 0.0
    %8087 = vmatprep.subr.mxu0 0.0
    %8088 = vmatpush1.msra.mxu0 %v8052
    %8089 = vmatprep.subr.mxu0 0.0
    %8090 = vmatpush1.msra.mxu0 %v8051
    %8091 = vmatprep.subr.mxu0 0.0
    %8092 = vmatpush2.msra.mxu0 0.0
    %8093 = vmatprep.subr.mxu0 0.0
    %8094 = vmatpush2.msra.mxu0 0.0
    %8095 = vmatprep.subr.mxu0 0.0
    %8096 = vmatpush2.msra.mxu0 0.0
    %8097 = vmatprep.subr.mxu0 0.0
    %8098 = vmatpush2.msra.mxu0 0.0
    %8099 = vmatprep.subr.mxu0 0.0
    %8100 = vmatpush2.msra.mxu0 0.0
    %8101 = vmatprep.subr.mxu0 0.0
    %8102 = vmatpush2.msra.mxu0 0.0
    %8103 = vmatprep.subr.mxu0 0.0
    %8104 = vmatpush2.msra.mxu0 0.0
    %8105 = vmatprep.subr.mxu0 0.0
    %8106 = vmatpush2.msra.mxu0 0.0
    %8107 = vmatprep.subr.mxu0 0.0
    %8108 = vmatpush2.msra.mxu0 0.0
    %8109 = vmatprep.subr.mxu0 0.0
    %8110 = vmatpush2.msra.mxu0 0.0
    %8111 = vmatprep.subr.mxu0 0.0
    %8112 = vmatpush2.msra.mxu0 0.0
    %8113 = vmatprep.subr.mxu0 0.0
    %8114 = vmatpush2.msra.mxu0 0.0
    %8115 = vmatprep.subr.mxu0 0.0
    %8116 = vmatpush2.msra.mxu0 0.0
    %8117 = vmatprep.subr.mxu0 0.0
    %8118 = vmatpush2.msra.mxu0 0.0
    %8119 = vmatprep.subr.mxu0 0.0
    %8120 = vmatpush2.msra.mxu0 0.0
    %8121 = vmatprep.subr.mxu0 0.0
    %8122 = vmatpush2.msra.mxu0 0.0
    %8123 = vmatprep.mubr.f32.mxu0 0.0
    %8124 = vmatmul.mubr.f32.gmra.mxu0 %v7113
    %v8125 = vpop.f32.mrf.mxu0
    %v8126 = vadd.f32 0.0, %v8125
    %v8127 = vpop.f32.mrf.mxu0
    %8128 = vmatprep.mubr.f32.mxu0 0.0
    %8129 = vmatmul.mubr.f32.gmra.mxu0 %v7115
    %v8130 = vpop.f32.mrf.mxu0
    %v8131 = vadd.f32 0.0, %v8130
    %v8132 = vpop.f32.mrf.mxu0
    %8133 = vmatprep.mubr.f32.mxu0 0.0
    %8134 = vmatmul.mubr.f32.gmra.mxu0 %v7117
    %v8135 = vpop.f32.mrf.mxu0
    %v8136 = vadd.f32 0.0, %v8135
    %v8137 = vpop.f32.mrf.mxu0
    %8138 = vmatprep.mubr.f32.mxu0 0.0
    %8139 = vmatmul.mubr.f32.gmra.mxu0 %v7119
    %v8140 = vpop.f32.mrf.mxu0
    %v8141 = vadd.f32 0.0, %v8140
    %v8142 = vpop.f32.mrf.mxu0
    %8143 = vmatprep.mubr.f32.mxu0 0.0
    %8144 = vmatmul.mubr.f32.gmra.mxu0 %v7121
    %v8145 = vpop.f32.mrf.mxu0
    %v8146 = vadd.f32 0.0, %v8145
    %v8147 = vpop.f32.mrf.mxu0
    %8148 = vmatprep.mubr.f32.mxu0 0.0
    %8149 = vmatmul.mubr.f32.gmra.mxu0 %v7123
    %v8150 = vpop.f32.mrf.mxu0
    %v8151 = vadd.f32 0.0, %v8150
    %v8152 = vpop.f32.mrf.mxu0
    %8153 = vmatprep.mubr.f32.mxu0 0.0
    %8154 = vmatmul.mubr.f32.gmra.mxu0 %v7534
    %v8155 = vpop.f32.mrf.mxu0
    %v8156 = vadd.f32 0.0, %v8155
    %v8157 = vpop.f32.mrf.mxu0
    %8158 = vmatprep.mubr.f32.mxu0 0.0
    %8159 = vmatmul.mubr.f32.gmra.mxu0 %v8054
    %v8160 = vpop.f32.mrf.mxu0
    %v8161 = vadd.f32 0.0, %v8160
    %v8162 = vpop.f32.mrf.mxu0
    %8163 = vmatprep.mubr.f32.mxu0 0.0
    %8164 = vmatmul.mubr.f32.gmra.mxu0 %v7129
    %v8165 = vpop.f32.mrf.mxu0
    %v8166 = vadd.f32 0.0, %v8165
    %v8167 = vpop.f32.mrf.mxu0
    %8168 = vmatprep.mubr.f32.mxu0 0.0
    %8169 = vmatmul.mubr.f32.gmra.mxu0 %v7131
    %v8170 = vpop.f32.mrf.mxu0
    %v8171 = vadd.f32 0.0, %v8170
    %v8172 = vpop.f32.mrf.mxu0
    %8173 = vmatprep.mubr.f32.mxu0 0.0
    %8174 = vmatmul.mubr.f32.gmra.mxu0 %v7133
    %v8175 = vpop.f32.mrf.mxu0
    %v8176 = vadd.f32 0.0, %v8175
    %v8177 = vpop.f32.mrf.mxu0
    %8178 = vmatprep.mubr.f32.mxu0 0.0
    %8179 = vmatmul.mubr.f32.gmra.mxu0 %v7135
    %v8180 = vpop.f32.mrf.mxu0
    %v8181 = vadd.f32 0.0, %v8180
    %v8182 = vpop.f32.mrf.mxu0
    %8183 = vmatprep.mubr.f32.mxu0 0.0
    %8184 = vmatmul.mubr.f32.gmra.mxu0 %v7137
    %v8185 = vpop.f32.mrf.mxu0
    %v8186 = vadd.f32 0.0, %v8185
    %v8187 = vpop.f32.mrf.mxu0
    %8188 = vmatprep.mubr.f32.mxu0 0.0
    %8189 = vmatmul.mubr.f32.gmra.mxu0 %v7139
    %v8190 = vpop.f32.mrf.mxu0
    %v8191 = vadd.f32 0.0, %v8190
    %v8192 = vpop.f32.mrf.mxu0
    %8193 = vmatprep.mubr.f32.mxu0 0.0
    %8194 = vmatmul.mubr.f32.gmra.mxu0 %v7537
    %v8195 = vpop.f32.mrf.mxu0
    %v8196 = vadd.f32 0.0, %v8195
    %v8197 = vpop.f32.mrf.mxu0
    %8198 = vmatprep.mubr.f32.mxu0 0.0
    %8199 = vmatmul.mubr.f32.gmra.mxu0 %v8057
    %v8200 = vpop.f32.mrf.mxu0
    %v8201 = vadd.f32 0.0, %v8200
    %v8202 = vpop.f32.mrf.mxu0
    %8203 = vdwg.mxu0
    %v8204 = vadd.f32 %v8034, %v8126
    %v8205 = vadd.f32 %v8035, %v8131
    %v8206 = vadd.f32 %v8036, %v8136
    %v8207 = vadd.f32 %v8037, %v8141
    %v8208 = vadd.f32 %v8038, %v8146
    %v8209 = vadd.f32 %v8039, %v8151
    %v8210 = vadd.f32 %v8040, %v8156
    %v8211 = vadd.f32 %v8041, %v8161
    %v8212 = vadd.f32 %v8042, %v8166
    %v8213 = vadd.f32 %v8043, %v8171
    %v8214 = vadd.f32 %v8044, %v8176
    %v8215 = vadd.f32 %v8045, %v8181
    %v8216 = vadd.f32 %v8046, %v8186
    %v8217 = vadd.f32 %v8047, %v8191
    %v8218 = vadd.f32 %v8048, %v8196
    %v8219 = vadd.f32 %v8049, %v8201
    %v8222 = vrot.slane %v6824, 1
    %v8223 = vrot.slane %v6825, 1
    %v8224 = vsel %vm258, %v8222, %v8223
    %v8225 = vrot.slane %v6844, 1
    %v8226 = vrot.slane %v6845, 1
    %v8227 = vsel %vm258, %v8225, %v8226
    %s8228 = scalar_lea.vmem %s4, 112
    %v8229 = vld [vmem:[%s8228] sm:$0xff]
    %v8230 = vld [vmem:[%s8228 + $0x8] sm:$0xff]
    %v8231 = vsel %vm6931, %v8224, 0
    %v8233 = vsel %vm6931, %v8227, 0
    %8235 = vmatprep.subr.mxu0 0.0
    %8236 = vmatpush1.msra.mxu0 0.0
    %8237 = vmatprep.subr.mxu0 0.0
    %8238 = vmatpush1.msra.mxu0 0.0
    %8239 = vmatprep.subr.mxu0 0.0
    %8240 = vmatpush1.msra.mxu0 0.0
    %8241 = vmatprep.subr.mxu0 0.0
    %8242 = vmatpush1.msra.mxu0 0.0
    %8243 = vmatprep.subr.mxu0 0.0
    %8244 = vmatpush1.msra.mxu0 0.0
    %8245 = vmatprep.subr.mxu0 0.0
    %8246 = vmatpush1.msra.mxu0 0.0
    %8247 = vmatprep.subr.mxu0 0.0
    %8248 = vmatpush1.msra.mxu0 0.0
    %8249 = vmatprep.subr.mxu0 0.0
    %8250 = vmatpush1.msra.mxu0 0.0
    %8251 = vmatprep.subr.mxu0 0.0
    %8252 = vmatpush1.msra.mxu0 0.0
    %8253 = vmatprep.subr.mxu0 0.0
    %8254 = vmatpush1.msra.mxu0 0.0
    %8255 = vmatprep.subr.mxu0 0.0
    %8256 = vmatpush1.msra.mxu0 0.0
    %8257 = vmatprep.subr.mxu0 0.0
    %8258 = vmatpush1.msra.mxu0 0.0
    %8259 = vmatprep.subr.mxu0 0.0
    %8260 = vmatpush1.msra.mxu0 0.0
    %8261 = vmatprep.subr.mxu0 0.0
    %8262 = vmatpush1.msra.mxu0 0.0
    %8263 = vmatprep.subr.mxu0 0.0
    %8264 = vmatpush1.msra.mxu0 %v8230
    %8265 = vmatprep.subr.mxu0 0.0
    %8266 = vmatpush1.msra.mxu0 %v8229
    %8267 = vmatprep.subr.mxu0 0.0
    %8268 = vmatpush2.msra.mxu0 0.0
    %8269 = vmatprep.subr.mxu0 0.0
    %8270 = vmatpush2.msra.mxu0 0.0
    %8271 = vmatprep.subr.mxu0 0.0
    %8272 = vmatpush2.msra.mxu0 0.0
    %8273 = vmatprep.subr.mxu0 0.0
    %8274 = vmatpush2.msra.mxu0 0.0
    %8275 = vmatprep.subr.mxu0 0.0
    %8276 = vmatpush2.msra.mxu0 0.0
    %8277 = vmatprep.subr.mxu0 0.0
    %8278 = vmatpush2.msra.mxu0 0.0
    %8279 = vmatprep.subr.mxu0 0.0
    %8280 = vmatpush2.msra.mxu0 0.0
    %8281 = vmatprep.subr.mxu0 0.0
    %8282 = vmatpush2.msra.mxu0 0.0
    %8283 = vmatprep.subr.mxu0 0.0
    %8284 = vmatpush2.msra.mxu0 0.0
    %8285 = vmatprep.subr.mxu0 0.0
    %8286 = vmatpush2.msra.mxu0 0.0
    %8287 = vmatprep.subr.mxu0 0.0
    %8288 = vmatpush2.msra.mxu0 0.0
    %8289 = vmatprep.subr.mxu0 0.0
    %8290 = vmatpush2.msra.mxu0 0.0
    %8291 = vmatprep.subr.mxu0 0.0
    %8292 = vmatpush2.msra.mxu0 0.0
    %8293 = vmatprep.subr.mxu0 0.0
    %8294 = vmatpush2.msra.mxu0 0.0
    %8295 = vmatprep.subr.mxu0 0.0
    %8296 = vmatpush2.msra.mxu0 0.0
    %8297 = vmatprep.subr.mxu0 0.0
    %8298 = vmatpush2.msra.mxu0 0.0
    %8299 = vmatprep.mubr.f32.mxu0 0.0
    %8300 = vmatmul.mubr.f32.gmra.mxu0 %v6936
    %v8301 = vpop.f32.mrf.mxu0
    %v8302 = vadd.f32 0.0, %v8301
    %v8303 = vpop.f32.mrf.mxu0
    %8304 = vmatprep.mubr.f32.mxu0 0.0
    %8305 = vmatmul.mubr.f32.gmra.mxu0 %v6938
    %v8306 = vpop.f32.mrf.mxu0
    %v8307 = vadd.f32 0.0, %v8306
    %v8308 = vpop.f32.mrf.mxu0
    %8309 = vmatprep.mubr.f32.mxu0 0.0
    %8310 = vmatmul.mubr.f32.gmra.mxu0 %v6940
    %v8311 = vpop.f32.mrf.mxu0
    %v8312 = vadd.f32 0.0, %v8311
    %v8313 = vpop.f32.mrf.mxu0
    %8314 = vmatprep.mubr.f32.mxu0 0.0
    %8315 = vmatmul.mubr.f32.gmra.mxu0 %v6942
    %v8316 = vpop.f32.mrf.mxu0
    %v8317 = vadd.f32 0.0, %v8316
    %v8318 = vpop.f32.mrf.mxu0
    %8319 = vmatprep.mubr.f32.mxu0 0.0
    %8320 = vmatmul.mubr.f32.gmra.mxu0 %v6944
    %v8321 = vpop.f32.mrf.mxu0
    %v8322 = vadd.f32 0.0, %v8321
    %v8323 = vpop.f32.mrf.mxu0
    %8324 = vmatprep.mubr.f32.mxu0 0.0
    %8325 = vmatmul.mubr.f32.gmra.mxu0 %v6946
    %v8326 = vpop.f32.mrf.mxu0
    %v8327 = vadd.f32 0.0, %v8326
    %v8328 = vpop.f32.mrf.mxu0
    %8329 = vmatprep.mubr.f32.mxu0 0.0
    %8330 = vmatmul.mubr.f32.gmra.mxu0 %v7711
    %v8331 = vpop.f32.mrf.mxu0
    %v8332 = vadd.f32 0.0, %v8331
    %v8333 = vpop.f32.mrf.mxu0
    %8334 = vmatprep.mubr.f32.mxu0 0.0
    %8335 = vmatmul.mubr.f32.gmra.mxu0 %v8231
    %v8336 = vpop.f32.mrf.mxu0
    %v8337 = vadd.f32 0.0, %v8336
    %v8338 = vpop.f32.mrf.mxu0
    %8339 = vmatprep.mubr.f32.mxu0 0.0
    %8340 = vmatmul.mubr.f32.gmra.mxu0 %v6952
    %v8341 = vpop.f32.mrf.mxu0
    %v8342 = vadd.f32 0.0, %v8341
    %v8343 = vpop.f32.mrf.mxu0
    %8344 = vmatprep.mubr.f32.mxu0 0.0
    %8345 = vmatmul.mubr.f32.gmra.mxu0 %v6954
    %v8346 = vpop.f32.mrf.mxu0
    %v8347 = vadd.f32 0.0, %v8346
    %v8348 = vpop.f32.mrf.mxu0
    %8349 = vmatprep.mubr.f32.mxu0 0.0
    %8350 = vmatmul.mubr.f32.gmra.mxu0 %v6956
    %v8351 = vpop.f32.mrf.mxu0
    %v8352 = vadd.f32 0.0, %v8351
    %v8353 = vpop.f32.mrf.mxu0
    %8354 = vmatprep.mubr.f32.mxu0 0.0
    %8355 = vmatmul.mubr.f32.gmra.mxu0 %v6958
    %v8356 = vpop.f32.mrf.mxu0
    %v8357 = vadd.f32 0.0, %v8356
    %v8358 = vpop.f32.mrf.mxu0
    %8359 = vmatprep.mubr.f32.mxu0 0.0
    %8360 = vmatmul.mubr.f32.gmra.mxu0 %v6960
    %v8361 = vpop.f32.mrf.mxu0
    %v8362 = vadd.f32 0.0, %v8361
    %v8363 = vpop.f32.mrf.mxu0
    %8364 = vmatprep.mubr.f32.mxu0 0.0
    %8365 = vmatmul.mubr.f32.gmra.mxu0 %v6962
    %v8366 = vpop.f32.mrf.mxu0
    %v8367 = vadd.f32 0.0, %v8366
    %v8368 = vpop.f32.mrf.mxu0
    %8369 = vmatprep.mubr.f32.mxu0 0.0
    %8370 = vmatmul.mubr.f32.gmra.mxu0 %v7713
    %v8371 = vpop.f32.mrf.mxu0
    %v8372 = vadd.f32 0.0, %v8371
    %v8373 = vpop.f32.mrf.mxu0
    %8374 = vmatprep.mubr.f32.mxu0 0.0
    %8375 = vmatmul.mubr.f32.gmra.mxu0 %v8233
    %v8376 = vpop.f32.mrf.mxu0
    %v8377 = vadd.f32 0.0, %v8376
    %v8378 = vpop.f32.mrf.mxu0
    %8379 = vdwg.mxu0
    %v8380 = vadd.f32 %v8204, %v8302
    %v8381 = vadd.f32 %v8205, %v8307
    %v8382 = vadd.f32 %v8206, %v8312
    %v8383 = vadd.f32 %v8207, %v8317
    %v8384 = vadd.f32 %v8208, %v8322
    %v8385 = vadd.f32 %v8209, %v8327
    %v8386 = vadd.f32 %v8210, %v8332
    %v8387 = vadd.f32 %v8211, %v8337
    %v8388 = vadd.f32 %v8212, %v8342
    %v8389 = vadd.f32 %v8213, %v8347
    %v8390 = vadd.f32 %v8214, %v8352
    %v8391 = vadd.f32 %v8215, %v8357
    %v8392 = vadd.f32 %v8216, %v8362
    %v8393 = vadd.f32 %v8217, %v8367
    %v8394 = vadd.f32 %v8218, %v8372
    %v8395 = vadd.f32 %v8219, %v8377
    %v8396 = vrot.slane %v6824, 2
    %v8397 = vrot.slane %v6825, 2
    %v8398 = vsel %vm1455, %v8396, %v8397
    %v8399 = vrot.slane %v6844, 2
    %v8400 = vrot.slane %v6845, 2
    %v8401 = vsel %vm1455, %v8399, %v8400
    %s8402 = scalar_lea.vmem %s4, 128
    %v8403 = vld [vmem:[%s8402] sm:$0xff]
    %v8404 = vld [vmem:[%s8402 + $0x8] sm:$0xff]
    %v8405 = vsel %vm6931, %v8398, 0
    %v8407 = vsel %vm6931, %v8401, 0
    %8409 = vmatprep.subr.mxu0 0.0
    %8410 = vmatpush1.msra.mxu0 0.0
    %8411 = vmatprep.subr.mxu0 0.0
    %8412 = vmatpush1.msra.mxu0 0.0
    %8413 = vmatprep.subr.mxu0 0.0
    %8414 = vmatpush1.msra.mxu0 0.0
    %8415 = vmatprep.subr.mxu0 0.0
    %8416 = vmatpush1.msra.mxu0 0.0
    %8417 = vmatprep.subr.mxu0 0.0
    %8418 = vmatpush1.msra.mxu0 0.0
    %8419 = vmatprep.subr.mxu0 0.0
    %8420 = vmatpush1.msra.mxu0 0.0
    %8421 = vmatprep.subr.mxu0 0.0
    %8422 = vmatpush1.msra.mxu0 0.0
    %8423 = vmatprep.subr.mxu0 0.0
    %8424 = vmatpush1.msra.mxu0 0.0
    %8425 = vmatprep.subr.mxu0 0.0
    %8426 = vmatpush1.msra.mxu0 0.0
    %8427 = vmatprep.subr.mxu0 0.0
    %8428 = vmatpush1.msra.mxu0 0.0
    %8429 = vmatprep.subr.mxu0 0.0
    %8430 = vmatpush1.msra.mxu0 0.0
    %8431 = vmatprep.subr.mxu0 0.0
    %8432 = vmatpush1.msra.mxu0 0.0
    %8433 = vmatprep.subr.mxu0 0.0
    %8434 = vmatpush1.msra.mxu0 0.0
    %8435 = vmatprep.subr.mxu0 0.0
    %8436 = vmatpush1.msra.mxu0 0.0
    %8437 = vmatprep.subr.mxu0 0.0
    %8438 = vmatpush1.msra.mxu0 %v8404
    %8439 = vmatprep.subr.mxu0 0.0
    %8440 = vmatpush1.msra.mxu0 %v8403
    %8441 = vmatprep.subr.mxu0 0.0
    %8442 = vmatpush2.msra.mxu0 0.0
    %8443 = vmatprep.subr.mxu0 0.0
    %8444 = vmatpush2.msra.mxu0 0.0
    %8445 = vmatprep.subr.mxu0 0.0
    %8446 = vmatpush2.msra.mxu0 0.0
    %8447 = vmatprep.subr.mxu0 0.0
    %8448 = vmatpush2.msra.mxu0 0.0
    %8449 = vmatprep.subr.mxu0 0.0
    %8450 = vmatpush2.msra.mxu0 0.0
    %8451 = vmatprep.subr.mxu0 0.0
    %8452 = vmatpush2.msra.mxu0 0.0
    %8453 = vmatprep.subr.mxu0 0.0
    %8454 = vmatpush2.msra.mxu0 0.0
    %8455 = vmatprep.subr.mxu0 0.0
    %8456 = vmatpush2.msra.mxu0 0.0
    %8457 = vmatprep.subr.mxu0 0.0
    %8458 = vmatpush2.msra.mxu0 0.0
    %8459 = vmatprep.subr.mxu0 0.0
    %8460 = vmatpush2.msra.mxu0 0.0
    %8461 = vmatprep.subr.mxu0 0.0
    %8462 = vmatpush2.msra.mxu0 0.0
    %8463 = vmatprep.subr.mxu0 0.0
    %8464 = vmatpush2.msra.mxu0 0.0
    %8465 = vmatprep.subr.mxu0 0.0
    %8466 = vmatpush2.msra.mxu0 0.0
    %8467 = vmatprep.subr.mxu0 0.0
    %8468 = vmatpush2.msra.mxu0 0.0
    %8469 = vmatprep.subr.mxu0 0.0
    %8470 = vmatpush2.msra.mxu0 0.0
    %8471 = vmatprep.subr.mxu0 0.0
    %8472 = vmatpush2.msra.mxu0 0.0
    %8473 = vmatprep.mubr.f32.mxu0 0.0
    %8474 = vmatmul.mubr.f32.gmra.mxu0 %v7341
    %v8475 = vpop.f32.mrf.mxu0
    %v8476 = vadd.f32 0.0, %v8475
    %v8477 = vpop.f32.mrf.mxu0
    %8478 = vmatprep.mubr.f32.mxu0 0.0
    %8479 = vmatmul.mubr.f32.gmra.mxu0 %v7343
    %v8480 = vpop.f32.mrf.mxu0
    %v8481 = vadd.f32 0.0, %v8480
    %v8482 = vpop.f32.mrf.mxu0
    %8483 = vmatprep.mubr.f32.mxu0 0.0
    %8484 = vmatmul.mubr.f32.gmra.mxu0 %v7345
    %v8485 = vpop.f32.mrf.mxu0
    %v8486 = vadd.f32 0.0, %v8485
    %v8487 = vpop.f32.mrf.mxu0
    %8488 = vmatprep.mubr.f32.mxu0 0.0
    %8489 = vmatmul.mubr.f32.gmra.mxu0 %v7347
    %v8490 = vpop.f32.mrf.mxu0
    %v8491 = vadd.f32 0.0, %v8490
    %v8492 = vpop.f32.mrf.mxu0
    %8493 = vmatprep.mubr.f32.mxu0 0.0
    %8494 = vmatmul.mubr.f32.gmra.mxu0 %v7349
    %v8495 = vpop.f32.mrf.mxu0
    %v8496 = vadd.f32 0.0, %v8495
    %v8497 = vpop.f32.mrf.mxu0
    %8498 = vmatprep.mubr.f32.mxu0 0.0
    %8499 = vmatmul.mubr.f32.gmra.mxu0 %v7351
    %v8500 = vpop.f32.mrf.mxu0
    %v8501 = vadd.f32 0.0, %v8500
    %v8502 = vpop.f32.mrf.mxu0
    %8503 = vmatprep.mubr.f32.mxu0 0.0
    %8504 = vmatmul.mubr.f32.gmra.mxu0 %v7885
    %v8505 = vpop.f32.mrf.mxu0
    %v8506 = vadd.f32 0.0, %v8505
    %v8507 = vpop.f32.mrf.mxu0
    %8508 = vmatprep.mubr.f32.mxu0 0.0
    %8509 = vmatmul.mubr.f32.gmra.mxu0 %v8405
    %v8510 = vpop.f32.mrf.mxu0
    %v8511 = vadd.f32 0.0, %v8510
    %v8512 = vpop.f32.mrf.mxu0
    %8513 = vmatprep.mubr.f32.mxu0 0.0
    %8514 = vmatmul.mubr.f32.gmra.mxu0 %v7357
    %v8515 = vpop.f32.mrf.mxu0
    %v8516 = vadd.f32 0.0, %v8515
    %v8517 = vpop.f32.mrf.mxu0
    %8518 = vmatprep.mubr.f32.mxu0 0.0
    %8519 = vmatmul.mubr.f32.gmra.mxu0 %v7359
    %v8520 = vpop.f32.mrf.mxu0
    %v8521 = vadd.f32 0.0, %v8520
    %v8522 = vpop.f32.mrf.mxu0
    %8523 = vmatprep.mubr.f32.mxu0 0.0
    %8524 = vmatmul.mubr.f32.gmra.mxu0 %v7361
    %v8525 = vpop.f32.mrf.mxu0
    %v8526 = vadd.f32 0.0, %v8525
    %v8527 = vpop.f32.mrf.mxu0
    %8528 = vmatprep.mubr.f32.mxu0 0.0
    %8529 = vmatmul.mubr.f32.gmra.mxu0 %v7363
    %v8530 = vpop.f32.mrf.mxu0
    %v8531 = vadd.f32 0.0, %v8530
    %v8532 = vpop.f32.mrf.mxu0
    %8533 = vmatprep.mubr.f32.mxu0 0.0
    %8534 = vmatmul.mubr.f32.gmra.mxu0 %v7365
    %v8535 = vpop.f32.mrf.mxu0
    %v8536 = vadd.f32 0.0, %v8535
    %v8537 = vpop.f32.mrf.mxu0
    %8538 = vmatprep.mubr.f32.mxu0 0.0
    %8539 = vmatmul.mubr.f32.gmra.mxu0 %v7367
    %v8540 = vpop.f32.mrf.mxu0
    %v8541 = vadd.f32 0.0, %v8540
    %v8542 = vpop.f32.mrf.mxu0
    %8543 = vmatprep.mubr.f32.mxu0 0.0
    %8544 = vmatmul.mubr.f32.gmra.mxu0 %v7887
    %v8545 = vpop.f32.mrf.mxu0
    %v8546 = vadd.f32 0.0, %v8545
    %v8547 = vpop.f32.mrf.mxu0
    %8548 = vmatprep.mubr.f32.mxu0 0.0
    %8549 = vmatmul.mubr.f32.gmra.mxu0 %v8407
    %v8550 = vpop.f32.mrf.mxu0
    %v8551 = vadd.f32 0.0, %v8550
    %v8552 = vpop.f32.mrf.mxu0
    %8553 = vdwg.mxu0
    %v8554 = vadd.f32 %v8380, %v8476
    %v8555 = vadd.f32 %v8381, %v8481
    %v8556 = vadd.f32 %v8382, %v8486
    %v8557 = vadd.f32 %v8383, %v8491
    %v8558 = vadd.f32 %v8384, %v8496
    %v8559 = vadd.f32 %v8385, %v8501
    %v8560 = vadd.f32 %v8386, %v8506
    %v8561 = vadd.f32 %v8387, %v8511
    %v8562 = vadd.f32 %v8388, %v8516
    %v8563 = vadd.f32 %v8389, %v8521
    %v8564 = vadd.f32 %v8390, %v8526
    %v8565 = vadd.f32 %v8391, %v8531
    %v8566 = vadd.f32 %v8392, %v8536
    %v8567 = vadd.f32 %v8393, %v8541
    %v8568 = vadd.f32 %v8394, %v8546
    %v8569 = vadd.f32 %v8395, %v8551
    %v8570 = vld [vmem:[%s5] sm:$0x1]
    %v8572 = vlaneseq
    %v8573 = vshrl.u32 %v8572, 7
    %v8574 = vsub.s32 0, %v8573
    %v8575 = vrot.slane %v8570, %v8574
    %v8577 = vadd.f32 %v8554, %v8575
    %v8578 = vadd.f32 %v8555, %v8575
    %v8579 = vadd.f32 %v8556, %v8575
    %v8580 = vadd.f32 %v8557, %v8575
    %v8581 = vadd.f32 %v8558, %v8575
    %v8582 = vadd.f32 %v8559, %v8575
    %v8583 = vadd.f32 %v8560, %v8575
    %v8584 = vadd.f32 %v8561, %v8575
    %v8585 = vadd.f32 %v8562, %v8575
    %v8586 = vadd.f32 %v8563, %v8575
    %v8587 = vadd.f32 %v8564, %v8575
    %v8588 = vadd.f32 %v8565, %v8575
    %v8589 = vadd.f32 %v8566, %v8575
    %v8590 = vadd.f32 %v8567, %v8575
    %v8591 = vadd.f32 %v8568, %v8575
    %v8592 = vadd.f32 %v8569, %v8575
    %v8593 = vmul.f32 %v8577, 0.5
    %v8594 = vmul.f32 %v8578, 0.5
    %v8595 = vmul.f32 %v8579, 0.5
    %v8596 = vmul.f32 %v8580, 0.5
    %v8597 = vmul.f32 %v8581, 0.5
    %v8598 = vmul.f32 %v8582, 0.5
    %v8599 = vmul.f32 %v8583, 0.5
    %v8600 = vmul.f32 %v8584, 0.5
    %v8601 = vmul.f32 %v8585, 0.5
    %v8602 = vmul.f32 %v8586, 0.5
    %v8603 = vmul.f32 %v8587, 0.5
    %v8604 = vmul.f32 %v8588, 0.5
    %v8605 = vmul.f32 %v8589, 0.5
    %v8606 = vmul.f32 %v8590, 0.5
    %v8607 = vmul.f32 %v8591, 0.5
    %v8608 = vmul.f32 %v8592, 0.5
    %v8609 = vmul.f32 %v8577, 0.044715
    %v8610 = vmul.f32 %v8578, 0.044715
    %v8611 = vmul.f32 %v8579, 0.044715
    %v8612 = vmul.f32 %v8580, 0.044715
    %v8613 = vmul.f32 %v8581, 0.044715
    %v8614 = vmul.f32 %v8582, 0.044715
    %v8615 = vmul.f32 %v8583, 0.044715
    %v8616 = vmul.f32 %v8584, 0.044715
    %v8617 = vmul.f32 %v8585, 0.044715
    %v8618 = vmul.f32 %v8586, 0.044715
    %v8619 = vmul.f32 %v8587, 0.044715
    %v8620 = vmul.f32 %v8588, 0.044715
    %v8621 = vmul.f32 %v8589, 0.044715
    %v8622 = vmul.f32 %v8590, 0.044715
    %v8623 = vmul.f32 %v8591, 0.044715
    %v8624 = vmul.f32 %v8592, 0.044715
    %v8625 = vmul.f32 %v8609, %v8577
    %v8626 = vmul.f32 %v8610, %v8578
    %v8627 = vmul.f32 %v8611, %v8579
    %v8628 = vmul.f32 %v8612, %v8580
    %v8629 = vmul.f32 %v8613, %v8581
    %v8630 = vmul.f32 %v8614, %v8582
    %v8631 = vmul.f32 %v8615, %v8583
    %v8632 = vmul.f32 %v8616, %v8584
    %v8633 = vmul.f32 %v8617, %v8585
    %v8634 = vmul.f32 %v8618, %v8586
    %v8635 = vmul.f32 %v8619, %v8587
    %v8636 = vmul.f32 %v8620, %v8588
    %v8637 = vmul.f32 %v8621, %v8589
    %v8638 = vmul.f32 %v8622, %v8590
    %v8639 = vmul.f32 %v8623, %v8591
    %v8640 = vmul.f32 %v8624, %v8592
    %v8641 = vmul.f32 %v8625, %v8577
    %v8642 = vmul.f32 %v8626, %v8578
    %v8643 = vmul.f32 %v8627, %v8579
    %v8644 = vmul.f32 %v8628, %v8580
    %v8645 = vmul.f32 %v8629, %v8581
    %v8646 = vmul.f32 %v8630, %v8582
    %v8647 = vmul.f32 %v8631, %v8583
    %v8648 = vmul.f32 %v8632, %v8584
    %v8649 = vmul.f32 %v8633, %v8585
    %v8650 = vmul.f32 %v8634, %v8586
    %v8651 = vmul.f32 %v8635, %v8587
    %v8652 = vmul.f32 %v8636, %v8588
    %v8653 = vmul.f32 %v8637, %v8589
    %v8654 = vmul.f32 %v8638, %v8590
    %v8655 = vmul.f32 %v8639, %v8591
    %v8656 = vmul.f32 %v8640, %v8592
    %v8657 = vadd.f32 %v8577, %v8641
    %v8658 = vadd.f32 %v8578, %v8642
    %v8659 = vadd.f32 %v8579, %v8643
    %v8660 = vadd.f32 %v8580, %v8644
    %v8661 = vadd.f32 %v8581, %v8645
    %v8662 = vadd.f32 %v8582, %v8646
    %v8663 = vadd.f32 %v8583, %v8647
    %v8664 = vadd.f32 %v8584, %v8648
    %v8665 = vadd.f32 %v8585, %v8649
    %v8666 = vadd.f32 %v8586, %v8650
    %v8667 = vadd.f32 %v8587, %v8651
    %v8668 = vadd.f32 %v8588, %v8652
    %v8669 = vadd.f32 %v8589, %v8653
    %v8670 = vadd.f32 %v8590, %v8654
    %v8671 = vadd.f32 %v8591, %v8655
    %v8672 = vadd.f32 %v8592, %v8656
    %v8673 = vmul.f32 %v8657, 0.7978846
    %v8674 = vmul.f32 %v8658, 0.7978846
    %v8675 = vmul.f32 %v8659, 0.7978846
    %v8676 = vmul.f32 %v8660, 0.7978846
    %v8677 = vmul.f32 %v8661, 0.7978846
    %v8678 = vmul.f32 %v8662, 0.7978846
    %v8679 = vmul.f32 %v8663, 0.7978846
    %v8680 = vmul.f32 %v8664, 0.7978846
    %v8681 = vmul.f32 %v8665, 0.7978846
    %v8682 = vmul.f32 %v8666, 0.7978846
    %v8683 = vmul.f32 %v8667, 0.7978846
    %v8684 = vmul.f32 %v8668, 0.7978846
    %v8685 = vmul.f32 %v8669, 0.7978846
    %v8686 = vmul.f32 %v8670, 0.7978846
    %v8687 = vmul.f32 %v8671, 0.7978846
    %v8688 = vmul.f32 %v8672, 0.7978846
    %v8689 = vtanh.pop %v8673
    %v8690 = vtanh.pop %v8674
    %v8691 = vtanh.pop %v8675
    %v8692 = vtanh.pop %v8676
    %v8693 = vtanh.pop %v8677
    %v8694 = vtanh.pop %v8678
    %v8695 = vtanh.pop %v8679
    %v8696 = vtanh.pop %v8680
    %v8697 = vtanh.pop %v8681
    %v8698 = vtanh.pop %v8682
    %v8699 = vtanh.pop %v8683
    %v8700 = vtanh.pop %v8684
    %v8701 = vtanh.pop %v8685
    %v8702 = vtanh.pop %v8686
    %v8703 = vtanh.pop %v8687
    %v8704 = vtanh.pop %v8688
    %v8705 = vadd.f32 %v8689, 1.0
    %v8706 = vadd.f32 %v8690, 1.0
    %v8707 = vadd.f32 %v8691, 1.0
    %v8708 = vadd.f32 %v8692, 1.0
    %v8709 = vadd.f32 %v8693, 1.0
    %v8710 = vadd.f32 %v8694, 1.0
    %v8711 = vadd.f32 %v8695, 1.0
    %v8712 = vadd.f32 %v8696, 1.0
    %v8713 = vadd.f32 %v8697, 1.0
    %v8714 = vadd.f32 %v8698, 1.0
    %v8715 = vadd.f32 %v8699, 1.0
    %v8716 = vadd.f32 %v8700, 1.0
    %v8717 = vadd.f32 %v8701, 1.0
    %v8718 = vadd.f32 %v8702, 1.0
    %v8719 = vadd.f32 %v8703, 1.0
    %v8720 = vadd.f32 %v8704, 1.0
    %v8721 = vmul.f32 %v8593, %v8705
    %v8722 = vmul.f32 %v8594, %v8706
    %v8723 = vmul.f32 %v8595, %v8707
    %v8724 = vmul.f32 %v8596, %v8708
    %v8725 = vmul.f32 %v8597, %v8709
    %v8726 = vmul.f32 %v8598, %v8710
    %v8727 = vmul.f32 %v8599, %v8711
    %v8728 = vmul.f32 %v8600, %v8712
    %v8729 = vmul.f32 %v8601, %v8713
    %v8730 = vmul.f32 %v8602, %v8714
    %v8731 = vmul.f32 %v8603, %v8715
    %v8732 = vmul.f32 %v8604, %v8716
    %v8733 = vmul.f32 %v8605, %v8717
    %v8734 = vmul.f32 %v8606, %v8718
    %v8735 = vmul.f32 %v8607, %v8719
    %v8736 = vmul.f32 %v8608, %v8720
    %v8737 = vmax.f32 %v8721, %v8722
    %v8738 = vmax.f32 %v8723, %v8724
    %v8739 = vmax.f32 %v8725, %v8726
    %v8740 = vmax.f32 %v8727, %v8728
    %v8741 = vmax.f32 %v8729, %v8730
    %v8742 = vmax.f32 %v8731, %v8732
    %v8743 = vmax.f32 %v8733, %v8734
    %v8744 = vmax.f32 %v8735, %v8736
    %v8745 = vmax.f32 %v8738, %v8722
    %v8746 = vmax.f32 %v8739, %v8724
    %v8747 = vmax.f32 %v8740, %v8726
    %v8748 = vmax.f32 %v8742, %v8730
    %v8749 = vmax.f32 %v8743, %v8732
    %v8750 = vmax.f32 %v8744, %v8734
    %v8751 = vld [vmem:[%s6] sm:$0xff]
    %v8752 = vld [vmem:[%s6 + $0x8] sm:$0xff]
    %v8753 = vld [vmem:[%s6 + $0x10] sm:$0xff]
    %v8754 = vld [vmem:[%s6 + $0x18] sm:$0xff]
    %vm8755 = vcmask 523264
    %v8757 = vsel %vm8755, %v8751, 0
    %v8760 = vsel %vm8755, %v8752, 0
    %v8763 = vsel %vm8755, %v8753, 0
    %v8766 = vsel %vm8755, %v8754, 0
    %8768 = vmatprep.subr.mxu0 0.0
    %8769 = vmatpush1.msra.mxu0 0.0
    %8770 = vmatprep.subr.mxu0 0.0
    %8771 = vmatpush1.msra.mxu0 0.0
    %8772 = vmatprep.subr.mxu0 0.0
    %8773 = vmatpush1.msra.mxu0 0.0
    %8774 = vmatprep.subr.mxu0 0.0
    %8775 = vmatpush1.msra.mxu0 0.0
    %8776 = vmatprep.subr.mxu0 0.0
    %8777 = vmatpush1.msra.mxu0 0.0
    %8778 = vmatprep.subr.mxu0 0.0
    %8779 = vmatpush1.msra.mxu0 0.0
    %8780 = vmatprep.subr.mxu0 0.0
    %8781 = vmatpush1.msra.mxu0 0.0
    %8782 = vmatprep.subr.mxu0 0.0
    %8783 = vmatpush1.msra.mxu0 0.0
    %8784 = vmatprep.subr.mxu0 0.0
    %8785 = vmatpush1.msra.mxu0 %v8750
    %8786 = vmatprep.subr.mxu0 0.0
    %8787 = vmatpush1.msra.mxu0 %v8749
    %8788 = vmatprep.subr.mxu0 0.0
    %8789 = vmatpush1.msra.mxu0 %v8748
    %8790 = vmatprep.subr.mxu0 0.0
    %8791 = vmatpush1.msra.mxu0 %v8741
    %8792 = vmatprep.subr.mxu0 0.0
    %8793 = vmatpush1.msra.mxu0 %v8747
    %8794 = vmatprep.subr.mxu0 0.0
    %8795 = vmatpush1.msra.mxu0 %v8746
    %8796 = vmatprep.subr.mxu0 0.0
    %8797 = vmatpush1.msra.mxu0 %v8745
    %8798 = vmatprep.subr.mxu0 0.0
    %8799 = vmatpush1.msra.mxu0 %v8737
    %8800 = vmatprep.subr.mxu0 0.0
    %8801 = vmatpush2.msra.mxu0 0.0
    %8802 = vmatprep.subr.mxu0 0.0
    %8803 = vmatpush2.msra.mxu0 0.0
    %8804 = vmatprep.subr.mxu0 0.0
    %8805 = vmatpush2.msra.mxu0 0.0
    %8806 = vmatprep.subr.mxu0 0.0
    %8807 = vmatpush2.msra.mxu0 0.0
    %8808 = vmatprep.subr.mxu0 0.0
    %8809 = vmatpush2.msra.mxu0 0.0
    %8810 = vmatprep.subr.mxu0 0.0
    %8811 = vmatpush2.msra.mxu0 0.0
    %8812 = vmatprep.subr.mxu0 0.0
    %8813 = vmatpush2.msra.mxu0 0.0
    %8814 = vmatprep.subr.mxu0 0.0
    %8815 = vmatpush2.msra.mxu0 0.0
    %8816 = vmatprep.subr.mxu0 0.0
    %8817 = vmatpush2.msra.mxu0 0.0
    %8818 = vmatprep.subr.mxu0 0.0
    %8819 = vmatpush2.msra.mxu0 0.0
    %8820 = vmatprep.subr.mxu0 0.0
    %8821 = vmatpush2.msra.mxu0 0.0
    %8822 = vmatprep.subr.mxu0 0.0
    %8823 = vmatpush2.msra.mxu0 0.0
    %8824 = vmatprep.subr.mxu0 0.0
    %8825 = vmatpush2.msra.mxu0 0.0
    %8826 = vmatprep.subr.mxu0 0.0
    %8827 = vmatpush2.msra.mxu0 0.0
    %8828 = vmatprep.subr.mxu0 0.0
    %8829 = vmatpush2.msra.mxu0 0.0
    %8830 = vmatprep.subr.mxu0 0.0
    %8831 = vmatpush2.msra.mxu0 0.0
    %8832 = vmatprep.mubr.f32.mxu0 0.0
    %8833 = vmatmul.mubr.f32.gmra.mxu0 %v8757
    %v8834 = vpop.f32.mrf.mxu0
    %v8835 = vadd.f32 0.0, %v8834
    %v8836 = vpop.f32.mrf.mxu0
    %8837 = vmatprep.mubr.f32.mxu0 0.0
    %8838 = vmatmul.mubr.f32.gmra.mxu0 %v8760
    %v8839 = vpop.f32.mrf.mxu0
    %v8840 = vadd.f32 0.0, %v8839
    %v8841 = vpop.f32.mrf.mxu0
    %8842 = vmatprep.mubr.f32.mxu0 0.0
    %8843 = vmatmul.mubr.f32.gmra.mxu0 %v8763
    %v8844 = vpop.f32.mrf.mxu0
    %v8845 = vadd.f32 0.0, %v8844
    %v8846 = vpop.f32.mrf.mxu0
    %8847 = vmatprep.mubr.f32.mxu0 0.0
    %8848 = vmatmul.mubr.f32.gmra.mxu0 %v8766
    %v8849 = vpop.f32.mrf.mxu0
    %v8850 = vadd.f32 0.0, %v8849
    %v8851 = vpop.f32.mrf.mxu0
    %8852 = vdwg.mxu0
    %s8853 = scalar_lea.vmem %s6, 32
    %v8854 = vld [vmem:[%s8853] sm:$0xff]
    %v8855 = vld [vmem:[%s8853 + $0x8] sm:$0xff]
    %v8856 = vld [vmem:[%s8853 + $0x10] sm:$0xff]
    %v8857 = vld [vmem:[%s8853 + $0x18] sm:$0xff]
    %v8859 = vsel %vm8755, %v8854, 0
    %v8862 = vsel %vm8755, %v8855, 0
    %v8865 = vsel %vm8755, %v8856, 0
    %v8868 = vsel %vm8755, %v8857, 0
    %8870 = vmatprep.subr.mxu0 0.0
    %8871 = vmatpush1.msra.mxu0 0.0
    %8872 = vmatprep.subr.mxu0 0.0
    %8873 = vmatpush1.msra.mxu0 0.0
    %8874 = vmatprep.subr.mxu0 0.0
    %8875 = vmatpush1.msra.mxu0 0.0
    %8876 = vmatprep.subr.mxu0 0.0
    %8877 = vmatpush1.msra.mxu0 0.0
    %8878 = vmatprep.subr.mxu0 0.0
    %8879 = vmatpush1.msra.mxu0 0.0
    %8880 = vmatprep.subr.mxu0 0.0
    %8881 = vmatpush1.msra.mxu0 0.0
    %8882 = vmatprep.subr.mxu0 0.0
    %8883 = vmatpush1.msra.mxu0 0.0
    %8884 = vmatprep.subr.mxu0 0.0
    %8885 = vmatpush1.msra.mxu0 0.0
    %8886 = vmatprep.subr.mxu0 0.0
    %8887 = vmatpush1.msra.mxu0 %v8750
    %8888 = vmatprep.subr.mxu0 0.0
    %8889 = vmatpush1.msra.mxu0 %v8749
    %8890 = vmatprep.subr.mxu0 0.0
    %8891 = vmatpush1.msra.mxu0 %v8748
    %8892 = vmatprep.subr.mxu0 0.0
    %8893 = vmatpush1.msra.mxu0 %v8741
    %8894 = vmatprep.subr.mxu0 0.0
    %8895 = vmatpush1.msra.mxu0 %v8747
    %8896 = vmatprep.subr.mxu0 0.0
    %8897 = vmatpush1.msra.mxu0 %v8746
    %8898 = vmatprep.subr.mxu0 0.0
    %8899 = vmatpush1.msra.mxu0 %v8745
    %8900 = vmatprep.subr.mxu0 0.0
    %8901 = vmatpush1.msra.mxu0 %v8737
    %8902 = vmatprep.subr.mxu0 0.0
    %8903 = vmatpush2.msra.mxu0 0.0
    %8904 = vmatprep.subr.mxu0 0.0
    %8905 = vmatpush2.msra.mxu0 0.0
    %8906 = vmatprep.subr.mxu0 0.0
    %8907 = vmatpush2.msra.mxu0 0.0
    %8908 = vmatprep.subr.mxu0 0.0
    %8909 = vmatpush2.msra.mxu0 0.0
    %8910 = vmatprep.subr.mxu0 0.0
    %8911 = vmatpush2.msra.mxu0 0.0
    %8912 = vmatprep.subr.mxu0 0.0
    %8913 = vmatpush2.msra.mxu0 0.0
    %8914 = vmatprep.subr.mxu0 0.0
    %8915 = vmatpush2.msra.mxu0 0.0
    %8916 = vmatprep.subr.mxu0 0.0
    %8917 = vmatpush2.msra.mxu0 0.0
    %8918 = vmatprep.subr.mxu0 0.0
    %8919 = vmatpush2.msra.mxu0 0.0
    %8920 = vmatprep.subr.mxu0 0.0
    %8921 = vmatpush2.msra.mxu0 0.0
    %8922 = vmatprep.subr.mxu0 0.0
    %8923 = vmatpush2.msra.mxu0 0.0
    %8924 = vmatprep.subr.mxu0 0.0
    %8925 = vmatpush2.msra.mxu0 0.0
    %8926 = vmatprep.subr.mxu0 0.0
    %8927 = vmatpush2.msra.mxu0 0.0
    %8928 = vmatprep.subr.mxu0 0.0
    %8929 = vmatpush2.msra.mxu0 0.0
    %8930 = vmatprep.subr.mxu0 0.0
    %8931 = vmatpush2.msra.mxu0 0.0
    %8932 = vmatprep.subr.mxu0 0.0
    %8933 = vmatpush2.msra.mxu0 0.0
    %8934 = vmatprep.mubr.f32.mxu0 0.0
    %8935 = vmatmul.mubr.f32.gmra.mxu0 %v8859
    %v8936 = vpop.f32.mrf.mxu0
    %v8937 = vadd.f32 0.0, %v8936
    %v8938 = vpop.f32.mrf.mxu0
    %8939 = vmatprep.mubr.f32.mxu0 0.0
    %8940 = vmatmul.mubr.f32.gmra.mxu0 %v8862
    %v8941 = vpop.f32.mrf.mxu0
    %v8942 = vadd.f32 0.0, %v8941
    %v8943 = vpop.f32.mrf.mxu0
    %8944 = vmatprep.mubr.f32.mxu0 0.0
    %8945 = vmatmul.mubr.f32.gmra.mxu0 %v8865
    %v8946 = vpop.f32.mrf.mxu0
    %v8947 = vadd.f32 0.0, %v8946
    %v8948 = vpop.f32.mrf.mxu0
    %8949 = vmatprep.mubr.f32.mxu0 0.0
    %8950 = vmatmul.mubr.f32.gmra.mxu0 %v8868
    %v8951 = vpop.f32.mrf.mxu0
    %v8952 = vadd.f32 0.0, %v8951
    %v8953 = vpop.f32.mrf.mxu0
    %8954 = vdwg.mxu0
    %v8955 = vmax.f32 %v8835, %v8937
    %v8956 = vmax.f32 %v8840, %v8942
    %v8957 = vmax.f32 %v8845, %v8947
    %v8958 = vmax.f32 %v8850, %v8952
    %s8959 = scalar_lea.vmem %s6, 64
    %v8960 = vld [vmem:[%s8959] sm:$0xff]
    %v8961 = vld [vmem:[%s8959 + $0x8] sm:$0xff]
    %v8962 = vld [vmem:[%s8959 + $0x10] sm:$0xff]
    %v8963 = vld [vmem:[%s8959 + $0x18] sm:$0xff]
    %v8965 = vsel %vm8755, %v8960, 0
    %v8968 = vsel %vm8755, %v8961, 0
    %v8971 = vsel %vm8755, %v8962, 0
    %v8974 = vsel %vm8755, %v8963, 0
    %8976 = vmatprep.subr.mxu0 0.0
    %8977 = vmatpush1.msra.mxu0 0.0
    %8978 = vmatprep.subr.mxu0 0.0
    %8979 = vmatpush1.msra.mxu0 0.0
    %8980 = vmatprep.subr.mxu0 0.0
    %8981 = vmatpush1.msra.mxu0 0.0
    %8982 = vmatprep.subr.mxu0 0.0
    %8983 = vmatpush1.msra.mxu0 0.0
    %8984 = vmatprep.subr.mxu0 0.0
    %8985 = vmatpush1.msra.mxu0 0.0
    %8986 = vmatprep.subr.mxu0 0.0
    %8987 = vmatpush1.msra.mxu0 0.0
    %8988 = vmatprep.subr.mxu0 0.0
    %8989 = vmatpush1.msra.mxu0 0.0
    %8990 = vmatprep.subr.mxu0 0.0
    %8991 = vmatpush1.msra.mxu0 0.0
    %8992 = vmatprep.subr.mxu0 0.0
    %8993 = vmatpush1.msra.mxu0 %v8750
    %8994 = vmatprep.subr.mxu0 0.0
    %8995 = vmatpush1.msra.mxu0 %v8749
    %8996 = vmatprep.subr.mxu0 0.0
    %8997 = vmatpush1.msra.mxu0 %v8748
    %8998 = vmatprep.subr.mxu0 0.0
    %8999 = vmatpush1.msra.mxu0 %v8741
    %9000 = vmatprep.subr.mxu0 0.0
    %9001 = vmatpush1.msra.mxu0 %v8747
    %9002 = vmatprep.subr.mxu0 0.0
    %9003 = vmatpush1.msra.mxu0 %v8746
    %9004 = vmatprep.subr.mxu0 0.0
    %9005 = vmatpush1.msra.mxu0 %v8745
    %9006 = vmatprep.subr.mxu0 0.0
    %9007 = vmatpush1.msra.mxu0 %v8737
    %9008 = vmatprep.subr.mxu0 0.0
    %9009 = vmatpush2.msra.mxu0 0.0
    %9010 = vmatprep.subr.mxu0 0.0
    %9011 = vmatpush2.msra.mxu0 0.0
    %9012 = vmatprep.subr.mxu0 0.0
    %9013 = vmatpush2.msra.mxu0 0.0
    %9014 = vmatprep.subr.mxu0 0.0
    %9015 = vmatpush2.msra.mxu0 0.0
    %9016 = vmatprep.subr.mxu0 0.0
    %9017 = vmatpush2.msra.mxu0 0.0
    %9018 = vmatprep.subr.mxu0 0.0
    %9019 = vmatpush2.msra.mxu0 0.0
    %9020 = vmatprep.subr.mxu0 0.0
    %9021 = vmatpush2.msra.mxu0 0.0
    %9022 = vmatprep.subr.mxu0 0.0
    %9023 = vmatpush2.msra.mxu0 0.0
    %9024 = vmatprep.subr.mxu0 0.0
    %9025 = vmatpush2.msra.mxu0 0.0
    %9026 = vmatprep.subr.mxu0 0.0
    %9027 = vmatpush2.msra.mxu0 0.0
    %9028 = vmatprep.subr.mxu0 0.0
    %9029 = vmatpush2.msra.mxu0 0.0
    %9030 = vmatprep.subr.mxu0 0.0
    %9031 = vmatpush2.msra.mxu0 0.0
    %9032 = vmatprep.subr.mxu0 0.0
    %9033 = vmatpush2.msra.mxu0 0.0
    %9034 = vmatprep.subr.mxu0 0.0
    %9035 = vmatpush2.msra.mxu0 0.0
    %9036 = vmatprep.subr.mxu0 0.0
    %9037 = vmatpush2.msra.mxu0 0.0
    %9038 = vmatprep.subr.mxu0 0.0
    %9039 = vmatpush2.msra.mxu0 0.0
    %9040 = vmatprep.mubr.f32.mxu0 0.0
    %9041 = vmatmul.mubr.f32.gmra.mxu0 %v8965
    %v9042 = vpop.f32.mrf.mxu0
    %v9043 = vadd.f32 0.0, %v9042
    %v9044 = vpop.f32.mrf.mxu0
    %9045 = vmatprep.mubr.f32.mxu0 0.0
    %9046 = vmatmul.mubr.f32.gmra.mxu0 %v8968
    %v9047 = vpop.f32.mrf.mxu0
    %v9048 = vadd.f32 0.0, %v9047
    %v9049 = vpop.f32.mrf.mxu0
    %9050 = vmatprep.mubr.f32.mxu0 0.0
    %9051 = vmatmul.mubr.f32.gmra.mxu0 %v8971
    %v9052 = vpop.f32.mrf.mxu0
    %v9053 = vadd.f32 0.0, %v9052
    %v9054 = vpop.f32.mrf.mxu0
    %9055 = vmatprep.mubr.f32.mxu0 0.0
    %9056 = vmatmul.mubr.f32.gmra.mxu0 %v8974
    %v9057 = vpop.f32.mrf.mxu0
    %v9058 = vadd.f32 0.0, %v9057
    %v9059 = vpop.f32.mrf.mxu0
    %9060 = vdwg.mxu0
    %v9061 = vmax.f32 %v8955, %v9043
    %v9062 = vmax.f32 %v8956, %v9048
    %v9063 = vmax.f32 %v8957, %v9053
    %v9064 = vmax.f32 %v8958, %v9058
    %v9065 = vld [vmem:[%s7] sm:$0xff]
    %v9066 = vld [vmem:[%s7 + $0x8] sm:$0xff]
    %v9067 = vld [vmem:[%s7 + $0x10] sm:$0xff]
    %v9068 = vld [vmem:[%s7 + $0x18] sm:$0xff]
    %s9069 = scalar_lea.vmem %s7, 32
    %v9070 = vld [vmem:[%s9069] sm:$0xff]
    %v9071 = vld [vmem:[%s9069 + $0x8] sm:$0xff]
    %v9072 = vld [vmem:[%s9069 + $0x10] sm:$0xff]
    %v9073 = vld [vmem:[%s9069 + $0x18] sm:$0xff]
    %v9075 = vrot.slane %v9061, 2
    %vm9076 = vcmask 261120
    %v9077 = vsel %vm9076, %v9075, 0
    %9079 = vmatprep.subr.mxu0 0.0
    %9080 = vmatpush1.msra.mxu0 0.0
    %9081 = vmatprep.subr.mxu0 0.0
    %9082 = vmatpush1.msra.mxu0 0.0
    %9083 = vmatprep.subr.mxu0 0.0
    %9084 = vmatpush1.msra.mxu0 0.0
    %9085 = vmatprep.subr.mxu0 0.0
    %9086 = vmatpush1.msra.mxu0 0.0
    %9087 = vmatprep.subr.mxu0 0.0
    %9088 = vmatpush1.msra.mxu0 0.0
    %9089 = vmatprep.subr.mxu0 0.0
    %9090 = vmatpush1.msra.mxu0 0.0
    %9091 = vmatprep.subr.mxu0 0.0
    %9092 = vmatpush1.msra.mxu0 0.0
    %9093 = vmatprep.subr.mxu0 0.0
    %9094 = vmatpush1.msra.mxu0 0.0
    %9095 = vmatprep.subr.mxu0 0.0
    %9096 = vmatpush1.msra.mxu0 0.0
    %9097 = vmatprep.subr.mxu0 0.0
    %9098 = vmatpush1.msra.mxu0 0.0
    %9099 = vmatprep.subr.mxu0 0.0
    %9100 = vmatpush1.msra.mxu0 0.0
    %9101 = vmatprep.subr.mxu0 0.0
    %9102 = vmatpush1.msra.mxu0 0.0
    %9103 = vmatprep.subr.mxu0 0.0
    %9104 = vmatpush1.msra.mxu0 %v9073
    %9105 = vmatprep.subr.mxu0 0.0
    %9106 = vmatpush1.msra.mxu0 %v9072
    %9107 = vmatprep.subr.mxu0 0.0
    %9108 = vmatpush1.msra.mxu0 %v9071
    %9109 = vmatprep.subr.mxu0 0.0
    %9110 = vmatpush1.msra.mxu0 %v9070
    %9111 = vmatprep.subr.mxu0 0.0
    %9112 = vmatpush2.msra.mxu0 0.0
    %9113 = vmatprep.subr.mxu0 0.0
    %9114 = vmatpush2.msra.mxu0 0.0
    %9115 = vmatprep.subr.mxu0 0.0
    %9116 = vmatpush2.msra.mxu0 0.0
    %9117 = vmatprep.subr.mxu0 0.0
    %9118 = vmatpush2.msra.mxu0 0.0
    %9119 = vmatprep.subr.mxu0 0.0
    %9120 = vmatpush2.msra.mxu0 0.0
    %9121 = vmatprep.subr.mxu0 0.0
    %9122 = vmatpush2.msra.mxu0 0.0
    %9123 = vmatprep.subr.mxu0 0.0
    %9124 = vmatpush2.msra.mxu0 0.0
    %9125 = vmatprep.subr.mxu0 0.0
    %9126 = vmatpush2.msra.mxu0 0.0
    %9127 = vmatprep.subr.mxu0 0.0
    %9128 = vmatpush2.msra.mxu0 0.0
    %9129 = vmatprep.subr.mxu0 0.0
    %9130 = vmatpush2.msra.mxu0 0.0
    %9131 = vmatprep.subr.mxu0 0.0
    %9132 = vmatpush2.msra.mxu0 0.0
    %9133 = vmatprep.subr.mxu0 0.0
    %9134 = vmatpush2.msra.mxu0 0.0
    %9135 = vmatprep.subr.mxu0 0.0
    %9136 = vmatpush2.msra.mxu0 0.0
    %9137 = vmatprep.subr.mxu0 0.0
    %9138 = vmatpush2.msra.mxu0 0.0
    %9139 = vmatprep.subr.mxu0 0.0
    %9140 = vmatpush2.msra.mxu0 0.0
    %9141 = vmatprep.subr.mxu0 0.0
    %9142 = vmatpush2.msra.mxu0 0.0
    %9143 = vmatprep.mubr.f32.mxu0 0.0
    %9144 = vmatmul.mubr.f32.gmra.mxu0 %v9077
    %v9145 = vpop.f32.mrf.mxu0
    %v9146 = vadd.f32 0.0, %v9145
    %v9147 = vpop.f32.mrf.mxu0
    %9148 = vdwg.mxu0
    %v9149 = vsel %vm9076, %v9061, 0
    %9151 = vmatprep.subr.mxu0 0.0
    %9152 = vmatpush1.msra.mxu0 0.0
    %9153 = vmatprep.subr.mxu0 0.0
    %9154 = vmatpush1.msra.mxu0 0.0
    %9155 = vmatprep.subr.mxu0 0.0
    %9156 = vmatpush1.msra.mxu0 0.0
    %9157 = vmatprep.subr.mxu0 0.0
    %9158 = vmatpush1.msra.mxu0 0.0
    %9159 = vmatprep.subr.mxu0 0.0
    %9160 = vmatpush1.msra.mxu0 0.0
    %9161 = vmatprep.subr.mxu0 0.0
    %9162 = vmatpush1.msra.mxu0 0.0
    %9163 = vmatprep.subr.mxu0 0.0
    %9164 = vmatpush1.msra.mxu0 0.0
    %9165 = vmatprep.subr.mxu0 0.0
    %9166 = vmatpush1.msra.mxu0 0.0
    %9167 = vmatprep.subr.mxu0 0.0
    %9168 = vmatpush1.msra.mxu0 0.0
    %9169 = vmatprep.subr.mxu0 0.0
    %9170 = vmatpush1.msra.mxu0 0.0
    %9171 = vmatprep.subr.mxu0 0.0
    %9172 = vmatpush1.msra.mxu0 0.0
    %9173 = vmatprep.subr.mxu0 0.0
    %9174 = vmatpush1.msra.mxu0 0.0
    %9175 = vmatprep.subr.mxu0 0.0
    %9176 = vmatpush1.msra.mxu0 %v9068
    %9177 = vmatprep.subr.mxu0 0.0
    %9178 = vmatpush1.msra.mxu0 %v9067
    %9179 = vmatprep.subr.mxu0 0.0
    %9180 = vmatpush1.msra.mxu0 %v9066
    %9181 = vmatprep.subr.mxu0 0.0
    %9182 = vmatpush1.msra.mxu0 %v9065
    %9183 = vmatprep.subr.mxu0 0.0
    %9184 = vmatpush2.msra.mxu0 0.0
    %9185 = vmatprep.subr.mxu0 0.0
    %9186 = vmatpush2.msra.mxu0 0.0
    %9187 = vmatprep.subr.mxu0 0.0
    %9188 = vmatpush2.msra.mxu0 0.0
    %9189 = vmatprep.subr.mxu0 0.0
    %9190 = vmatpush2.msra.mxu0 0.0
    %9191 = vmatprep.subr.mxu0 0.0
    %9192 = vmatpush2.msra.mxu0 0.0
    %9193 = vmatprep.subr.mxu0 0.0
    %9194 = vmatpush2.msra.mxu0 0.0
    %9195 = vmatprep.subr.mxu0 0.0
    %9196 = vmatpush2.msra.mxu0 0.0
    %9197 = vmatprep.subr.mxu0 0.0
    %9198 = vmatpush2.msra.mxu0 0.0
    %9199 = vmatprep.subr.mxu0 0.0
    %9200 = vmatpush2.msra.mxu0 0.0
    %9201 = vmatprep.subr.mxu0 0.0
    %9202 = vmatpush2.msra.mxu0 0.0
    %9203 = vmatprep.subr.mxu0 0.0
    %9204 = vmatpush2.msra.mxu0 0.0
    %9205 = vmatprep.subr.mxu0 0.0
    %9206 = vmatpush2.msra.mxu0 0.0
    %9207 = vmatprep.subr.mxu0 0.0
    %9208 = vmatpush2.msra.mxu0 0.0
    %9209 = vmatprep.subr.mxu0 0.0
    %9210 = vmatpush2.msra.mxu0 0.0
    %9211 = vmatprep.subr.mxu0 0.0
    %9212 = vmatpush2.msra.mxu0 0.0
    %9213 = vmatprep.subr.mxu0 0.0
    %9214 = vmatpush2.msra.mxu0 0.0
    %9215 = vmatprep.mubr.f32.mxu0 0.0
    %9216 = vmatmul.mubr.f32.gmra.mxu0 %v9149
    %v9217 = vpop.f32.mrf.mxu0
    %v9218 = vadd.f32 %v9146, %v9217
    %v9219 = vpop.f32.mrf.mxu0
    %9220 = vdwg.mxu0
    %s9221 = scalar_lea.vmem %s7, 64
    %v9222 = vld [vmem:[%s9221] sm:$0xff]
    %v9223 = vld [vmem:[%s9221 + $0x8] sm:$0xff]
    %v9224 = vld [vmem:[%s9221 + $0x10] sm:$0xff]
    %v9225 = vld [vmem:[%s9221 + $0x18] sm:$0xff]
    %v9226 = vrot.slane %v9061, 4
    %v9227 = vsel %vm9076, %v9226, 0
    %9229 = vmatprep.subr.mxu0 0.0
    %9230 = vmatpush1.msra.mxu0 0.0
    %9231 = vmatprep.subr.mxu0 0.0
    %9232 = vmatpush1.msra.mxu0 0.0
    %9233 = vmatprep.subr.mxu0 0.0
    %9234 = vmatpush1.msra.mxu0 0.0
    %9235 = vmatprep.subr.mxu0 0.0
    %9236 = vmatpush1.msra.mxu0 0.0
    %9237 = vmatprep.subr.mxu0 0.0
    %9238 = vmatpush1.msra.mxu0 0.0
    %9239 = vmatprep.subr.mxu0 0.0
    %9240 = vmatpush1.msra.mxu0 0.0
    %9241 = vmatprep.subr.mxu0 0.0
    %9242 = vmatpush1.msra.mxu0 0.0
    %9243 = vmatprep.subr.mxu0 0.0
    %9244 = vmatpush1.msra.mxu0 0.0
    %9245 = vmatprep.subr.mxu0 0.0
    %9246 = vmatpush1.msra.mxu0 0.0
    %9247 = vmatprep.subr.mxu0 0.0
    %9248 = vmatpush1.msra.mxu0 0.0
    %9249 = vmatprep.subr.mxu0 0.0
    %9250 = vmatpush1.msra.mxu0 0.0
    %9251 = vmatprep.subr.mxu0 0.0
    %9252 = vmatpush1.msra.mxu0 0.0
    %9253 = vmatprep.subr.mxu0 0.0
    %9254 = vmatpush1.msra.mxu0 %v9225
    %9255 = vmatprep.subr.mxu0 0.0
    %9256 = vmatpush1.msra.mxu0 %v9224
    %9257 = vmatprep.subr.mxu0 0.0
    %9258 = vmatpush1.msra.mxu0 %v9223
    %9259 = vmatprep.subr.mxu0 0.0
    %9260 = vmatpush1.msra.mxu0 %v9222
    %9261 = vmatprep.subr.mxu0 0.0
    %9262 = vmatpush2.msra.mxu0 0.0
    %9263 = vmatprep.subr.mxu0 0.0
    %9264 = vmatpush2.msra.mxu0 0.0
    %9265 = vmatprep.subr.mxu0 0.0
    %9266 = vmatpush2.msra.mxu0 0.0
    %9267 = vmatprep.subr.mxu0 0.0
    %9268 = vmatpush2.msra.mxu0 0.0
    %9269 = vmatprep.subr.mxu0 0.0
    %9270 = vmatpush2.msra.mxu0 0.0
    %9271 = vmatprep.subr.mxu0 0.0
    %9272 = vmatpush2.msra.mxu0 0.0
    %9273 = vmatprep.subr.mxu0 0.0
    %9274 = vmatpush2.msra.mxu0 0.0
    %9275 = vmatprep.subr.mxu0 0.0
    %9276 = vmatpush2.msra.mxu0 0.0
    %9277 = vmatprep.subr.mxu0 0.0
    %9278 = vmatpush2.msra.mxu0 0.0
    %9279 = vmatprep.subr.mxu0 0.0
    %9280 = vmatpush2.msra.mxu0 0.0
    %9281 = vmatprep.subr.mxu0 0.0
    %9282 = vmatpush2.msra.mxu0 0.0
    %9283 = vmatprep.subr.mxu0 0.0
    %9284 = vmatpush2.msra.mxu0 0.0
    %9285 = vmatprep.subr.mxu0 0.0
    %9286 = vmatpush2.msra.mxu0 0.0
    %9287 = vmatprep.subr.mxu0 0.0
    %9288 = vmatpush2.msra.mxu0 0.0
    %9289 = vmatprep.subr.mxu0 0.0
    %9290 = vmatpush2.msra.mxu0 0.0
    %9291 = vmatprep.subr.mxu0 0.0
    %9292 = vmatpush2.msra.mxu0 0.0
    %9293 = vmatprep.mubr.f32.mxu0 0.0
    %9294 = vmatmul.mubr.f32.gmra.mxu0 %v9227
    %v9295 = vpop.f32.mrf.mxu0
    %v9296 = vadd.f32 0.0, %v9295
    %v9297 = vpop.f32.mrf.mxu0
    %9298 = vdwg.mxu0
    %v9299 = vadd.f32 %v9218, %v9296
    %s9300 = scalar_lea.vmem %s7, 96
    %v9301 = vld [vmem:[%s9300] sm:$0xff]
    %v9302 = vld [vmem:[%s9300 + $0x8] sm:$0xff]
    %v9303 = vld [vmem:[%s9300 + $0x10] sm:$0xff]
    %v9304 = vld [vmem:[%s9300 + $0x18] sm:$0xff]
    %v9305 = vrot.slane %v9061, 6
    %v9306 = vsel %vm9076, %v9305, 0
    %9308 = vmatprep.subr.mxu0 0.0
    %9309 = vmatpush1.msra.mxu0 0.0
    %9310 = vmatprep.subr.mxu0 0.0
    %9311 = vmatpush1.msra.mxu0 0.0
    %9312 = vmatprep.subr.mxu0 0.0
    %9313 = vmatpush1.msra.mxu0 0.0
    %9314 = vmatprep.subr.mxu0 0.0
    %9315 = vmatpush1.msra.mxu0 0.0
    %9316 = vmatprep.subr.mxu0 0.0
    %9317 = vmatpush1.msra.mxu0 0.0
    %9318 = vmatprep.subr.mxu0 0.0
    %9319 = vmatpush1.msra.mxu0 0.0
    %9320 = vmatprep.subr.mxu0 0.0
    %9321 = vmatpush1.msra.mxu0 0.0
    %9322 = vmatprep.subr.mxu0 0.0
    %9323 = vmatpush1.msra.mxu0 0.0
    %9324 = vmatprep.subr.mxu0 0.0
    %9325 = vmatpush1.msra.mxu0 0.0
    %9326 = vmatprep.subr.mxu0 0.0
    %9327 = vmatpush1.msra.mxu0 0.0
    %9328 = vmatprep.subr.mxu0 0.0
    %9329 = vmatpush1.msra.mxu0 0.0
    %9330 = vmatprep.subr.mxu0 0.0
    %9331 = vmatpush1.msra.mxu0 0.0
    %9332 = vmatprep.subr.mxu0 0.0
    %9333 = vmatpush1.msra.mxu0 %v9304
    %9334 = vmatprep.subr.mxu0 0.0
    %9335 = vmatpush1.msra.mxu0 %v9303
    %9336 = vmatprep.subr.mxu0 0.0
    %9337 = vmatpush1.msra.mxu0 %v9302
    %9338 = vmatprep.subr.mxu0 0.0
    %9339 = vmatpush1.msra.mxu0 %v9301
    %9340 = vmatprep.subr.mxu0 0.0
    %9341 = vmatpush2.msra.mxu0 0.0
    %9342 = vmatprep.subr.mxu0 0.0
    %9343 = vmatpush2.msra.mxu0 0.0
    %9344 = vmatprep.subr.mxu0 0.0
    %9345 = vmatpush2.msra.mxu0 0.0
    %9346 = vmatprep.subr.mxu0 0.0
    %9347 = vmatpush2.msra.mxu0 0.0
    %9348 = vmatprep.subr.mxu0 0.0
    %9349 = vmatpush2.msra.mxu0 0.0
    %9350 = vmatprep.subr.mxu0 0.0
    %9351 = vmatpush2.msra.mxu0 0.0
    %9352 = vmatprep.subr.mxu0 0.0
    %9353 = vmatpush2.msra.mxu0 0.0
    %9354 = vmatprep.subr.mxu0 0.0
    %9355 = vmatpush2.msra.mxu0 0.0
    %9356 = vmatprep.subr.mxu0 0.0
    %9357 = vmatpush2.msra.mxu0 0.0
    %9358 = vmatprep.subr.mxu0 0.0
    %9359 = vmatpush2.msra.mxu0 0.0
    %9360 = vmatprep.subr.mxu0 0.0
    %9361 = vmatpush2.msra.mxu0 0.0
    %9362 = vmatprep.subr.mxu0 0.0
    %9363 = vmatpush2.msra.mxu0 0.0
    %9364 = vmatprep.subr.mxu0 0.0
    %9365 = vmatpush2.msra.mxu0 0.0
    %9366 = vmatprep.subr.mxu0 0.0
    %9367 = vmatpush2.msra.mxu0 0.0
    %9368 = vmatprep.subr.mxu0 0.0
    %9369 = vmatpush2.msra.mxu0 0.0
    %9370 = vmatprep.subr.mxu0 0.0
    %9371 = vmatpush2.msra.mxu0 0.0
    %9372 = vmatprep.mubr.f32.mxu0 0.0
    %9373 = vmatmul.mubr.f32.gmra.mxu0 %v9306
    %v9374 = vpop.f32.mrf.mxu0
    %v9375 = vadd.f32 0.0, %v9374
    %v9376 = vpop.f32.mrf.mxu0
    %9377 = vdwg.mxu0
    %v9378 = vadd.f32 %v9299, %v9375
    %s9379 = scalar_lea.vmem %s7, 128
    %v9380 = vld [vmem:[%s9379] sm:$0xff]
    %v9381 = vld [vmem:[%s9379 + $0x8] sm:$0xff]
    %v9382 = vld [vmem:[%s9379 + $0x10] sm:$0xff]
    %v9383 = vld [vmem:[%s9379 + $0x18] sm:$0xff]
    %v9385 = vsel %vm9076, %v9062, 0
    %9387 = vmatprep.subr.mxu0 0.0
    %9388 = vmatpush1.msra.mxu0 0.0
    %9389 = vmatprep.subr.mxu0 0.0
    %9390 = vmatpush1.msra.mxu0 0.0
    %9391 = vmatprep.subr.mxu0 0.0
    %9392 = vmatpush1.msra.mxu0 0.0
    %9393 = vmatprep.subr.mxu0 0.0
    %9394 = vmatpush1.msra.mxu0 0.0
    %9395 = vmatprep.subr.mxu0 0.0
    %9396 = vmatpush1.msra.mxu0 0.0
    %9397 = vmatprep.subr.mxu0 0.0
    %9398 = vmatpush1.msra.mxu0 0.0
    %9399 = vmatprep.subr.mxu0 0.0
    %9400 = vmatpush1.msra.mxu0 0.0
    %9401 = vmatprep.subr.mxu0 0.0
    %9402 = vmatpush1.msra.mxu0 0.0
    %9403 = vmatprep.subr.mxu0 0.0
    %9404 = vmatpush1.msra.mxu0 0.0
    %9405 = vmatprep.subr.mxu0 0.0
    %9406 = vmatpush1.msra.mxu0 0.0
    %9407 = vmatprep.subr.mxu0 0.0
    %9408 = vmatpush1.msra.mxu0 0.0
    %9409 = vmatprep.subr.mxu0 0.0
    %9410 = vmatpush1.msra.mxu0 0.0
    %9411 = vmatprep.subr.mxu0 0.0
    %9412 = vmatpush1.msra.mxu0 %v9383
    %9413 = vmatprep.subr.mxu0 0.0
    %9414 = vmatpush1.msra.mxu0 %v9382
    %9415 = vmatprep.subr.mxu0 0.0
    %9416 = vmatpush1.msra.mxu0 %v9381
    %9417 = vmatprep.subr.mxu0 0.0
    %9418 = vmatpush1.msra.mxu0 %v9380
    %9419 = vmatprep.subr.mxu0 0.0
    %9420 = vmatpush2.msra.mxu0 0.0
    %9421 = vmatprep.subr.mxu0 0.0
    %9422 = vmatpush2.msra.mxu0 0.0
    %9423 = vmatprep.subr.mxu0 0.0
    %9424 = vmatpush2.msra.mxu0 0.0
    %9425 = vmatprep.subr.mxu0 0.0
    %9426 = vmatpush2.msra.mxu0 0.0
    %9427 = vmatprep.subr.mxu0 0.0
    %9428 = vmatpush2.msra.mxu0 0.0
    %9429 = vmatprep.subr.mxu0 0.0
    %9430 = vmatpush2.msra.mxu0 0.0
    %9431 = vmatprep.subr.mxu0 0.0
    %9432 = vmatpush2.msra.mxu0 0.0
    %9433 = vmatprep.subr.mxu0 0.0
    %9434 = vmatpush2.msra.mxu0 0.0
    %9435 = vmatprep.subr.mxu0 0.0
    %9436 = vmatpush2.msra.mxu0 0.0
    %9437 = vmatprep.subr.mxu0 0.0
    %9438 = vmatpush2.msra.mxu0 0.0
    %9439 = vmatprep.subr.mxu0 0.0
    %9440 = vmatpush2.msra.mxu0 0.0
    %9441 = vmatprep.subr.mxu0 0.0
    %9442 = vmatpush2.msra.mxu0 0.0
    %9443 = vmatprep.subr.mxu0 0.0
    %9444 = vmatpush2.msra.mxu0 0.0
    %9445 = vmatprep.subr.mxu0 0.0
    %9446 = vmatpush2.msra.mxu0 0.0
    %9447 = vmatprep.subr.mxu0 0.0
    %9448 = vmatpush2.msra.mxu0 0.0
    %9449 = vmatprep.subr.mxu0 0.0
    %9450 = vmatpush2.msra.mxu0 0.0
    %9451 = vmatprep.mubr.f32.mxu0 0.0
    %9452 = vmatmul.mubr.f32.gmra.mxu0 %v9385
    %v9453 = vpop.f32.mrf.mxu0
    %v9454 = vadd.f32 0.0, %v9453
    %v9455 = vpop.f32.mrf.mxu0
    %9456 = vdwg.mxu0
    %v9457 = vadd.f32 %v9378, %v9454
    %s9458 = scalar_lea.vmem %s7, 160
    %v9459 = vld [vmem:[%s9458] sm:$0xff]
    %v9460 = vld [vmem:[%s9458 + $0x8] sm:$0xff]
    %v9461 = vld [vmem:[%s9458 + $0x10] sm:$0xff]
    %v9462 = vld [vmem:[%s9458 + $0x18] sm:$0xff]
    %v9463 = vrot.slane %v9062, 2
    %v9464 = vsel %vm9076, %v9463, 0
    %9466 = vmatprep.subr.mxu0 0.0
    %9467 = vmatpush1.msra.mxu0 0.0
    %9468 = vmatprep.subr.mxu0 0.0
    %9469 = vmatpush1.msra.mxu0 0.0
    %9470 = vmatprep.subr.mxu0 0.0
    %9471 = vmatpush1.msra.mxu0 0.0
    %9472 = vmatprep.subr.mxu0 0.0
    %9473 = vmatpush1.msra.mxu0 0.0
    %9474 = vmatprep.subr.mxu0 0.0
    %9475 = vmatpush1.msra.mxu0 0.0
    %9476 = vmatprep.subr.mxu0 0.0
    %9477 = vmatpush1.msra.mxu0 0.0
    %9478 = vmatprep.subr.mxu0 0.0
    %9479 = vmatpush1.msra.mxu0 0.0
    %9480 = vmatprep.subr.mxu0 0.0
    %9481 = vmatpush1.msra.mxu0 0.0
    %9482 = vmatprep.subr.mxu0 0.0
    %9483 = vmatpush1.msra.mxu0 0.0
    %9484 = vmatprep.subr.mxu0 0.0
    %9485 = vmatpush1.msra.mxu0 0.0
    %9486 = vmatprep.subr.mxu0 0.0
    %9487 = vmatpush1.msra.mxu0 0.0
    %9488 = vmatprep.subr.mxu0 0.0
    %9489 = vmatpush1.msra.mxu0 0.0
    %9490 = vmatprep.subr.mxu0 0.0
    %9491 = vmatpush1.msra.mxu0 %v9462
    %9492 = vmatprep.subr.mxu0 0.0
    %9493 = vmatpush1.msra.mxu0 %v9461
    %9494 = vmatprep.subr.mxu0 0.0
    %9495 = vmatpush1.msra.mxu0 %v9460
    %9496 = vmatprep.subr.mxu0 0.0
    %9497 = vmatpush1.msra.mxu0 %v9459
    %9498 = vmatprep.subr.mxu0 0.0
    %9499 = vmatpush2.msra.mxu0 0.0
    %9500 = vmatprep.subr.mxu0 0.0
    %9501 = vmatpush2.msra.mxu0 0.0
    %9502 = vmatprep.subr.mxu0 0.0
    %9503 = vmatpush2.msra.mxu0 0.0
    %9504 = vmatprep.subr.mxu0 0.0
    %9505 = vmatpush2.msra.mxu0 0.0
    %9506 = vmatprep.subr.mxu0 0.0
    %9507 = vmatpush2.msra.mxu0 0.0
    %9508 = vmatprep.subr.mxu0 0.0
    %9509 = vmatpush2.msra.mxu0 0.0
    %9510 = vmatprep.subr.mxu0 0.0
    %9511 = vmatpush2.msra.mxu0 0.0
    %9512 = vmatprep.subr.mxu0 0.0
    %9513 = vmatpush2.msra.mxu0 0.0
    %9514 = vmatprep.subr.mxu0 0.0
    %9515 = vmatpush2.msra.mxu0 0.0
    %9516 = vmatprep.subr.mxu0 0.0
    %9517 = vmatpush2.msra.mxu0 0.0
    %9518 = vmatprep.subr.mxu0 0.0
    %9519 = vmatpush2.msra.mxu0 0.0
    %9520 = vmatprep.subr.mxu0 0.0
    %9521 = vmatpush2.msra.mxu0 0.0
    %9522 = vmatprep.subr.mxu0 0.0
    %9523 = vmatpush2.msra.mxu0 0.0
    %9524 = vmatprep.subr.mxu0 0.0
    %9525 = vmatpush2.msra.mxu0 0.0
    %9526 = vmatprep.subr.mxu0 0.0
    %9527 = vmatpush2.msra.mxu0 0.0
    %9528 = vmatprep.subr.mxu0 0.0
    %9529 = vmatpush2.msra.mxu0 0.0
    %9530 = vmatprep.mubr.f32.mxu0 0.0
    %9531 = vmatmul.mubr.f32.gmra.mxu0 %v9464
    %v9532 = vpop.f32.mrf.mxu0
    %v9533 = vadd.f32 0.0, %v9532
    %v9534 = vpop.f32.mrf.mxu0
    %9535 = vdwg.mxu0
    %v9536 = vadd.f32 %v9457, %v9533
    %s9537 = scalar_lea.vmem %s7, 192
    %v9538 = vld [vmem:[%s9537] sm:$0xff]
    %v9539 = vld [vmem:[%s9537 + $0x8] sm:$0xff]
    %v9540 = vld [vmem:[%s9537 + $0x10] sm:$0xff]
    %v9541 = vld [vmem:[%s9537 + $0x18] sm:$0xff]
    %v9542 = vrot.slane %v9062, 4
    %v9543 = vsel %vm9076, %v9542, 0
    %9545 = vmatprep.subr.mxu0 0.0
    %9546 = vmatpush1.msra.mxu0 0.0
    %9547 = vmatprep.subr.mxu0 0.0
    %9548 = vmatpush1.msra.mxu0 0.0
    %9549 = vmatprep.subr.mxu0 0.0
    %9550 = vmatpush1.msra.mxu0 0.0
    %9551 = vmatprep.subr.mxu0 0.0
    %9552 = vmatpush1.msra.mxu0 0.0
    %9553 = vmatprep.subr.mxu0 0.0
    %9554 = vmatpush1.msra.mxu0 0.0
    %9555 = vmatprep.subr.mxu0 0.0
    %9556 = vmatpush1.msra.mxu0 0.0
    %9557 = vmatprep.subr.mxu0 0.0
    %9558 = vmatpush1.msra.mxu0 0.0
    %9559 = vmatprep.subr.mxu0 0.0
    %9560 = vmatpush1.msra.mxu0 0.0
    %9561 = vmatprep.subr.mxu0 0.0
    %9562 = vmatpush1.msra.mxu0 0.0
    %9563 = vmatprep.subr.mxu0 0.0
    %9564 = vmatpush1.msra.mxu0 0.0
    %9565 = vmatprep.subr.mxu0 0.0
    %9566 = vmatpush1.msra.mxu0 0.0
    %9567 = vmatprep.subr.mxu0 0.0
    %9568 = vmatpush1.msra.mxu0 0.0
    %9569 = vmatprep.subr.mxu0 0.0
    %9570 = vmatpush1.msra.mxu0 %v9541
    %9571 = vmatprep.subr.mxu0 0.0
    %9572 = vmatpush1.msra.mxu0 %v9540
    %9573 = vmatprep.subr.mxu0 0.0
    %9574 = vmatpush1.msra.mxu0 %v9539
    %9575 = vmatprep.subr.mxu0 0.0
    %9576 = vmatpush1.msra.mxu0 %v9538
    %9577 = vmatprep.subr.mxu0 0.0
    %9578 = vmatpush2.msra.mxu0 0.0
    %9579 = vmatprep.subr.mxu0 0.0
    %9580 = vmatpush2.msra.mxu0 0.0
    %9581 = vmatprep.subr.mxu0 0.0
    %9582 = vmatpush2.msra.mxu0 0.0
    %9583 = vmatprep.subr.mxu0 0.0
    %9584 = vmatpush2.msra.mxu0 0.0
    %9585 = vmatprep.subr.mxu0 0.0
    %9586 = vmatpush2.msra.mxu0 0.0
    %9587 = vmatprep.subr.mxu0 0.0
    %9588 = vmatpush2.msra.mxu0 0.0
    %9589 = vmatprep.subr.mxu0 0.0
    %9590 = vmatpush2.msra.mxu0 0.0
    %9591 = vmatprep.subr.mxu0 0.0
    %9592 = vmatpush2.msra.mxu0 0.0
    %9593 = vmatprep.subr.mxu0 0.0
    %9594 = vmatpush2.msra.mxu0 0.0
    %9595 = vmatprep.subr.mxu0 0.0
    %9596 = vmatpush2.msra.mxu0 0.0
    %9597 = vmatprep.subr.mxu0 0.0
    %9598 = vmatpush2.msra.mxu0 0.0
    %9599 = vmatprep.subr.mxu0 0.0
    %9600 = vmatpush2.msra.mxu0 0.0
    %9601 = vmatprep.subr.mxu0 0.0
    %9602 = vmatpush2.msra.mxu0 0.0
    %9603 = vmatprep.subr.mxu0 0.0
    %9604 = vmatpush2.msra.mxu0 0.0
    %9605 = vmatprep.subr.mxu0 0.0
    %9606 = vmatpush2.msra.mxu0 0.0
    %9607 = vmatprep.subr.mxu0 0.0
    %9608 = vmatpush2.msra.mxu0 0.0
    %9609 = vmatprep.mubr.f32.mxu0 0.0
    %9610 = vmatmul.mubr.f32.gmra.mxu0 %v9543
    %v9611 = vpop.f32.mrf.mxu0
    %v9612 = vadd.f32 0.0, %v9611
    %v9613 = vpop.f32.mrf.mxu0
    %9614 = vdwg.mxu0
    %v9615 = vadd.f32 %v9536, %v9612
    %s9616 = scalar_lea.vmem %s7, 224
    %v9617 = vld [vmem:[%s9616] sm:$0xff]
    %v9618 = vld [vmem:[%s9616 + $0x8] sm:$0xff]
    %v9619 = vld [vmem:[%s9616 + $0x10] sm:$0xff]
    %v9620 = vld [vmem:[%s9616 + $0x18] sm:$0xff]
    %v9621 = vrot.slane %v9062, 6
    %v9622 = vsel %vm9076, %v9621, 0
    %9624 = vmatprep.subr.mxu0 0.0
    %9625 = vmatpush1.msra.mxu0 0.0
    %9626 = vmatprep.subr.mxu0 0.0
    %9627 = vmatpush1.msra.mxu0 0.0
    %9628 = vmatprep.subr.mxu0 0.0
    %9629 = vmatpush1.msra.mxu0 0.0
    %9630 = vmatprep.subr.mxu0 0.0
    %9631 = vmatpush1.msra.mxu0 0.0
    %9632 = vmatprep.subr.mxu0 0.0
    %9633 = vmatpush1.msra.mxu0 0.0
    %9634 = vmatprep.subr.mxu0 0.0
    %9635 = vmatpush1.msra.mxu0 0.0
    %9636 = vmatprep.subr.mxu0 0.0
    %9637 = vmatpush1.msra.mxu0 0.0
    %9638 = vmatprep.subr.mxu0 0.0
    %9639 = vmatpush1.msra.mxu0 0.0
    %9640 = vmatprep.subr.mxu0 0.0
    %9641 = vmatpush1.msra.mxu0 0.0
    %9642 = vmatprep.subr.mxu0 0.0
    %9643 = vmatpush1.msra.mxu0 0.0
    %9644 = vmatprep.subr.mxu0 0.0
    %9645 = vmatpush1.msra.mxu0 0.0
    %9646 = vmatprep.subr.mxu0 0.0
    %9647 = vmatpush1.msra.mxu0 0.0
    %9648 = vmatprep.subr.mxu0 0.0
    %9649 = vmatpush1.msra.mxu0 %v9620
    %9650 = vmatprep.subr.mxu0 0.0
    %9651 = vmatpush1.msra.mxu0 %v9619
    %9652 = vmatprep.subr.mxu0 0.0
    %9653 = vmatpush1.msra.mxu0 %v9618
    %9654 = vmatprep.subr.mxu0 0.0
    %9655 = vmatpush1.msra.mxu0 %v9617
    %9656 = vmatprep.subr.mxu0 0.0
    %9657 = vmatpush2.msra.mxu0 0.0
    %9658 = vmatprep.subr.mxu0 0.0
    %9659 = vmatpush2.msra.mxu0 0.0
    %9660 = vmatprep.subr.mxu0 0.0
    %9661 = vmatpush2.msra.mxu0 0.0
    %9662 = vmatprep.subr.mxu0 0.0
    %9663 = vmatpush2.msra.mxu0 0.0
    %9664 = vmatprep.subr.mxu0 0.0
    %9665 = vmatpush2.msra.mxu0 0.0
    %9666 = vmatprep.subr.mxu0 0.0
    %9667 = vmatpush2.msra.mxu0 0.0
    %9668 = vmatprep.subr.mxu0 0.0
    %9669 = vmatpush2.msra.mxu0 0.0
    %9670 = vmatprep.subr.mxu0 0.0
    %9671 = vmatpush2.msra.mxu0 0.0
    %9672 = vmatprep.subr.mxu0 0.0
    %9673 = vmatpush2.msra.mxu0 0.0
    %9674 = vmatprep.subr.mxu0 0.0
    %9675 = vmatpush2.msra.mxu0 0.0
    %9676 = vmatprep.subr.mxu0 0.0
    %9677 = vmatpush2.msra.mxu0 0.0
    %9678 = vmatprep.subr.mxu0 0.0
    %9679 = vmatpush2.msra.mxu0 0.0
    %9680 = vmatprep.subr.mxu0 0.0
    %9681 = vmatpush2.msra.mxu0 0.0
    %9682 = vmatprep.subr.mxu0 0.0
    %9683 = vmatpush2.msra.mxu0 0.0
    %9684 = vmatprep.subr.mxu0 0.0
    %9685 = vmatpush2.msra.mxu0 0.0
    %9686 = vmatprep.subr.mxu0 0.0
    %9687 = vmatpush2.msra.mxu0 0.0
    %9688 = vmatprep.mubr.f32.mxu0 0.0
    %9689 = vmatmul.mubr.f32.gmra.mxu0 %v9622
    %v9690 = vpop.f32.mrf.mxu0
    %v9691 = vadd.f32 0.0, %v9690
    %v9692 = vpop.f32.mrf.mxu0
    %9693 = vdwg.mxu0
    %v9694 = vadd.f32 %v9615, %v9691
    %s9695 = scalar_lea.vmem %s7, 256
    %v9696 = vld [vmem:[%s9695] sm:$0xff]
    %v9697 = vld [vmem:[%s9695 + $0x8] sm:$0xff]
    %v9698 = vld [vmem:[%s9695 + $0x10] sm:$0xff]
    %v9699 = vld [vmem:[%s9695 + $0x18] sm:$0xff]
    %v9701 = vsel %vm9076, %v9063, 0
    %9703 = vmatprep.subr.mxu0 0.0
    %9704 = vmatpush1.msra.mxu0 0.0
    %9705 = vmatprep.subr.mxu0 0.0
    %9706 = vmatpush1.msra.mxu0 0.0
    %9707 = vmatprep.subr.mxu0 0.0
    %9708 = vmatpush1.msra.mxu0 0.0
    %9709 = vmatprep.subr.mxu0 0.0
    %9710 = vmatpush1.msra.mxu0 0.0
    %9711 = vmatprep.subr.mxu0 0.0
    %9712 = vmatpush1.msra.mxu0 0.0
    %9713 = vmatprep.subr.mxu0 0.0
    %9714 = vmatpush1.msra.mxu0 0.0
    %9715 = vmatprep.subr.mxu0 0.0
    %9716 = vmatpush1.msra.mxu0 0.0
    %9717 = vmatprep.subr.mxu0 0.0
    %9718 = vmatpush1.msra.mxu0 0.0
    %9719 = vmatprep.subr.mxu0 0.0
    %9720 = vmatpush1.msra.mxu0 0.0
    %9721 = vmatprep.subr.mxu0 0.0
    %9722 = vmatpush1.msra.mxu0 0.0
    %9723 = vmatprep.subr.mxu0 0.0
    %9724 = vmatpush1.msra.mxu0 0.0
    %9725 = vmatprep.subr.mxu0 0.0
    %9726 = vmatpush1.msra.mxu0 0.0
    %9727 = vmatprep.subr.mxu0 0.0
    %9728 = vmatpush1.msra.mxu0 %v9699
    %9729 = vmatprep.subr.mxu0 0.0
    %9730 = vmatpush1.msra.mxu0 %v9698
    %9731 = vmatprep.subr.mxu0 0.0
    %9732 = vmatpush1.msra.mxu0 %v9697
    %9733 = vmatprep.subr.mxu0 0.0
    %9734 = vmatpush1.msra.mxu0 %v9696
    %9735 = vmatprep.subr.mxu0 0.0
    %9736 = vmatpush2.msra.mxu0 0.0
    %9737 = vmatprep.subr.mxu0 0.0
    %9738 = vmatpush2.msra.mxu0 0.0
    %9739 = vmatprep.subr.mxu0 0.0
    %9740 = vmatpush2.msra.mxu0 0.0
    %9741 = vmatprep.subr.mxu0 0.0
    %9742 = vmatpush2.msra.mxu0 0.0
    %9743 = vmatprep.subr.mxu0 0.0
    %9744 = vmatpush2.msra.mxu0 0.0
    %9745 = vmatprep.subr.mxu0 0.0
    %9746 = vmatpush2.msra.mxu0 0.0
    %9747 = vmatprep.subr.mxu0 0.0
    %9748 = vmatpush2.msra.mxu0 0.0
    %9749 = vmatprep.subr.mxu0 0.0
    %9750 = vmatpush2.msra.mxu0 0.0
    %9751 = vmatprep.subr.mxu0 0.0
    %9752 = vmatpush2.msra.mxu0 0.0
    %9753 = vmatprep.subr.mxu0 0.0
    %9754 = vmatpush2.msra.mxu0 0.0
    %9755 = vmatprep.subr.mxu0 0.0
    %9756 = vmatpush2.msra.mxu0 0.0
    %9757 = vmatprep.subr.mxu0 0.0
    %9758 = vmatpush2.msra.mxu0 0.0
    %9759 = vmatprep.subr.mxu0 0.0
    %9760 = vmatpush2.msra.mxu0 0.0
    %9761 = vmatprep.subr.mxu0 0.0
    %9762 = vmatpush2.msra.mxu0 0.0
    %9763 = vmatprep.subr.mxu0 0.0
    %9764 = vmatpush2.msra.mxu0 0.0
    %9765 = vmatprep.subr.mxu0 0.0
    %9766 = vmatpush2.msra.mxu0 0.0
    %9767 = vmatprep.mubr.f32.mxu0 0.0
    %9768 = vmatmul.mubr.f32.gmra.mxu0 %v9701
    %v9769 = vpop.f32.mrf.mxu0
    %v9770 = vadd.f32 0.0, %v9769
    %v9771 = vpop.f32.mrf.mxu0
    %9772 = vdwg.mxu0
    %v9773 = vadd.f32 %v9694, %v9770
    %s9774 = scalar_lea.vmem %s7, 288
    %v9775 = vld [vmem:[%s9774] sm:$0xff]
    %v9776 = vld [vmem:[%s9774 + $0x8] sm:$0xff]
    %v9777 = vld [vmem:[%s9774 + $0x10] sm:$0xff]
    %v9778 = vld [vmem:[%s9774 + $0x18] sm:$0xff]
    %v9779 = vrot.slane %v9063, 2
    %v9780 = vsel %vm9076, %v9779, 0
    %9782 = vmatprep.subr.mxu0 0.0
    %9783 = vmatpush1.msra.mxu0 0.0
    %9784 = vmatprep.subr.mxu0 0.0
    %9785 = vmatpush1.msra.mxu0 0.0
    %9786 = vmatprep.subr.mxu0 0.0
    %9787 = vmatpush1.msra.mxu0 0.0
    %9788 = vmatprep.subr.mxu0 0.0
    %9789 = vmatpush1.msra.mxu0 0.0
    %9790 = vmatprep.subr.mxu0 0.0
    %9791 = vmatpush1.msra.mxu0 0.0
    %9792 = vmatprep.subr.mxu0 0.0
    %9793 = vmatpush1.msra.mxu0 0.0
    %9794 = vmatprep.subr.mxu0 0.0
    %9795 = vmatpush1.msra.mxu0 0.0
    %9796 = vmatprep.subr.mxu0 0.0
    %9797 = vmatpush1.msra.mxu0 0.0
    %9798 = vmatprep.subr.mxu0 0.0
    %9799 = vmatpush1.msra.mxu0 0.0
    %9800 = vmatprep.subr.mxu0 0.0
    %9801 = vmatpush1.msra.mxu0 0.0
    %9802 = vmatprep.subr.mxu0 0.0
    %9803 = vmatpush1.msra.mxu0 0.0
    %9804 = vmatprep.subr.mxu0 0.0
    %9805 = vmatpush1.msra.mxu0 0.0
    %9806 = vmatprep.subr.mxu0 0.0
    %9807 = vmatpush1.msra.mxu0 %v9778
    %9808 = vmatprep.subr.mxu0 0.0
    %9809 = vmatpush1.msra.mxu0 %v9777
    %9810 = vmatprep.subr.mxu0 0.0
    %9811 = vmatpush1.msra.mxu0 %v9776
    %9812 = vmatprep.subr.mxu0 0.0
    %9813 = vmatpush1.msra.mxu0 %v9775
    %9814 = vmatprep.subr.mxu0 0.0
    %9815 = vmatpush2.msra.mxu0 0.0
    %9816 = vmatprep.subr.mxu0 0.0
    %9817 = vmatpush2.msra.mxu0 0.0
    %9818 = vmatprep.subr.mxu0 0.0
    %9819 = vmatpush2.msra.mxu0 0.0
    %9820 = vmatprep.subr.mxu0 0.0
    %9821 = vmatpush2.msra.mxu0 0.0
    %9822 = vmatprep.subr.mxu0 0.0
    %9823 = vmatpush2.msra.mxu0 0.0
    %9824 = vmatprep.subr.mxu0 0.0
    %9825 = vmatpush2.msra.mxu0 0.0
    %9826 = vmatprep.subr.mxu0 0.0
    %9827 = vmatpush2.msra.mxu0 0.0
    %9828 = vmatprep.subr.mxu0 0.0
    %9829 = vmatpush2.msra.mxu0 0.0
    %9830 = vmatprep.subr.mxu0 0.0
    %9831 = vmatpush2.msra.mxu0 0.0
    %9832 = vmatprep.subr.mxu0 0.0
    %9833 = vmatpush2.msra.mxu0 0.0
    %9834 = vmatprep.subr.mxu0 0.0
    %9835 = vmatpush2.msra.mxu0 0.0
    %9836 = vmatprep.subr.mxu0 0.0
    %9837 = vmatpush2.msra.mxu0 0.0
    %9838 = vmatprep.subr.mxu0 0.0
    %9839 = vmatpush2.msra.mxu0 0.0
    %9840 = vmatprep.subr.mxu0 0.0
    %9841 = vmatpush2.msra.mxu0 0.0
    %9842 = vmatprep.subr.mxu0 0.0
    %9843 = vmatpush2.msra.mxu0 0.0
    %9844 = vmatprep.subr.mxu0 0.0
    %9845 = vmatpush2.msra.mxu0 0.0
    %9846 = vmatprep.mubr.f32.mxu0 0.0
    %9847 = vmatmul.mubr.f32.gmra.mxu0 %v9780
    %v9848 = vpop.f32.mrf.mxu0
    %v9849 = vadd.f32 0.0, %v9848
    %v9850 = vpop.f32.mrf.mxu0
    %9851 = vdwg.mxu0
    %v9852 = vadd.f32 %v9773, %v9849
    %s9853 = scalar_lea.vmem %s7, 320
    %v9854 = vld [vmem:[%s9853] sm:$0xff]
    %v9855 = vld [vmem:[%s9853 + $0x8] sm:$0xff]
    %v9856 = vld [vmem:[%s9853 + $0x10] sm:$0xff]
    %v9857 = vld [vmem:[%s9853 + $0x18] sm:$0xff]
    %v9858 = vrot.slane %v9063, 4
    %v9859 = vsel %vm9076, %v9858, 0
    %9861 = vmatprep.subr.mxu0 0.0
    %9862 = vmatpush1.msra.mxu0 0.0
    %9863 = vmatprep.subr.mxu0 0.0
    %9864 = vmatpush1.msra.mxu0 0.0
    %9865 = vmatprep.subr.mxu0 0.0
    %9866 = vmatpush1.msra.mxu0 0.0
    %9867 = vmatprep.subr.mxu0 0.0
    %9868 = vmatpush1.msra.mxu0 0.0
    %9869 = vmatprep.subr.mxu0 0.0
    %9870 = vmatpush1.msra.mxu0 0.0
    %9871 = vmatprep.subr.mxu0 0.0
    %9872 = vmatpush1.msra.mxu0 0.0
    %9873 = vmatprep.subr.mxu0 0.0
    %9874 = vmatpush1.msra.mxu0 0.0
    %9875 = vmatprep.subr.mxu0 0.0
    %9876 = vmatpush1.msra.mxu0 0.0
    %9877 = vmatprep.subr.mxu0 0.0
    %9878 = vmatpush1.msra.mxu0 0.0
    %9879 = vmatprep.subr.mxu0 0.0
    %9880 = vmatpush1.msra.mxu0 0.0
    %9881 = vmatprep.subr.mxu0 0.0
    %9882 = vmatpush1.msra.mxu0 0.0
    %9883 = vmatprep.subr.mxu0 0.0
    %9884 = vmatpush1.msra.mxu0 0.0
    %9885 = vmatprep.subr.mxu0 0.0
    %9886 = vmatpush1.msra.mxu0 %v9857
    %9887 = vmatprep.subr.mxu0 0.0
    %9888 = vmatpush1.msra.mxu0 %v9856
    %9889 = vmatprep.subr.mxu0 0.0
    %9890 = vmatpush1.msra.mxu0 %v9855
    %9891 = vmatprep.subr.mxu0 0.0
    %9892 = vmatpush1.msra.mxu0 %v9854
    %9893 = vmatprep.subr.mxu0 0.0
    %9894 = vmatpush2.msra.mxu0 0.0
    %9895 = vmatprep.subr.mxu0 0.0
    %9896 = vmatpush2.msra.mxu0 0.0
    %9897 = vmatprep.subr.mxu0 0.0
    %9898 = vmatpush2.msra.mxu0 0.0
    %9899 = vmatprep.subr.mxu0 0.0
    %9900 = vmatpush2.msra.mxu0 0.0
    %9901 = vmatprep.subr.mxu0 0.0
    %9902 = vmatpush2.msra.mxu0 0.0
    %9903 = vmatprep.subr.mxu0 0.0
    %9904 = vmatpush2.msra.mxu0 0.0
    %9905 = vmatprep.subr.mxu0 0.0
    %9906 = vmatpush2.msra.mxu0 0.0
    %9907 = vmatprep.subr.mxu0 0.0
    %9908 = vmatpush2.msra.mxu0 0.0
    %9909 = vmatprep.subr.mxu0 0.0
    %9910 = vmatpush2.msra.mxu0 0.0
    %9911 = vmatprep.subr.mxu0 0.0
    %9912 = vmatpush2.msra.mxu0 0.0
    %9913 = vmatprep.subr.mxu0 0.0
    %9914 = vmatpush2.msra.mxu0 0.0
    %9915 = vmatprep.subr.mxu0 0.0
    %9916 = vmatpush2.msra.mxu0 0.0
    %9917 = vmatprep.subr.mxu0 0.0
    %9918 = vmatpush2.msra.mxu0 0.0
    %9919 = vmatprep.subr.mxu0 0.0
    %9920 = vmatpush2.msra.mxu0 0.0
    %9921 = vmatprep.subr.mxu0 0.0
    %9922 = vmatpush2.msra.mxu0 0.0
    %9923 = vmatprep.subr.mxu0 0.0
    %9924 = vmatpush2.msra.mxu0 0.0
    %9925 = vmatprep.mubr.f32.mxu0 0.0
    %9926 = vmatmul.mubr.f32.gmra.mxu0 %v9859
    %v9927 = vpop.f32.mrf.mxu0
    %v9928 = vadd.f32 0.0, %v9927
    %v9929 = vpop.f32.mrf.mxu0
    %9930 = vdwg.mxu0
    %v9931 = vadd.f32 %v9852, %v9928
    %s9932 = scalar_lea.vmem %s7, 352
    %v9933 = vld [vmem:[%s9932] sm:$0xff]
    %v9934 = vld [vmem:[%s9932 + $0x8] sm:$0xff]
    %v9935 = vld [vmem:[%s9932 + $0x10] sm:$0xff]
    %v9936 = vld [vmem:[%s9932 + $0x18] sm:$0xff]
    %v9937 = vrot.slane %v9063, 6
    %v9938 = vsel %vm9076, %v9937, 0
    %9940 = vmatprep.subr.mxu0 0.0
    %9941 = vmatpush1.msra.mxu0 0.0
    %9942 = vmatprep.subr.mxu0 0.0
    %9943 = vmatpush1.msra.mxu0 0.0
    %9944 = vmatprep.subr.mxu0 0.0
    %9945 = vmatpush1.msra.mxu0 0.0
    %9946 = vmatprep.subr.mxu0 0.0
    %9947 = vmatpush1.msra.mxu0 0.0
    %9948 = vmatprep.subr.mxu0 0.0
    %9949 = vmatpush1.msra.mxu0 0.0
    %9950 = vmatprep.subr.mxu0 0.0
    %9951 = vmatpush1.msra.mxu0 0.0
    %9952 = vmatprep.subr.mxu0 0.0
    %9953 = vmatpush1.msra.mxu0 0.0
    %9954 = vmatprep.subr.mxu0 0.0
    %9955 = vmatpush1.msra.mxu0 0.0
    %9956 = vmatprep.subr.mxu0 0.0
    %9957 = vmatpush1.msra.mxu0 0.0
    %9958 = vmatprep.subr.mxu0 0.0
    %9959 = vmatpush1.msra.mxu0 0.0
    %9960 = vmatprep.subr.mxu0 0.0
    %9961 = vmatpush1.msra.mxu0 0.0
    %9962 = vmatprep.subr.mxu0 0.0
    %9963 = vmatpush1.msra.mxu0 0.0
    %9964 = vmatprep.subr.mxu0 0.0
    %9965 = vmatpush1.msra.mxu0 %v9936
    %9966 = vmatprep.subr.mxu0 0.0
    %9967 = vmatpush1.msra.mxu0 %v9935
    %9968 = vmatprep.subr.mxu0 0.0
    %9969 = vmatpush1.msra.mxu0 %v9934
    %9970 = vmatprep.subr.mxu0 0.0
    %9971 = vmatpush1.msra.mxu0 %v9933
    %9972 = vmatprep.subr.mxu0 0.0
    %9973 = vmatpush2.msra.mxu0 0.0
    %9974 = vmatprep.subr.mxu0 0.0
    %9975 = vmatpush2.msra.mxu0 0.0
    %9976 = vmatprep.subr.mxu0 0.0
    %9977 = vmatpush2.msra.mxu0 0.0
    %9978 = vmatprep.subr.mxu0 0.0
    %9979 = vmatpush2.msra.mxu0 0.0
    %9980 = vmatprep.subr.mxu0 0.0
    %9981 = vmatpush2.msra.mxu0 0.0
    %9982 = vmatprep.subr.mxu0 0.0
    %9983 = vmatpush2.msra.mxu0 0.0
    %9984 = vmatprep.subr.mxu0 0.0
    %9985 = vmatpush2.msra.mxu0 0.0
    %9986 = vmatprep.subr.mxu0 0.0
    %9987 = vmatpush2.msra.mxu0 0.0
    %9988 = vmatprep.subr.mxu0 0.0
    %9989 = vmatpush2.msra.mxu0 0.0
    %9990 = vmatprep.subr.mxu0 0.0
    %9991 = vmatpush2.msra.mxu0 0.0
    %9992 = vmatprep.subr.mxu0 0.0
    %9993 = vmatpush2.msra.mxu0 0.0
    %9994 = vmatprep.subr.mxu0 0.0
    %9995 = vmatpush2.msra.mxu0 0.0
    %9996 = vmatprep.subr.mxu0 0.0
    %9997 = vmatpush2.msra.mxu0 0.0
    %9998 = vmatprep.subr.mxu0 0.0
    %9999 = vmatpush2.msra.mxu0 0.0
    %10000 = vmatprep.subr.mxu0 0.0
    %10001 = vmatpush2.msra.mxu0 0.0
    %10002 = vmatprep.subr.mxu0 0.0
    %10003 = vmatpush2.msra.mxu0 0.0
    %10004 = vmatprep.mubr.f32.mxu0 0.0
    %10005 = vmatmul.mubr.f32.gmra.mxu0 %v9938
    %v10006 = vpop.f32.mrf.mxu0
    %v10007 = vadd.f32 0.0, %v10006
    %v10008 = vpop.f32.mrf.mxu0
    %10009 = vdwg.mxu0
    %v10010 = vadd.f32 %v9931, %v10007
    %s10011 = scalar_lea.vmem %s7, 384
    %v10012 = vld [vmem:[%s10011] sm:$0xff]
    %v10013 = vld [vmem:[%s10011 + $0x8] sm:$0xff]
    %v10014 = vld [vmem:[%s10011 + $0x10] sm:$0xff]
    %v10015 = vld [vmem:[%s10011 + $0x18] sm:$0xff]
    %v10017 = vsel %vm9076, %v9064, 0
    %10019 = vmatprep.subr.mxu0 0.0
    %10020 = vmatpush1.msra.mxu0 0.0
    %10021 = vmatprep.subr.mxu0 0.0
    %10022 = vmatpush1.msra.mxu0 0.0
    %10023 = vmatprep.subr.mxu0 0.0
    %10024 = vmatpush1.msra.mxu0 0.0
    %10025 = vmatprep.subr.mxu0 0.0
    %10026 = vmatpush1.msra.mxu0 0.0
    %10027 = vmatprep.subr.mxu0 0.0
    %10028 = vmatpush1.msra.mxu0 0.0
    %10029 = vmatprep.subr.mxu0 0.0
    %10030 = vmatpush1.msra.mxu0 0.0
    %10031 = vmatprep.subr.mxu0 0.0
    %10032 = vmatpush1.msra.mxu0 0.0
    %10033 = vmatprep.subr.mxu0 0.0
    %10034 = vmatpush1.msra.mxu0 0.0
    %10035 = vmatprep.subr.mxu0 0.0
    %10036 = vmatpush1.msra.mxu0 0.0
    %10037 = vmatprep.subr.mxu0 0.0
    %10038 = vmatpush1.msra.mxu0 0.0
    %10039 = vmatprep.subr.mxu0 0.0
    %10040 = vmatpush1.msra.mxu0 0.0
    %10041 = vmatprep.subr.mxu0 0.0
    %10042 = vmatpush1.msra.mxu0 0.0
    %10043 = vmatprep.subr.mxu0 0.0
    %10044 = vmatpush1.msra.mxu0 %v10015
    %10045 = vmatprep.subr.mxu0 0.0
    %10046 = vmatpush1.msra.mxu0 %v10014
    %10047 = vmatprep.subr.mxu0 0.0
    %10048 = vmatpush1.msra.mxu0 %v10013
    %10049 = vmatprep.subr.mxu0 0.0
    %10050 = vmatpush1.msra.mxu0 %v10012
    %10051 = vmatprep.subr.mxu0 0.0
    %10052 = vmatpush2.msra.mxu0 0.0
    %10053 = vmatprep.subr.mxu0 0.0
    %10054 = vmatpush2.msra.mxu0 0.0
    %10055 = vmatprep.subr.mxu0 0.0
    %10056 = vmatpush2.msra.mxu0 0.0
    %10057 = vmatprep.subr.mxu0 0.0
    %10058 = vmatpush2.msra.mxu0 0.0
    %10059 = vmatprep.subr.mxu0 0.0
    %10060 = vmatpush2.msra.mxu0 0.0
    %10061 = vmatprep.subr.mxu0 0.0
    %10062 = vmatpush2.msra.mxu0 0.0
    %10063 = vmatprep.subr.mxu0 0.0
    %10064 = vmatpush2.msra.mxu0 0.0
    %10065 = vmatprep.subr.mxu0 0.0
    %10066 = vmatpush2.msra.mxu0 0.0
    %10067 = vmatprep.subr.mxu0 0.0
    %10068 = vmatpush2.msra.mxu0 0.0
    %10069 = vmatprep.subr.mxu0 0.0
    %10070 = vmatpush2.msra.mxu0 0.0
    %10071 = vmatprep.subr.mxu0 0.0
    %10072 = vmatpush2.msra.mxu0 0.0
    %10073 = vmatprep.subr.mxu0 0.0
    %10074 = vmatpush2.msra.mxu0 0.0
    %10075 = vmatprep.subr.mxu0 0.0
    %10076 = vmatpush2.msra.mxu0 0.0
    %10077 = vmatprep.subr.mxu0 0.0
    %10078 = vmatpush2.msra.mxu0 0.0
    %10079 = vmatprep.subr.mxu0 0.0
    %10080 = vmatpush2.msra.mxu0 0.0
    %10081 = vmatprep.subr.mxu0 0.0
    %10082 = vmatpush2.msra.mxu0 0.0
    %10083 = vmatprep.mubr.f32.mxu0 0.0
    %10084 = vmatmul.mubr.f32.gmra.mxu0 %v10017
    %v10085 = vpop.f32.mrf.mxu0
    %v10086 = vadd.f32 0.0, %v10085
    %v10087 = vpop.f32.mrf.mxu0
    %10088 = vdwg.mxu0
    %v10089 = vadd.f32 %v10010, %v10086
    %s10090 = scalar_lea.vmem %s7, 416
    %v10091 = vld [vmem:[%s10090] sm:$0xff]
    %v10092 = vld [vmem:[%s10090 + $0x8] sm:$0xff]
    %v10093 = vld [vmem:[%s10090 + $0x10] sm:$0xff]
    %v10094 = vld [vmem:[%s10090 + $0x18] sm:$0xff]
    %v10095 = vrot.slane %v9064, 2
    %v10096 = vsel %vm9076, %v10095, 0
    %10098 = vmatprep.subr.mxu0 0.0
    %10099 = vmatpush1.msra.mxu0 0.0
    %10100 = vmatprep.subr.mxu0 0.0
    %10101 = vmatpush1.msra.mxu0 0.0
    %10102 = vmatprep.subr.mxu0 0.0
    %10103 = vmatpush1.msra.mxu0 0.0
    %10104 = vmatprep.subr.mxu0 0.0
    %10105 = vmatpush1.msra.mxu0 0.0
    %10106 = vmatprep.subr.mxu0 0.0
    %10107 = vmatpush1.msra.mxu0 0.0
    %10108 = vmatprep.subr.mxu0 0.0
    %10109 = vmatpush1.msra.mxu0 0.0
    %10110 = vmatprep.subr.mxu0 0.0
    %10111 = vmatpush1.msra.mxu0 0.0
    %10112 = vmatprep.subr.mxu0 0.0
    %10113 = vmatpush1.msra.mxu0 0.0
    %10114 = vmatprep.subr.mxu0 0.0
    %10115 = vmatpush1.msra.mxu0 0.0
    %10116 = vmatprep.subr.mxu0 0.0
    %10117 = vmatpush1.msra.mxu0 0.0
    %10118 = vmatprep.subr.mxu0 0.0
    %10119 = vmatpush1.msra.mxu0 0.0
    %10120 = vmatprep.subr.mxu0 0.0
    %10121 = vmatpush1.msra.mxu0 0.0
    %10122 = vmatprep.subr.mxu0 0.0
    %10123 = vmatpush1.msra.mxu0 %v10094
    %10124 = vmatprep.subr.mxu0 0.0
    %10125 = vmatpush1.msra.mxu0 %v10093
    %10126 = vmatprep.subr.mxu0 0.0
    %10127 = vmatpush1.msra.mxu0 %v10092
    %10128 = vmatprep.subr.mxu0 0.0
    %10129 = vmatpush1.msra.mxu0 %v10091
    %10130 = vmatprep.subr.mxu0 0.0
    %10131 = vmatpush2.msra.mxu0 0.0
    %10132 = vmatprep.subr.mxu0 0.0
    %10133 = vmatpush2.msra.mxu0 0.0
    %10134 = vmatprep.subr.mxu0 0.0
    %10135 = vmatpush2.msra.mxu0 0.0
    %10136 = vmatprep.subr.mxu0 0.0
    %10137 = vmatpush2.msra.mxu0 0.0
    %10138 = vmatprep.subr.mxu0 0.0
    %10139 = vmatpush2.msra.mxu0 0.0
    %10140 = vmatprep.subr.mxu0 0.0
    %10141 = vmatpush2.msra.mxu0 0.0
    %10142 = vmatprep.subr.mxu0 0.0
    %10143 = vmatpush2.msra.mxu0 0.0
    %10144 = vmatprep.subr.mxu0 0.0
    %10145 = vmatpush2.msra.mxu0 0.0
    %10146 = vmatprep.subr.mxu0 0.0
    %10147 = vmatpush2.msra.mxu0 0.0
    %10148 = vmatprep.subr.mxu0 0.0
    %10149 = vmatpush2.msra.mxu0 0.0
    %10150 = vmatprep.subr.mxu0 0.0
    %10151 = vmatpush2.msra.mxu0 0.0
    %10152 = vmatprep.subr.mxu0 0.0
    %10153 = vmatpush2.msra.mxu0 0.0
    %10154 = vmatprep.subr.mxu0 0.0
    %10155 = vmatpush2.msra.mxu0 0.0
    %10156 = vmatprep.subr.mxu0 0.0
    %10157 = vmatpush2.msra.mxu0 0.0
    %10158 = vmatprep.subr.mxu0 0.0
    %10159 = vmatpush2.msra.mxu0 0.0
    %10160 = vmatprep.subr.mxu0 0.0
    %10161 = vmatpush2.msra.mxu0 0.0
    %10162 = vmatprep.mubr.f32.mxu0 0.0
    %10163 = vmatmul.mubr.f32.gmra.mxu0 %v10096
    %v10164 = vpop.f32.mrf.mxu0
    %v10165 = vadd.f32 0.0, %v10164
    %v10166 = vpop.f32.mrf.mxu0
    %10167 = vdwg.mxu0
    %v10168 = vadd.f32 %v10089, %v10165
    %s10169 = scalar_lea.vmem %s7, 448
    %v10170 = vld [vmem:[%s10169] sm:$0xff]
    %v10171 = vld [vmem:[%s10169 + $0x8] sm:$0xff]
    %v10172 = vld [vmem:[%s10169 + $0x10] sm:$0xff]
    %v10173 = vld [vmem:[%s10169 + $0x18] sm:$0xff]
    %v10174 = vrot.slane %v9064, 4
    %v10175 = vsel %vm9076, %v10174, 0
    %10177 = vmatprep.subr.mxu0 0.0
    %10178 = vmatpush1.msra.mxu0 0.0
    %10179 = vmatprep.subr.mxu0 0.0
    %10180 = vmatpush1.msra.mxu0 0.0
    %10181 = vmatprep.subr.mxu0 0.0
    %10182 = vmatpush1.msra.mxu0 0.0
    %10183 = vmatprep.subr.mxu0 0.0
    %10184 = vmatpush1.msra.mxu0 0.0
    %10185 = vmatprep.subr.mxu0 0.0
    %10186 = vmatpush1.msra.mxu0 0.0
    %10187 = vmatprep.subr.mxu0 0.0
    %10188 = vmatpush1.msra.mxu0 0.0
    %10189 = vmatprep.subr.mxu0 0.0
    %10190 = vmatpush1.msra.mxu0 0.0
    %10191 = vmatprep.subr.mxu0 0.0
    %10192 = vmatpush1.msra.mxu0 0.0
    %10193 = vmatprep.subr.mxu0 0.0
    %10194 = vmatpush1.msra.mxu0 0.0
    %10195 = vmatprep.subr.mxu0 0.0
    %10196 = vmatpush1.msra.mxu0 0.0
    %10197 = vmatprep.subr.mxu0 0.0
    %10198 = vmatpush1.msra.mxu0 0.0
    %10199 = vmatprep.subr.mxu0 0.0
    %10200 = vmatpush1.msra.mxu0 0.0
    %10201 = vmatprep.subr.mxu0 0.0
    %10202 = vmatpush1.msra.mxu0 %v10173
    %10203 = vmatprep.subr.mxu0 0.0
    %10204 = vmatpush1.msra.mxu0 %v10172
    %10205 = vmatprep.subr.mxu0 0.0
    %10206 = vmatpush1.msra.mxu0 %v10171
    %10207 = vmatprep.subr.mxu0 0.0
    %10208 = vmatpush1.msra.mxu0 %v10170
    %10209 = vmatprep.subr.mxu0 0.0
    %10210 = vmatpush2.msra.mxu0 0.0
    %10211 = vmatprep.subr.mxu0 0.0
    %10212 = vmatpush2.msra.mxu0 0.0
    %10213 = vmatprep.subr.mxu0 0.0
    %10214 = vmatpush2.msra.mxu0 0.0
    %10215 = vmatprep.subr.mxu0 0.0
    %10216 = vmatpush2.msra.mxu0 0.0
    %10217 = vmatprep.subr.mxu0 0.0
    %10218 = vmatpush2.msra.mxu0 0.0
    %10219 = vmatprep.subr.mxu0 0.0
    %10220 = vmatpush2.msra.mxu0 0.0
    %10221 = vmatprep.subr.mxu0 0.0
    %10222 = vmatpush2.msra.mxu0 0.0
    %10223 = vmatprep.subr.mxu0 0.0
    %10224 = vmatpush2.msra.mxu0 0.0
    %10225 = vmatprep.subr.mxu0 0.0
    %10226 = vmatpush2.msra.mxu0 0.0
    %10227 = vmatprep.subr.mxu0 0.0
    %10228 = vmatpush2.msra.mxu0 0.0
    %10229 = vmatprep.subr.mxu0 0.0
    %10230 = vmatpush2.msra.mxu0 0.0
    %10231 = vmatprep.subr.mxu0 0.0
    %10232 = vmatpush2.msra.mxu0 0.0
    %10233 = vmatprep.subr.mxu0 0.0
    %10234 = vmatpush2.msra.mxu0 0.0
    %10235 = vmatprep.subr.mxu0 0.0
    %10236 = vmatpush2.msra.mxu0 0.0
    %10237 = vmatprep.subr.mxu0 0.0
    %10238 = vmatpush2.msra.mxu0 0.0
    %10239 = vmatprep.subr.mxu0 0.0
    %10240 = vmatpush2.msra.mxu0 0.0
    %10241 = vmatprep.mubr.f32.mxu0 0.0
    %10242 = vmatmul.mubr.f32.gmra.mxu0 %v10175
    %v10243 = vpop.f32.mrf.mxu0
    %v10244 = vadd.f32 0.0, %v10243
    %v10245 = vpop.f32.mrf.mxu0
    %10246 = vdwg.mxu0
    %v10247 = vadd.f32 %v10168, %v10244
    %s10248 = scalar_lea.vmem %s7, 480
    %v10249 = vld [vmem:[%s10248] sm:$0xff]
    %v10250 = vld [vmem:[%s10248 + $0x8] sm:$0xff]
    %v10251 = vld [vmem:[%s10248 + $0x10] sm:$0xff]
    %v10252 = vld [vmem:[%s10248 + $0x18] sm:$0xff]
    %v10253 = vrot.slane %v9064, 6
    %v10254 = vsel %vm9076, %v10253, 0
    %10256 = vmatprep.subr.mxu0 0.0
    %10257 = vmatpush1.msra.mxu0 0.0
    %10258 = vmatprep.subr.mxu0 0.0
    %10259 = vmatpush1.msra.mxu0 0.0
    %10260 = vmatprep.subr.mxu0 0.0
    %10261 = vmatpush1.msra.mxu0 0.0
    %10262 = vmatprep.subr.mxu0 0.0
    %10263 = vmatpush1.msra.mxu0 0.0
    %10264 = vmatprep.subr.mxu0 0.0
    %10265 = vmatpush1.msra.mxu0 0.0
    %10266 = vmatprep.subr.mxu0 0.0
    %10267 = vmatpush1.msra.mxu0 0.0
    %10268 = vmatprep.subr.mxu0 0.0
    %10269 = vmatpush1.msra.mxu0 0.0
    %10270 = vmatprep.subr.mxu0 0.0
    %10271 = vmatpush1.msra.mxu0 0.0
    %10272 = vmatprep.subr.mxu0 0.0
    %10273 = vmatpush1.msra.mxu0 0.0
    %10274 = vmatprep.subr.mxu0 0.0
    %10275 = vmatpush1.msra.mxu0 0.0
    %10276 = vmatprep.subr.mxu0 0.0
    %10277 = vmatpush1.msra.mxu0 0.0
    %10278 = vmatprep.subr.mxu0 0.0
    %10279 = vmatpush1.msra.mxu0 0.0
    %10280 = vmatprep.subr.mxu0 0.0
    %10281 = vmatpush1.msra.mxu0 %v10252
    %10282 = vmatprep.subr.mxu0 0.0
    %10283 = vmatpush1.msra.mxu0 %v10251
    %10284 = vmatprep.subr.mxu0 0.0
    %10285 = vmatpush1.msra.mxu0 %v10250
    %10286 = vmatprep.subr.mxu0 0.0
    %10287 = vmatpush1.msra.mxu0 %v10249
    %10288 = vmatprep.subr.mxu0 0.0
    %10289 = vmatpush2.msra.mxu0 0.0
    %10290 = vmatprep.subr.mxu0 0.0
    %10291 = vmatpush2.msra.mxu0 0.0
    %10292 = vmatprep.subr.mxu0 0.0
    %10293 = vmatpush2.msra.mxu0 0.0
    %10294 = vmatprep.subr.mxu0 0.0
    %10295 = vmatpush2.msra.mxu0 0.0
    %10296 = vmatprep.subr.mxu0 0.0
    %10297 = vmatpush2.msra.mxu0 0.0
    %10298 = vmatprep.subr.mxu0 0.0
    %10299 = vmatpush2.msra.mxu0 0.0
    %10300 = vmatprep.subr.mxu0 0.0
    %10301 = vmatpush2.msra.mxu0 0.0
    %10302 = vmatprep.subr.mxu0 0.0
    %10303 = vmatpush2.msra.mxu0 0.0
    %10304 = vmatprep.subr.mxu0 0.0
    %10305 = vmatpush2.msra.mxu0 0.0
    %10306 = vmatprep.subr.mxu0 0.0
    %10307 = vmatpush2.msra.mxu0 0.0
    %10308 = vmatprep.subr.mxu0 0.0
    %10309 = vmatpush2.msra.mxu0 0.0
    %10310 = vmatprep.subr.mxu0 0.0
    %10311 = vmatpush2.msra.mxu0 0.0
    %10312 = vmatprep.subr.mxu0 0.0
    %10313 = vmatpush2.msra.mxu0 0.0
    %10314 = vmatprep.subr.mxu0 0.0
    %10315 = vmatpush2.msra.mxu0 0.0
    %10316 = vmatprep.subr.mxu0 0.0
    %10317 = vmatpush2.msra.mxu0 0.0
    %10318 = vmatprep.subr.mxu0 0.0
    %10319 = vmatpush2.msra.mxu0 0.0
    %10320 = vmatprep.mubr.f32.mxu0 0.0
    %10321 = vmatmul.mubr.f32.gmra.mxu0 %v10254
    %v10322 = vpop.f32.mrf.mxu0
    %v10323 = vadd.f32 0.0, %v10322
    %v10324 = vpop.f32.mrf.mxu0
    %10325 = vdwg.mxu0
    %v10326 = vadd.f32 %v10247, %v10323
    %v10327 = vld [vmem:[%s8] sm:$0x1]
    %v10329 = vlaneseq
    %v10330 = vshrl.u32 %v10329, 7
    %v10331 = vsub.s32 0, %v10330
    %v10332 = vrot.slane %v10327, %v10331
    %v10334 = vadd.f32 %v10326, %v10332
    %v10335 = vmul.f32 %v10334, 0.5
    %v10336 = vmul.f32 %v10334, 0.044715
    %v10337 = vmul.f32 %v10336, %v10334
    %v10338 = vmul.f32 %v10337, %v10334
    %v10339 = vadd.f32 %v10334, %v10338
    %v10340 = vmul.f32 %v10339, 0.7978846
    %v10341 = vtanh.pop %v10340
    %v10342 = vadd.f32 %v10341, 1.0
    %v10343 = vmul.f32 %v10335, %v10342
    %v10344 = vld [vmem:[%s9] sm:$0xff]
    %v10345 = vld [vmem:[%s9 + $0x8] sm:$0xff]
    %v10346 = vld [vmem:[%s9 + $0x10] sm:$0xff]
    %v10347 = vld [vmem:[%s9 + $0x18] sm:$0xff]
    %v10348 = vld [vmem:[%s9 + $0x20] sm:$0xff]
    %v10349 = vld [vmem:[%s9 + $0x28] sm:$0xff]
    %v10350 = vld [vmem:[%s9 + $0x30] sm:$0xff]
    %v10351 = vld [vmem:[%s9 + $0x38] sm:$0xff]
    %v10352 = vld [vmem:[%s10] sm:$0x1]
    %v10354 = vlaneseq
    %v10355 = vshrl.u32 %v10354, 7
    %v10356 = vsub.s32 0, %v10355
    %v10357 = vrot.slane %v10352, %v10356
    %v10360 = vsel %vm8755, %v10343, 0
    %10362 = vmatprep.subr.mxu0 0.0
    %10363 = vmatpush1.msra.mxu0 0.0
    %10364 = vmatprep.subr.mxu0 0.0
    %10365 = vmatpush1.msra.mxu0 0.0
    %10366 = vmatprep.subr.mxu0 0.0
    %10367 = vmatpush1.msra.mxu0 0.0
    %10368 = vmatprep.subr.mxu0 0.0
    %10369 = vmatpush1.msra.mxu0 0.0
    %10370 = vmatprep.subr.mxu0 0.0
    %10371 = vmatpush1.msra.mxu0 0.0
    %10372 = vmatprep.subr.mxu0 0.0
    %10373 = vmatpush1.msra.mxu0 0.0
    %10374 = vmatprep.subr.mxu0 0.0
    %10375 = vmatpush1.msra.mxu0 0.0
    %10376 = vmatprep.subr.mxu0 0.0
    %10377 = vmatpush1.msra.mxu0 0.0
    %10378 = vmatprep.subr.mxu0 0.0
    %10379 = vmatpush1.msra.mxu0 %v10351
    %10380 = vmatprep.subr.mxu0 0.0
    %10381 = vmatpush1.msra.mxu0 %v10350
    %10382 = vmatprep.subr.mxu0 0.0
    %10383 = vmatpush1.msra.mxu0 %v10349
    %10384 = vmatprep.subr.mxu0 0.0
    %10385 = vmatpush1.msra.mxu0 %v10348
    %10386 = vmatprep.subr.mxu0 0.0
    %10387 = vmatpush1.msra.mxu0 %v10347
    %10388 = vmatprep.subr.mxu0 0.0
    %10389 = vmatpush1.msra.mxu0 %v10346
    %10390 = vmatprep.subr.mxu0 0.0
    %10391 = vmatpush1.msra.mxu0 %v10345
    %10392 = vmatprep.subr.mxu0 0.0
    %10393 = vmatpush1.msra.mxu0 %v10344
    %10394 = vmatprep.subr.mxu0 0.0
    %10395 = vmatpush2.msra.mxu0 0.0
    %10396 = vmatprep.subr.mxu0 0.0
    %10397 = vmatpush2.msra.mxu0 0.0
    %10398 = vmatprep.subr.mxu0 0.0
    %10399 = vmatpush2.msra.mxu0 0.0
    %10400 = vmatprep.subr.mxu0 0.0
    %10401 = vmatpush2.msra.mxu0 0.0
    %10402 = vmatprep.subr.mxu0 0.0
    %10403 = vmatpush2.msra.mxu0 0.0
    %10404 = vmatprep.subr.mxu0 0.0
    %10405 = vmatpush2.msra.mxu0 0.0
    %10406 = vmatprep.subr.mxu0 0.0
    %10407 = vmatpush2.msra.mxu0 0.0
    %10408 = vmatprep.subr.mxu0 0.0
    %10409 = vmatpush2.msra.mxu0 0.0
    %10410 = vmatprep.subr.mxu0 0.0
    %10411 = vmatpush2.msra.mxu0 0.0
    %10412 = vmatprep.subr.mxu0 0.0
    %10413 = vmatpush2.msra.mxu0 0.0
    %10414 = vmatprep.subr.mxu0 0.0
    %10415 = vmatpush2.msra.mxu0 0.0
    %10416 = vmatprep.subr.mxu0 0.0
    %10417 = vmatpush2.msra.mxu0 0.0
    %10418 = vmatprep.subr.mxu0 0.0
    %10419 = vmatpush2.msra.mxu0 0.0
    %10420 = vmatprep.subr.mxu0 0.0
    %10421 = vmatpush2.msra.mxu0 0.0
    %10422 = vmatprep.subr.mxu0 0.0
    %10423 = vmatpush2.msra.mxu0 0.0
    %10424 = vmatprep.subr.mxu0 0.0
    %10425 = vmatpush2.msra.mxu0 0.0
    %10426 = vmatprep.mubr.f32.mxu0 0.0
    %10427 = vmatmul.mubr.f32.gmra.mxu0 %v10360
    %v10428 = vpop.f32.mrf.mxu0
    %v10429 = vadd.f32 %v10357, %v10428
    %v10430 = vpop.f32.mrf.mxu0
    %10431 = vdwg.mxu0
    %vm10432 = vcmask 254976
    %10433 = vst.msk [vmem:[#allocation5] sm:$0x3] %vm10432, %v10429
    // Predicated region
    $region50: #{tpu_custom_call.1} parent=1 // pred_check
      _
    $region51: #{tpu_custom_call.1} parent=1 // pred_check_branch
      %10435 = sbr.rel (0) target = $region53
    $region52: #{tpu_custom_call.1} parent=1 // pred_region
      %s10437 = ssub.s32 32, 32
      %10438 = vsyncadd [#allocation4], %s10437
      %s10440 = sshll.u32 [#allocation5], 4
      %s10441 = int_to_ptr.vmem [resolvable:$true] %s10440
      %10443 = dma.vmem_to_hbm [thread:$0]  %s10441, 32, %s11, [#allocation4]
    $region53: #{tpu_custom_call.1} parent=1 // pred_fallthru
      _
    // Predicated region
    $region54: #{tpu_custom_call.1} parent=1 // pred_check
      _
    $region55: #{tpu_custom_call.1} parent=1 // pred_check_branch
      %10445 = sbr.rel (0) target = $region57
    $region56: #{tpu_custom_call.1} parent=1 // pred_region
      %10446 = dma.done [#allocation4], 32
    $region57: #{tpu_custom_call.1} parent=1 // pred_fallthru
      _
    %10447 = vsyncpa [#allocation3], 1
    %10448 = vsyncpa [#allocation4], 1

</llo_original>
